<compile_context>
chip_gen: v6e
topology: v6e:2x2x1
jax: 0.10.0
libtpu: 0.0.40
codegen_flags: <defaults>
</compile_context>

<pallas_src>
import functools

import jax
import jax.numpy as jnp
from jax.experimental import pallas as pl
from jax.experimental.pallas import tpu as pltpu


def _round_up(x, m):
    return (x + m - 1) // m * m


# ---------------------------------------------------------------------------
# Pallas kernels: fused  out = relu( (A @ B) * scale + bias (+ residual) )
# A, B, residual are bf16; matmul accumulates in fp32; epilogue in fp32.
# Whole K is resident (no reduction grid axis), so no accumulator scratch.
# ---------------------------------------------------------------------------
def _mm_bn_act_kernel(a_ref, b_ref, scale_ref, bias_ref, o_ref, *, relu):
    out = jnp.dot(a_ref[...], b_ref[...], preferred_element_type=jnp.float32)
    out = out * scale_ref[...] + bias_ref[...]
    if relu:
        out = jnp.maximum(out, 0.0)
    o_ref[...] = out.astype(o_ref.dtype)


def _mm_bn_act_res_kernel(a_ref, b_ref, scale_ref, bias_ref, res_ref, o_ref,
                          *, relu):
    out = jnp.dot(a_ref[...], b_ref[...], preferred_element_type=jnp.float32)
    out = out * scale_ref[...] + bias_ref[...] + res_ref[...].astype(jnp.float32)
    if relu:
        out = jnp.maximum(out, 0.0)
    o_ref[...] = out.astype(o_ref.dtype)


def matmul_bn_act(a, b_p, scale_p, bias_p, n_out, residual=None, relu=False):
    """a: [M, K] (any float dtype), b_p: pre-padded bf16 [Kp, Np],
    scale_p/bias_p: fp32 [1, Np], residual: [M, n_out] or None.
    Returns bf16 [M, n_out]."""
    M, K = a.shape
    Kp, Np = b_p.shape

    # M tiling (K and the weight are fully resident; Kp <= ~2.7k in this model).
    if M >= 1024:
        tm = 512
    elif M >= 256:
        tm = 256
    else:
        tm = _round_up(max(M, 16), 16)
    Mp = _round_up(M, tm)

    a = a.astype(jnp.bfloat16)
    if (M, K) != (Mp, Kp):
        a = jnp.pad(a, ((0, Mp - M), (0, Kp - K)))

    operands = [a, b_p, scale_p, bias_p]
    in_specs = [
        pl.BlockSpec((tm, Kp), lambda i: (i, 0)),   # A tile
        pl.BlockSpec((Kp, Np), lambda i: (0, 0)),   # whole weight, resident
        pl.BlockSpec((1, Np), lambda i: (0, 0)),    # BN scale
        pl.BlockSpec((1, Np), lambda i: (0, 0)),    # BN bias
    ]

    if residual is not None:
        r = residual.astype(jnp.bfloat16)
        rm, rn = r.shape
        if (rm, rn) != (Mp, Np):
            r = jnp.pad(r, ((0, Mp - rm), (0, Np - rn)))
        operands.append(r)
        in_specs.append(pl.BlockSpec((tm, Np), lambda i: (i, 0)))
        kernel = functools.partial(_mm_bn_act_res_kernel, relu=relu)
    else:
        kernel = functools.partial(_mm_bn_act_kernel, relu=relu)

    out = pl.pallas_call(
        kernel,
        out_shape=jax.ShapeDtypeStruct((Mp, Np), jnp.bfloat16),
        grid_spec=pltpu.PrefetchScalarGridSpec(
            num_scalar_prefetch=0,
            grid=(Mp // tm,),
            in_specs=in_specs,
            out_specs=pl.BlockSpec((tm, Np), lambda i: (i, 0)),
        ),
        compiler_params=pltpu.CompilerParams(
            dimension_semantics=("parallel",)),
    )(*operands)
    return out[:M, :n_out]


# ---------------------------------------------------------------------------
# Conv2d wrapper (matmul hot path in Pallas).  Weights are pre-packed at init.
# ---------------------------------------------------------------------------
def conv2d(x, layer, stride=1, relu=False, residual=None):
    """x: [N, H, W, Cin]; layer: packed conv dict. padding = KH//2 (torch)."""
    N, H, W, Cin = x.shape
    KH, KW = layer['khw']
    Cout = layer['cout']
    x = x.astype(jnp.bfloat16)

    if KH == 1 and KW == 1 and stride == 1:
        Ho, Wo = H, W
        a = x.reshape(N * H * W, Cin)            # free reshape (C is minor)
    else:
        ph, pw = KH // 2, KW // 2
        xp = jnp.pad(x, ((0, 0), (ph, ph), (pw, pw), (0, 0)))
        Ho = (H + 2 * ph - KH) // stride + 1
        Wo = (W + 2 * pw - KW) // stride + 1
        # TODO(synk): im2col is still materialized (bf16, so half the bytes of
        # before); a direct tap-accumulating conv kernel would avoid the 9x
        # activation blow-up at large resolutions.
        patches = [
            xp[:, kh:kh + stride * (Ho - 1) + 1:stride,
               kw:kw + stride * (Wo - 1) + 1:stride, :]
            for kh in range(KH) for kw in range(KW)
        ]
        a = jnp.concatenate(patches, axis=-1).reshape(N * Ho * Wo, KH * KW * Cin)

    res2d = None
    if residual is not None:
        res2d = residual.reshape(N * Ho * Wo, Cout)

    out = matmul_bn_act(a, layer['w'], layer['s'], layer['b'], Cout,
                        residual=res2d, relu=relu)
    return out.reshape(N, Ho, Wo, Cout)


# ---------------------------------------------------------------------------
# Bilinear upsample (F.interpolate mode='bilinear', align_corners=False) as
# two separable dense matmuls (no lane-scrambling gathers).
# ---------------------------------------------------------------------------
def _interp_matrix(out_size, in_size):
    pos = (jnp.arange(out_size, dtype=jnp.float32) + 0.5) * (in_size / out_size) - 0.5
    pos = jnp.clip(pos, 0.0, float(in_size - 1))
    lo = jnp.floor(pos).astype(jnp.int32)
    hi = jnp.minimum(lo + 1, in_size - 1)
    frac = pos - lo.astype(jnp.float32)
    rows = jnp.arange(out_size)
    m = jnp.zeros((out_size, in_size), jnp.float32)
    m = m.at[rows, lo].add(1.0 - frac)
    m = m.at[rows, hi].add(frac)
    return m


def bilinear_upsample(x, out_h, out_w):
    N, H, W, C = x.shape
    wy = _interp_matrix(out_h, H)                       # [out_h, H]
    wx = _interp_matrix(out_w, W)                       # [out_w, W]
    t = jnp.einsum('oh,nhwc->nowc', wy, x)
    return jnp.einsum('pw,nowc->nopc', wx, t)


# ---------------------------------------------------------------------------
# Parameter construction (deterministic, synthetic) with weight pre-packing:
# weight -> padded bf16 (Kp, Np); folded BN scale/bias -> fp32 (1, Np).
# ---------------------------------------------------------------------------
def _conv_w(key, kh, kw, cin, cout):
    return jax.random.normal(key, (kh, kw, cin, cout), jnp.float32) / jnp.sqrt(
        float(kh * kw * cin))


def _bn_fold(key, c, eps=1e-5):
    k1, k2, k3, k4 = jax.random.split(key, 4)
    gamma = 1.0 + 0.1 * jax.random.normal(k1, (c,), jnp.float32)
    beta = 0.1 * jax.random.normal(k2, (c,), jnp.float32)
    mean = 0.1 * jax.random.normal(k3, (c,), jnp.float32)
    var = 1.0 + 0.1 * jax.random.uniform(k4, (c,), jnp.float32)
    scale = gamma / jnp.sqrt(var + eps)
    bias = beta - mean * scale
    return scale, bias


def _pack_conv(w, scale, bias):
    KH, KW, Cin, Cout = w.shape
    K = KH * KW * Cin
    Kp = _round_up(max(K, 128), 128)
    Np = _round_up(max(Cout, 128), 128)
    wm = jnp.zeros((Kp, Np), jnp.bfloat16)
    wm = wm.at[:K, :Cout].set(w.reshape(K, Cout).astype(jnp.bfloat16))
    s = jnp.ones((1, Np), jnp.float32).at[0, :Cout].set(scale)
    b = jnp.zeros((1, Np), jnp.float32).at[0, :Cout].set(bias)
    return {'w': wm, 's': s, 'b': b, 'khw': (KH, KW), 'cout': Cout}


def init_params(key):
    keys = iter(jax.random.split(key, 256))
    nk = lambda: next(keys)
    p = {}

    # simplified HRNet backbone stem (stand-in for mmseg build_backbone)
    stem = []
    for cin, cout in [(3, 64), (64, 64), (64, 72), (72, 144), (144, 144)]:
        s, b = _bn_fold(nk(), cout)
        stem.append(_pack_conv(_conv_w(nk(), 3, 3, cin, cout), s, b))
    p['stem'] = stem

    # resCD: 6 ResBlocks, first one with 1x1 downsample (288 -> 144)
    blocks = []
    inp = 288
    for i in range(6):
        s1, b1 = _bn_fold(nk(), 144)
        s2, b2 = _bn_fold(nk(), 144)
        blk = {
            'c1': _pack_conv(_conv_w(nk(), 3, 3, inp, 144), s1, b1),
            'c2': _pack_conv(_conv_w(nk(), 3, 3, 144, 144), s2, b2),
        }
        if i == 0:
            ds, db = _bn_fold(nk(), 144)
            blk['ds'] = _pack_conv(_conv_w(nk(), 1, 1, inp, 144), ds, db)
        blocks.append(blk)
        inp = 144
    p['resCD'] = blocks

    # classifierCD: conv1x1(144->72)+bias+BN+ReLU, conv1x1(72->1)+bias
    w = _conv_w(nk(), 1, 1, 144, 72)
    conv_b = 0.05 * jax.random.normal(nk(), (72,), jnp.float32)
    bs, bb = _bn_fold(nk(), 72)
    p['cd1'] = _pack_conv(w, bs, bb + conv_b * bs)   # fold conv bias through BN
    w2 = _conv_w(nk(), 1, 1, 72, 1)
    b2 = 0.05 * jax.random.normal(nk(), (1,), jnp.float32)
    p['cd2'] = _pack_conv(w2, jnp.ones((1,), jnp.float32), b2)

    # classifier1 / classifier2: conv1x1(144 -> 7) with bias
    for name in ('cls1', 'cls2'):
        w = _conv_w(nk(), 1, 1, 144, 7)
        b = 0.05 * jax.random.normal(nk(), (7,), jnp.float32)
        p[name] = _pack_conv(w, jnp.ones((7,), jnp.float32), b)
    return p


# ---------------------------------------------------------------------------
# Forward
# ---------------------------------------------------------------------------
def backbone_forward(p, x):
    # stride-32, 144-channel "last feature" (stand-in for HRNet outputs[-1])
    for layer in p['stem']:
        x = conv2d(x, layer, stride=2, relu=True)
    return x


def resCD_forward(p, x):
    for i, blk in enumerate(p['resCD']):
        identity = conv2d(x, blk['ds']) if i == 0 else x   # 1x1 downsample + BN
        out = conv2d(x, blk['c1'], relu=True)
        x = conv2d(out, blk['c2'], relu=True, residual=identity)  # bn2 + add + relu
    return x


def hrnet_forward(p, x1_nchw, x2_nchw):
    B = x1_nchw.shape[0]
    x1 = jnp.transpose(x1_nchw, (0, 2, 3, 1))
    x2 = jnp.transpose(x2_nchw, (0, 2, 3, 1))

    # batch the two backbone passes so the parallel grid axis has extent >= 2
    f = backbone_forward(p, jnp.concatenate([x1, x2], axis=0))
    f1, f2 = f[:B], f[B:]

    # CD_forward
    xcat = jnp.concatenate([f1, f2], axis=-1)   # torch.cat(dim=1) == channel cat
    xcd = resCD_forward(p, xcat)
    change = conv2d(xcd, p['cd1'], relu=True)
    change = conv2d(change, p['cd2'])

    out1 = conv2d(f1, p['cls1'])
    out2 = conv2d(f2, p['cls2'])

    H, W = x1_nchw.shape[2], x1_nchw.shape[3]
    change = bilinear_upsample(change.astype(jnp.float32), H, W)
    out1 = bilinear_upsample(out1.astype(jnp.float32), H, W)
    out2 = bilinear_upsample(out2.astype(jnp.float32), H, W)

    to_nchw = lambda t: jnp.transpose(t, (0, 3, 1, 2))
    return to_nchw(change), to_nchw(out1), to_nchw(out2)


if __name__ == "__main__":
    key = jax.random.PRNGKey(0)
    kp, kx1, kx2 = jax.random.split(key, 3)
    params = init_params(kp)

    # small example consistent with the module: NCHW, 3 input channels
    x1 = jax.random.normal(kx1, (2, 3, 64, 64), jnp.float32)
    x2 = jax.random.normal(kx2, (2, 3, 64, 64), jnp.float32)

    # params bound via partial (weights become compile-time constants; the
    # Python shape metadata in the dict never enters the traced arguments).
    fwd = jax.jit(functools.partial(hrnet_forward, params))
    change, out1, out2 = fwd(x1, x2)
    jax.block_until_ready((change, out1, out2))

    assert change.shape == (2, 1, 64, 64)
    assert out1.shape == (2, 7, 64, 64)
    assert out2.shape == (2, 7, 64, 64)
    print("KERNEL_OK")
</pallas_src>

<mosaic_0001>
module attributes {stable_mosaic.version = 11 : i64} {
  func.func private @main(%arg0: i32) attributes {dimension_semantics = [#tpu.dimension_semantics<core_parallel>], iteration_bounds = array<i64: 2>, tpu.core_type = #tpu.core_type<sc_scalar_subcore>, window_params = []} {
    return
  }
}

module attributes {stable_mosaic.version = 11 : i64} {
  func.func private @main(%arg0: i32) attributes {dimension_semantics = [#tpu.dimension_semantics<core_parallel>], iteration_bounds = array<i64: 2>, tpu.core_type = #tpu.core_type<sc_scalar_subcore>, window_params = []} {
    return
  }
}

module attributes {stable_mosaic.version = 11 : i64} {
  func.func @_mm_bn_act_kernel(%arg0: i32, %arg1: memref<512x128xbf16, #tpu.memory_space<vmem>>, %arg2: memref<128x128xbf16, #tpu.memory_space<vmem>>, %arg3: memref<1x128xf32, #tpu.memory_space<vmem>>, %arg4: memref<1x128xf32, #tpu.memory_space<vmem>>, %arg5: memref<512x128xbf16, #tpu.memory_space<vmem>>) attributes {dimension_semantics = [#tpu.dimension_semantics<parallel>], iteration_bounds = array<i64: 8>, scalar_prefetch = 0 : i64, scratch_operands = 0 : i64, tpu.core_type = #tpu.core_type<tc>, window_params = [{transform_indices = @transform_0, window_bounds = array<i64: 512, 128>}, {pipeline_mode = #tpu.pipeline_mode<synchronous>, transform_indices = @transform_1, window_bounds = array<i64: 128, 128>}, {pipeline_mode = #tpu.pipeline_mode<synchronous>, transform_indices = @transform_2, window_bounds = array<i64: 1, 128>}, {pipeline_mode = #tpu.pipeline_mode<synchronous>, transform_indices = @transform_3, window_bounds = array<i64: 1, 128>}, {transform_indices = @transform_4, window_bounds = array<i64: 512, 128>}]} {
    %c0 = arith.constant 0 : index
    %c0_0 = arith.constant 0 : index
    %0 = vector.load %arg1[%c0, %c0_0] : memref<512x128xbf16, #tpu.memory_space<vmem>>, vector<512x128xbf16>
    %c0_1 = arith.constant 0 : index
    %c0_2 = arith.constant 0 : index
    %1 = vector.load %arg2[%c0_1, %c0_2] : memref<128x128xbf16, #tpu.memory_space<vmem>>, vector<128x128xbf16>
    %cst = arith.constant dense<0.000000e+00> : vector<512x128xf32>
    %2 = tpu.matmul %0, %1, %cst {dimension_numbers = #tpu.dot_dimension_numbers<[1], [0], [0], [1], [0, 0, 1, 1], [], []>} : vector<512x128xbf16>, vector<128x128xbf16>, vector<512x128xf32> -> vector<512x128xf32>
    %c0_3 = arith.constant 0 : index
    %c0_4 = arith.constant 0 : index
    %3 = vector.load %arg3[%c0_3, %c0_4] : memref<1x128xf32, #tpu.memory_space<vmem>>, vector<1x128xf32>
    %4 = vector.broadcast %3 : vector<1x128xf32> to vector<512x128xf32>
    %5 = arith.mulf %2, %4 : vector<512x128xf32>
    %c0_5 = arith.constant 0 : index
    %c0_6 = arith.constant 0 : index
    %6 = vector.load %arg4[%c0_5, %c0_6] : memref<1x128xf32, #tpu.memory_space<vmem>>, vector<1x128xf32>
    %7 = vector.broadcast %6 : vector<1x128xf32> to vector<512x128xf32>
    %8 = arith.addf %5, %7 : vector<512x128xf32>
    %cst_7 = arith.constant 0.000000e+00 : f32
    %9 = vector.broadcast %cst_7 : f32 to vector<512x128xf32>
    %10 = arith.maximumf %8, %9 : vector<512x128xf32>
    %11 = arith.truncf %10 : vector<512x128xf32> to vector<512x128xbf16>
    %c0_8 = arith.constant 0 : index
    %c0_9 = arith.constant 0 : index
    %12 = vector.load %arg5[%c0_8, %c0_9] : memref<512x128xbf16, #tpu.memory_space<vmem>>, vector<512x128xbf16>
    tpu.vector_store %arg5[%c0_8, %c0_9], %11 {strides = array<i32>} : memref<512x128xbf16, #tpu.memory_space<vmem>>, vector<512x128xbf16>,
    return
  }
  func.func @transform_0(%arg0: i32) -> (i32, i32) {
    %c0_i32 = arith.constant 0 : i32
    %c0_i32_0 = arith.constant 0 : i32
    return %arg0, %c0_i32 : i32, i32
  }
  func.func @transform_1(%arg0: i32) -> (i32, i32) {
    %c0_i32 = arith.constant 0 : i32
    %c0_i32_0 = arith.constant 0 : i32
    %c0_i32_1 = arith.constant 0 : i32
    return %c0_i32, %c0_i32_0 : i32, i32
  }
  func.func @transform_2(%arg0: i32) -> (i32, i32) {
    %c0_i32 = arith.constant 0 : i32
    %c0_i32_0 = arith.constant 0 : i32
    %c0_i32_1 = arith.constant 0 : i32
    return %c0_i32, %c0_i32_0 : i32, i32
  }
  func.func @transform_3(%arg0: i32) -> (i32, i32) {
    %c0_i32 = arith.constant 0 : i32
    %c0_i32_0 = arith.constant 0 : i32
    %c0_i32_1 = arith.constant 0 : i32
    return %c0_i32, %c0_i32_0 : i32, i32
  }
  func.func @transform_4(%arg0: i32) -> (i32, i32) {
    %c0_i32 = arith.constant 0 : i32
    %c0_i32_0 = arith.constant 0 : i32
    return %arg0, %c0_i32 : i32, i32
  }
}

module attributes {stable_mosaic.version = 11 : i64} {
  func.func @_mm_bn_act_kernel(%arg0: i32, %arg1: memref<512x640xbf16, #tpu.memory_space<vmem>>, %arg2: memref<640x128xbf16, #tpu.memory_space<vmem>>, %arg3: memref<1x128xf32, #tpu.memory_space<vmem>>, %arg4: memref<1x128xf32, #tpu.memory_space<vmem>>, %arg5: memref<512x128xbf16, #tpu.memory_space<vmem>>) attributes {dimension_semantics = [#tpu.dimension_semantics<parallel>], iteration_bounds = array<i64: 2>, scalar_prefetch = 0 : i64, scratch_operands = 0 : i64, tpu.core_type = #tpu.core_type<tc>, window_params = [{transform_indices = @transform_0, window_bounds = array<i64: 512, 640>}, {pipeline_mode = #tpu.pipeline_mode<synchronous>, transform_indices = @transform_1, window_bounds = array<i64: 640, 128>}, {pipeline_mode = #tpu.pipeline_mode<synchronous>, transform_indices = @transform_2, window_bounds = array<i64: 1, 128>}, {pipeline_mode = #tpu.pipeline_mode<synchronous>, transform_indices = @transform_3, window_bounds = array<i64: 1, 128>}, {transform_indices = @transform_4, window_bounds = array<i64: 512, 128>}]} {
    %c0 = arith.constant 0 : index
    %c0_0 = arith.constant 0 : index
    %0 = vector.load %arg1[%c0, %c0_0] : memref<512x640xbf16, #tpu.memory_space<vmem>>, vector<512x640xbf16>
    %c0_1 = arith.constant 0 : index
    %c0_2 = arith.constant 0 : index
    %1 = vector.load %arg2[%c0_1, %c0_2] : memref<640x128xbf16, #tpu.memory_space<vmem>>, vector<640x128xbf16>
    %cst = arith.constant dense<0.000000e+00> : vector<512x128xf32>
    %2 = tpu.matmul %0, %1, %cst {dimension_numbers = #tpu.dot_dimension_numbers<[1], [0], [0], [1], [0, 0, 1, 1], [], []>} : vector<512x640xbf16>, vector<640x128xbf16>, vector<512x128xf32> -> vector<512x128xf32>
    %c0_3 = arith.constant 0 : index
    %c0_4 = arith.constant 0 : index
    %3 = vector.load %arg3[%c0_3, %c0_4] : memref<1x128xf32, #tpu.memory_space<vmem>>, vector<1x128xf32>
    %4 = vector.broadcast %3 : vector<1x128xf32> to vector<512x128xf32>
    %5 = arith.mulf %2, %4 : vector<512x128xf32>
    %c0_5 = arith.constant 0 : index
    %c0_6 = arith.constant 0 : index
    %6 = vector.load %arg4[%c0_5, %c0_6] : memref<1x128xf32, #tpu.memory_space<vmem>>, vector<1x128xf32>
    %7 = vector.broadcast %6 : vector<1x128xf32> to vector<512x128xf32>
    %8 = arith.addf %5, %7 : vector<512x128xf32>
    %cst_7 = arith.constant 0.000000e+00 : f32
    %9 = vector.broadcast %cst_7 : f32 to vector<512x128xf32>
    %10 = arith.maximumf %8, %9 : vector<512x128xf32>
    %11 = arith.truncf %10 : vector<512x128xf32> to vector<512x128xbf16>
    %c0_8 = arith.constant 0 : index
    %c0_9 = arith.constant 0 : index
    %12 = vector.load %arg5[%c0_8, %c0_9] : memref<512x128xbf16, #tpu.memory_space<vmem>>, vector<512x128xbf16>
    tpu.vector_store %arg5[%c0_8, %c0_9], %11 {strides = array<i32>} : memref<512x128xbf16, #tpu.memory_space<vmem>>, vector<512x128xbf16>,
    return
  }
  func.func @transform_0(%arg0: i32) -> (i32, i32) {
    %c0_i32 = arith.constant 0 : i32
    %c0_i32_0 = arith.constant 0 : i32
    return %arg0, %c0_i32 : i32, i32
  }
  func.func @transform_1(%arg0: i32) -> (i32, i32) {
    %c0_i32 = arith.constant 0 : i32
    %c0_i32_0 = arith.constant 0 : i32
    %c0_i32_1 = arith.constant 0 : i32
    return %c0_i32, %c0_i32_0 : i32, i32
  }
  func.func @transform_2(%arg0: i32) -> (i32, i32) {
    %c0_i32 = arith.constant 0 : i32
    %c0_i32_0 = arith.constant 0 : i32
    %c0_i32_1 = arith.constant 0 : i32
    return %c0_i32, %c0_i32_0 : i32, i32
  }
  func.func @transform_3(%arg0: i32) -> (i32, i32) {
    %c0_i32 = arith.constant 0 : i32
    %c0_i32_0 = arith.constant 0 : i32
    %c0_i32_1 = arith.constant 0 : i32
    return %c0_i32, %c0_i32_0 : i32, i32
  }
  func.func @transform_4(%arg0: i32) -> (i32, i32) {
    %c0_i32 = arith.constant 0 : i32
    %c0_i32_0 = arith.constant 0 : i32
    return %arg0, %c0_i32 : i32, i32
  }
}

module attributes {stable_mosaic.version = 11 : i64} {
  func.func @_mm_bn_act_kernel(%arg0: i32, %arg1: memref<256x640xbf16, #tpu.memory_space<vmem>>, %arg2: memref<640x128xbf16, #tpu.memory_space<vmem>>, %arg3: memref<1x128xf32, #tpu.memory_space<vmem>>, %arg4: memref<1x128xf32, #tpu.memory_space<vmem>>, %arg5: memref<256x128xbf16, #tpu.memory_space<vmem>>) attributes {dimension_semantics = [#tpu.dimension_semantics<parallel>], iteration_bounds = array<i64: 1>, scalar_prefetch = 0 : i64, scratch_operands = 0 : i64, tpu.core_type = #tpu.core_type<tc>, window_params = [{transform_indices = @transform_0, window_bounds = array<i64: 256, 640>}, {pipeline_mode = #tpu.pipeline_mode<synchronous>, transform_indices = @transform_1, window_bounds = array<i64: 640, 128>}, {pipeline_mode = #tpu.pipeline_mode<synchronous>, transform_indices = @transform_2, window_bounds = array<i64: 1, 128>}, {pipeline_mode = #tpu.pipeline_mode<synchronous>, transform_indices = @transform_3, window_bounds = array<i64: 1, 128>}, {transform_indices = @transform_4, window_bounds = array<i64: 256, 128>}]} {
    %c0 = arith.constant 0 : index
    %c0_0 = arith.constant 0 : index
    %0 = vector.load %arg1[%c0, %c0_0] : memref<256x640xbf16, #tpu.memory_space<vmem>>, vector<256x640xbf16>
    %c0_1 = arith.constant 0 : index
    %c0_2 = arith.constant 0 : index
    %1 = vector.load %arg2[%c0_1, %c0_2] : memref<640x128xbf16, #tpu.memory_space<vmem>>, vector<640x128xbf16>
    %cst = arith.constant dense<0.000000e+00> : vector<256x128xf32>
    %2 = tpu.matmul %0, %1, %cst {dimension_numbers = #tpu.dot_dimension_numbers<[1], [0], [0], [1], [0, 0, 1, 1], [], []>} : vector<256x640xbf16>, vector<640x128xbf16>, vector<256x128xf32> -> vector<256x128xf32>
    %c0_3 = arith.constant 0 : index
    %c0_4 = arith.constant 0 : index
    %3 = vector.load %arg3[%c0_3, %c0_4] : memref<1x128xf32, #tpu.memory_space<vmem>>, vector<1x128xf32>
    %4 = vector.broadcast %3 : vector<1x128xf32> to vector<256x128xf32>
    %5 = arith.mulf %2, %4 : vector<256x128xf32>
    %c0_5 = arith.constant 0 : index
    %c0_6 = arith.constant 0 : index
    %6 = vector.load %arg4[%c0_5, %c0_6] : memref<1x128xf32, #tpu.memory_space<vmem>>, vector<1x128xf32>
    %7 = vector.broadcast %6 : vector<1x128xf32> to vector<256x128xf32>
    %8 = arith.addf %5, %7 : vector<256x128xf32>
    %cst_7 = arith.constant 0.000000e+00 : f32
    %9 = vector.broadcast %cst_7 : f32 to vector<256x128xf32>
    %10 = arith.maximumf %8, %9 : vector<256x128xf32>
    %11 = arith.truncf %10 : vector<256x128xf32> to vector<256x128xbf16>
    %c0_8 = arith.constant 0 : index
    %c0_9 = arith.constant 0 : index
    %12 = vector.load %arg5[%c0_8, %c0_9] : memref<256x128xbf16, #tpu.memory_space<vmem>>, vector<256x128xbf16>
    tpu.vector_store %arg5[%c0_8, %c0_9], %11 {strides = array<i32>} : memref<256x128xbf16, #tpu.memory_space<vmem>>, vector<256x128xbf16>,
    return
  }
  func.func @transform_0(%arg0: i32) -> (i32, i32) {
    %c0_i32 = arith.constant 0 : i32
    %c0_i32_0 = arith.constant 0 : i32
    return %arg0, %c0_i32 : i32, i32
  }
  func.func @transform_1(%arg0: i32) -> (i32, i32) {
    %c0_i32 = arith.constant 0 : i32
    %c0_i32_0 = arith.constant 0 : i32
    %c0_i32_1 = arith.constant 0 : i32
    return %c0_i32, %c0_i32_0 : i32, i32
  }
  func.func @transform_2(%arg0: i32) -> (i32, i32) {
    %c0_i32 = arith.constant 0 : i32
    %c0_i32_0 = arith.constant 0 : i32
    %c0_i32_1 = arith.constant 0 : i32
    return %c0_i32, %c0_i32_0 : i32, i32
  }
  func.func @transform_3(%arg0: i32) -> (i32, i32) {
    %c0_i32 = arith.constant 0 : i32
    %c0_i32_0 = arith.constant 0 : i32
    %c0_i32_1 = arith.constant 0 : i32
    return %c0_i32, %c0_i32_0 : i32, i32
  }
  func.func @transform_4(%arg0: i32) -> (i32, i32) {
    %c0_i32 = arith.constant 0 : i32
    %c0_i32_0 = arith.constant 0 : i32
    return %arg0, %c0_i32 : i32, i32
  }
}

module attributes {stable_mosaic.version = 11 : i64} {
  func.func @_mm_bn_act_kernel(%arg0: i32, %arg1: memref<64x768xbf16, #tpu.memory_space<vmem>>, %arg2: memref<768x256xbf16, #tpu.memory_space<vmem>>, %arg3: memref<1x256xf32, #tpu.memory_space<vmem>>, %arg4: memref<1x256xf32, #tpu.memory_space<vmem>>, %arg5: memref<64x256xbf16, #tpu.memory_space<vmem>>) attributes {dimension_semantics = [#tpu.dimension_semantics<parallel>], iteration_bounds = array<i64: 1>, scalar_prefetch = 0 : i64, scratch_operands = 0 : i64, tpu.core_type = #tpu.core_type<tc>, window_params = [{transform_indices = @transform_0, window_bounds = array<i64: 64, 768>}, {pipeline_mode = #tpu.pipeline_mode<synchronous>, transform_indices = @transform_1, window_bounds = array<i64: 768, 256>}, {pipeline_mode = #tpu.pipeline_mode<synchronous>, transform_indices = @transform_2, window_bounds = array<i64: 1, 256>}, {pipeline_mode = #tpu.pipeline_mode<synchronous>, transform_indices = @transform_3, window_bounds = array<i64: 1, 256>}, {transform_indices = @transform_4, window_bounds = array<i64: 64, 256>}]} {
    %c0 = arith.constant 0 : index
    %c0_0 = arith.constant 0 : index
    %0 = vector.load %arg1[%c0, %c0_0] : memref<64x768xbf16, #tpu.memory_space<vmem>>, vector<64x768xbf16>
    %c0_1 = arith.constant 0 : index
    %c0_2 = arith.constant 0 : index
    %1 = vector.load %arg2[%c0_1, %c0_2] : memref<768x256xbf16, #tpu.memory_space<vmem>>, vector<768x256xbf16>
    %cst = arith.constant dense<0.000000e+00> : vector<64x256xf32>
    %2 = tpu.matmul %0, %1, %cst {dimension_numbers = #tpu.dot_dimension_numbers<[1], [0], [0], [1], [0, 0, 1, 1], [], []>} : vector<64x768xbf16>, vector<768x256xbf16>, vector<64x256xf32> -> vector<64x256xf32>
    %c0_3 = arith.constant 0 : index
    %c0_4 = arith.constant 0 : index
    %3 = vector.load %arg3[%c0_3, %c0_4] : memref<1x256xf32, #tpu.memory_space<vmem>>, vector<1x256xf32>
    %4 = vector.broadcast %3 : vector<1x256xf32> to vector<64x256xf32>
    %5 = arith.mulf %2, %4 : vector<64x256xf32>
    %c0_5 = arith.constant 0 : index
    %c0_6 = arith.constant 0 : index
    %6 = vector.load %arg4[%c0_5, %c0_6] : memref<1x256xf32, #tpu.memory_space<vmem>>, vector<1x256xf32>
    %7 = vector.broadcast %6 : vector<1x256xf32> to vector<64x256xf32>
    %8 = arith.addf %5, %7 : vector<64x256xf32>
    %cst_7 = arith.constant 0.000000e+00 : f32
    %9 = vector.broadcast %cst_7 : f32 to vector<64x256xf32>
    %10 = arith.maximumf %8, %9 : vector<64x256xf32>
    %11 = arith.truncf %10 : vector<64x256xf32> to vector<64x256xbf16>
    %c0_8 = arith.constant 0 : index
    %c0_9 = arith.constant 0 : index
    %12 = vector.load %arg5[%c0_8, %c0_9] : memref<64x256xbf16, #tpu.memory_space<vmem>>, vector<64x256xbf16>
    tpu.vector_store %arg5[%c0_8, %c0_9], %11 {strides = array<i32>} : memref<64x256xbf16, #tpu.memory_space<vmem>>, vector<64x256xbf16>,
    return
  }
  func.func @transform_0(%arg0: i32) -> (i32, i32) {
    %c0_i32 = arith.constant 0 : i32
    %c0_i32_0 = arith.constant 0 : i32
    return %arg0, %c0_i32 : i32, i32
  }
  func.func @transform_1(%arg0: i32) -> (i32, i32) {
    %c0_i32 = arith.constant 0 : i32
    %c0_i32_0 = arith.constant 0 : i32
    %c0_i32_1 = arith.constant 0 : i32
    return %c0_i32, %c0_i32_0 : i32, i32
  }
  func.func @transform_2(%arg0: i32) -> (i32, i32) {
    %c0_i32 = arith.constant 0 : i32
    %c0_i32_0 = arith.constant 0 : i32
    %c0_i32_1 = arith.constant 0 : i32
    return %c0_i32, %c0_i32_0 : i32, i32
  }
  func.func @transform_3(%arg0: i32) -> (i32, i32) {
    %c0_i32 = arith.constant 0 : i32
    %c0_i32_0 = arith.constant 0 : i32
    %c0_i32_1 = arith.constant 0 : i32
    return %c0_i32, %c0_i32_0 : i32, i32
  }
  func.func @transform_4(%arg0: i32) -> (i32, i32) {
    %c0_i32 = arith.constant 0 : i32
    %c0_i32_0 = arith.constant 0 : i32
    return %arg0, %c0_i32 : i32, i32
  }
}

module attributes {stable_mosaic.version = 11 : i64} {
  func.func @_mm_bn_act_kernel(%arg0: i32, %arg1: memref<16x1408xbf16, #tpu.memory_space<vmem>>, %arg2: memref<1408x256xbf16, #tpu.memory_space<vmem>>, %arg3: memref<1x256xf32, #tpu.memory_space<vmem>>, %arg4: memref<1x256xf32, #tpu.memory_space<vmem>>, %arg5: memref<16x256xbf16, #tpu.memory_space<vmem>>) attributes {dimension_semantics = [#tpu.dimension_semantics<parallel>], iteration_bounds = array<i64: 1>, scalar_prefetch = 0 : i64, scratch_operands = 0 : i64, tpu.core_type = #tpu.core_type<tc>, window_params = [{transform_indices = @transform_0, window_bounds = array<i64: 16, 1408>}, {pipeline_mode = #tpu.pipeline_mode<synchronous>, transform_indices = @transform_1, window_bounds = array<i64: 1408, 256>}, {pipeline_mode = #tpu.pipeline_mode<synchronous>, transform_indices = @transform_2, window_bounds = array<i64: 1, 256>}, {pipeline_mode = #tpu.pipeline_mode<synchronous>, transform_indices = @transform_3, window_bounds = array<i64: 1, 256>}, {transform_indices = @transform_4, window_bounds = array<i64: 16, 256>}]} {
    %c0 = arith.constant 0 : index
    %c0_0 = arith.constant 0 : index
    %0 = vector.load %arg1[%c0, %c0_0] : memref<16x1408xbf16, #tpu.memory_space<vmem>>, vector<16x1408xbf16>
    %c0_1 = arith.constant 0 : index
    %c0_2 = arith.constant 0 : index
    %1 = vector.load %arg2[%c0_1, %c0_2] : memref<1408x256xbf16, #tpu.memory_space<vmem>>, vector<1408x256xbf16>
    %cst = arith.constant dense<0.000000e+00> : vector<16x256xf32>
    %2 = tpu.matmul %0, %1, %cst {dimension_numbers = #tpu.dot_dimension_numbers<[1], [0], [0], [1], [0, 0, 1, 1], [], []>} : vector<16x1408xbf16>, vector<1408x256xbf16>, vector<16x256xf32> -> vector<16x256xf32>
    %c0_3 = arith.constant 0 : index
    %c0_4 = arith.constant 0 : index
    %3 = vector.load %arg3[%c0_3, %c0_4] : memref<1x256xf32, #tpu.memory_space<vmem>>, vector<1x256xf32>
    %4 = vector.broadcast %3 : vector<1x256xf32> to vector<16x256xf32>
    %5 = arith.mulf %2, %4 : vector<16x256xf32>
    %c0_5 = arith.constant 0 : index
    %c0_6 = arith.constant 0 : index
    %6 = vector.load %arg4[%c0_5, %c0_6] : memref<1x256xf32, #tpu.memory_space<vmem>>, vector<1x256xf32>
    %7 = vector.broadcast %6 : vector<1x256xf32> to vector<16x256xf32>
    %8 = arith.addf %5, %7 : vector<16x256xf32>
    %cst_7 = arith.constant 0.000000e+00 : f32
    %9 = vector.broadcast %cst_7 : f32 to vector<16x256xf32>
    %10 = arith.maximumf %8, %9 : vector<16x256xf32>
    %11 = arith.truncf %10 : vector<16x256xf32> to vector<16x256xbf16>
    %c0_8 = arith.constant 0 : index
    %c0_9 = arith.constant 0 : index
    %12 = vector.load %arg5[%c0_8, %c0_9] : memref<16x256xbf16, #tpu.memory_space<vmem>>, vector<16x256xbf16>
    tpu.vector_store %arg5[%c0_8, %c0_9], %11 {strides = array<i32>} : memref<16x256xbf16, #tpu.memory_space<vmem>>, vector<16x256xbf16>,
    return
  }
  func.func @transform_0(%arg0: i32) -> (i32, i32) {
    %c0_i32 = arith.constant 0 : i32
    %c0_i32_0 = arith.constant 0 : i32
    return %arg0, %c0_i32 : i32, i32
  }
  func.func @transform_1(%arg0: i32) -> (i32, i32) {
    %c0_i32 = arith.constant 0 : i32
    %c0_i32_0 = arith.constant 0 : i32
    %c0_i32_1 = arith.constant 0 : i32
    return %c0_i32, %c0_i32_0 : i32, i32
  }
  func.func @transform_2(%arg0: i32) -> (i32, i32) {
    %c0_i32 = arith.constant 0 : i32
    %c0_i32_0 = arith.constant 0 : i32
    %c0_i32_1 = arith.constant 0 : i32
    return %c0_i32, %c0_i32_0 : i32, i32
  }
  func.func @transform_3(%arg0: i32) -> (i32, i32) {
    %c0_i32 = arith.constant 0 : i32
    %c0_i32_0 = arith.constant 0 : i32
    %c0_i32_1 = arith.constant 0 : i32
    return %c0_i32, %c0_i32_0 : i32, i32
  }
  func.func @transform_4(%arg0: i32) -> (i32, i32) {
    %c0_i32 = arith.constant 0 : i32
    %c0_i32_0 = arith.constant 0 : i32
    return %arg0, %c0_i32 : i32, i32
  }
}

module attributes {stable_mosaic.version = 11 : i64} {
  func.func @_mm_bn_act_kernel(%arg0: i32, %arg1: memref<16x384xbf16, #tpu.memory_space<vmem>>, %arg2: memref<384x256xbf16, #tpu.memory_space<vmem>>, %arg3: memref<1x256xf32, #tpu.memory_space<vmem>>, %arg4: memref<1x256xf32, #tpu.memory_space<vmem>>, %arg5: memref<16x256xbf16, #tpu.memory_space<vmem>>) attributes {dimension_semantics = [#tpu.dimension_semantics<parallel>], iteration_bounds = array<i64: 1>, scalar_prefetch = 0 : i64, scratch_operands = 0 : i64, tpu.core_type = #tpu.core_type<tc>, window_params = [{transform_indices = @transform_0, window_bounds = array<i64: 16, 384>}, {pipeline_mode = #tpu.pipeline_mode<synchronous>, transform_indices = @transform_1, window_bounds = array<i64: 384, 256>}, {pipeline_mode = #tpu.pipeline_mode<synchronous>, transform_indices = @transform_2, window_bounds = array<i64: 1, 256>}, {pipeline_mode = #tpu.pipeline_mode<synchronous>, transform_indices = @transform_3, window_bounds = array<i64: 1, 256>}, {transform_indices = @transform_4, window_bounds = array<i64: 16, 256>}]} {
    %c0 = arith.constant 0 : index
    %c0_0 = arith.constant 0 : index
    %0 = vector.load %arg1[%c0, %c0_0] : memref<16x384xbf16, #tpu.memory_space<vmem>>, vector<16x384xbf16>
    %c0_1 = arith.constant 0 : index
    %c0_2 = arith.constant 0 : index
    %1 = vector.load %arg2[%c0_1, %c0_2] : memref<384x256xbf16, #tpu.memory_space<vmem>>, vector<384x256xbf16>
    %cst = arith.constant dense<0.000000e+00> : vector<16x256xf32>
    %2 = tpu.matmul %0, %1, %cst {dimension_numbers = #tpu.dot_dimension_numbers<[1], [0], [0], [1], [0, 0, 1, 1], [], []>} : vector<16x384xbf16>, vector<384x256xbf16>, vector<16x256xf32> -> vector<16x256xf32>
    %c0_3 = arith.constant 0 : index
    %c0_4 = arith.constant 0 : index
    %3 = vector.load %arg3[%c0_3, %c0_4] : memref<1x256xf32, #tpu.memory_space<vmem>>, vector<1x256xf32>
    %4 = vector.broadcast %3 : vector<1x256xf32> to vector<16x256xf32>
    %5 = arith.mulf %2, %4 : vector<16x256xf32>
    %c0_5 = arith.constant 0 : index
    %c0_6 = arith.constant 0 : index
    %6 = vector.load %arg4[%c0_5, %c0_6] : memref<1x256xf32, #tpu.memory_space<vmem>>, vector<1x256xf32>
    %7 = vector.broadcast %6 : vector<1x256xf32> to vector<16x256xf32>
    %8 = arith.addf %5, %7 : vector<16x256xf32>
    %9 = arith.truncf %8 : vector<16x256xf32> to vector<16x256xbf16>
    %c0_7 = arith.constant 0 : index
    %c0_8 = arith.constant 0 : index
    %10 = vector.load %arg5[%c0_7, %c0_8] : memref<16x256xbf16, #tpu.memory_space<vmem>>, vector<16x256xbf16>
    tpu.vector_store %arg5[%c0_7, %c0_8], %9 {strides = array<i32>} : memref<16x256xbf16, #tpu.memory_space<vmem>>, vector<16x256xbf16>,
    return
  }
  func.func @transform_0(%arg0: i32) -> (i32, i32) {
    %c0_i32 = arith.constant 0 : i32
    %c0_i32_0 = arith.constant 0 : i32
    return %arg0, %c0_i32 : i32, i32
  }
  func.func @transform_1(%arg0: i32) -> (i32, i32) {
    %c0_i32 = arith.constant 0 : i32
    %c0_i32_0 = arith.constant 0 : i32
    %c0_i32_1 = arith.constant 0 : i32
    return %c0_i32, %c0_i32_0 : i32, i32
  }
  func.func @transform_2(%arg0: i32) -> (i32, i32) {
    %c0_i32 = arith.constant 0 : i32
    %c0_i32_0 = arith.constant 0 : i32
    %c0_i32_1 = arith.constant 0 : i32
    return %c0_i32, %c0_i32_0 : i32, i32
  }
  func.func @transform_3(%arg0: i32) -> (i32, i32) {
    %c0_i32 = arith.constant 0 : i32
    %c0_i32_0 = arith.constant 0 : i32
    %c0_i32_1 = arith.constant 0 : i32
    return %c0_i32, %c0_i32_0 : i32, i32
  }
  func.func @transform_4(%arg0: i32) -> (i32, i32) {
    %c0_i32 = arith.constant 0 : i32
    %c0_i32_0 = arith.constant 0 : i32
    return %arg0, %c0_i32 : i32, i32
  }
}

module attributes {stable_mosaic.version = 11 : i64} {
  func.func @_mm_bn_act_kernel(%arg0: i32, %arg1: memref<16x2688xbf16, #tpu.memory_space<vmem>>, %arg2: memref<2688x256xbf16, #tpu.memory_space<vmem>>, %arg3: memref<1x256xf32, #tpu.memory_space<vmem>>, %arg4: memref<1x256xf32, #tpu.memory_space<vmem>>, %arg5: memref<16x256xbf16, #tpu.memory_space<vmem>>) attributes {dimension_semantics = [#tpu.dimension_semantics<parallel>], iteration_bounds = array<i64: 1>, scalar_prefetch = 0 : i64, scratch_operands = 0 : i64, tpu.core_type = #tpu.core_type<tc>, window_params = [{transform_indices = @transform_0, window_bounds = array<i64: 16, 2688>}, {pipeline_mode = #tpu.pipeline_mode<synchronous>, transform_indices = @transform_1, window_bounds = array<i64: 2688, 256>}, {pipeline_mode = #tpu.pipeline_mode<synchronous>, transform_indices = @transform_2, window_bounds = array<i64: 1, 256>}, {pipeline_mode = #tpu.pipeline_mode<synchronous>, transform_indices = @transform_3, window_bounds = array<i64: 1, 256>}, {transform_indices = @transform_4, window_bounds = array<i64: 16, 256>}]} {
    %c0 = arith.constant 0 : index
    %c0_0 = arith.constant 0 : index
    %0 = vector.load %arg1[%c0, %c0_0] : memref<16x2688xbf16, #tpu.memory_space<vmem>>, vector<16x2688xbf16>
    %c0_1 = arith.constant 0 : index
    %c0_2 = arith.constant 0 : index
    %1 = vector.load %arg2[%c0_1, %c0_2] : memref<2688x256xbf16, #tpu.memory_space<vmem>>, vector<2688x256xbf16>
    %cst = arith.constant dense<0.000000e+00> : vector<16x256xf32>
    %2 = tpu.matmul %0, %1, %cst {dimension_numbers = #tpu.dot_dimension_numbers<[1], [0], [0], [1], [0, 0, 1, 1], [], []>} : vector<16x2688xbf16>, vector<2688x256xbf16>, vector<16x256xf32> -> vector<16x256xf32>
    %c0_3 = arith.constant 0 : index
    %c0_4 = arith.constant 0 : index
    %3 = vector.load %arg3[%c0_3, %c0_4] : memref<1x256xf32, #tpu.memory_space<vmem>>, vector<1x256xf32>
    %4 = vector.broadcast %3 : vector<1x256xf32> to vector<16x256xf32>
    %5 = arith.mulf %2, %4 : vector<16x256xf32>
    %c0_5 = arith.constant 0 : index
    %c0_6 = arith.constant 0 : index
    %6 = vector.load %arg4[%c0_5, %c0_6] : memref<1x256xf32, #tpu.memory_space<vmem>>, vector<1x256xf32>
    %7 = vector.broadcast %6 : vector<1x256xf32> to vector<16x256xf32>
    %8 = arith.addf %5, %7 : vector<16x256xf32>
    %cst_7 = arith.constant 0.000000e+00 : f32
    %9 = vector.broadcast %cst_7 : f32 to vector<16x256xf32>
    %10 = arith.maximumf %8, %9 : vector<16x256xf32>
    %11 = arith.truncf %10 : vector<16x256xf32> to vector<16x256xbf16>
    %c0_8 = arith.constant 0 : index
    %c0_9 = arith.constant 0 : index
    %12 = vector.load %arg5[%c0_8, %c0_9] : memref<16x256xbf16, #tpu.memory_space<vmem>>, vector<16x256xbf16>
    tpu.vector_store %arg5[%c0_8, %c0_9], %11 {strides = array<i32>} : memref<16x256xbf16, #tpu.memory_space<vmem>>, vector<16x256xbf16>,
    return
  }
  func.func @transform_0(%arg0: i32) -> (i32, i32) {
    %c0_i32 = arith.constant 0 : i32
    %c0_i32_0 = arith.constant 0 : i32
    return %arg0, %c0_i32 : i32, i32
  }
  func.func @transform_1(%arg0: i32) -> (i32, i32) {
    %c0_i32 = arith.constant 0 : i32
    %c0_i32_0 = arith.constant 0 : i32
    %c0_i32_1 = arith.constant 0 : i32
    return %c0_i32, %c0_i32_0 : i32, i32
  }
  func.func @transform_2(%arg0: i32) -> (i32, i32) {
    %c0_i32 = arith.constant 0 : i32
    %c0_i32_0 = arith.constant 0 : i32
    %c0_i32_1 = arith.constant 0 : i32
    return %c0_i32, %c0_i32_0 : i32, i32
  }
  func.func @transform_3(%arg0: i32) -> (i32, i32) {
    %c0_i32 = arith.constant 0 : i32
    %c0_i32_0 = arith.constant 0 : i32
    %c0_i32_1 = arith.constant 0 : i32
    return %c0_i32, %c0_i32_0 : i32, i32
  }
  func.func @transform_4(%arg0: i32) -> (i32, i32) {
    %c0_i32 = arith.constant 0 : i32
    %c0_i32_0 = arith.constant 0 : i32
    return %arg0, %c0_i32 : i32, i32
  }
}

module attributes {stable_mosaic.version = 11 : i64} {
  func.func @_mm_bn_act_res_kernel(%arg0: i32, %arg1: memref<16x1408xbf16, #tpu.memory_space<vmem>>, %arg2: memref<1408x256xbf16, #tpu.memory_space<vmem>>, %arg3: memref<1x256xf32, #tpu.memory_space<vmem>>, %arg4: memref<1x256xf32, #tpu.memory_space<vmem>>, %arg5: memref<16x256xbf16, #tpu.memory_space<vmem>>, %arg6: memref<16x256xbf16, #tpu.memory_space<vmem>>) attributes {dimension_semantics = [#tpu.dimension_semantics<parallel>], iteration_bounds = array<i64: 1>, scalar_prefetch = 0 : i64, scratch_operands = 0 : i64, tpu.core_type = #tpu.core_type<tc>, window_params = [{transform_indices = @transform_0, window_bounds = array<i64: 16, 1408>}, {pipeline_mode = #tpu.pipeline_mode<synchronous>, transform_indices = @transform_1, window_bounds = array<i64: 1408, 256>}, {pipeline_mode = #tpu.pipeline_mode<synchronous>, transform_indices = @transform_2, window_bounds = array<i64: 1, 256>}, {pipeline_mode = #tpu.pipeline_mode<synchronous>, transform_indices = @transform_3, window_bounds = array<i64: 1, 256>}, {transform_indices = @transform_4, window_bounds = array<i64: 16, 256>}, {transform_indices = @transform_5, window_bounds = array<i64: 16, 256>}]} {
    %c0 = arith.constant 0 : index
    %c0_0 = arith.constant 0 : index
    %0 = vector.load %arg1[%c0, %c0_0] : memref<16x1408xbf16, #tpu.memory_space<vmem>>, vector<16x1408xbf16>
    %c0_1 = arith.constant 0 : index
    %c0_2 = arith.constant 0 : index
    %1 = vector.load %arg2[%c0_1, %c0_2] : memref<1408x256xbf16, #tpu.memory_space<vmem>>, vector<1408x256xbf16>
    %cst = arith.constant dense<0.000000e+00> : vector<16x256xf32>
    %2 = tpu.matmul %0, %1, %cst {dimension_numbers = #tpu.dot_dimension_numbers<[1], [0], [0], [1], [0, 0, 1, 1], [], []>} : vector<16x1408xbf16>, vector<1408x256xbf16>, vector<16x256xf32> -> vector<16x256xf32>
    %c0_3 = arith.constant 0 : index
    %c0_4 = arith.constant 0 : index
    %3 = vector.load %arg3[%c0_3, %c0_4] : memref<1x256xf32, #tpu.memory_space<vmem>>, vector<1x256xf32>
    %4 = vector.broadcast %3 : vector<1x256xf32> to vector<16x256xf32>
    %5 = arith.mulf %2, %4 : vector<16x256xf32>
    %c0_5 = arith.constant 0 : index
    %c0_6 = arith.constant 0 : index
    %6 = vector.load %arg4[%c0_5, %c0_6] : memref<1x256xf32, #tpu.memory_space<vmem>>, vector<1x256xf32>
    %7 = vector.broadcast %6 : vector<1x256xf32> to vector<16x256xf32>
    %8 = arith.addf %5, %7 : vector<16x256xf32>
    %c0_7 = arith.constant 0 : index
    %c0_8 = arith.constant 0 : index
    %9 = vector.load %arg5[%c0_7, %c0_8] : memref<16x256xbf16, #tpu.memory_space<vmem>>, vector<16x256xbf16>
    %10 = arith.extf %9 : vector<16x256xbf16> to vector<16x256xf32>
    %11 = arith.addf %8, %10 : vector<16x256xf32>
    %cst_9 = arith.constant 0.000000e+00 : f32
    %12 = vector.broadcast %cst_9 : f32 to vector<16x256xf32>
    %13 = arith.maximumf %11, %12 : vector<16x256xf32>
    %14 = arith.truncf %13 : vector<16x256xf32> to vector<16x256xbf16>
    %c0_10 = arith.constant 0 : index
    %c0_11 = arith.constant 0 : index
    %15 = vector.load %arg6[%c0_10, %c0_11] : memref<16x256xbf16, #tpu.memory_space<vmem>>, vector<16x256xbf16>
    tpu.vector_store %arg6[%c0_10, %c0_11], %14 {strides = array<i32>} : memref<16x256xbf16, #tpu.memory_space<vmem>>, vector<16x256xbf16>,
    return
  }
  func.func @transform_0(%arg0: i32) -> (i32, i32) {
    %c0_i32 = arith.constant 0 : i32
    %c0_i32_0 = arith.constant 0 : i32
    return %arg0, %c0_i32 : i32, i32
  }
  func.func @transform_1(%arg0: i32) -> (i32, i32) {
    %c0_i32 = arith.constant 0 : i32
    %c0_i32_0 = arith.constant 0 : i32
    %c0_i32_1 = arith.constant 0 : i32
    return %c0_i32, %c0_i32_0 : i32, i32
  }
  func.func @transform_2(%arg0: i32) -> (i32, i32) {
    %c0_i32 = arith.constant 0 : i32
    %c0_i32_0 = arith.constant 0 : i32
    %c0_i32_1 = arith.constant 0 : i32
    return %c0_i32, %c0_i32_0 : i32, i32
  }
  func.func @transform_3(%arg0: i32) -> (i32, i32) {
    %c0_i32 = arith.constant 0 : i32
    %c0_i32_0 = arith.constant 0 : i32
    %c0_i32_1 = arith.constant 0 : i32
    return %c0_i32, %c0_i32_0 : i32, i32
  }
  func.func @transform_4(%arg0: i32) -> (i32, i32) {
    %c0_i32 = arith.constant 0 : i32
    %c0_i32_0 = arith.constant 0 : i32
    return %arg0, %c0_i32 : i32, i32
  }
  func.func @transform_5(%arg0: i32) -> (i32, i32) {
    %c0_i32 = arith.constant 0 : i32
    %c0_i32_0 = arith.constant 0 : i32
    return %arg0, %c0_i32 : i32, i32
  }
}

module attributes {stable_mosaic.version = 11 : i64} {
  func.func @_mm_bn_act_kernel(%arg0: i32, %arg1: memref<16x256xbf16, #tpu.memory_space<vmem>>, %arg2: memref<256x128xbf16, #tpu.memory_space<vmem>>, %arg3: memref<1x128xf32, #tpu.memory_space<vmem>>, %arg4: memref<1x128xf32, #tpu.memory_space<vmem>>, %arg5: memref<16x128xbf16, #tpu.memory_space<vmem>>) attributes {dimension_semantics = [#tpu.dimension_semantics<parallel>], iteration_bounds = array<i64: 1>, scalar_prefetch = 0 : i64, scratch_operands = 0 : i64, tpu.core_type = #tpu.core_type<tc>, window_params = [{transform_indices = @transform_0, window_bounds = array<i64: 16, 256>}, {pipeline_mode = #tpu.pipeline_mode<synchronous>, transform_indices = @transform_1, window_bounds = array<i64: 256, 128>}, {pipeline_mode = #tpu.pipeline_mode<synchronous>, transform_indices = @transform_2, window_bounds = array<i64: 1, 128>}, {pipeline_mode = #tpu.pipeline_mode<synchronous>, transform_indices = @transform_3, window_bounds = array<i64: 1, 128>}, {transform_indices = @transform_4, window_bounds = array<i64: 16, 128>}]} {
    %c0 = arith.constant 0 : index
    %c0_0 = arith.constant 0 : index
    %0 = vector.load %arg1[%c0, %c0_0] : memref<16x256xbf16, #tpu.memory_space<vmem>>, vector<16x256xbf16>
    %c0_1 = arith.constant 0 : index
    %c0_2 = arith.constant 0 : index
    %1 = vector.load %arg2[%c0_1, %c0_2] : memref<256x128xbf16, #tpu.memory_space<vmem>>, vector<256x128xbf16>
    %cst = arith.constant dense<0.000000e+00> : vector<16x128xf32>
    %2 = tpu.matmul %0, %1, %cst {dimension_numbers = #tpu.dot_dimension_numbers<[1], [0], [0], [1], [0, 0, 1, 1], [], []>} : vector<16x256xbf16>, vector<256x128xbf16>, vector<16x128xf32> -> vector<16x128xf32>
    %c0_3 = arith.constant 0 : index
    %c0_4 = arith.constant 0 : index
    %3 = vector.load %arg3[%c0_3, %c0_4] : memref<1x128xf32, #tpu.memory_space<vmem>>, vector<1x128xf32>
    %4 = vector.broadcast %3 : vector<1x128xf32> to vector<16x128xf32>
    %5 = arith.mulf %2, %4 : vector<16x128xf32>
    %c0_5 = arith.constant 0 : index
    %c0_6 = arith.constant 0 : index
    %6 = vector.load %arg4[%c0_5, %c0_6] : memref<1x128xf32, #tpu.memory_space<vmem>>, vector<1x128xf32>
    %7 = vector.broadcast %6 : vector<1x128xf32> to vector<16x128xf32>
    %8 = arith.addf %5, %7 : vector<16x128xf32>
    %cst_7 = arith.constant 0.000000e+00 : f32
    %9 = vector.broadcast %cst_7 : f32 to vector<16x128xf32>
    %10 = arith.maximumf %8, %9 : vector<16x128xf32>
    %11 = arith.truncf %10 : vector<16x128xf32> to vector<16x128xbf16>
    %c0_8 = arith.constant 0 : index
    %c0_9 = arith.constant 0 : index
    %12 = vector.load %arg5[%c0_8, %c0_9] : memref<16x128xbf16, #tpu.memory_space<vmem>>, vector<16x128xbf16>
    tpu.vector_store %arg5[%c0_8, %c0_9], %11 {strides = array<i32>} : memref<16x128xbf16, #tpu.memory_space<vmem>>, vector<16x128xbf16>,
    return
  }
  func.func @transform_0(%arg0: i32) -> (i32, i32) {
    %c0_i32 = arith.constant 0 : i32
    %c0_i32_0 = arith.constant 0 : i32
    return %arg0, %c0_i32 : i32, i32
  }
  func.func @transform_1(%arg0: i32) -> (i32, i32) {
    %c0_i32 = arith.constant 0 : i32
    %c0_i32_0 = arith.constant 0 : i32
    %c0_i32_1 = arith.constant 0 : i32
    return %c0_i32, %c0_i32_0 : i32, i32
  }
  func.func @transform_2(%arg0: i32) -> (i32, i32) {
    %c0_i32 = arith.constant 0 : i32
    %c0_i32_0 = arith.constant 0 : i32
    %c0_i32_1 = arith.constant 0 : i32
    return %c0_i32, %c0_i32_0 : i32, i32
  }
  func.func @transform_3(%arg0: i32) -> (i32, i32) {
    %c0_i32 = arith.constant 0 : i32
    %c0_i32_0 = arith.constant 0 : i32
    %c0_i32_1 = arith.constant 0 : i32
    return %c0_i32, %c0_i32_0 : i32, i32
  }
  func.func @transform_4(%arg0: i32) -> (i32, i32) {
    %c0_i32 = arith.constant 0 : i32
    %c0_i32_0 = arith.constant 0 : i32
    return %arg0, %c0_i32 : i32, i32
  }
}

module attributes {stable_mosaic.version = 11 : i64} {
  func.func @_mm_bn_act_kernel(%arg0: i32, %arg1: memref<16x128xbf16, #tpu.memory_space<vmem>>, %arg2: memref<128x128xbf16, #tpu.memory_space<vmem>>, %arg3: memref<1x128xf32, #tpu.memory_space<vmem>>, %arg4: memref<1x128xf32, #tpu.memory_space<vmem>>, %arg5: memref<16x128xbf16, #tpu.memory_space<vmem>>) attributes {dimension_semantics = [#tpu.dimension_semantics<parallel>], iteration_bounds = array<i64: 1>, scalar_prefetch = 0 : i64, scratch_operands = 0 : i64, tpu.core_type = #tpu.core_type<tc>, window_params = [{transform_indices = @transform_0, window_bounds = array<i64: 16, 128>}, {pipeline_mode = #tpu.pipeline_mode<synchronous>, transform_indices = @transform_1, window_bounds = array<i64: 128, 128>}, {pipeline_mode = #tpu.pipeline_mode<synchronous>, transform_indices = @transform_2, window_bounds = array<i64: 1, 128>}, {pipeline_mode = #tpu.pipeline_mode<synchronous>, transform_indices = @transform_3, window_bounds = array<i64: 1, 128>}, {transform_indices = @transform_4, window_bounds = array<i64: 16, 128>}]} {
    %c0 = arith.constant 0 : index
    %c0_0 = arith.constant 0 : index
    %0 = vector.load %arg1[%c0, %c0_0] : memref<16x128xbf16, #tpu.memory_space<vmem>>, vector<16x128xbf16>
    %c0_1 = arith.constant 0 : index
    %c0_2 = arith.constant 0 : index
    %1 = vector.load %arg2[%c0_1, %c0_2] : memref<128x128xbf16, #tpu.memory_space<vmem>>, vector<128x128xbf16>
    %cst = arith.constant dense<0.000000e+00> : vector<16x128xf32>
    %2 = tpu.matmul %0, %1, %cst {dimension_numbers = #tpu.dot_dimension_numbers<[1], [0], [0], [1], [0, 0, 1, 1], [], []>} : vector<16x128xbf16>, vector<128x128xbf16>, vector<16x128xf32> -> vector<16x128xf32>
    %c0_3 = arith.constant 0 : index
    %c0_4 = arith.constant 0 : index
    %3 = vector.load %arg3[%c0_3, %c0_4] : memref<1x128xf32, #tpu.memory_space<vmem>>, vector<1x128xf32>
    %4 = vector.broadcast %3 : vector<1x128xf32> to vector<16x128xf32>
    %5 = arith.mulf %2, %4 : vector<16x128xf32>
    %c0_5 = arith.constant 0 : index
    %c0_6 = arith.constant 0 : index
    %6 = vector.load %arg4[%c0_5, %c0_6] : memref<1x128xf32, #tpu.memory_space<vmem>>, vector<1x128xf32>
    %7 = vector.broadcast %6 : vector<1x128xf32> to vector<16x128xf32>
    %8 = arith.addf %5, %7 : vector<16x128xf32>
    %9 = arith.truncf %8 : vector<16x128xf32> to vector<16x128xbf16>
    %c0_7 = arith.constant 0 : index
    %c0_8 = arith.constant 0 : index
    %10 = vector.load %arg5[%c0_7, %c0_8] : memref<16x128xbf16, #tpu.memory_space<vmem>>, vector<16x128xbf16>
    tpu.vector_store %arg5[%c0_7, %c0_8], %9 {strides = array<i32>} : memref<16x128xbf16, #tpu.memory_space<vmem>>, vector<16x128xbf16>,
    return
  }
  func.func @transform_0(%arg0: i32) -> (i32, i32) {
    %c0_i32 = arith.constant 0 : i32
    %c0_i32_0 = arith.constant 0 : i32
    return %arg0, %c0_i32 : i32, i32
  }
  func.func @transform_1(%arg0: i32) -> (i32, i32) {
    %c0_i32 = arith.constant 0 : i32
    %c0_i32_0 = arith.constant 0 : i32
    %c0_i32_1 = arith.constant 0 : i32
    return %c0_i32, %c0_i32_0 : i32, i32
  }
  func.func @transform_2(%arg0: i32) -> (i32, i32) {
    %c0_i32 = arith.constant 0 : i32
    %c0_i32_0 = arith.constant 0 : i32
    %c0_i32_1 = arith.constant 0 : i32
    return %c0_i32, %c0_i32_0 : i32, i32
  }
  func.func @transform_3(%arg0: i32) -> (i32, i32) {
    %c0_i32 = arith.constant 0 : i32
    %c0_i32_0 = arith.constant 0 : i32
    %c0_i32_1 = arith.constant 0 : i32
    return %c0_i32, %c0_i32_0 : i32, i32
  }
  func.func @transform_4(%arg0: i32) -> (i32, i32) {
    %c0_i32 = arith.constant 0 : i32
    %c0_i32_0 = arith.constant 0 : i32
    return %arg0, %c0_i32 : i32, i32
  }
}

module attributes {stable_mosaic.version = 11 : i64} {
  func.func @_mm_bn_act_kernel(%arg0: i32, %arg1: memref<16x256xbf16, #tpu.memory_space<vmem>>, %arg2: memref<256x128xbf16, #tpu.memory_space<vmem>>, %arg3: memref<1x128xf32, #tpu.memory_space<vmem>>, %arg4: memref<1x128xf32, #tpu.memory_space<vmem>>, %arg5: memref<16x128xbf16, #tpu.memory_space<vmem>>) attributes {dimension_semantics = [#tpu.dimension_semantics<parallel>], iteration_bounds = array<i64: 1>, scalar_prefetch = 0 : i64, scratch_operands = 0 : i64, tpu.core_type = #tpu.core_type<tc>, window_params = [{transform_indices = @transform_0, window_bounds = array<i64: 16, 256>}, {pipeline_mode = #tpu.pipeline_mode<synchronous>, transform_indices = @transform_1, window_bounds = array<i64: 256, 128>}, {pipeline_mode = #tpu.pipeline_mode<synchronous>, transform_indices = @transform_2, window_bounds = array<i64: 1, 128>}, {pipeline_mode = #tpu.pipeline_mode<synchronous>, transform_indices = @transform_3, window_bounds = array<i64: 1, 128>}, {transform_indices = @transform_4, window_bounds = array<i64: 16, 128>}]} {
    %c0 = arith.constant 0 : index
    %c0_0 = arith.constant 0 : index
    %0 = vector.load %arg1[%c0, %c0_0] : memref<16x256xbf16, #tpu.memory_space<vmem>>, vector<16x256xbf16>
    %c0_1 = arith.constant 0 : index
    %c0_2 = arith.constant 0 : index
    %1 = vector.load %arg2[%c0_1, %c0_2] : memref<256x128xbf16, #tpu.memory_space<vmem>>, vector<256x128xbf16>
    %cst = arith.constant dense<0.000000e+00> : vector<16x128xf32>
    %2 = tpu.matmul %0, %1, %cst {dimension_numbers = #tpu.dot_dimension_numbers<[1], [0], [0], [1], [0, 0, 1, 1], [], []>} : vector<16x256xbf16>, vector<256x128xbf16>, vector<16x128xf32> -> vector<16x128xf32>
    %c0_3 = arith.constant 0 : index
    %c0_4 = arith.constant 0 : index
    %3 = vector.load %arg3[%c0_3, %c0_4] : memref<1x128xf32, #tpu.memory_space<vmem>>, vector<1x128xf32>
    %4 = vector.broadcast %3 : vector<1x128xf32> to vector<16x128xf32>
    %5 = arith.mulf %2, %4 : vector<16x128xf32>
    %c0_5 = arith.constant 0 : index
    %c0_6 = arith.constant 0 : index
    %6 = vector.load %arg4[%c0_5, %c0_6] : memref<1x128xf32, #tpu.memory_space<vmem>>, vector<1x128xf32>
    %7 = vector.broadcast %6 : vector<1x128xf32> to vector<16x128xf32>
    %8 = arith.addf %5, %7 : vector<16x128xf32>
    %9 = arith.truncf %8 : vector<16x128xf32> to vector<16x128xbf16>
    %c0_7 = arith.constant 0 : index
    %c0_8 = arith.constant 0 : index
    %10 = vector.load %arg5[%c0_7, %c0_8] : memref<16x128xbf16, #tpu.memory_space<vmem>>, vector<16x128xbf16>
    tpu.vector_store %arg5[%c0_7, %c0_8], %9 {strides = array<i32>} : memref<16x128xbf16, #tpu.memory_space<vmem>>, vector<16x128xbf16>,
    return
  }
  func.func @transform_0(%arg0: i32) -> (i32, i32) {
    %c0_i32 = arith.constant 0 : i32
    %c0_i32_0 = arith.constant 0 : i32
    return %arg0, %c0_i32 : i32, i32
  }
  func.func @transform_1(%arg0: i32) -> (i32, i32) {
    %c0_i32 = arith.constant 0 : i32
    %c0_i32_0 = arith.constant 0 : i32
    %c0_i32_1 = arith.constant 0 : i32
    return %c0_i32, %c0_i32_0 : i32, i32
  }
  func.func @transform_2(%arg0: i32) -> (i32, i32) {
    %c0_i32 = arith.constant 0 : i32
    %c0_i32_0 = arith.constant 0 : i32
    %c0_i32_1 = arith.constant 0 : i32
    return %c0_i32, %c0_i32_0 : i32, i32
  }
  func.func @transform_3(%arg0: i32) -> (i32, i32) {
    %c0_i32 = arith.constant 0 : i32
    %c0_i32_0 = arith.constant 0 : i32
    %c0_i32_1 = arith.constant 0 : i32
    return %c0_i32, %c0_i32_0 : i32, i32
  }
  func.func @transform_4(%arg0: i32) -> (i32, i32) {
    %c0_i32 = arith.constant 0 : i32
    %c0_i32_0 = arith.constant 0 : i32
    return %arg0, %c0_i32 : i32, i32
  }
}

</mosaic_0001>

<llo_original>
// kernel: hrnet_forward.22
$region0: #{hrnet_forward.22}
  #allocation0 [shape = 'u32[]', space=smem, size = 0x4, offset = 0x4, fixed_abs, tag = 'smem constant byte address 0x4 - core index']
  #allocation1 [shape = 'u32[144,128]{1,0:T(1,128)}', space=vmem, size = 0x12000, scoped, tag = 'internal scratch']
  %s0 = inlined_call_operand.vmem [shape: bf16[4096,128], index: 0, kind: input, shape index: {}]
  %s1 = inlined_call_operand.vmem [shape: bf16[128,128], index: 1, kind: input, shape index: {}]
  %s2 = inlined_call_operand.vmem [shape: f32[1,128], index: 2, kind: input, shape index: {}]
  %s3 = inlined_call_operand.vmem [shape: f32[1,128], index: 3, kind: input, shape index: {}]
  %s4 = inlined_call_operand.vmem [shape: bf16[4096,128], index: 4, kind: output, shape index: {}]
  %s5 = sld [smem:[#allocation0]]
  $region49: #{hrnet_forward.22} parent=0
    _
  %s7 = ssub.s32 1, %s5
  %s8 = scalar_select 0, %s7, %s5
  loop: start=0, step=1, limit=10
  $region2: #{hrnet_forward.22} parent=0 // loop_pre_header
    _
  $region3: #{hrnet_forward.22} parent=0 // loop_header
    %s10 = sphi 0, %s14
    %p11 = scmp.ge.s32.totalorder %s10, 10
    %s20 = sphi 0, %s22
    %s23 = sphi 0, %s20
    %s24 = sphi 0, %s23
    %s40 = sphi 0, %s24
    %s44 = sphi 0, %s44
    %s46 = sphi 0, %s44
    %s47 = sphi 0, %s46
    %s61 = sphi 0, %s47
    %s65 = sphi 0, %s65
    %s67 = sphi 0, %s65
    %s68 = sphi 0, %s67
    %s82 = sphi 0, %s68
    %s86 = sphi 0, %s86
    %s88 = sphi 0, %s86
    %s89 = sphi 0, %s88
    %s103 = sphi 0, %s89
    %s109 = sphi 0, %s111
    %s112 = sphi 0, %s109
    %s113 = sphi 0, %s112
    %s129 = sphi 0, %s113
  $region4: #{hrnet_forward.22} parent=0 // loop_header_branch
    %13 = sbr.rel (%p11) target = $region8
  $region5: #{hrnet_forward.22} parent=0 // loop_body
    %s15 = ssub.s32 %s10, 1
    %s16 = ssub.s32 %s10, 2
    %s17 = sadd.s32 %s10, 1
    %s18 = ssub.s32 %s10, %s17
    %p19 = scmp.eq.s32.totalorder %s18, 0
    %s21 = sadd.s32 %s20, 1
    %s22 = scalar_select %p19, %s20, %s21
    %p25 = pneg %p19
    %p26 = scmp.eq.s32.totalorder %s10, 7
    %p27 = por %p25, %p26
    %p28 = scmp.ne.s32.totalorder %s20, %s23
    %p29 = scmp.eq.s32.totalorder %s10, 0
    %p30 = por %p28, %p29
    %p31 = scmp.ne.s32.totalorder %s20, %s23
    %p32 = scmp.eq.s32.totalorder %s15, 7
    %p33 = por %p31, %p32
    %p34 = scmp.ne.s32.totalorder %s23, %s24
    %p35 = scmp.eq.s32.totalorder %s15, 0
    %p36 = por %p34, %p35
    %p37 = scmp.ne.s32.totalorder %s23, %s24
    %p38 = scmp.eq.s32.totalorder %s16, 7
    %p39 = por %p37, %p38
    %p41 = scmp.ne.s32.totalorder %s24, %s40
    %p42 = scmp.eq.s32.totalorder %s16, 0
    %p43 = por %p41, %p42
    %s45 = sadd.s32 %s44, 1
    %p48 = scmp.eq.s32.totalorder %s10, 7
    %p49 = scmp.ne.s32.totalorder %s44, %s46
    %p50 = scmp.eq.s32.totalorder %s10, 0
    %p51 = por %p49, %p50
    %p52 = scmp.ne.s32.totalorder %s44, %s46
    %p53 = scmp.eq.s32.totalorder %s15, 7
    %p54 = por %p52, %p53
    %p55 = scmp.ne.s32.totalorder %s46, %s47
    %p56 = scmp.eq.s32.totalorder %s15, 0
    %p57 = por %p55, %p56
    %p58 = scmp.ne.s32.totalorder %s46, %s47
    %p59 = scmp.eq.s32.totalorder %s16, 7
    %p60 = por %p58, %p59
    %p62 = scmp.ne.s32.totalorder %s47, %s61
    %p63 = scmp.eq.s32.totalorder %s16, 0
    %p64 = por %p62, %p63
    %s66 = sadd.s32 %s65, 1
    %p69 = scmp.eq.s32.totalorder %s10, 7
    %p70 = scmp.ne.s32.totalorder %s65, %s67
    %p71 = scmp.eq.s32.totalorder %s10, 0
    %p72 = por %p70, %p71
    %p73 = scmp.ne.s32.totalorder %s65, %s67
    %p74 = scmp.eq.s32.totalorder %s15, 7
    %p75 = por %p73, %p74
    %p76 = scmp.ne.s32.totalorder %s67, %s68
    %p77 = scmp.eq.s32.totalorder %s15, 0
    %p78 = por %p76, %p77
    %p79 = scmp.ne.s32.totalorder %s67, %s68
    %p80 = scmp.eq.s32.totalorder %s16, 7
    %p81 = por %p79, %p80
    %p83 = scmp.ne.s32.totalorder %s68, %s82
    %p84 = scmp.eq.s32.totalorder %s16, 0
    %p85 = por %p83, %p84
    %s87 = sadd.s32 %s86, 1
    %p90 = scmp.eq.s32.totalorder %s10, 7
    %p91 = scmp.ne.s32.totalorder %s86, %s88
    %p92 = scmp.eq.s32.totalorder %s10, 0
    %p93 = por %p91, %p92
    %p94 = scmp.ne.s32.totalorder %s86, %s88
    %p95 = scmp.eq.s32.totalorder %s15, 7
    %p96 = por %p94, %p95
    %p97 = scmp.ne.s32.totalorder %s88, %s89
    %p98 = scmp.eq.s32.totalorder %s15, 0
    %p99 = por %p97, %p98
    %p100 = scmp.ne.s32.totalorder %s88, %s89
    %p101 = scmp.eq.s32.totalorder %s16, 7
    %p102 = por %p100, %p101
    %p104 = scmp.ne.s32.totalorder %s89, %s103
    %p105 = scmp.eq.s32.totalorder %s16, 0
    %p106 = por %p104, %p105
    %s107 = ssub.s32 %s10, %s17
    %p108 = scmp.eq.s32.totalorder %s107, 0
    %s110 = sadd.s32 %s109, 1
    %s111 = scalar_select %p108, %s109, %s110
    %p114 = pneg %p108
    %p115 = scmp.eq.s32.totalorder %s10, 7
    %p116 = por %p114, %p115
    %p117 = scmp.ne.s32.totalorder %s109, %s112
    %p118 = scmp.eq.s32.totalorder %s10, 0
    %p119 = por %p117, %p118
    %p120 = scmp.ne.s32.totalorder %s109, %s112
    %p121 = scmp.eq.s32.totalorder %s15, 7
    %p122 = por %p120, %p121
    %p123 = scmp.ne.s32.totalorder %s112, %s113
    %p124 = scmp.eq.s32.totalorder %s15, 0
    %p125 = por %p123, %p124
    %p126 = scmp.ne.s32.totalorder %s112, %s113
    %p127 = scmp.eq.s32.totalorder %s16, 7
    %p128 = por %p126, %p127
    %p130 = scmp.ne.s32.totalorder %s113, %s129
    %p131 = scmp.eq.s32.totalorder %s16, 0
    %p132 = por %p130, %p131
    %p133 = scmp.le.s32.totalorder 1, %s10
    %p134 = scmp.lt.s32.totalorder %s10, 9
    %p135 = pnand %p133, %p134
    %p136 = pneg %p135
    // Predicated region
    $region9: #{hrnet_forward.22} parent=5 // pred_check
      _
    $region10: #{hrnet_forward.22} parent=5 // pred_check_branch
      %138 = sbr.rel (%p135) target = $region12
    $region11: #{hrnet_forward.22} parent=5 // pred_region
      %s139 = ssub.s32 %s10, 1
      // Predicated region
      $region13: #{hrnet_forward.22} parent=11 // pred_check
        %p140 = pneg %p57
      $region14: #{hrnet_forward.22} parent=11 // pred_check_branch
        %142 = sbr.rel (%p140) target = $region16
      $region15: #{hrnet_forward.22} parent=11 // pred_region
        _
      $region16: #{hrnet_forward.22} parent=11 // pred_fallthru
        _
      // Predicated region
      $region17: #{hrnet_forward.22} parent=11 // pred_check
        %p143 = pneg %p78
      $region18: #{hrnet_forward.22} parent=11 // pred_check_branch
        %145 = sbr.rel (%p143) target = $region20
      $region19: #{hrnet_forward.22} parent=11 // pred_region
        _
      $region20: #{hrnet_forward.22} parent=11 // pred_fallthru
        _
      // Predicated region
      $region21: #{hrnet_forward.22} parent=11 // pred_check
        %p146 = pneg %p99
      $region22: #{hrnet_forward.22} parent=11 // pred_check_branch
        %148 = sbr.rel (%p146) target = $region24
      $region23: #{hrnet_forward.22} parent=11 // pred_region
        _
      $region24: #{hrnet_forward.22} parent=11 // pred_fallthru
        _
    $region12: #{hrnet_forward.22} parent=5 // pred_fallthru
      _
    %p149 = scmp.lt.s32.totalorder %s10, 8
    // Predicated region
    $region25: #{hrnet_forward.22} parent=5 // pred_check
      %p150 = pneg %p149
    $region26: #{hrnet_forward.22} parent=5 // pred_check_branch
      %152 = sbr.rel (%p150) target = $region28
    $region27: #{hrnet_forward.22} parent=5 // pred_region
      // Predicated region
      $region29: #{hrnet_forward.22} parent=27 // pred_check
        %p153 = pneg %p30
      $region30: #{hrnet_forward.22} parent=27 // pred_check_branch
        %155 = sbr.rel (%p153) target = $region32
      $region31: #{hrnet_forward.22} parent=27 // pred_region
        %s156 = smul.u32 64, %s10
        %p157 = scmp.lt.s32.totalorder %s156, 511
        %s158 = scalar_select %p157, %s156, 511
        %s159 = smul.addr %s158, 4
        %s160 = scalar_lea.vmem %s0, %s159
        %s161 = smul.u32 64, %s10
      $region32: #{hrnet_forward.22} parent=27 // pred_fallthru
        _
    $region28: #{hrnet_forward.22} parent=5 // pred_fallthru
      _
    %p162 = scmp.le.s32.totalorder 1, %s10
    %p163 = scmp.lt.s32.totalorder %s10, 9
    %p164 = pnand %p162, %p163
    %p165 = pneg %p164
    // Predicated region
    $region33: #{hrnet_forward.22} parent=5 // pred_check
      _
    $region34: #{hrnet_forward.22} parent=5 // pred_check_branch
      %167 = sbr.rel (%p164) target = $region36
    $region35: #{hrnet_forward.22} parent=5 // pred_region
      %s168 = ssub.s32 %s10, 1
      %s169 = smul.u32 64, %s15
      %p170 = scmp.lt.s32.totalorder %s169, 511
      %s171 = scalar_select %p170, %s169, 511
      %s172 = smul.addr %s171, 4
      %s173 = scalar_lea.vmem %s0, %s172
      %p174 = pneg %p36
      %p175 = pneg %p33
      %p176 = pneg %p57
      %p177 = pneg %p54
      %p178 = pneg %p78
      %p179 = pneg %p75
      %p180 = pneg %p99
      %p181 = pneg %p96
      %p182 = pneg %p125
      %p183 = pneg %p122
      %s184 = smul.u32 64, %s15
      %p185 = scmp.lt.s32.totalorder %s184, 511
      %s186 = scalar_select %p185, %s184, 511
      %s187 = smul.addr %s186, 4
      %s188 = scalar_lea.vmem %s4, %s187
      %s189 = smul.u32 64, %s15
      %p190 = scmp.lt.s32.totalorder %s189, 511
      %s191 = scalar_select %p190, %s189, 511
      %s192 = smul.addr %s191, 4
      %s193 = scalar_lea.vmem %s0, %s192
      %s194 = smul.u32 64, %s15
      %s195 = smul.u32 64, %s15
      %p196 = scmp.lt.s32.totalorder %s195, 511
      %s197 = scalar_select %p196, %s195, 511
      %s198 = smul.addr %s197, 4
      %s199 = scalar_lea.vmem %s4, %s198
      %s200 = smul.u32 64, %s15
      %v202 = vld [vmem:[%s193] sm:$0xf]
      %v203 = vld [vmem:[%s193 + $0x4] sm:$0xf]
      %v204 = vld [vmem:[%s193 + $0x8] sm:$0xf]
      %v205 = vld [vmem:[%s193 + $0xc] sm:$0xf]
      %v206 = vld [vmem:[%s193 + $0x10] sm:$0xf]
      %v207 = vld [vmem:[%s193 + $0x14] sm:$0xf]
      %v208 = vld [vmem:[%s193 + $0x18] sm:$0xf]
      %v209 = vld [vmem:[%s193 + $0x1c] sm:$0xf]
      %v210 = vld [vmem:[%s193 + $0x20] sm:$0xf]
      %v211 = vld [vmem:[%s193 + $0x24] sm:$0xf]
      %v212 = vld [vmem:[%s193 + $0x28] sm:$0xf]
      %v213 = vld [vmem:[%s193 + $0x2c] sm:$0xf]
      %v214 = vld [vmem:[%s193 + $0x30] sm:$0xf]
      %v215 = vld [vmem:[%s193 + $0x34] sm:$0xf]
      %v216 = vld [vmem:[%s193 + $0x38] sm:$0xf]
      %v217 = vld [vmem:[%s193 + $0x3c] sm:$0xf]
      %v218 = vld [vmem:[%s193 + $0x40] sm:$0xf]
      %v219 = vld [vmem:[%s193 + $0x44] sm:$0xf]
      %v220 = vld [vmem:[%s193 + $0x48] sm:$0xf]
      %v221 = vld [vmem:[%s193 + $0x4c] sm:$0xf]
      %v222 = vld [vmem:[%s193 + $0x50] sm:$0xf]
      %v223 = vld [vmem:[%s193 + $0x54] sm:$0xf]
      %v224 = vld [vmem:[%s193 + $0x58] sm:$0xf]
      %v225 = vld [vmem:[%s193 + $0x5c] sm:$0xf]
      %v226 = vld [vmem:[%s193 + $0x60] sm:$0xf]
      %v227 = vld [vmem:[%s193 + $0x64] sm:$0xf]
      %v228 = vld [vmem:[%s193 + $0x68] sm:$0xf]
      %v229 = vld [vmem:[%s193 + $0x6c] sm:$0xf]
      %v230 = vld [vmem:[%s193 + $0x70] sm:$0xf]
      %v231 = vld [vmem:[%s193 + $0x74] sm:$0xf]
      %v232 = vld [vmem:[%s193 + $0x78] sm:$0xf]
      %v233 = vld [vmem:[%s193 + $0x7c] sm:$0xf]
      %v234 = vld [vmem:[%s193 + $0x80] sm:$0xf]
      %v235 = vld [vmem:[%s193 + $0x84] sm:$0xf]
      %v236 = vld [vmem:[%s193 + $0x88] sm:$0xf]
      %v237 = vld [vmem:[%s193 + $0x8c] sm:$0xf]
      %v238 = vld [vmem:[%s193 + $0x90] sm:$0xf]
      %v239 = vld [vmem:[%s193 + $0x94] sm:$0xf]
      %v240 = vld [vmem:[%s193 + $0x98] sm:$0xf]
      %v241 = vld [vmem:[%s193 + $0x9c] sm:$0xf]
      %v242 = vld [vmem:[%s193 + $0xa0] sm:$0xf]
      %v243 = vld [vmem:[%s193 + $0xa4] sm:$0xf]
      %v244 = vld [vmem:[%s193 + $0xa8] sm:$0xf]
      %v245 = vld [vmem:[%s193 + $0xac] sm:$0xf]
      %v246 = vld [vmem:[%s193 + $0xb0] sm:$0xf]
      %v247 = vld [vmem:[%s193 + $0xb4] sm:$0xf]
      %v248 = vld [vmem:[%s193 + $0xb8] sm:$0xf]
      %v249 = vld [vmem:[%s193 + $0xbc] sm:$0xf]
      %v250 = vld [vmem:[%s193 + $0xc0] sm:$0xf]
      %v251 = vld [vmem:[%s193 + $0xc4] sm:$0xf]
      %v252 = vld [vmem:[%s193 + $0xc8] sm:$0xf]
      %v253 = vld [vmem:[%s193 + $0xcc] sm:$0xf]
      %v254 = vld [vmem:[%s193 + $0xd0] sm:$0xf]
      %v255 = vld [vmem:[%s193 + $0xd4] sm:$0xf]
      %v256 = vld [vmem:[%s193 + $0xd8] sm:$0xf]
      %v257 = vld [vmem:[%s193 + $0xdc] sm:$0xf]
      %v258 = vld [vmem:[%s193 + $0xe0] sm:$0xf]
      %v259 = vld [vmem:[%s193 + $0xe4] sm:$0xf]
      %v260 = vld [vmem:[%s193 + $0xe8] sm:$0xf]
      %v261 = vld [vmem:[%s193 + $0xec] sm:$0xf]
      %v262 = vld [vmem:[%s193 + $0xf0] sm:$0xf]
      %v263 = vld [vmem:[%s193 + $0xf4] sm:$0xf]
      %v264 = vld [vmem:[%s193 + $0xf8] sm:$0xf]
      %v265 = vld [vmem:[%s193 + $0xfc] sm:$0xf]
      %v266 = vld [vmem:[%s1] sm:$0xf]
      %v267 = vld [vmem:[%s1 + $0x4] sm:$0xf]
      %v268 = vld [vmem:[%s1 + $0x8] sm:$0xf]
      %v269 = vld [vmem:[%s1 + $0xc] sm:$0xf]
      %v270 = vld [vmem:[%s1 + $0x10] sm:$0xf]
      %v271 = vld [vmem:[%s1 + $0x14] sm:$0xf]
      %v272 = vld [vmem:[%s1 + $0x18] sm:$0xf]
      %v273 = vld [vmem:[%s1 + $0x1c] sm:$0xf]
      %v274 = vld [vmem:[%s1 + $0x20] sm:$0xf]
      %v275 = vld [vmem:[%s1 + $0x24] sm:$0xf]
      %v276 = vld [vmem:[%s1 + $0x28] sm:$0xf]
      %v277 = vld [vmem:[%s1 + $0x2c] sm:$0xf]
      %v278 = vld [vmem:[%s1 + $0x30] sm:$0xf]
      %v279 = vld [vmem:[%s1 + $0x34] sm:$0xf]
      %v280 = vld [vmem:[%s1 + $0x38] sm:$0xf]
      %v281 = vld [vmem:[%s1 + $0x3c] sm:$0xf]
      %v346 = vunpack.c.l.b16 %v202
      %v347 = vunpack.c.l.b16 %v203
      %v348 = vunpack.c.l.b16 %v204
      %v349 = vunpack.c.l.b16 %v205
      %v350 = vunpack.c.l.b16 %v206
      %v351 = vunpack.c.l.b16 %v207
      %v352 = vunpack.c.l.b16 %v208
      %v353 = vunpack.c.l.b16 %v209
      %v354 = vunpack.c.l.b16 %v210
      %v355 = vunpack.c.l.b16 %v211
      %v356 = vunpack.c.l.b16 %v212
      %v357 = vunpack.c.l.b16 %v213
      %v358 = vunpack.c.l.b16 %v214
      %v359 = vunpack.c.l.b16 %v215
      %v360 = vunpack.c.l.b16 %v216
      %v361 = vunpack.c.l.b16 %v217
      %v362 = vunpack.c.l.b16 %v218
      %v363 = vunpack.c.l.b16 %v219
      %v364 = vunpack.c.l.b16 %v220
      %v365 = vunpack.c.l.b16 %v221
      %v366 = vunpack.c.l.b16 %v222
      %v367 = vunpack.c.l.b16 %v223
      %v368 = vunpack.c.l.b16 %v224
      %v369 = vunpack.c.l.b16 %v225
      %v370 = vunpack.c.l.b16 %v226
      %v371 = vunpack.c.l.b16 %v227
      %v372 = vunpack.c.l.b16 %v228
      %v373 = vunpack.c.l.b16 %v229
      %v374 = vunpack.c.l.b16 %v230
      %v375 = vunpack.c.l.b16 %v231
      %v376 = vunpack.c.l.b16 %v232
      %v377 = vunpack.c.l.b16 %v233
      %v378 = vunpack.c.l.b16 %v234
      %v379 = vunpack.c.l.b16 %v235
      %v380 = vunpack.c.l.b16 %v236
      %v381 = vunpack.c.l.b16 %v237
      %v382 = vunpack.c.l.b16 %v238
      %v383 = vunpack.c.l.b16 %v239
      %v384 = vunpack.c.l.b16 %v240
      %v385 = vunpack.c.l.b16 %v241
      %v386 = vunpack.c.l.b16 %v242
      %v387 = vunpack.c.l.b16 %v243
      %v388 = vunpack.c.l.b16 %v244
      %v389 = vunpack.c.l.b16 %v245
      %v390 = vunpack.c.l.b16 %v246
      %v391 = vunpack.c.l.b16 %v247
      %v392 = vunpack.c.l.b16 %v248
      %v393 = vunpack.c.l.b16 %v249
      %v394 = vunpack.c.l.b16 %v250
      %v395 = vunpack.c.l.b16 %v251
      %v396 = vunpack.c.l.b16 %v252
      %v397 = vunpack.c.l.b16 %v253
      %v398 = vunpack.c.l.b16 %v254
      %v399 = vunpack.c.l.b16 %v255
      %v400 = vunpack.c.l.b16 %v256
      %v401 = vunpack.c.l.b16 %v257
      %v402 = vunpack.c.l.b16 %v258
      %v403 = vunpack.c.l.b16 %v259
      %v404 = vunpack.c.l.b16 %v260
      %v405 = vunpack.c.l.b16 %v261
      %v406 = vunpack.c.l.b16 %v262
      %v407 = vunpack.c.l.b16 %v263
      %v408 = vunpack.c.l.b16 %v264
      %v409 = vunpack.c.l.b16 %v265
      %v410 = vpack.c.b16 %v347, %v346
      %v411 = vpack.c.b16 %v349, %v348
      %v412 = vpack.c.b16 %v351, %v350
      %v413 = vpack.c.b16 %v353, %v352
      %v414 = vpack.c.b16 %v355, %v354
      %v415 = vpack.c.b16 %v357, %v356
      %v416 = vpack.c.b16 %v359, %v358
      %v417 = vpack.c.b16 %v361, %v360
      %v418 = vpack.c.b16 %v363, %v362
      %v419 = vpack.c.b16 %v365, %v364
      %v420 = vpack.c.b16 %v367, %v366
      %v421 = vpack.c.b16 %v369, %v368
      %v422 = vpack.c.b16 %v371, %v370
      %v423 = vpack.c.b16 %v373, %v372
      %v424 = vpack.c.b16 %v375, %v374
      %v425 = vpack.c.b16 %v377, %v376
      %v426 = vpack.c.b16 %v379, %v378
      %v427 = vpack.c.b16 %v381, %v380
      %v428 = vpack.c.b16 %v383, %v382
      %v429 = vpack.c.b16 %v385, %v384
      %v430 = vpack.c.b16 %v387, %v386
      %v431 = vpack.c.b16 %v389, %v388
      %v432 = vpack.c.b16 %v391, %v390
      %v433 = vpack.c.b16 %v393, %v392
      %v434 = vpack.c.b16 %v395, %v394
      %v435 = vpack.c.b16 %v397, %v396
      %v436 = vpack.c.b16 %v399, %v398
      %v437 = vpack.c.b16 %v401, %v400
      %v438 = vpack.c.b16 %v403, %v402
      %v439 = vpack.c.b16 %v405, %v404
      %v440 = vpack.c.b16 %v407, %v406
      %v441 = vpack.c.b16 %v409, %v408
      %v490 = vunpack.c.l.b16 %v266
      %v491 = vunpack.c.l.b16 %v267
      %v492 = vunpack.c.l.b16 %v268
      %v493 = vunpack.c.l.b16 %v269
      %v494 = vunpack.c.l.b16 %v270
      %v495 = vunpack.c.l.b16 %v271
      %v496 = vunpack.c.l.b16 %v272
      %v497 = vunpack.c.l.b16 %v273
      %v498 = vunpack.c.l.b16 %v274
      %v499 = vunpack.c.l.b16 %v275
      %v500 = vunpack.c.l.b16 %v276
      %v501 = vunpack.c.l.b16 %v277
      %v502 = vunpack.c.l.b16 %v278
      %v503 = vunpack.c.l.b16 %v279
      %v504 = vunpack.c.l.b16 %v280
      %v505 = vunpack.c.l.b16 %v281
      %v506 = vpack.c.b16 %v491, %v490
      %v507 = vpack.c.b16 %v493, %v492
      %v508 = vpack.c.b16 %v495, %v494
      %v509 = vpack.c.b16 %v497, %v496
      %v510 = vpack.c.b16 %v499, %v498
      %v511 = vpack.c.b16 %v501, %v500
      %v512 = vpack.c.b16 %v503, %v502
      %v513 = vpack.c.b16 %v505, %v504
      %522 = vmatprep.subr.bf16.mxu0 0
      %523 = vmatpush1.bf16.msra.mxu0 %v513
      %524 = vmatprep.subr.bf16.mxu0 0
      %525 = vmatpush1.bf16.msra.mxu0 %v512
      %526 = vmatprep.subr.bf16.mxu0 0
      %527 = vmatpush1.bf16.msra.mxu0 %v511
      %528 = vmatprep.subr.bf16.mxu0 0
      %529 = vmatpush1.bf16.msra.mxu0 %v510
      %530 = vmatprep.subr.bf16.mxu0 0
      %531 = vmatpush1.bf16.msra.mxu0 %v509
      %532 = vmatprep.subr.bf16.mxu0 0
      %533 = vmatpush1.bf16.msra.mxu0 %v508
      %534 = vmatprep.subr.bf16.mxu0 0
      %535 = vmatpush1.bf16.msra.mxu0 %v507
      %536 = vmatprep.subr.bf16.mxu0 0
      %537 = vmatpush1.bf16.msra.mxu0 %v506
      %538 = vmatprep.subr.bf16.mxu0 0
      %539 = vmatpush2.bf16.msra.mxu0 0
      %540 = vmatprep.subr.bf16.mxu0 0
      %541 = vmatpush2.bf16.msra.mxu0 0
      %542 = vmatprep.subr.bf16.mxu0 0
      %543 = vmatpush2.bf16.msra.mxu0 0
      %544 = vmatprep.subr.bf16.mxu0 0
      %545 = vmatpush2.bf16.msra.mxu0 0
      %546 = vmatprep.subr.bf16.mxu0 0
      %547 = vmatpush2.bf16.msra.mxu0 0
      %548 = vmatprep.subr.bf16.mxu0 0
      %549 = vmatpush2.bf16.msra.mxu0 0
      %550 = vmatprep.subr.bf16.mxu0 0
      %551 = vmatpush2.bf16.msra.mxu0 0
      %552 = vmatprep.subr.bf16.mxu0 0
      %553 = vmatpush2.bf16.msra.mxu0 0
      %554 = vmatprep.mubr.bf16.mxu0 0
      %555 = vmatmul.mubr.bf16.gmra.mxu0 %v410
      %v556 = vpop.f32.mrf.mxu0
      %v557 = vadd.f32 0.0, %v556
      %v558 = vpop.f32.mrf.mxu0
      %v559 = vpop.f32.mrf.mxu0
      %v560 = vadd.f32 0.0, %v559
      %v561 = vpop.f32.mrf.mxu0
      %562 = vmatprep.mubr.bf16.mxu0 0
      %563 = vmatmul.mubr.bf16.gmra.mxu0 %v411
      %v564 = vpop.f32.mrf.mxu0
      %v565 = vadd.f32 0.0, %v564
      %v566 = vpop.f32.mrf.mxu0
      %v567 = vpop.f32.mrf.mxu0
      %v568 = vadd.f32 0.0, %v567
      %v569 = vpop.f32.mrf.mxu0
      %570 = vmatprep.mubr.bf16.mxu0 0
      %571 = vmatmul.mubr.bf16.gmra.mxu0 %v412
      %v572 = vpop.f32.mrf.mxu0
      %v573 = vadd.f32 0.0, %v572
      %v574 = vpop.f32.mrf.mxu0
      %v575 = vpop.f32.mrf.mxu0
      %v576 = vadd.f32 0.0, %v575
      %v577 = vpop.f32.mrf.mxu0
      %578 = vmatprep.mubr.bf16.mxu0 0
      %579 = vmatmul.mubr.bf16.gmra.mxu0 %v413
      %v580 = vpop.f32.mrf.mxu0
      %v581 = vadd.f32 0.0, %v580
      %v582 = vpop.f32.mrf.mxu0
      %v583 = vpop.f32.mrf.mxu0
      %v584 = vadd.f32 0.0, %v583
      %v585 = vpop.f32.mrf.mxu0
      %586 = vmatprep.mubr.bf16.mxu0 0
      %587 = vmatmul.mubr.bf16.gmra.mxu0 %v414
      %v588 = vpop.f32.mrf.mxu0
      %v589 = vadd.f32 0.0, %v588
      %v590 = vpop.f32.mrf.mxu0
      %v591 = vpop.f32.mrf.mxu0
      %v592 = vadd.f32 0.0, %v591
      %v593 = vpop.f32.mrf.mxu0
      %594 = vmatprep.mubr.bf16.mxu0 0
      %595 = vmatmul.mubr.bf16.gmra.mxu0 %v415
      %v596 = vpop.f32.mrf.mxu0
      %v597 = vadd.f32 0.0, %v596
      %v598 = vpop.f32.mrf.mxu0
      %v599 = vpop.f32.mrf.mxu0
      %v600 = vadd.f32 0.0, %v599
      %v601 = vpop.f32.mrf.mxu0
      %602 = vmatprep.mubr.bf16.mxu0 0
      %603 = vmatmul.mubr.bf16.gmra.mxu0 %v416
      %v604 = vpop.f32.mrf.mxu0
      %v605 = vadd.f32 0.0, %v604
      %v606 = vpop.f32.mrf.mxu0
      %v607 = vpop.f32.mrf.mxu0
      %v608 = vadd.f32 0.0, %v607
      %v609 = vpop.f32.mrf.mxu0
      %610 = vmatprep.mubr.bf16.mxu0 0
      %611 = vmatmul.mubr.bf16.gmra.mxu0 %v417
      %v612 = vpop.f32.mrf.mxu0
      %v613 = vadd.f32 0.0, %v612
      %v614 = vpop.f32.mrf.mxu0
      %v615 = vpop.f32.mrf.mxu0
      %v616 = vadd.f32 0.0, %v615
      %v617 = vpop.f32.mrf.mxu0
      %618 = vmatprep.mubr.bf16.mxu0 0
      %619 = vmatmul.mubr.bf16.gmra.mxu0 %v418
      %v620 = vpop.f32.mrf.mxu0
      %v621 = vadd.f32 0.0, %v620
      %v622 = vpop.f32.mrf.mxu0
      %v623 = vpop.f32.mrf.mxu0
      %v624 = vadd.f32 0.0, %v623
      %v625 = vpop.f32.mrf.mxu0
      %626 = vmatprep.mubr.bf16.mxu0 0
      %627 = vmatmul.mubr.bf16.gmra.mxu0 %v419
      %v628 = vpop.f32.mrf.mxu0
      %v629 = vadd.f32 0.0, %v628
      %v630 = vpop.f32.mrf.mxu0
      %v631 = vpop.f32.mrf.mxu0
      %v632 = vadd.f32 0.0, %v631
      %v633 = vpop.f32.mrf.mxu0
      %634 = vmatprep.mubr.bf16.mxu0 0
      %635 = vmatmul.mubr.bf16.gmra.mxu0 %v420
      %v636 = vpop.f32.mrf.mxu0
      %v637 = vadd.f32 0.0, %v636
      %v638 = vpop.f32.mrf.mxu0
      %v639 = vpop.f32.mrf.mxu0
      %v640 = vadd.f32 0.0, %v639
      %v641 = vpop.f32.mrf.mxu0
      %642 = vmatprep.mubr.bf16.mxu0 0
      %643 = vmatmul.mubr.bf16.gmra.mxu0 %v421
      %v644 = vpop.f32.mrf.mxu0
      %v645 = vadd.f32 0.0, %v644
      %v646 = vpop.f32.mrf.mxu0
      %v647 = vpop.f32.mrf.mxu0
      %v648 = vadd.f32 0.0, %v647
      %v649 = vpop.f32.mrf.mxu0
      %650 = vmatprep.mubr.bf16.mxu0 0
      %651 = vmatmul.mubr.bf16.gmra.mxu0 %v422
      %v652 = vpop.f32.mrf.mxu0
      %v653 = vadd.f32 0.0, %v652
      %v654 = vpop.f32.mrf.mxu0
      %v655 = vpop.f32.mrf.mxu0
      %v656 = vadd.f32 0.0, %v655
      %v657 = vpop.f32.mrf.mxu0
      %658 = vmatprep.mubr.bf16.mxu0 0
      %659 = vmatmul.mubr.bf16.gmra.mxu0 %v423
      %v660 = vpop.f32.mrf.mxu0
      %v661 = vadd.f32 0.0, %v660
      %v662 = vpop.f32.mrf.mxu0
      %v663 = vpop.f32.mrf.mxu0
      %v664 = vadd.f32 0.0, %v663
      %v665 = vpop.f32.mrf.mxu0
      %666 = vmatprep.mubr.bf16.mxu0 0
      %667 = vmatmul.mubr.bf16.gmra.mxu0 %v424
      %v668 = vpop.f32.mrf.mxu0
      %v669 = vadd.f32 0.0, %v668
      %v670 = vpop.f32.mrf.mxu0
      %v671 = vpop.f32.mrf.mxu0
      %v672 = vadd.f32 0.0, %v671
      %v673 = vpop.f32.mrf.mxu0
      %674 = vmatprep.mubr.bf16.mxu0 0
      %675 = vmatmul.mubr.bf16.gmra.mxu0 %v425
      %v676 = vpop.f32.mrf.mxu0
      %v677 = vadd.f32 0.0, %v676
      %v678 = vpop.f32.mrf.mxu0
      %v679 = vpop.f32.mrf.mxu0
      %v680 = vadd.f32 0.0, %v679
      %v681 = vpop.f32.mrf.mxu0
      %682 = vmatprep.mubr.bf16.mxu0 0
      %683 = vmatmul.mubr.bf16.gmra.mxu0 %v426
      %v684 = vpop.f32.mrf.mxu0
      %v685 = vadd.f32 0.0, %v684
      %v686 = vpop.f32.mrf.mxu0
      %v687 = vpop.f32.mrf.mxu0
      %v688 = vadd.f32 0.0, %v687
      %v689 = vpop.f32.mrf.mxu0
      %690 = vmatprep.mubr.bf16.mxu0 0
      %691 = vmatmul.mubr.bf16.gmra.mxu0 %v427
      %v692 = vpop.f32.mrf.mxu0
      %v693 = vadd.f32 0.0, %v692
      %v694 = vpop.f32.mrf.mxu0
      %v695 = vpop.f32.mrf.mxu0
      %v696 = vadd.f32 0.0, %v695
      %v697 = vpop.f32.mrf.mxu0
      %698 = vmatprep.mubr.bf16.mxu0 0
      %699 = vmatmul.mubr.bf16.gmra.mxu0 %v428
      %v700 = vpop.f32.mrf.mxu0
      %v701 = vadd.f32 0.0, %v700
      %v702 = vpop.f32.mrf.mxu0
      %v703 = vpop.f32.mrf.mxu0
      %v704 = vadd.f32 0.0, %v703
      %v705 = vpop.f32.mrf.mxu0
      %706 = vmatprep.mubr.bf16.mxu0 0
      %707 = vmatmul.mubr.bf16.gmra.mxu0 %v429
      %v708 = vpop.f32.mrf.mxu0
      %v709 = vadd.f32 0.0, %v708
      %v710 = vpop.f32.mrf.mxu0
      %v711 = vpop.f32.mrf.mxu0
      %v712 = vadd.f32 0.0, %v711
      %v713 = vpop.f32.mrf.mxu0
      %714 = vmatprep.mubr.bf16.mxu0 0
      %715 = vmatmul.mubr.bf16.gmra.mxu0 %v430
      %v716 = vpop.f32.mrf.mxu0
      %v717 = vadd.f32 0.0, %v716
      %v718 = vpop.f32.mrf.mxu0
      %v719 = vpop.f32.mrf.mxu0
      %v720 = vadd.f32 0.0, %v719
      %v721 = vpop.f32.mrf.mxu0
      %722 = vmatprep.mubr.bf16.mxu0 0
      %723 = vmatmul.mubr.bf16.gmra.mxu0 %v431
      %v724 = vpop.f32.mrf.mxu0
      %v725 = vadd.f32 0.0, %v724
      %v726 = vpop.f32.mrf.mxu0
      %v727 = vpop.f32.mrf.mxu0
      %v728 = vadd.f32 0.0, %v727
      %v729 = vpop.f32.mrf.mxu0
      %730 = vmatprep.mubr.bf16.mxu0 0
      %731 = vmatmul.mubr.bf16.gmra.mxu0 %v432
      %v732 = vpop.f32.mrf.mxu0
      %v733 = vadd.f32 0.0, %v732
      %v734 = vpop.f32.mrf.mxu0
      %v735 = vpop.f32.mrf.mxu0
      %v736 = vadd.f32 0.0, %v735
      %v737 = vpop.f32.mrf.mxu0
      %738 = vmatprep.mubr.bf16.mxu0 0
      %739 = vmatmul.mubr.bf16.gmra.mxu0 %v433
      %v740 = vpop.f32.mrf.mxu0
      %v741 = vadd.f32 0.0, %v740
      %v742 = vpop.f32.mrf.mxu0
      %v743 = vpop.f32.mrf.mxu0
      %v744 = vadd.f32 0.0, %v743
      %v745 = vpop.f32.mrf.mxu0
      %746 = vmatprep.mubr.bf16.mxu0 0
      %747 = vmatmul.mubr.bf16.gmra.mxu0 %v434
      %v748 = vpop.f32.mrf.mxu0
      %v749 = vadd.f32 0.0, %v748
      %v750 = vpop.f32.mrf.mxu0
      %v751 = vpop.f32.mrf.mxu0
      %v752 = vadd.f32 0.0, %v751
      %v753 = vpop.f32.mrf.mxu0
      %754 = vmatprep.mubr.bf16.mxu0 0
      %755 = vmatmul.mubr.bf16.gmra.mxu0 %v435
      %v756 = vpop.f32.mrf.mxu0
      %v757 = vadd.f32 0.0, %v756
      %v758 = vpop.f32.mrf.mxu0
      %v759 = vpop.f32.mrf.mxu0
      %v760 = vadd.f32 0.0, %v759
      %v761 = vpop.f32.mrf.mxu0
      %762 = vmatprep.mubr.bf16.mxu0 0
      %763 = vmatmul.mubr.bf16.gmra.mxu0 %v436
      %v764 = vpop.f32.mrf.mxu0
      %v765 = vadd.f32 0.0, %v764
      %v766 = vpop.f32.mrf.mxu0
      %v767 = vpop.f32.mrf.mxu0
      %v768 = vadd.f32 0.0, %v767
      %v769 = vpop.f32.mrf.mxu0
      %770 = vmatprep.mubr.bf16.mxu0 0
      %771 = vmatmul.mubr.bf16.gmra.mxu0 %v437
      %v772 = vpop.f32.mrf.mxu0
      %v773 = vadd.f32 0.0, %v772
      %v774 = vpop.f32.mrf.mxu0
      %v775 = vpop.f32.mrf.mxu0
      %v776 = vadd.f32 0.0, %v775
      %v777 = vpop.f32.mrf.mxu0
      %778 = vmatprep.mubr.bf16.mxu0 0
      %779 = vmatmul.mubr.bf16.gmra.mxu0 %v438
      %v780 = vpop.f32.mrf.mxu0
      %v781 = vadd.f32 0.0, %v780
      %v782 = vpop.f32.mrf.mxu0
      %v783 = vpop.f32.mrf.mxu0
      %v784 = vadd.f32 0.0, %v783
      %v785 = vpop.f32.mrf.mxu0
      %786 = vmatprep.mubr.bf16.mxu0 0
      %787 = vmatmul.mubr.bf16.gmra.mxu0 %v439
      %v788 = vpop.f32.mrf.mxu0
      %v789 = vadd.f32 0.0, %v788
      %v790 = vpop.f32.mrf.mxu0
      %v791 = vpop.f32.mrf.mxu0
      %v792 = vadd.f32 0.0, %v791
      %v793 = vpop.f32.mrf.mxu0
      %794 = vmatprep.mubr.bf16.mxu0 0
      %795 = vmatmul.mubr.bf16.gmra.mxu0 %v440
      %v796 = vpop.f32.mrf.mxu0
      %v797 = vadd.f32 0.0, %v796
      %v798 = vpop.f32.mrf.mxu0
      %v799 = vpop.f32.mrf.mxu0
      %v800 = vadd.f32 0.0, %v799
      %v801 = vpop.f32.mrf.mxu0
      %802 = vmatprep.mubr.bf16.mxu0 0
      %803 = vmatmul.mubr.bf16.gmra.mxu0 %v441
      %v804 = vpop.f32.mrf.mxu0
      %v805 = vadd.f32 0.0, %v804
      %v806 = vpop.f32.mrf.mxu0
      %v807 = vpop.f32.mrf.mxu0
      %v808 = vadd.f32 0.0, %v807
      %v809 = vpop.f32.mrf.mxu0
      %810 = vdwg.mxu0
      %v811 = vld [vmem:[%s2] sm:$0x1]
      %v813 = vlaneseq
      %v814 = vshrl.u32 %v813, 7
      %v815 = vsub.s32 0, %v814
      %v816 = vrot.slane %v811, %v815
      %v818 = vmul.f32 %v557, %v816
      %v819 = vmul.f32 %v560, %v816
      %v820 = vmul.f32 %v565, %v816
      %v821 = vmul.f32 %v568, %v816
      %v822 = vmul.f32 %v573, %v816
      %v823 = vmul.f32 %v576, %v816
      %v824 = vmul.f32 %v581, %v816
      %v825 = vmul.f32 %v584, %v816
      %v826 = vmul.f32 %v589, %v816
      %v827 = vmul.f32 %v592, %v816
      %v828 = vmul.f32 %v597, %v816
      %v829 = vmul.f32 %v600, %v816
      %v830 = vmul.f32 %v605, %v816
      %v831 = vmul.f32 %v608, %v816
      %v832 = vmul.f32 %v613, %v816
      %v833 = vmul.f32 %v616, %v816
      %v834 = vmul.f32 %v621, %v816
      %v835 = vmul.f32 %v624, %v816
      %v836 = vmul.f32 %v629, %v816
      %v837 = vmul.f32 %v632, %v816
      %v838 = vmul.f32 %v637, %v816
      %v839 = vmul.f32 %v640, %v816
      %v840 = vmul.f32 %v645, %v816
      %v841 = vmul.f32 %v648, %v816
      %v842 = vmul.f32 %v653, %v816
      %v843 = vmul.f32 %v656, %v816
      %v844 = vmul.f32 %v661, %v816
      %v845 = vmul.f32 %v664, %v816
      %v846 = vmul.f32 %v669, %v816
      %v847 = vmul.f32 %v672, %v816
      %v848 = vmul.f32 %v677, %v816
      %v849 = vmul.f32 %v680, %v816
      %v850 = vmul.f32 %v685, %v816
      %v851 = vmul.f32 %v688, %v816
      %v852 = vmul.f32 %v693, %v816
      %v853 = vmul.f32 %v696, %v816
      %v854 = vmul.f32 %v701, %v816
      %v855 = vmul.f32 %v704, %v816
      %v856 = vmul.f32 %v709, %v816
      %v857 = vmul.f32 %v712, %v816
      %v858 = vmul.f32 %v717, %v816
      %v859 = vmul.f32 %v720, %v816
      %v860 = vmul.f32 %v725, %v816
      %v861 = vmul.f32 %v728, %v816
      %v862 = vmul.f32 %v733, %v816
      %v863 = vmul.f32 %v736, %v816
      %v864 = vmul.f32 %v741, %v816
      %v865 = vmul.f32 %v744, %v816
      %v866 = vmul.f32 %v749, %v816
      %v867 = vmul.f32 %v752, %v816
      %v868 = vmul.f32 %v757, %v816
      %v869 = vmul.f32 %v760, %v816
      %v870 = vmul.f32 %v765, %v816
      %v871 = vmul.f32 %v768, %v816
      %v872 = vmul.f32 %v773, %v816
      %v873 = vmul.f32 %v776, %v816
      %v874 = vmul.f32 %v781, %v816
      %v875 = vmul.f32 %v784, %v816
      %v876 = vmul.f32 %v789, %v816
      %v877 = vmul.f32 %v792, %v816
      %v878 = vmul.f32 %v797, %v816
      %v879 = vmul.f32 %v800, %v816
      %v880 = vmul.f32 %v805, %v816
      %v881 = vmul.f32 %v808, %v816
      %v882 = vld [vmem:[%s3] sm:$0x1]
      %v884 = vlaneseq
      %v885 = vshrl.u32 %v884, 7
      %v886 = vsub.s32 0, %v885
      %v887 = vrot.slane %v882, %v886
      %v889 = vadd.f32 %v818, %v887
      %v890 = vadd.f32 %v819, %v887
      %v891 = vadd.f32 %v820, %v887
      %v892 = vadd.f32 %v821, %v887
      %v893 = vadd.f32 %v822, %v887
      %v894 = vadd.f32 %v823, %v887
      %v895 = vadd.f32 %v824, %v887
      %v896 = vadd.f32 %v825, %v887
      %v897 = vadd.f32 %v826, %v887
      %v898 = vadd.f32 %v827, %v887
      %v899 = vadd.f32 %v828, %v887
      %v900 = vadd.f32 %v829, %v887
      %v901 = vadd.f32 %v830, %v887
      %v902 = vadd.f32 %v831, %v887
      %v903 = vadd.f32 %v832, %v887
      %v904 = vadd.f32 %v833, %v887
      %v905 = vadd.f32 %v834, %v887
      %v906 = vadd.f32 %v835, %v887
      %v907 = vadd.f32 %v836, %v887
      %v908 = vadd.f32 %v837, %v887
      %v909 = vadd.f32 %v838, %v887
      %v910 = vadd.f32 %v839, %v887
      %v911 = vadd.f32 %v840, %v887
      %v912 = vadd.f32 %v841, %v887
      %v913 = vadd.f32 %v842, %v887
      %v914 = vadd.f32 %v843, %v887
      %v915 = vadd.f32 %v844, %v887
      %v916 = vadd.f32 %v845, %v887
      %v917 = vadd.f32 %v846, %v887
      %v918 = vadd.f32 %v847, %v887
      %v919 = vadd.f32 %v848, %v887
      %v920 = vadd.f32 %v849, %v887
      %v921 = vadd.f32 %v850, %v887
      %v922 = vadd.f32 %v851, %v887
      %v923 = vadd.f32 %v852, %v887
      %v924 = vadd.f32 %v853, %v887
      %v925 = vadd.f32 %v854, %v887
      %v926 = vadd.f32 %v855, %v887
      %v927 = vadd.f32 %v856, %v887
      %v928 = vadd.f32 %v857, %v887
      %v929 = vadd.f32 %v858, %v887
      %v930 = vadd.f32 %v859, %v887
      %v931 = vadd.f32 %v860, %v887
      %v932 = vadd.f32 %v861, %v887
      %v933 = vadd.f32 %v862, %v887
      %v934 = vadd.f32 %v863, %v887
      %v935 = vadd.f32 %v864, %v887
      %v936 = vadd.f32 %v865, %v887
      %v937 = vadd.f32 %v866, %v887
      %v938 = vadd.f32 %v867, %v887
      %v939 = vadd.f32 %v868, %v887
      %v940 = vadd.f32 %v869, %v887
      %v941 = vadd.f32 %v870, %v887
      %v942 = vadd.f32 %v871, %v887
      %v943 = vadd.f32 %v872, %v887
      %v944 = vadd.f32 %v873, %v887
      %v945 = vadd.f32 %v874, %v887
      %v946 = vadd.f32 %v875, %v887
      %v947 = vadd.f32 %v876, %v887
      %v948 = vadd.f32 %v877, %v887
      %v949 = vadd.f32 %v878, %v887
      %v950 = vadd.f32 %v879, %v887
      %v951 = vadd.f32 %v880, %v887
      %v952 = vadd.f32 %v881, %v887
      %v953 = vmax.f32 %v889, 0.0
      %v954 = vmax.f32 %v890, 0.0
      %v955 = vmax.f32 %v891, 0.0
      %v956 = vmax.f32 %v892, 0.0
      %v957 = vmax.f32 %v893, 0.0
      %v958 = vmax.f32 %v894, 0.0
      %v959 = vmax.f32 %v895, 0.0
      %v960 = vmax.f32 %v896, 0.0
      %v961 = vmax.f32 %v897, 0.0
      %v962 = vmax.f32 %v898, 0.0
      %v963 = vmax.f32 %v899, 0.0
      %v964 = vmax.f32 %v900, 0.0
      %v965 = vmax.f32 %v901, 0.0
      %v966 = vmax.f32 %v902, 0.0
      %v967 = vmax.f32 %v903, 0.0
      %v968 = vmax.f32 %v904, 0.0
      %v969 = vmax.f32 %v905, 0.0
      %v970 = vmax.f32 %v906, 0.0
      %v971 = vmax.f32 %v907, 0.0
      %v972 = vmax.f32 %v908, 0.0
      %v973 = vmax.f32 %v909, 0.0
      %v974 = vmax.f32 %v910, 0.0
      %v975 = vmax.f32 %v911, 0.0
      %v976 = vmax.f32 %v912, 0.0
      %v977 = vmax.f32 %v913, 0.0
      %v978 = vmax.f32 %v914, 0.0
      %v979 = vmax.f32 %v915, 0.0
      %v980 = vmax.f32 %v916, 0.0
      %v981 = vmax.f32 %v917, 0.0
      %v982 = vmax.f32 %v918, 0.0
      %v983 = vmax.f32 %v919, 0.0
      %v984 = vmax.f32 %v920, 0.0
      %v985 = vmax.f32 %v921, 0.0
      %v986 = vmax.f32 %v922, 0.0
      %v987 = vmax.f32 %v923, 0.0
      %v988 = vmax.f32 %v924, 0.0
      %v989 = vmax.f32 %v925, 0.0
      %v990 = vmax.f32 %v926, 0.0
      %v991 = vmax.f32 %v927, 0.0
      %v992 = vmax.f32 %v928, 0.0
      %v993 = vmax.f32 %v929, 0.0
      %v994 = vmax.f32 %v930, 0.0
      %v995 = vmax.f32 %v931, 0.0
      %v996 = vmax.f32 %v932, 0.0
      %v997 = vmax.f32 %v933, 0.0
      %v998 = vmax.f32 %v934, 0.0
      %v999 = vmax.f32 %v935, 0.0
      %v1000 = vmax.f32 %v936, 0.0
      %v1001 = vmax.f32 %v937, 0.0
      %v1002 = vmax.f32 %v938, 0.0
      %v1003 = vmax.f32 %v939, 0.0
      %v1004 = vmax.f32 %v940, 0.0
      %v1005 = vmax.f32 %v941, 0.0
      %v1006 = vmax.f32 %v942, 0.0
      %v1007 = vmax.f32 %v943, 0.0
      %v1008 = vmax.f32 %v944, 0.0
      %v1009 = vmax.f32 %v945, 0.0
      %v1010 = vmax.f32 %v946, 0.0
      %v1011 = vmax.f32 %v947, 0.0
      %v1012 = vmax.f32 %v948, 0.0
      %v1013 = vmax.f32 %v949, 0.0
      %v1014 = vmax.f32 %v950, 0.0
      %v1015 = vmax.f32 %v951, 0.0
      %v1016 = vmax.f32 %v952, 0.0
      %v1017 = vpack.c.bf16 %v954, %v953
      %v1018 = vpack.c.bf16 %v956, %v955
      %v1019 = vpack.c.bf16 %v958, %v957
      %v1020 = vpack.c.bf16 %v960, %v959
      %v1021 = vpack.c.bf16 %v962, %v961
      %v1022 = vpack.c.bf16 %v964, %v963
      %v1023 = vpack.c.bf16 %v966, %v965
      %v1024 = vpack.c.bf16 %v968, %v967
      %v1025 = vpack.c.bf16 %v970, %v969
      %v1026 = vpack.c.bf16 %v972, %v971
      %v1027 = vpack.c.bf16 %v974, %v973
      %v1028 = vpack.c.bf16 %v976, %v975
      %v1029 = vpack.c.bf16 %v978, %v977
      %v1030 = vpack.c.bf16 %v980, %v979
      %v1031 = vpack.c.bf16 %v982, %v981
      %v1032 = vpack.c.bf16 %v984, %v983
      %v1033 = vpack.c.bf16 %v986, %v985
      %v1034 = vpack.c.bf16 %v988, %v987
      %v1035 = vpack.c.bf16 %v990, %v989
      %v1036 = vpack.c.bf16 %v992, %v991
      %v1037 = vpack.c.bf16 %v994, %v993
      %v1038 = vpack.c.bf16 %v996, %v995
      %v1039 = vpack.c.bf16 %v998, %v997
      %v1040 = vpack.c.bf16 %v1000, %v999
      %v1041 = vpack.c.bf16 %v1002, %v1001
      %v1042 = vpack.c.bf16 %v1004, %v1003
      %v1043 = vpack.c.bf16 %v1006, %v1005
      %v1044 = vpack.c.bf16 %v1008, %v1007
      %v1045 = vpack.c.bf16 %v1010, %v1009
      %v1046 = vpack.c.bf16 %v1012, %v1011
      %v1047 = vpack.c.bf16 %v1014, %v1013
      %v1048 = vpack.c.bf16 %v1016, %v1015
      %v1081 = vunpack.c.l.b16 %v1017
      %v1082 = vunpack.c.h.b16 %v1017
      %v1083 = vunpack.c.l.b16 %v1018
      %v1084 = vunpack.c.h.b16 %v1018
      %v1085 = vunpack.c.l.b16 %v1019
      %v1086 = vunpack.c.h.b16 %v1019
      %v1087 = vunpack.c.l.b16 %v1020
      %v1088 = vunpack.c.h.b16 %v1020
      %v1089 = vunpack.c.l.b16 %v1021
      %v1090 = vunpack.c.h.b16 %v1021
      %v1091 = vunpack.c.l.b16 %v1022
      %v1092 = vunpack.c.h.b16 %v1022
      %v1093 = vunpack.c.l.b16 %v1023
      %v1094 = vunpack.c.h.b16 %v1023
      %v1095 = vunpack.c.l.b16 %v1024
      %v1096 = vunpack.c.h.b16 %v1024
      %v1097 = vunpack.c.l.b16 %v1025
      %v1098 = vunpack.c.h.b16 %v1025
      %v1099 = vunpack.c.l.b16 %v1026
      %v1100 = vunpack.c.h.b16 %v1026
      %v1101 = vunpack.c.l.b16 %v1027
      %v1102 = vunpack.c.h.b16 %v1027
      %v1103 = vunpack.c.l.b16 %v1028
      %v1104 = vunpack.c.h.b16 %v1028
      %v1105 = vunpack.c.l.b16 %v1029
      %v1106 = vunpack.c.h.b16 %v1029
      %v1107 = vunpack.c.l.b16 %v1030
      %v1108 = vunpack.c.h.b16 %v1030
      %v1109 = vunpack.c.l.b16 %v1031
      %v1110 = vunpack.c.h.b16 %v1031
      %v1111 = vunpack.c.l.b16 %v1032
      %v1112 = vunpack.c.h.b16 %v1032
      %v1113 = vunpack.c.l.b16 %v1033
      %v1114 = vunpack.c.h.b16 %v1033
      %v1115 = vunpack.c.l.b16 %v1034
      %v1116 = vunpack.c.h.b16 %v1034
      %v1117 = vunpack.c.l.b16 %v1035
      %v1118 = vunpack.c.h.b16 %v1035
      %v1119 = vunpack.c.l.b16 %v1036
      %v1120 = vunpack.c.h.b16 %v1036
      %v1121 = vunpack.c.l.b16 %v1037
      %v1122 = vunpack.c.h.b16 %v1037
      %v1123 = vunpack.c.l.b16 %v1038
      %v1124 = vunpack.c.h.b16 %v1038
      %v1125 = vunpack.c.l.b16 %v1039
      %v1126 = vunpack.c.h.b16 %v1039
      %v1127 = vunpack.c.l.b16 %v1040
      %v1128 = vunpack.c.h.b16 %v1040
      %v1129 = vunpack.c.l.b16 %v1041
      %v1130 = vunpack.c.h.b16 %v1041
      %v1131 = vunpack.c.l.b16 %v1042
      %v1132 = vunpack.c.h.b16 %v1042
      %v1133 = vunpack.c.l.b16 %v1043
      %v1134 = vunpack.c.h.b16 %v1043
      %v1135 = vunpack.c.l.b16 %v1044
      %v1136 = vunpack.c.h.b16 %v1044
      %v1137 = vunpack.c.l.b16 %v1045
      %v1138 = vunpack.c.h.b16 %v1045
      %v1139 = vunpack.c.l.b16 %v1046
      %v1140 = vunpack.c.h.b16 %v1046
      %v1141 = vunpack.c.l.b16 %v1047
      %v1142 = vunpack.c.h.b16 %v1047
      %v1143 = vunpack.c.l.b16 %v1048
      %v1144 = vunpack.c.h.b16 %v1048
      %v1145 = vpack.c.b16 %v1081, %v1081
      %v1146 = vpack.c.b16 %v1082, %v1082
      %v1147 = vpack.c.b16 %v1083, %v1083
      %v1148 = vpack.c.b16 %v1084, %v1084
      %v1149 = vpack.c.b16 %v1085, %v1085
      %v1150 = vpack.c.b16 %v1086, %v1086
      %v1151 = vpack.c.b16 %v1087, %v1087
      %v1152 = vpack.c.b16 %v1088, %v1088
      %v1153 = vpack.c.b16 %v1089, %v1089
      %v1154 = vpack.c.b16 %v1090, %v1090
      %v1155 = vpack.c.b16 %v1091, %v1091
      %v1156 = vpack.c.b16 %v1092, %v1092
      %v1157 = vpack.c.b16 %v1093, %v1093
      %v1158 = vpack.c.b16 %v1094, %v1094
      %v1159 = vpack.c.b16 %v1095, %v1095
      %v1160 = vpack.c.b16 %v1096, %v1096
      %v1161 = vpack.c.b16 %v1097, %v1097
      %v1162 = vpack.c.b16 %v1098, %v1098
      %v1163 = vpack.c.b16 %v1099, %v1099
      %v1164 = vpack.c.b16 %v1100, %v1100
      %v1165 = vpack.c.b16 %v1101, %v1101
      %v1166 = vpack.c.b16 %v1102, %v1102
      %v1167 = vpack.c.b16 %v1103, %v1103
      %v1168 = vpack.c.b16 %v1104, %v1104
      %v1169 = vpack.c.b16 %v1105, %v1105
      %v1170 = vpack.c.b16 %v1106, %v1106
      %v1171 = vpack.c.b16 %v1107, %v1107
      %v1172 = vpack.c.b16 %v1108, %v1108
      %v1173 = vpack.c.b16 %v1109, %v1109
      %v1174 = vpack.c.b16 %v1110, %v1110
      %v1175 = vpack.c.b16 %v1111, %v1111
      %v1176 = vpack.c.b16 %v1112, %v1112
      %v1177 = vpack.c.b16 %v1113, %v1113
      %v1178 = vpack.c.b16 %v1114, %v1114
      %v1179 = vpack.c.b16 %v1115, %v1115
      %v1180 = vpack.c.b16 %v1116, %v1116
      %v1181 = vpack.c.b16 %v1117, %v1117
      %v1182 = vpack.c.b16 %v1118, %v1118
      %v1183 = vpack.c.b16 %v1119, %v1119
      %v1184 = vpack.c.b16 %v1120, %v1120
      %v1185 = vpack.c.b16 %v1121, %v1121
      %v1186 = vpack.c.b16 %v1122, %v1122
      %v1187 = vpack.c.b16 %v1123, %v1123
      %v1188 = vpack.c.b16 %v1124, %v1124
      %v1189 = vpack.c.b16 %v1125, %v1125
      %v1190 = vpack.c.b16 %v1126, %v1126
      %v1191 = vpack.c.b16 %v1127, %v1127
      %v1192 = vpack.c.b16 %v1128, %v1128
      %v1193 = vpack.c.b16 %v1129, %v1129
      %v1194 = vpack.c.b16 %v1130, %v1130
      %v1195 = vpack.c.b16 %v1131, %v1131
      %v1196 = vpack.c.b16 %v1132, %v1132
      %v1197 = vpack.c.b16 %v1133, %v1133
      %v1198 = vpack.c.b16 %v1134, %v1134
      %v1199 = vpack.c.b16 %v1135, %v1135
      %v1200 = vpack.c.b16 %v1136, %v1136
      %v1201 = vpack.c.b16 %v1137, %v1137
      %v1202 = vpack.c.b16 %v1138, %v1138
      %v1203 = vpack.c.b16 %v1139, %v1139
      %v1204 = vpack.c.b16 %v1140, %v1140
      %v1205 = vpack.c.b16 %v1141, %v1141
      %v1206 = vpack.c.b16 %v1142, %v1142
      %v1207 = vpack.c.b16 %v1143, %v1143
      %v1208 = vpack.c.b16 %v1144, %v1144
      %1273 = vst [vmem:[%s199] sm:$0xf] %v1145
      %1274 = vst [vmem:[%s199 + $0x4] sm:$0xf] %v1146
      %1275 = vst [vmem:[%s199 + $0x8] sm:$0xf] %v1147
      %1276 = vst [vmem:[%s199 + $0xc] sm:$0xf] %v1148
      %1277 = vst [vmem:[%s199 + $0x10] sm:$0xf] %v1149
      %1278 = vst [vmem:[%s199 + $0x14] sm:$0xf] %v1150
      %1279 = vst [vmem:[%s199 + $0x18] sm:$0xf] %v1151
      %1280 = vst [vmem:[%s199 + $0x1c] sm:$0xf] %v1152
      %1281 = vst [vmem:[%s199 + $0x20] sm:$0xf] %v1153
      %1282 = vst [vmem:[%s199 + $0x24] sm:$0xf] %v1154
      %1283 = vst [vmem:[%s199 + $0x28] sm:$0xf] %v1155
      %1284 = vst [vmem:[%s199 + $0x2c] sm:$0xf] %v1156
      %1285 = vst [vmem:[%s199 + $0x30] sm:$0xf] %v1157
      %1286 = vst [vmem:[%s199 + $0x34] sm:$0xf] %v1158
      %1287 = vst [vmem:[%s199 + $0x38] sm:$0xf] %v1159
      %1288 = vst [vmem:[%s199 + $0x3c] sm:$0xf] %v1160
      %1289 = vst [vmem:[%s199 + $0x40] sm:$0xf] %v1161
      %1290 = vst [vmem:[%s199 + $0x44] sm:$0xf] %v1162
      %1291 = vst [vmem:[%s199 + $0x48] sm:$0xf] %v1163
      %1292 = vst [vmem:[%s199 + $0x4c] sm:$0xf] %v1164
      %1293 = vst [vmem:[%s199 + $0x50] sm:$0xf] %v1165
      %1294 = vst [vmem:[%s199 + $0x54] sm:$0xf] %v1166
      %1295 = vst [vmem:[%s199 + $0x58] sm:$0xf] %v1167
      %1296 = vst [vmem:[%s199 + $0x5c] sm:$0xf] %v1168
      %1297 = vst [vmem:[%s199 + $0x60] sm:$0xf] %v1169
      %1298 = vst [vmem:[%s199 + $0x64] sm:$0xf] %v1170
      %1299 = vst [vmem:[%s199 + $0x68] sm:$0xf] %v1171
      %1300 = vst [vmem:[%s199 + $0x6c] sm:$0xf] %v1172
      %1301 = vst [vmem:[%s199 + $0x70] sm:$0xf] %v1173
      %1302 = vst [vmem:[%s199 + $0x74] sm:$0xf] %v1174
      %1303 = vst [vmem:[%s199 + $0x78] sm:$0xf] %v1175
      %1304 = vst [vmem:[%s199 + $0x7c] sm:$0xf] %v1176
      %1305 = vst [vmem:[%s199 + $0x80] sm:$0xf] %v1177
      %1306 = vst [vmem:[%s199 + $0x84] sm:$0xf] %v1178
      %1307 = vst [vmem:[%s199 + $0x88] sm:$0xf] %v1179
      %1308 = vst [vmem:[%s199 + $0x8c] sm:$0xf] %v1180
      %1309 = vst [vmem:[%s199 + $0x90] sm:$0xf] %v1181
      %1310 = vst [vmem:[%s199 + $0x94] sm:$0xf] %v1182
      %1311 = vst [vmem:[%s199 + $0x98] sm:$0xf] %v1183
      %1312 = vst [vmem:[%s199 + $0x9c] sm:$0xf] %v1184
      %1313 = vst [vmem:[%s199 + $0xa0] sm:$0xf] %v1185
      %1314 = vst [vmem:[%s199 + $0xa4] sm:$0xf] %v1186
      %1315 = vst [vmem:[%s199 + $0xa8] sm:$0xf] %v1187
      %1316 = vst [vmem:[%s199 + $0xac] sm:$0xf] %v1188
      %1317 = vst [vmem:[%s199 + $0xb0] sm:$0xf] %v1189
      %1318 = vst [vmem:[%s199 + $0xb4] sm:$0xf] %v1190
      %1319 = vst [vmem:[%s199 + $0xb8] sm:$0xf] %v1191
      %1320 = vst [vmem:[%s199 + $0xbc] sm:$0xf] %v1192
      %1321 = vst [vmem:[%s199 + $0xc0] sm:$0xf] %v1193
      %1322 = vst [vmem:[%s199 + $0xc4] sm:$0xf] %v1194
      %1323 = vst [vmem:[%s199 + $0xc8] sm:$0xf] %v1195
      %1324 = vst [vmem:[%s199 + $0xcc] sm:$0xf] %v1196
      %1325 = vst [vmem:[%s199 + $0xd0] sm:$0xf] %v1197
      %1326 = vst [vmem:[%s199 + $0xd4] sm:$0xf] %v1198
      %1327 = vst [vmem:[%s199 + $0xd8] sm:$0xf] %v1199
      %1328 = vst [vmem:[%s199 + $0xdc] sm:$0xf] %v1200
      %1329 = vst [vmem:[%s199 + $0xe0] sm:$0xf] %v1201
      %1330 = vst [vmem:[%s199 + $0xe4] sm:$0xf] %v1202
      %1331 = vst [vmem:[%s199 + $0xe8] sm:$0xf] %v1203
      %1332 = vst [vmem:[%s199 + $0xec] sm:$0xf] %v1204
      %1333 = vst [vmem:[%s199 + $0xf0] sm:$0xf] %v1205
      %1334 = vst [vmem:[%s199 + $0xf4] sm:$0xf] %v1206
      %1335 = vst [vmem:[%s199 + $0xf8] sm:$0xf] %v1207
      %1336 = vst [vmem:[%s199 + $0xfc] sm:$0xf] %v1208
      %s1337 = smul.u32 64, %s15
      %p1338 = scmp.lt.s32.totalorder %s1337, 511
      %s1339 = scalar_select %p1338, %s1337, 511
      %s1340 = smul.addr %s1339, 4
      %s1341 = scalar_lea.vmem %s4, %s1340
      // Predicated region
      $region37: #{hrnet_forward.22} parent=35 // pred_check
        %p1342 = pneg %p122
      $region38: #{hrnet_forward.22} parent=35 // pred_check_branch
        %1344 = sbr.rel (%p1342) target = $region40
      $region39: #{hrnet_forward.22} parent=35 // pred_region
        %s1345 = smul.u32 64, %s15
      $region40: #{hrnet_forward.22} parent=35 // pred_fallthru
        _
    $region36: #{hrnet_forward.22} parent=5 // pred_fallthru
      _
    %p1346 = scmp.le.s32.totalorder 2, %s10
    // Predicated region
    $region41: #{hrnet_forward.22} parent=5 // pred_check
      %p1347 = pneg %p1346
    $region42: #{hrnet_forward.22} parent=5 // pred_check_branch
      %1349 = sbr.rel (%p1347) target = $region44
    $region43: #{hrnet_forward.22} parent=5 // pred_region
      %s1350 = ssub.s32 %s10, 2
      // Predicated region
      $region45: #{hrnet_forward.22} parent=43 // pred_check
        %p1351 = pneg %p128
      $region46: #{hrnet_forward.22} parent=43 // pred_check_branch
        %1353 = sbr.rel (%p1351) target = $region48
      $region47: #{hrnet_forward.22} parent=43 // pred_region
        %s1354 = smul.u32 64, %s16
        %p1355 = scmp.lt.s32.totalorder %s1354, 511
        %s1356 = scalar_select %p1355, %s1354, 511
        %s1357 = smul.addr %s1356, 4
        %s1358 = scalar_lea.vmem %s4, %s1357
      $region48: #{hrnet_forward.22} parent=43 // pred_fallthru
        _
    $region44: #{hrnet_forward.22} parent=5 // pred_fallthru
      _
  $region6: #{hrnet_forward.22} parent=0 // loop_footer
    %s14 = sadd.s32 1, %s10
  $region7: #{hrnet_forward.22} parent=0 // loop_footer_branch
    %9 = sbr.rel target = $region3
  $region8: #{hrnet_forward.22} parent=0 // loop_exit
    _

// kernel: hrnet_forward.23
$region0: #{hrnet_forward.23}
  #allocation0 [shape = 'u32[]', space=smem, size = 0x4, offset = 0x4, fixed_abs, tag = 'smem constant byte address 0x4 - core index']
  #allocation1 [shape = 'u32[144,128]{1,0:T(1,128)}', space=vmem, size = 0x12000, scoped, tag = 'internal scratch']
  %s0 = inlined_call_operand.vmem [shape: bf16[1024,640], index: 0, kind: input, shape index: {}]
  %s1 = inlined_call_operand.vmem [shape: bf16[640,128], index: 1, kind: input, shape index: {}]
  %s2 = inlined_call_operand.vmem [shape: f32[1,128], index: 2, kind: input, shape index: {}]
  %s3 = inlined_call_operand.vmem [shape: f32[1,128], index: 3, kind: input, shape index: {}]
  %s4 = inlined_call_operand.vmem [shape: bf16[1024,128], index: 4, kind: output, shape index: {}]
  %s5 = sld [smem:[#allocation0]]
  $region49: #{hrnet_forward.23} parent=0
    _
  %s7 = ssub.s32 1, %s5
  %s8 = scalar_select 0, %s7, %s5
  loop: start=0, step=1, limit=4
  $region2: #{hrnet_forward.23} parent=0 // loop_pre_header
    _
  $region3: #{hrnet_forward.23} parent=0 // loop_header
    %s10 = sphi 0, %s14
    %p11 = scmp.ge.s32.totalorder %s10, 4
    %s20 = sphi 0, %s22
    %s23 = sphi 0, %s20
    %s24 = sphi 0, %s23
    %s40 = sphi 0, %s24
    %s44 = sphi 0, %s44
    %s46 = sphi 0, %s44
    %s47 = sphi 0, %s46
    %s61 = sphi 0, %s47
    %s65 = sphi 0, %s65
    %s67 = sphi 0, %s65
    %s68 = sphi 0, %s67
    %s82 = sphi 0, %s68
    %s86 = sphi 0, %s86
    %s88 = sphi 0, %s86
    %s89 = sphi 0, %s88
    %s103 = sphi 0, %s89
    %s109 = sphi 0, %s111
    %s112 = sphi 0, %s109
    %s113 = sphi 0, %s112
    %s129 = sphi 0, %s113
  $region4: #{hrnet_forward.23} parent=0 // loop_header_branch
    %13 = sbr.rel (%p11) target = $region8
  $region5: #{hrnet_forward.23} parent=0 // loop_body
    %s15 = ssub.s32 %s10, 1
    %s16 = ssub.s32 %s10, 2
    %s17 = sadd.s32 %s10, 1
    %s18 = ssub.s32 %s10, %s17
    %p19 = scmp.eq.s32.totalorder %s18, 0
    %s21 = sadd.s32 %s20, 1
    %s22 = scalar_select %p19, %s20, %s21
    %p25 = pneg %p19
    %p26 = scmp.eq.s32.totalorder %s10, 1
    %p27 = por %p25, %p26
    %p28 = scmp.ne.s32.totalorder %s20, %s23
    %p29 = scmp.eq.s32.totalorder %s10, 0
    %p30 = por %p28, %p29
    %p31 = scmp.ne.s32.totalorder %s20, %s23
    %p32 = scmp.eq.s32.totalorder %s15, 1
    %p33 = por %p31, %p32
    %p34 = scmp.ne.s32.totalorder %s23, %s24
    %p35 = scmp.eq.s32.totalorder %s15, 0
    %p36 = por %p34, %p35
    %p37 = scmp.ne.s32.totalorder %s23, %s24
    %p38 = scmp.eq.s32.totalorder %s16, 1
    %p39 = por %p37, %p38
    %p41 = scmp.ne.s32.totalorder %s24, %s40
    %p42 = scmp.eq.s32.totalorder %s16, 0
    %p43 = por %p41, %p42
    %s45 = sadd.s32 %s44, 1
    %p48 = scmp.eq.s32.totalorder %s10, 1
    %p49 = scmp.ne.s32.totalorder %s44, %s46
    %p50 = scmp.eq.s32.totalorder %s10, 0
    %p51 = por %p49, %p50
    %p52 = scmp.ne.s32.totalorder %s44, %s46
    %p53 = scmp.eq.s32.totalorder %s15, 1
    %p54 = por %p52, %p53
    %p55 = scmp.ne.s32.totalorder %s46, %s47
    %p56 = scmp.eq.s32.totalorder %s15, 0
    %p57 = por %p55, %p56
    %p58 = scmp.ne.s32.totalorder %s46, %s47
    %p59 = scmp.eq.s32.totalorder %s16, 1
    %p60 = por %p58, %p59
    %p62 = scmp.ne.s32.totalorder %s47, %s61
    %p63 = scmp.eq.s32.totalorder %s16, 0
    %p64 = por %p62, %p63
    %s66 = sadd.s32 %s65, 1
    %p69 = scmp.eq.s32.totalorder %s10, 1
    %p70 = scmp.ne.s32.totalorder %s65, %s67
    %p71 = scmp.eq.s32.totalorder %s10, 0
    %p72 = por %p70, %p71
    %p73 = scmp.ne.s32.totalorder %s65, %s67
    %p74 = scmp.eq.s32.totalorder %s15, 1
    %p75 = por %p73, %p74
    %p76 = scmp.ne.s32.totalorder %s67, %s68
    %p77 = scmp.eq.s32.totalorder %s15, 0
    %p78 = por %p76, %p77
    %p79 = scmp.ne.s32.totalorder %s67, %s68
    %p80 = scmp.eq.s32.totalorder %s16, 1
    %p81 = por %p79, %p80
    %p83 = scmp.ne.s32.totalorder %s68, %s82
    %p84 = scmp.eq.s32.totalorder %s16, 0
    %p85 = por %p83, %p84
    %s87 = sadd.s32 %s86, 1
    %p90 = scmp.eq.s32.totalorder %s10, 1
    %p91 = scmp.ne.s32.totalorder %s86, %s88
    %p92 = scmp.eq.s32.totalorder %s10, 0
    %p93 = por %p91, %p92
    %p94 = scmp.ne.s32.totalorder %s86, %s88
    %p95 = scmp.eq.s32.totalorder %s15, 1
    %p96 = por %p94, %p95
    %p97 = scmp.ne.s32.totalorder %s88, %s89
    %p98 = scmp.eq.s32.totalorder %s15, 0
    %p99 = por %p97, %p98
    %p100 = scmp.ne.s32.totalorder %s88, %s89
    %p101 = scmp.eq.s32.totalorder %s16, 1
    %p102 = por %p100, %p101
    %p104 = scmp.ne.s32.totalorder %s89, %s103
    %p105 = scmp.eq.s32.totalorder %s16, 0
    %p106 = por %p104, %p105
    %s107 = ssub.s32 %s10, %s17
    %p108 = scmp.eq.s32.totalorder %s107, 0
    %s110 = sadd.s32 %s109, 1
    %s111 = scalar_select %p108, %s109, %s110
    %p114 = pneg %p108
    %p115 = scmp.eq.s32.totalorder %s10, 1
    %p116 = por %p114, %p115
    %p117 = scmp.ne.s32.totalorder %s109, %s112
    %p118 = scmp.eq.s32.totalorder %s10, 0
    %p119 = por %p117, %p118
    %p120 = scmp.ne.s32.totalorder %s109, %s112
    %p121 = scmp.eq.s32.totalorder %s15, 1
    %p122 = por %p120, %p121
    %p123 = scmp.ne.s32.totalorder %s112, %s113
    %p124 = scmp.eq.s32.totalorder %s15, 0
    %p125 = por %p123, %p124
    %p126 = scmp.ne.s32.totalorder %s112, %s113
    %p127 = scmp.eq.s32.totalorder %s16, 1
    %p128 = por %p126, %p127
    %p130 = scmp.ne.s32.totalorder %s113, %s129
    %p131 = scmp.eq.s32.totalorder %s16, 0
    %p132 = por %p130, %p131
    %p133 = scmp.le.s32.totalorder 1, %s10
    %p134 = scmp.lt.s32.totalorder %s10, 3
    %p135 = pnand %p133, %p134
    %p136 = pneg %p135
    // Predicated region
    $region9: #{hrnet_forward.23} parent=5 // pred_check
      _
    $region10: #{hrnet_forward.23} parent=5 // pred_check_branch
      %138 = sbr.rel (%p135) target = $region12
    $region11: #{hrnet_forward.23} parent=5 // pred_region
      %s139 = ssub.s32 %s10, 1
      // Predicated region
      $region13: #{hrnet_forward.23} parent=11 // pred_check
        %p140 = pneg %p57
      $region14: #{hrnet_forward.23} parent=11 // pred_check_branch
        %142 = sbr.rel (%p140) target = $region16
      $region15: #{hrnet_forward.23} parent=11 // pred_region
        _
      $region16: #{hrnet_forward.23} parent=11 // pred_fallthru
        _
      // Predicated region
      $region17: #{hrnet_forward.23} parent=11 // pred_check
        %p143 = pneg %p78
      $region18: #{hrnet_forward.23} parent=11 // pred_check_branch
        %145 = sbr.rel (%p143) target = $region20
      $region19: #{hrnet_forward.23} parent=11 // pred_region
        _
      $region20: #{hrnet_forward.23} parent=11 // pred_fallthru
        _
      // Predicated region
      $region21: #{hrnet_forward.23} parent=11 // pred_check
        %p146 = pneg %p99
      $region22: #{hrnet_forward.23} parent=11 // pred_check_branch
        %148 = sbr.rel (%p146) target = $region24
      $region23: #{hrnet_forward.23} parent=11 // pred_region
        _
      $region24: #{hrnet_forward.23} parent=11 // pred_fallthru
        _
    $region12: #{hrnet_forward.23} parent=5 // pred_fallthru
      _
    %p149 = scmp.lt.s32.totalorder %s10, 2
    // Predicated region
    $region25: #{hrnet_forward.23} parent=5 // pred_check
      %p150 = pneg %p149
    $region26: #{hrnet_forward.23} parent=5 // pred_check_branch
      %152 = sbr.rel (%p150) target = $region28
    $region27: #{hrnet_forward.23} parent=5 // pred_region
      // Predicated region
      $region29: #{hrnet_forward.23} parent=27 // pred_check
        %p153 = pneg %p30
      $region30: #{hrnet_forward.23} parent=27 // pred_check_branch
        %155 = sbr.rel (%p153) target = $region32
      $region31: #{hrnet_forward.23} parent=27 // pred_region
        %s156 = smul.u32 64, %s10
        %p157 = scmp.lt.s32.totalorder %s156, 127
        %s158 = scalar_select %p157, %s156, 127
        %s159 = smul.addr %s158, 5
        %s160 = smul.addr %s159, 4
        %s161 = scalar_lea.vmem %s0, %s160
        %s162 = smul.u32 64, %s10
      $region32: #{hrnet_forward.23} parent=27 // pred_fallthru
        _
    $region28: #{hrnet_forward.23} parent=5 // pred_fallthru
      _
    %p163 = scmp.le.s32.totalorder 1, %s10
    %p164 = scmp.lt.s32.totalorder %s10, 3
    %p165 = pnand %p163, %p164
    %p166 = pneg %p165
    // Predicated region
    $region33: #{hrnet_forward.23} parent=5 // pred_check
      _
    $region34: #{hrnet_forward.23} parent=5 // pred_check_branch
      %168 = sbr.rel (%p165) target = $region36
    $region35: #{hrnet_forward.23} parent=5 // pred_region
      %s169 = ssub.s32 %s10, 1
      %s170 = smul.u32 64, %s15
      %p171 = scmp.lt.s32.totalorder %s170, 127
      %s172 = scalar_select %p171, %s170, 127
      %s173 = smul.addr %s172, 5
      %s174 = smul.addr %s173, 4
      %s175 = scalar_lea.vmem %s0, %s174
      %p176 = pneg %p36
      %p177 = pneg %p33
      %p178 = pneg %p57
      %p179 = pneg %p54
      %p180 = pneg %p78
      %p181 = pneg %p75
      %p182 = pneg %p99
      %p183 = pneg %p96
      %p184 = pneg %p125
      %p185 = pneg %p122
      %s186 = smul.u32 64, %s15
      %p187 = scmp.lt.s32.totalorder %s186, 127
      %s188 = scalar_select %p187, %s186, 127
      %s189 = smul.addr %s188, 4
      %s190 = scalar_lea.vmem %s4, %s189
      %s191 = smul.u32 64, %s15
      %p192 = scmp.lt.s32.totalorder %s191, 127
      %s193 = scalar_select %p192, %s191, 127
      %s194 = smul.addr %s193, 5
      %s195 = smul.addr %s194, 4
      %s196 = scalar_lea.vmem %s0, %s195
      %s197 = smul.u32 64, %s15
      %s198 = smul.u32 64, %s15
      %p199 = scmp.lt.s32.totalorder %s198, 127
      %s200 = scalar_select %p199, %s198, 127
      %s201 = smul.addr %s200, 4
      %s202 = scalar_lea.vmem %s4, %s201
      %s203 = smul.u32 64, %s15
      %v205 = vld [vmem:[%s196] sm:$0xff]
      %v206 = vld [vmem:[%s196 + $0x8] sm:$0xff]
      %v207 = vld [vmem:[%s196 + $0x10] sm:$0xf]
      %v208 = vld [vmem:[%s196 + $0x14] sm:$0xff]
      %v209 = vld [vmem:[%s196 + $0x1c] sm:$0xff]
      %v210 = vld [vmem:[%s196 + $0x24] sm:$0xf]
      %v211 = vld [vmem:[%s196 + $0x28] sm:$0xff]
      %v212 = vld [vmem:[%s196 + $0x30] sm:$0xff]
      %v213 = vld [vmem:[%s196 + $0x38] sm:$0xf]
      %v214 = vld [vmem:[%s196 + $0x3c] sm:$0xff]
      %v215 = vld [vmem:[%s196 + $0x44] sm:$0xff]
      %v216 = vld [vmem:[%s196 + $0x4c] sm:$0xf]
      %v217 = vld [vmem:[%s196 + $0x50] sm:$0xff]
      %v218 = vld [vmem:[%s196 + $0x58] sm:$0xff]
      %v219 = vld [vmem:[%s196 + $0x60] sm:$0xf]
      %v220 = vld [vmem:[%s196 + $0x64] sm:$0xff]
      %v221 = vld [vmem:[%s196 + $0x6c] sm:$0xff]
      %v222 = vld [vmem:[%s196 + $0x74] sm:$0xf]
      %v223 = vld [vmem:[%s196 + $0x78] sm:$0xff]
      %v224 = vld [vmem:[%s196 + $0x80] sm:$0xff]
      %v225 = vld [vmem:[%s196 + $0x88] sm:$0xf]
      %v226 = vld [vmem:[%s196 + $0x8c] sm:$0xff]
      %v227 = vld [vmem:[%s196 + $0x94] sm:$0xff]
      %v228 = vld [vmem:[%s196 + $0x9c] sm:$0xf]
      %v229 = vld [vmem:[%s196 + $0xa0] sm:$0xff]
      %v230 = vld [vmem:[%s196 + $0xa8] sm:$0xff]
      %v231 = vld [vmem:[%s196 + $0xb0] sm:$0xf]
      %v232 = vld [vmem:[%s196 + $0xb4] sm:$0xff]
      %v233 = vld [vmem:[%s196 + $0xbc] sm:$0xff]
      %v234 = vld [vmem:[%s196 + $0xc4] sm:$0xf]
      %v235 = vld [vmem:[%s196 + $0xc8] sm:$0xff]
      %v236 = vld [vmem:[%s196 + $0xd0] sm:$0xff]
      %v237 = vld [vmem:[%s196 + $0xd8] sm:$0xf]
      %v238 = vld [vmem:[%s196 + $0xdc] sm:$0xff]
      %v239 = vld [vmem:[%s196 + $0xe4] sm:$0xff]
      %v240 = vld [vmem:[%s196 + $0xec] sm:$0xf]
      %v241 = vld [vmem:[%s196 + $0xf0] sm:$0xff]
      %v242 = vld [vmem:[%s196 + $0xf8] sm:$0xff]
      %v243 = vld [vmem:[%s196 + $0x100] sm:$0xf]
      %v244 = vld [vmem:[%s196 + $0x104] sm:$0xff]
      %v245 = vld [vmem:[%s196 + $0x10c] sm:$0xff]
      %v246 = vld [vmem:[%s196 + $0x114] sm:$0xf]
      %v247 = vld [vmem:[%s196 + $0x118] sm:$0xff]
      %v248 = vld [vmem:[%s196 + $0x120] sm:$0xff]
      %v249 = vld [vmem:[%s196 + $0x128] sm:$0xf]
      %v250 = vld [vmem:[%s196 + $0x12c] sm:$0xff]
      %v251 = vld [vmem:[%s196 + $0x134] sm:$0xff]
      %v252 = vld [vmem:[%s196 + $0x13c] sm:$0xf]
      %v253 = vld [vmem:[%s196 + $0x140] sm:$0xff]
      %v254 = vld [vmem:[%s196 + $0x148] sm:$0xff]
      %v255 = vld [vmem:[%s196 + $0x150] sm:$0xf]
      %v256 = vld [vmem:[%s196 + $0x154] sm:$0xff]
      %v257 = vld [vmem:[%s196 + $0x15c] sm:$0xff]
      %v258 = vld [vmem:[%s196 + $0x164] sm:$0xf]
      %v259 = vld [vmem:[%s196 + $0x168] sm:$0xff]
      %v260 = vld [vmem:[%s196 + $0x170] sm:$0xff]
      %v261 = vld [vmem:[%s196 + $0x178] sm:$0xf]
      %v262 = vld [vmem:[%s196 + $0x17c] sm:$0xff]
      %v263 = vld [vmem:[%s196 + $0x184] sm:$0xff]
      %v264 = vld [vmem:[%s196 + $0x18c] sm:$0xf]
      %v265 = vld [vmem:[%s196 + $0x190] sm:$0xff]
      %v266 = vld [vmem:[%s196 + $0x198] sm:$0xff]
      %v267 = vld [vmem:[%s196 + $0x1a0] sm:$0xf]
      %v268 = vld [vmem:[%s196 + $0x1a4] sm:$0xff]
      %v269 = vld [vmem:[%s196 + $0x1ac] sm:$0xff]
      %v270 = vld [vmem:[%s196 + $0x1b4] sm:$0xf]
      %v271 = vld [vmem:[%s196 + $0x1b8] sm:$0xff]
      %v272 = vld [vmem:[%s196 + $0x1c0] sm:$0xff]
      %v273 = vld [vmem:[%s196 + $0x1c8] sm:$0xf]
      %v274 = vld [vmem:[%s196 + $0x1cc] sm:$0xff]
      %v275 = vld [vmem:[%s196 + $0x1d4] sm:$0xff]
      %v276 = vld [vmem:[%s196 + $0x1dc] sm:$0xf]
      %v277 = vld [vmem:[%s196 + $0x1e0] sm:$0xff]
      %v278 = vld [vmem:[%s196 + $0x1e8] sm:$0xff]
      %v279 = vld [vmem:[%s196 + $0x1f0] sm:$0xf]
      %v280 = vld [vmem:[%s196 + $0x1f4] sm:$0xff]
      %v281 = vld [vmem:[%s196 + $0x1fc] sm:$0xff]
      %v282 = vld [vmem:[%s196 + $0x204] sm:$0xf]
      %v283 = vld [vmem:[%s196 + $0x208] sm:$0xff]
      %v284 = vld [vmem:[%s196 + $0x210] sm:$0xff]
      %v285 = vld [vmem:[%s196 + $0x218] sm:$0xf]
      %v286 = vld [vmem:[%s196 + $0x21c] sm:$0xff]
      %v287 = vld [vmem:[%s196 + $0x224] sm:$0xff]
      %v288 = vld [vmem:[%s196 + $0x22c] sm:$0xf]
      %v289 = vld [vmem:[%s196 + $0x230] sm:$0xff]
      %v290 = vld [vmem:[%s196 + $0x238] sm:$0xff]
      %v291 = vld [vmem:[%s196 + $0x240] sm:$0xf]
      %v292 = vld [vmem:[%s196 + $0x244] sm:$0xff]
      %v293 = vld [vmem:[%s196 + $0x24c] sm:$0xff]
      %v294 = vld [vmem:[%s196 + $0x254] sm:$0xf]
      %v295 = vld [vmem:[%s196 + $0x258] sm:$0xff]
      %v296 = vld [vmem:[%s196 + $0x260] sm:$0xff]
      %v297 = vld [vmem:[%s196 + $0x268] sm:$0xf]
      %v298 = vld [vmem:[%s196 + $0x26c] sm:$0xff]
      %v299 = vld [vmem:[%s196 + $0x274] sm:$0xff]
      %v300 = vld [vmem:[%s196 + $0x27c] sm:$0xf]
      %v301 = vld [vmem:[%s196 + $0x280] sm:$0xff]
      %v302 = vld [vmem:[%s196 + $0x288] sm:$0xff]
      %v303 = vld [vmem:[%s196 + $0x290] sm:$0xf]
      %v304 = vld [vmem:[%s196 + $0x294] sm:$0xff]
      %v305 = vld [vmem:[%s196 + $0x29c] sm:$0xff]
      %v306 = vld [vmem:[%s196 + $0x2a4] sm:$0xf]
      %v307 = vld [vmem:[%s196 + $0x2a8] sm:$0xff]
      %v308 = vld [vmem:[%s196 + $0x2b0] sm:$0xff]
      %v309 = vld [vmem:[%s196 + $0x2b8] sm:$0xf]
      %v310 = vld [vmem:[%s196 + $0x2bc] sm:$0xff]
      %v311 = vld [vmem:[%s196 + $0x2c4] sm:$0xff]
      %v312 = vld [vmem:[%s196 + $0x2cc] sm:$0xf]
      %v313 = vld [vmem:[%s196 + $0x2d0] sm:$0xff]
      %v314 = vld [vmem:[%s196 + $0x2d8] sm:$0xff]
      %v315 = vld [vmem:[%s196 + $0x2e0] sm:$0xf]
      %v316 = vld [vmem:[%s196 + $0x2e4] sm:$0xff]
      %v317 = vld [vmem:[%s196 + $0x2ec] sm:$0xff]
      %v318 = vld [vmem:[%s196 + $0x2f4] sm:$0xf]
      %v319 = vld [vmem:[%s196 + $0x2f8] sm:$0xff]
      %v320 = vld [vmem:[%s196 + $0x300] sm:$0xff]
      %v321 = vld [vmem:[%s196 + $0x308] sm:$0xf]
      %v322 = vld [vmem:[%s196 + $0x30c] sm:$0xff]
      %v323 = vld [vmem:[%s196 + $0x314] sm:$0xff]
      %v324 = vld [vmem:[%s196 + $0x31c] sm:$0xf]
      %v325 = vld [vmem:[%s196 + $0x320] sm:$0xff]
      %v326 = vld [vmem:[%s196 + $0x328] sm:$0xff]
      %v327 = vld [vmem:[%s196 + $0x330] sm:$0xf]
      %v328 = vld [vmem:[%s196 + $0x334] sm:$0xff]
      %v329 = vld [vmem:[%s196 + $0x33c] sm:$0xff]
      %v330 = vld [vmem:[%s196 + $0x344] sm:$0xf]
      %v331 = vld [vmem:[%s196 + $0x348] sm:$0xff]
      %v332 = vld [vmem:[%s196 + $0x350] sm:$0xff]
      %v333 = vld [vmem:[%s196 + $0x358] sm:$0xf]
      %v334 = vld [vmem:[%s196 + $0x35c] sm:$0xff]
      %v335 = vld [vmem:[%s196 + $0x364] sm:$0xff]
      %v336 = vld [vmem:[%s196 + $0x36c] sm:$0xf]
      %v337 = vld [vmem:[%s196 + $0x370] sm:$0xff]
      %v338 = vld [vmem:[%s196 + $0x378] sm:$0xff]
      %v339 = vld [vmem:[%s196 + $0x380] sm:$0xf]
      %v340 = vld [vmem:[%s196 + $0x384] sm:$0xff]
      %v341 = vld [vmem:[%s196 + $0x38c] sm:$0xff]
      %v342 = vld [vmem:[%s196 + $0x394] sm:$0xf]
      %v343 = vld [vmem:[%s196 + $0x398] sm:$0xff]
      %v344 = vld [vmem:[%s196 + $0x3a0] sm:$0xff]
      %v345 = vld [vmem:[%s196 + $0x3a8] sm:$0xf]
      %v346 = vld [vmem:[%s196 + $0x3ac] sm:$0xff]
      %v347 = vld [vmem:[%s196 + $0x3b4] sm:$0xff]
      %v348 = vld [vmem:[%s196 + $0x3bc] sm:$0xf]
      %v349 = vld [vmem:[%s196 + $0x3c0] sm:$0xff]
      %v350 = vld [vmem:[%s196 + $0x3c8] sm:$0xff]
      %v351 = vld [vmem:[%s196 + $0x3d0] sm:$0xf]
      %v352 = vld [vmem:[%s196 + $0x3d4] sm:$0xff]
      %v353 = vld [vmem:[%s196 + $0x3dc] sm:$0xff]
      %v354 = vld [vmem:[%s196 + $0x3e4] sm:$0xf]
      %v355 = vld [vmem:[%s196 + $0x3e8] sm:$0xff]
      %v356 = vld [vmem:[%s196 + $0x3f0] sm:$0xff]
      %v357 = vld [vmem:[%s196 + $0x3f8] sm:$0xf]
      %v358 = vld [vmem:[%s196 + $0x3fc] sm:$0xff]
      %v359 = vld [vmem:[%s196 + $0x404] sm:$0xff]
      %v360 = vld [vmem:[%s196 + $0x40c] sm:$0xf]
      %v361 = vld [vmem:[%s196 + $0x410] sm:$0xff]
      %v362 = vld [vmem:[%s196 + $0x418] sm:$0xff]
      %v363 = vld [vmem:[%s196 + $0x420] sm:$0xf]
      %v364 = vld [vmem:[%s196 + $0x424] sm:$0xff]
      %v365 = vld [vmem:[%s196 + $0x42c] sm:$0xff]
      %v366 = vld [vmem:[%s196 + $0x434] sm:$0xf]
      %v367 = vld [vmem:[%s196 + $0x438] sm:$0xff]
      %v368 = vld [vmem:[%s196 + $0x440] sm:$0xff]
      %v369 = vld [vmem:[%s196 + $0x448] sm:$0xf]
      %v370 = vld [vmem:[%s196 + $0x44c] sm:$0xff]
      %v371 = vld [vmem:[%s196 + $0x454] sm:$0xff]
      %v372 = vld [vmem:[%s196 + $0x45c] sm:$0xf]
      %v373 = vld [vmem:[%s196 + $0x460] sm:$0xff]
      %v374 = vld [vmem:[%s196 + $0x468] sm:$0xff]
      %v375 = vld [vmem:[%s196 + $0x470] sm:$0xf]
      %v376 = vld [vmem:[%s196 + $0x474] sm:$0xff]
      %v377 = vld [vmem:[%s196 + $0x47c] sm:$0xff]
      %v378 = vld [vmem:[%s196 + $0x484] sm:$0xf]
      %v379 = vld [vmem:[%s196 + $0x488] sm:$0xff]
      %v380 = vld [vmem:[%s196 + $0x490] sm:$0xff]
      %v381 = vld [vmem:[%s196 + $0x498] sm:$0xf]
      %v382 = vld [vmem:[%s196 + $0x49c] sm:$0xff]
      %v383 = vld [vmem:[%s196 + $0x4a4] sm:$0xff]
      %v384 = vld [vmem:[%s196 + $0x4ac] sm:$0xf]
      %v385 = vld [vmem:[%s196 + $0x4b0] sm:$0xff]
      %v386 = vld [vmem:[%s196 + $0x4b8] sm:$0xff]
      %v387 = vld [vmem:[%s196 + $0x4c0] sm:$0xf]
      %v388 = vld [vmem:[%s196 + $0x4c4] sm:$0xff]
      %v389 = vld [vmem:[%s196 + $0x4cc] sm:$0xff]
      %v390 = vld [vmem:[%s196 + $0x4d4] sm:$0xf]
      %v391 = vld [vmem:[%s196 + $0x4d8] sm:$0xff]
      %v392 = vld [vmem:[%s196 + $0x4e0] sm:$0xff]
      %v393 = vld [vmem:[%s196 + $0x4e8] sm:$0xf]
      %v394 = vld [vmem:[%s196 + $0x4ec] sm:$0xff]
      %v395 = vld [vmem:[%s196 + $0x4f4] sm:$0xff]
      %v396 = vld [vmem:[%s196 + $0x4fc] sm:$0xf]
      %v397 = vld [vmem:[%s1] sm:$0xf]
      %v398 = vld [vmem:[%s1 + $0x4] sm:$0xf]
      %v399 = vld [vmem:[%s1 + $0x8] sm:$0xf]
      %v400 = vld [vmem:[%s1 + $0xc] sm:$0xf]
      %v401 = vld [vmem:[%s1 + $0x10] sm:$0xf]
      %v402 = vld [vmem:[%s1 + $0x14] sm:$0xf]
      %v403 = vld [vmem:[%s1 + $0x18] sm:$0xf]
      %v404 = vld [vmem:[%s1 + $0x1c] sm:$0xf]
      %v405 = vld [vmem:[%s1 + $0x20] sm:$0xf]
      %v406 = vld [vmem:[%s1 + $0x24] sm:$0xf]
      %v407 = vld [vmem:[%s1 + $0x28] sm:$0xf]
      %v408 = vld [vmem:[%s1 + $0x2c] sm:$0xf]
      %v409 = vld [vmem:[%s1 + $0x30] sm:$0xf]
      %v410 = vld [vmem:[%s1 + $0x34] sm:$0xf]
      %v411 = vld [vmem:[%s1 + $0x38] sm:$0xf]
      %v412 = vld [vmem:[%s1 + $0x3c] sm:$0xf]
      %v413 = vld [vmem:[%s1 + $0x40] sm:$0xf]
      %v414 = vld [vmem:[%s1 + $0x44] sm:$0xf]
      %v415 = vld [vmem:[%s1 + $0x48] sm:$0xf]
      %v416 = vld [vmem:[%s1 + $0x4c] sm:$0xf]
      %v417 = vld [vmem:[%s1 + $0x50] sm:$0xf]
      %v418 = vld [vmem:[%s1 + $0x54] sm:$0xf]
      %v419 = vld [vmem:[%s1 + $0x58] sm:$0xf]
      %v420 = vld [vmem:[%s1 + $0x5c] sm:$0xf]
      %v421 = vld [vmem:[%s1 + $0x60] sm:$0xf]
      %v422 = vld [vmem:[%s1 + $0x64] sm:$0xf]
      %v423 = vld [vmem:[%s1 + $0x68] sm:$0xf]
      %v424 = vld [vmem:[%s1 + $0x6c] sm:$0xf]
      %v425 = vld [vmem:[%s1 + $0x70] sm:$0xf]
      %v426 = vld [vmem:[%s1 + $0x74] sm:$0xf]
      %v427 = vld [vmem:[%s1 + $0x78] sm:$0xf]
      %v428 = vld [vmem:[%s1 + $0x7c] sm:$0xf]
      %v429 = vld [vmem:[%s1 + $0x80] sm:$0xf]
      %v430 = vld [vmem:[%s1 + $0x84] sm:$0xf]
      %v431 = vld [vmem:[%s1 + $0x88] sm:$0xf]
      %v432 = vld [vmem:[%s1 + $0x8c] sm:$0xf]
      %v433 = vld [vmem:[%s1 + $0x90] sm:$0xf]
      %v434 = vld [vmem:[%s1 + $0x94] sm:$0xf]
      %v435 = vld [vmem:[%s1 + $0x98] sm:$0xf]
      %v436 = vld [vmem:[%s1 + $0x9c] sm:$0xf]
      %v437 = vld [vmem:[%s1 + $0xa0] sm:$0xf]
      %v438 = vld [vmem:[%s1 + $0xa4] sm:$0xf]
      %v439 = vld [vmem:[%s1 + $0xa8] sm:$0xf]
      %v440 = vld [vmem:[%s1 + $0xac] sm:$0xf]
      %v441 = vld [vmem:[%s1 + $0xb0] sm:$0xf]
      %v442 = vld [vmem:[%s1 + $0xb4] sm:$0xf]
      %v443 = vld [vmem:[%s1 + $0xb8] sm:$0xf]
      %v444 = vld [vmem:[%s1 + $0xbc] sm:$0xf]
      %v445 = vld [vmem:[%s1 + $0xc0] sm:$0xf]
      %v446 = vld [vmem:[%s1 + $0xc4] sm:$0xf]
      %v447 = vld [vmem:[%s1 + $0xc8] sm:$0xf]
      %v448 = vld [vmem:[%s1 + $0xcc] sm:$0xf]
      %v449 = vld [vmem:[%s1 + $0xd0] sm:$0xf]
      %v450 = vld [vmem:[%s1 + $0xd4] sm:$0xf]
      %v451 = vld [vmem:[%s1 + $0xd8] sm:$0xf]
      %v452 = vld [vmem:[%s1 + $0xdc] sm:$0xf]
      %v453 = vld [vmem:[%s1 + $0xe0] sm:$0xf]
      %v454 = vld [vmem:[%s1 + $0xe4] sm:$0xf]
      %v455 = vld [vmem:[%s1 + $0xe8] sm:$0xf]
      %v456 = vld [vmem:[%s1 + $0xec] sm:$0xf]
      %v457 = vld [vmem:[%s1 + $0xf0] sm:$0xf]
      %v458 = vld [vmem:[%s1 + $0xf4] sm:$0xf]
      %v459 = vld [vmem:[%s1 + $0xf8] sm:$0xf]
      %v460 = vld [vmem:[%s1 + $0xfc] sm:$0xf]
      %v461 = vld [vmem:[%s1 + $0x100] sm:$0xf]
      %v462 = vld [vmem:[%s1 + $0x104] sm:$0xf]
      %v463 = vld [vmem:[%s1 + $0x108] sm:$0xf]
      %v464 = vld [vmem:[%s1 + $0x10c] sm:$0xf]
      %v465 = vld [vmem:[%s1 + $0x110] sm:$0xf]
      %v466 = vld [vmem:[%s1 + $0x114] sm:$0xf]
      %v467 = vld [vmem:[%s1 + $0x118] sm:$0xf]
      %v468 = vld [vmem:[%s1 + $0x11c] sm:$0xf]
      %v469 = vld [vmem:[%s1 + $0x120] sm:$0xf]
      %v470 = vld [vmem:[%s1 + $0x124] sm:$0xf]
      %v471 = vld [vmem:[%s1 + $0x128] sm:$0xf]
      %v472 = vld [vmem:[%s1 + $0x12c] sm:$0xf]
      %v473 = vld [vmem:[%s1 + $0x130] sm:$0xf]
      %v474 = vld [vmem:[%s1 + $0x134] sm:$0xf]
      %v475 = vld [vmem:[%s1 + $0x138] sm:$0xf]
      %v476 = vld [vmem:[%s1 + $0x13c] sm:$0xf]
      %v669 = vunpack.c.l.b16 %v205
      %v670 = vunpack.c.h.b16 %v205
      %v671 = vunpack.c.l.b16 %v206
      %v672 = vunpack.c.h.b16 %v206
      %v673 = vunpack.c.l.b16 %v207
      %v674 = vunpack.c.l.b16 %v208
      %v675 = vunpack.c.h.b16 %v208
      %v676 = vunpack.c.l.b16 %v209
      %v677 = vunpack.c.h.b16 %v209
      %v678 = vunpack.c.l.b16 %v210
      %v679 = vunpack.c.l.b16 %v211
      %v680 = vunpack.c.h.b16 %v211
      %v681 = vunpack.c.l.b16 %v212
      %v682 = vunpack.c.h.b16 %v212
      %v683 = vunpack.c.l.b16 %v213
      %v684 = vunpack.c.l.b16 %v214
      %v685 = vunpack.c.h.b16 %v214
      %v686 = vunpack.c.l.b16 %v215
      %v687 = vunpack.c.h.b16 %v215
      %v688 = vunpack.c.l.b16 %v216
      %v689 = vunpack.c.l.b16 %v217
      %v690 = vunpack.c.h.b16 %v217
      %v691 = vunpack.c.l.b16 %v218
      %v692 = vunpack.c.h.b16 %v218
      %v693 = vunpack.c.l.b16 %v219
      %v694 = vunpack.c.l.b16 %v220
      %v695 = vunpack.c.h.b16 %v220
      %v696 = vunpack.c.l.b16 %v221
      %v697 = vunpack.c.h.b16 %v221
      %v698 = vunpack.c.l.b16 %v222
      %v699 = vunpack.c.l.b16 %v223
      %v700 = vunpack.c.h.b16 %v223
      %v701 = vunpack.c.l.b16 %v224
      %v702 = vunpack.c.h.b16 %v224
      %v703 = vunpack.c.l.b16 %v225
      %v704 = vunpack.c.l.b16 %v226
      %v705 = vunpack.c.h.b16 %v226
      %v706 = vunpack.c.l.b16 %v227
      %v707 = vunpack.c.h.b16 %v227
      %v708 = vunpack.c.l.b16 %v228
      %v709 = vunpack.c.l.b16 %v229
      %v710 = vunpack.c.h.b16 %v229
      %v711 = vunpack.c.l.b16 %v230
      %v712 = vunpack.c.h.b16 %v230
      %v713 = vunpack.c.l.b16 %v231
      %v714 = vunpack.c.l.b16 %v232
      %v715 = vunpack.c.h.b16 %v232
      %v716 = vunpack.c.l.b16 %v233
      %v717 = vunpack.c.h.b16 %v233
      %v718 = vunpack.c.l.b16 %v234
      %v719 = vunpack.c.l.b16 %v235
      %v720 = vunpack.c.h.b16 %v235
      %v721 = vunpack.c.l.b16 %v236
      %v722 = vunpack.c.h.b16 %v236
      %v723 = vunpack.c.l.b16 %v237
      %v724 = vunpack.c.l.b16 %v238
      %v725 = vunpack.c.h.b16 %v238
      %v726 = vunpack.c.l.b16 %v239
      %v727 = vunpack.c.h.b16 %v239
      %v728 = vunpack.c.l.b16 %v240
      %v729 = vunpack.c.l.b16 %v241
      %v730 = vunpack.c.h.b16 %v241
      %v731 = vunpack.c.l.b16 %v242
      %v732 = vunpack.c.h.b16 %v242
      %v733 = vunpack.c.l.b16 %v243
      %v734 = vunpack.c.l.b16 %v244
      %v735 = vunpack.c.h.b16 %v244
      %v736 = vunpack.c.l.b16 %v245
      %v737 = vunpack.c.h.b16 %v245
      %v738 = vunpack.c.l.b16 %v246
      %v739 = vunpack.c.l.b16 %v247
      %v740 = vunpack.c.h.b16 %v247
      %v741 = vunpack.c.l.b16 %v248
      %v742 = vunpack.c.h.b16 %v248
      %v743 = vunpack.c.l.b16 %v249
      %v744 = vunpack.c.l.b16 %v250
      %v745 = vunpack.c.h.b16 %v250
      %v746 = vunpack.c.l.b16 %v251
      %v747 = vunpack.c.h.b16 %v251
      %v748 = vunpack.c.l.b16 %v252
      %v749 = vunpack.c.l.b16 %v253
      %v750 = vunpack.c.h.b16 %v253
      %v751 = vunpack.c.l.b16 %v254
      %v752 = vunpack.c.h.b16 %v254
      %v753 = vunpack.c.l.b16 %v255
      %v754 = vunpack.c.l.b16 %v256
      %v755 = vunpack.c.h.b16 %v256
      %v756 = vunpack.c.l.b16 %v257
      %v757 = vunpack.c.h.b16 %v257
      %v758 = vunpack.c.l.b16 %v258
      %v759 = vunpack.c.l.b16 %v259
      %v760 = vunpack.c.h.b16 %v259
      %v761 = vunpack.c.l.b16 %v260
      %v762 = vunpack.c.h.b16 %v260
      %v763 = vunpack.c.l.b16 %v261
      %v764 = vunpack.c.l.b16 %v262
      %v765 = vunpack.c.h.b16 %v262
      %v766 = vunpack.c.l.b16 %v263
      %v767 = vunpack.c.h.b16 %v263
      %v768 = vunpack.c.l.b16 %v264
      %v769 = vunpack.c.l.b16 %v265
      %v770 = vunpack.c.h.b16 %v265
      %v771 = vunpack.c.l.b16 %v266
      %v772 = vunpack.c.h.b16 %v266
      %v773 = vunpack.c.l.b16 %v267
      %v774 = vunpack.c.l.b16 %v268
      %v775 = vunpack.c.h.b16 %v268
      %v776 = vunpack.c.l.b16 %v269
      %v777 = vunpack.c.h.b16 %v269
      %v778 = vunpack.c.l.b16 %v270
      %v779 = vunpack.c.l.b16 %v271
      %v780 = vunpack.c.h.b16 %v271
      %v781 = vunpack.c.l.b16 %v272
      %v782 = vunpack.c.h.b16 %v272
      %v783 = vunpack.c.l.b16 %v273
      %v784 = vunpack.c.l.b16 %v274
      %v785 = vunpack.c.h.b16 %v274
      %v786 = vunpack.c.l.b16 %v275
      %v787 = vunpack.c.h.b16 %v275
      %v788 = vunpack.c.l.b16 %v276
      %v789 = vunpack.c.l.b16 %v277
      %v790 = vunpack.c.h.b16 %v277
      %v791 = vunpack.c.l.b16 %v278
      %v792 = vunpack.c.h.b16 %v278
      %v793 = vunpack.c.l.b16 %v279
      %v794 = vunpack.c.l.b16 %v280
      %v795 = vunpack.c.h.b16 %v280
      %v796 = vunpack.c.l.b16 %v281
      %v797 = vunpack.c.h.b16 %v281
      %v798 = vunpack.c.l.b16 %v282
      %v799 = vunpack.c.l.b16 %v283
      %v800 = vunpack.c.h.b16 %v283
      %v801 = vunpack.c.l.b16 %v284
      %v802 = vunpack.c.h.b16 %v284
      %v803 = vunpack.c.l.b16 %v285
      %v804 = vunpack.c.l.b16 %v286
      %v805 = vunpack.c.h.b16 %v286
      %v806 = vunpack.c.l.b16 %v287
      %v807 = vunpack.c.h.b16 %v287
      %v808 = vunpack.c.l.b16 %v288
      %v809 = vunpack.c.l.b16 %v289
      %v810 = vunpack.c.h.b16 %v289
      %v811 = vunpack.c.l.b16 %v290
      %v812 = vunpack.c.h.b16 %v290
      %v813 = vunpack.c.l.b16 %v291
      %v814 = vunpack.c.l.b16 %v292
      %v815 = vunpack.c.h.b16 %v292
      %v816 = vunpack.c.l.b16 %v293
      %v817 = vunpack.c.h.b16 %v293
      %v818 = vunpack.c.l.b16 %v294
      %v819 = vunpack.c.l.b16 %v295
      %v820 = vunpack.c.h.b16 %v295
      %v821 = vunpack.c.l.b16 %v296
      %v822 = vunpack.c.h.b16 %v296
      %v823 = vunpack.c.l.b16 %v297
      %v824 = vunpack.c.l.b16 %v298
      %v825 = vunpack.c.h.b16 %v298
      %v826 = vunpack.c.l.b16 %v299
      %v827 = vunpack.c.h.b16 %v299
      %v828 = vunpack.c.l.b16 %v300
      %v829 = vunpack.c.l.b16 %v301
      %v830 = vunpack.c.h.b16 %v301
      %v831 = vunpack.c.l.b16 %v302
      %v832 = vunpack.c.h.b16 %v302
      %v833 = vunpack.c.l.b16 %v303
      %v834 = vunpack.c.l.b16 %v304
      %v835 = vunpack.c.h.b16 %v304
      %v836 = vunpack.c.l.b16 %v305
      %v837 = vunpack.c.h.b16 %v305
      %v838 = vunpack.c.l.b16 %v306
      %v839 = vunpack.c.l.b16 %v307
      %v840 = vunpack.c.h.b16 %v307
      %v841 = vunpack.c.l.b16 %v308
      %v842 = vunpack.c.h.b16 %v308
      %v843 = vunpack.c.l.b16 %v309
      %v844 = vunpack.c.l.b16 %v310
      %v845 = vunpack.c.h.b16 %v310
      %v846 = vunpack.c.l.b16 %v311
      %v847 = vunpack.c.h.b16 %v311
      %v848 = vunpack.c.l.b16 %v312
      %v849 = vunpack.c.l.b16 %v313
      %v850 = vunpack.c.h.b16 %v313
      %v851 = vunpack.c.l.b16 %v314
      %v852 = vunpack.c.h.b16 %v314
      %v853 = vunpack.c.l.b16 %v315
      %v854 = vunpack.c.l.b16 %v316
      %v855 = vunpack.c.h.b16 %v316
      %v856 = vunpack.c.l.b16 %v317
      %v857 = vunpack.c.h.b16 %v317
      %v858 = vunpack.c.l.b16 %v318
      %v859 = vunpack.c.l.b16 %v319
      %v860 = vunpack.c.h.b16 %v319
      %v861 = vunpack.c.l.b16 %v320
      %v862 = vunpack.c.h.b16 %v320
      %v863 = vunpack.c.l.b16 %v321
      %v864 = vunpack.c.l.b16 %v322
      %v865 = vunpack.c.h.b16 %v322
      %v866 = vunpack.c.l.b16 %v323
      %v867 = vunpack.c.h.b16 %v323
      %v868 = vunpack.c.l.b16 %v324
      %v869 = vunpack.c.l.b16 %v325
      %v870 = vunpack.c.h.b16 %v325
      %v871 = vunpack.c.l.b16 %v326
      %v872 = vunpack.c.h.b16 %v326
      %v873 = vunpack.c.l.b16 %v327
      %v874 = vunpack.c.l.b16 %v328
      %v875 = vunpack.c.h.b16 %v328
      %v876 = vunpack.c.l.b16 %v329
      %v877 = vunpack.c.h.b16 %v329
      %v878 = vunpack.c.l.b16 %v330
      %v879 = vunpack.c.l.b16 %v331
      %v880 = vunpack.c.h.b16 %v331
      %v881 = vunpack.c.l.b16 %v332
      %v882 = vunpack.c.h.b16 %v332
      %v883 = vunpack.c.l.b16 %v333
      %v884 = vunpack.c.l.b16 %v334
      %v885 = vunpack.c.h.b16 %v334
      %v886 = vunpack.c.l.b16 %v335
      %v887 = vunpack.c.h.b16 %v335
      %v888 = vunpack.c.l.b16 %v336
      %v889 = vunpack.c.l.b16 %v337
      %v890 = vunpack.c.h.b16 %v337
      %v891 = vunpack.c.l.b16 %v338
      %v892 = vunpack.c.h.b16 %v338
      %v893 = vunpack.c.l.b16 %v339
      %v894 = vunpack.c.l.b16 %v340
      %v895 = vunpack.c.h.b16 %v340
      %v896 = vunpack.c.l.b16 %v341
      %v897 = vunpack.c.h.b16 %v341
      %v898 = vunpack.c.l.b16 %v342
      %v899 = vunpack.c.l.b16 %v343
      %v900 = vunpack.c.h.b16 %v343
      %v901 = vunpack.c.l.b16 %v344
      %v902 = vunpack.c.h.b16 %v344
      %v903 = vunpack.c.l.b16 %v345
      %v904 = vunpack.c.l.b16 %v346
      %v905 = vunpack.c.h.b16 %v346
      %v906 = vunpack.c.l.b16 %v347
      %v907 = vunpack.c.h.b16 %v347
      %v908 = vunpack.c.l.b16 %v348
      %v909 = vunpack.c.l.b16 %v349
      %v910 = vunpack.c.h.b16 %v349
      %v911 = vunpack.c.l.b16 %v350
      %v912 = vunpack.c.h.b16 %v350
      %v913 = vunpack.c.l.b16 %v351
      %v914 = vunpack.c.l.b16 %v352
      %v915 = vunpack.c.h.b16 %v352
      %v916 = vunpack.c.l.b16 %v353
      %v917 = vunpack.c.h.b16 %v353
      %v918 = vunpack.c.l.b16 %v354
      %v919 = vunpack.c.l.b16 %v355
      %v920 = vunpack.c.h.b16 %v355
      %v921 = vunpack.c.l.b16 %v356
      %v922 = vunpack.c.h.b16 %v356
      %v923 = vunpack.c.l.b16 %v357
      %v924 = vunpack.c.l.b16 %v358
      %v925 = vunpack.c.h.b16 %v358
      %v926 = vunpack.c.l.b16 %v359
      %v927 = vunpack.c.h.b16 %v359
      %v928 = vunpack.c.l.b16 %v360
      %v929 = vunpack.c.l.b16 %v361
      %v930 = vunpack.c.h.b16 %v361
      %v931 = vunpack.c.l.b16 %v362
      %v932 = vunpack.c.h.b16 %v362
      %v933 = vunpack.c.l.b16 %v363
      %v934 = vunpack.c.l.b16 %v364
      %v935 = vunpack.c.h.b16 %v364
      %v936 = vunpack.c.l.b16 %v365
      %v937 = vunpack.c.h.b16 %v365
      %v938 = vunpack.c.l.b16 %v366
      %v939 = vunpack.c.l.b16 %v367
      %v940 = vunpack.c.h.b16 %v367
      %v941 = vunpack.c.l.b16 %v368
      %v942 = vunpack.c.h.b16 %v368
      %v943 = vunpack.c.l.b16 %v369
      %v944 = vunpack.c.l.b16 %v370
      %v945 = vunpack.c.h.b16 %v370
      %v946 = vunpack.c.l.b16 %v371
      %v947 = vunpack.c.h.b16 %v371
      %v948 = vunpack.c.l.b16 %v372
      %v949 = vunpack.c.l.b16 %v373
      %v950 = vunpack.c.h.b16 %v373
      %v951 = vunpack.c.l.b16 %v374
      %v952 = vunpack.c.h.b16 %v374
      %v953 = vunpack.c.l.b16 %v375
      %v954 = vunpack.c.l.b16 %v376
      %v955 = vunpack.c.h.b16 %v376
      %v956 = vunpack.c.l.b16 %v377
      %v957 = vunpack.c.h.b16 %v377
      %v958 = vunpack.c.l.b16 %v378
      %v959 = vunpack.c.l.b16 %v379
      %v960 = vunpack.c.h.b16 %v379
      %v961 = vunpack.c.l.b16 %v380
      %v962 = vunpack.c.h.b16 %v380
      %v963 = vunpack.c.l.b16 %v381
      %v964 = vunpack.c.l.b16 %v382
      %v965 = vunpack.c.h.b16 %v382
      %v966 = vunpack.c.l.b16 %v383
      %v967 = vunpack.c.h.b16 %v383
      %v968 = vunpack.c.l.b16 %v384
      %v969 = vunpack.c.l.b16 %v385
      %v970 = vunpack.c.h.b16 %v385
      %v971 = vunpack.c.l.b16 %v386
      %v972 = vunpack.c.h.b16 %v386
      %v973 = vunpack.c.l.b16 %v387
      %v974 = vunpack.c.l.b16 %v388
      %v975 = vunpack.c.h.b16 %v388
      %v976 = vunpack.c.l.b16 %v389
      %v977 = vunpack.c.h.b16 %v389
      %v978 = vunpack.c.l.b16 %v390
      %v979 = vunpack.c.l.b16 %v391
      %v980 = vunpack.c.h.b16 %v391
      %v981 = vunpack.c.l.b16 %v392
      %v982 = vunpack.c.h.b16 %v392
      %v983 = vunpack.c.l.b16 %v393
      %v984 = vunpack.c.l.b16 %v394
      %v985 = vunpack.c.h.b16 %v394
      %v986 = vunpack.c.l.b16 %v395
      %v987 = vunpack.c.h.b16 %v395
      %v988 = vunpack.c.l.b16 %v396
      %v989 = vpack.c.b16 %v674, %v669
      %v990 = vpack.c.b16 %v675, %v670
      %v991 = vpack.c.b16 %v676, %v671
      %v992 = vpack.c.b16 %v677, %v672
      %v993 = vpack.c.b16 %v678, %v673
      %v994 = vpack.c.b16 %v684, %v679
      %v995 = vpack.c.b16 %v685, %v680
      %v996 = vpack.c.b16 %v686, %v681
      %v997 = vpack.c.b16 %v687, %v682
      %v998 = vpack.c.b16 %v688, %v683
      %v999 = vpack.c.b16 %v694, %v689
      %v1000 = vpack.c.b16 %v695, %v690
      %v1001 = vpack.c.b16 %v696, %v691
      %v1002 = vpack.c.b16 %v697, %v692
      %v1003 = vpack.c.b16 %v698, %v693
      %v1004 = vpack.c.b16 %v704, %v699
      %v1005 = vpack.c.b16 %v705, %v700
      %v1006 = vpack.c.b16 %v706, %v701
      %v1007 = vpack.c.b16 %v707, %v702
      %v1008 = vpack.c.b16 %v708, %v703
      %v1009 = vpack.c.b16 %v714, %v709
      %v1010 = vpack.c.b16 %v715, %v710
      %v1011 = vpack.c.b16 %v716, %v711
      %v1012 = vpack.c.b16 %v717, %v712
      %v1013 = vpack.c.b16 %v718, %v713
      %v1014 = vpack.c.b16 %v724, %v719
      %v1015 = vpack.c.b16 %v725, %v720
      %v1016 = vpack.c.b16 %v726, %v721
      %v1017 = vpack.c.b16 %v727, %v722
      %v1018 = vpack.c.b16 %v728, %v723
      %v1019 = vpack.c.b16 %v734, %v729
      %v1020 = vpack.c.b16 %v735, %v730
      %v1021 = vpack.c.b16 %v736, %v731
      %v1022 = vpack.c.b16 %v737, %v732
      %v1023 = vpack.c.b16 %v738, %v733
      %v1024 = vpack.c.b16 %v744, %v739
      %v1025 = vpack.c.b16 %v745, %v740
      %v1026 = vpack.c.b16 %v746, %v741
      %v1027 = vpack.c.b16 %v747, %v742
      %v1028 = vpack.c.b16 %v748, %v743
      %v1029 = vpack.c.b16 %v754, %v749
      %v1030 = vpack.c.b16 %v755, %v750
      %v1031 = vpack.c.b16 %v756, %v751
      %v1032 = vpack.c.b16 %v757, %v752
      %v1033 = vpack.c.b16 %v758, %v753
      %v1034 = vpack.c.b16 %v764, %v759
      %v1035 = vpack.c.b16 %v765, %v760
      %v1036 = vpack.c.b16 %v766, %v761
      %v1037 = vpack.c.b16 %v767, %v762
      %v1038 = vpack.c.b16 %v768, %v763
      %v1039 = vpack.c.b16 %v774, %v769
      %v1040 = vpack.c.b16 %v775, %v770
      %v1041 = vpack.c.b16 %v776, %v771
      %v1042 = vpack.c.b16 %v777, %v772
      %v1043 = vpack.c.b16 %v778, %v773
      %v1044 = vpack.c.b16 %v784, %v779
      %v1045 = vpack.c.b16 %v785, %v780
      %v1046 = vpack.c.b16 %v786, %v781
      %v1047 = vpack.c.b16 %v787, %v782
      %v1048 = vpack.c.b16 %v788, %v783
      %v1049 = vpack.c.b16 %v794, %v789
      %v1050 = vpack.c.b16 %v795, %v790
      %v1051 = vpack.c.b16 %v796, %v791
      %v1052 = vpack.c.b16 %v797, %v792
      %v1053 = vpack.c.b16 %v798, %v793
      %v1054 = vpack.c.b16 %v804, %v799
      %v1055 = vpack.c.b16 %v805, %v800
      %v1056 = vpack.c.b16 %v806, %v801
      %v1057 = vpack.c.b16 %v807, %v802
      %v1058 = vpack.c.b16 %v808, %v803
      %v1059 = vpack.c.b16 %v814, %v809
      %v1060 = vpack.c.b16 %v815, %v810
      %v1061 = vpack.c.b16 %v816, %v811
      %v1062 = vpack.c.b16 %v817, %v812
      %v1063 = vpack.c.b16 %v818, %v813
      %v1064 = vpack.c.b16 %v824, %v819
      %v1065 = vpack.c.b16 %v825, %v820
      %v1066 = vpack.c.b16 %v826, %v821
      %v1067 = vpack.c.b16 %v827, %v822
      %v1068 = vpack.c.b16 %v828, %v823
      %v1069 = vpack.c.b16 %v834, %v829
      %v1070 = vpack.c.b16 %v835, %v830
      %v1071 = vpack.c.b16 %v836, %v831
      %v1072 = vpack.c.b16 %v837, %v832
      %v1073 = vpack.c.b16 %v838, %v833
      %v1074 = vpack.c.b16 %v844, %v839
      %v1075 = vpack.c.b16 %v845, %v840
      %v1076 = vpack.c.b16 %v846, %v841
      %v1077 = vpack.c.b16 %v847, %v842
      %v1078 = vpack.c.b16 %v848, %v843
      %v1079 = vpack.c.b16 %v854, %v849
      %v1080 = vpack.c.b16 %v855, %v850
      %v1081 = vpack.c.b16 %v856, %v851
      %v1082 = vpack.c.b16 %v857, %v852
      %v1083 = vpack.c.b16 %v858, %v853
      %v1084 = vpack.c.b16 %v864, %v859
      %v1085 = vpack.c.b16 %v865, %v860
      %v1086 = vpack.c.b16 %v866, %v861
      %v1087 = vpack.c.b16 %v867, %v862
      %v1088 = vpack.c.b16 %v868, %v863
      %v1089 = vpack.c.b16 %v874, %v869
      %v1090 = vpack.c.b16 %v875, %v870
      %v1091 = vpack.c.b16 %v876, %v871
      %v1092 = vpack.c.b16 %v877, %v872
      %v1093 = vpack.c.b16 %v878, %v873
      %v1094 = vpack.c.b16 %v884, %v879
      %v1095 = vpack.c.b16 %v885, %v880
      %v1096 = vpack.c.b16 %v886, %v881
      %v1097 = vpack.c.b16 %v887, %v882
      %v1098 = vpack.c.b16 %v888, %v883
      %v1099 = vpack.c.b16 %v894, %v889
      %v1100 = vpack.c.b16 %v895, %v890
      %v1101 = vpack.c.b16 %v896, %v891
      %v1102 = vpack.c.b16 %v897, %v892
      %v1103 = vpack.c.b16 %v898, %v893
      %v1104 = vpack.c.b16 %v904, %v899
      %v1105 = vpack.c.b16 %v905, %v900
      %v1106 = vpack.c.b16 %v906, %v901
      %v1107 = vpack.c.b16 %v907, %v902
      %v1108 = vpack.c.b16 %v908, %v903
      %v1109 = vpack.c.b16 %v914, %v909
      %v1110 = vpack.c.b16 %v915, %v910
      %v1111 = vpack.c.b16 %v916, %v911
      %v1112 = vpack.c.b16 %v917, %v912
      %v1113 = vpack.c.b16 %v918, %v913
      %v1114 = vpack.c.b16 %v924, %v919
      %v1115 = vpack.c.b16 %v925, %v920
      %v1116 = vpack.c.b16 %v926, %v921
      %v1117 = vpack.c.b16 %v927, %v922
      %v1118 = vpack.c.b16 %v928, %v923
      %v1119 = vpack.c.b16 %v934, %v929
      %v1120 = vpack.c.b16 %v935, %v930
      %v1121 = vpack.c.b16 %v936, %v931
      %v1122 = vpack.c.b16 %v937, %v932
      %v1123 = vpack.c.b16 %v938, %v933
      %v1124 = vpack.c.b16 %v944, %v939
      %v1125 = vpack.c.b16 %v945, %v940
      %v1126 = vpack.c.b16 %v946, %v941
      %v1127 = vpack.c.b16 %v947, %v942
      %v1128 = vpack.c.b16 %v948, %v943
      %v1129 = vpack.c.b16 %v954, %v949
      %v1130 = vpack.c.b16 %v955, %v950
      %v1131 = vpack.c.b16 %v956, %v951
      %v1132 = vpack.c.b16 %v957, %v952
      %v1133 = vpack.c.b16 %v958, %v953
      %v1134 = vpack.c.b16 %v964, %v959
      %v1135 = vpack.c.b16 %v965, %v960
      %v1136 = vpack.c.b16 %v966, %v961
      %v1137 = vpack.c.b16 %v967, %v962
      %v1138 = vpack.c.b16 %v968, %v963
      %v1139 = vpack.c.b16 %v974, %v969
      %v1140 = vpack.c.b16 %v975, %v970
      %v1141 = vpack.c.b16 %v976, %v971
      %v1142 = vpack.c.b16 %v977, %v972
      %v1143 = vpack.c.b16 %v978, %v973
      %v1144 = vpack.c.b16 %v984, %v979
      %v1145 = vpack.c.b16 %v985, %v980
      %v1146 = vpack.c.b16 %v986, %v981
      %v1147 = vpack.c.b16 %v987, %v982
      %v1148 = vpack.c.b16 %v988, %v983
      %v1389 = vunpack.c.l.b16 %v397
      %v1390 = vunpack.c.l.b16 %v398
      %v1391 = vunpack.c.l.b16 %v399
      %v1392 = vunpack.c.l.b16 %v400
      %v1393 = vunpack.c.l.b16 %v401
      %v1394 = vunpack.c.l.b16 %v402
      %v1395 = vunpack.c.l.b16 %v403
      %v1396 = vunpack.c.l.b16 %v404
      %v1397 = vunpack.c.l.b16 %v405
      %v1398 = vunpack.c.l.b16 %v406
      %v1399 = vunpack.c.l.b16 %v407
      %v1400 = vunpack.c.l.b16 %v408
      %v1401 = vunpack.c.l.b16 %v409
      %v1402 = vunpack.c.l.b16 %v410
      %v1403 = vunpack.c.l.b16 %v411
      %v1404 = vunpack.c.l.b16 %v412
      %v1405 = vunpack.c.l.b16 %v413
      %v1406 = vunpack.c.l.b16 %v414
      %v1407 = vunpack.c.l.b16 %v415
      %v1408 = vunpack.c.l.b16 %v416
      %v1409 = vunpack.c.l.b16 %v417
      %v1410 = vunpack.c.l.b16 %v418
      %v1411 = vunpack.c.l.b16 %v419
      %v1412 = vunpack.c.l.b16 %v420
      %v1413 = vunpack.c.l.b16 %v421
      %v1414 = vunpack.c.l.b16 %v422
      %v1415 = vunpack.c.l.b16 %v423
      %v1416 = vunpack.c.l.b16 %v424
      %v1417 = vunpack.c.l.b16 %v425
      %v1418 = vunpack.c.l.b16 %v426
      %v1419 = vunpack.c.l.b16 %v427
      %v1420 = vunpack.c.l.b16 %v428
      %v1421 = vunpack.c.l.b16 %v429
      %v1422 = vunpack.c.l.b16 %v430
      %v1423 = vunpack.c.l.b16 %v431
      %v1424 = vunpack.c.l.b16 %v432
      %v1425 = vunpack.c.l.b16 %v433
      %v1426 = vunpack.c.l.b16 %v434
      %v1427 = vunpack.c.l.b16 %v435
      %v1428 = vunpack.c.l.b16 %v436
      %v1429 = vunpack.c.l.b16 %v437
      %v1430 = vunpack.c.l.b16 %v438
      %v1431 = vunpack.c.l.b16 %v439
      %v1432 = vunpack.c.l.b16 %v440
      %v1433 = vunpack.c.l.b16 %v441
      %v1434 = vunpack.c.l.b16 %v442
      %v1435 = vunpack.c.l.b16 %v443
      %v1436 = vunpack.c.l.b16 %v444
      %v1437 = vunpack.c.l.b16 %v445
      %v1438 = vunpack.c.l.b16 %v446
      %v1439 = vunpack.c.l.b16 %v447
      %v1440 = vunpack.c.l.b16 %v448
      %v1441 = vunpack.c.l.b16 %v449
      %v1442 = vunpack.c.l.b16 %v450
      %v1443 = vunpack.c.l.b16 %v451
      %v1444 = vunpack.c.l.b16 %v452
      %v1445 = vunpack.c.l.b16 %v453
      %v1446 = vunpack.c.l.b16 %v454
      %v1447 = vunpack.c.l.b16 %v455
      %v1448 = vunpack.c.l.b16 %v456
      %v1449 = vunpack.c.l.b16 %v457
      %v1450 = vunpack.c.l.b16 %v458
      %v1451 = vunpack.c.l.b16 %v459
      %v1452 = vunpack.c.l.b16 %v460
      %v1453 = vunpack.c.l.b16 %v461
      %v1454 = vunpack.c.l.b16 %v462
      %v1455 = vunpack.c.l.b16 %v463
      %v1456 = vunpack.c.l.b16 %v464
      %v1457 = vunpack.c.l.b16 %v465
      %v1458 = vunpack.c.l.b16 %v466
      %v1459 = vunpack.c.l.b16 %v467
      %v1460 = vunpack.c.l.b16 %v468
      %v1461 = vunpack.c.l.b16 %v469
      %v1462 = vunpack.c.l.b16 %v470
      %v1463 = vunpack.c.l.b16 %v471
      %v1464 = vunpack.c.l.b16 %v472
      %v1465 = vunpack.c.l.b16 %v473
      %v1466 = vunpack.c.l.b16 %v474
      %v1467 = vunpack.c.l.b16 %v475
      %v1468 = vunpack.c.l.b16 %v476
      %v1469 = vpack.c.b16 %v1390, %v1389
      %v1470 = vpack.c.b16 %v1392, %v1391
      %v1471 = vpack.c.b16 %v1394, %v1393
      %v1472 = vpack.c.b16 %v1396, %v1395
      %v1473 = vpack.c.b16 %v1398, %v1397
      %v1474 = vpack.c.b16 %v1400, %v1399
      %v1475 = vpack.c.b16 %v1402, %v1401
      %v1476 = vpack.c.b16 %v1404, %v1403
      %v1477 = vpack.c.b16 %v1406, %v1405
      %v1478 = vpack.c.b16 %v1408, %v1407
      %v1479 = vpack.c.b16 %v1410, %v1409
      %v1480 = vpack.c.b16 %v1412, %v1411
      %v1481 = vpack.c.b16 %v1414, %v1413
      %v1482 = vpack.c.b16 %v1416, %v1415
      %v1483 = vpack.c.b16 %v1418, %v1417
      %v1484 = vpack.c.b16 %v1420, %v1419
      %v1485 = vpack.c.b16 %v1422, %v1421
      %v1486 = vpack.c.b16 %v1424, %v1423
      %v1487 = vpack.c.b16 %v1426, %v1425
      %v1488 = vpack.c.b16 %v1428, %v1427
      %v1489 = vpack.c.b16 %v1430, %v1429
      %v1490 = vpack.c.b16 %v1432, %v1431
      %v1491 = vpack.c.b16 %v1434, %v1433
      %v1492 = vpack.c.b16 %v1436, %v1435
      %v1493 = vpack.c.b16 %v1438, %v1437
      %v1494 = vpack.c.b16 %v1440, %v1439
      %v1495 = vpack.c.b16 %v1442, %v1441
      %v1496 = vpack.c.b16 %v1444, %v1443
      %v1497 = vpack.c.b16 %v1446, %v1445
      %v1498 = vpack.c.b16 %v1448, %v1447
      %v1499 = vpack.c.b16 %v1450, %v1449
      %v1500 = vpack.c.b16 %v1452, %v1451
      %v1501 = vpack.c.b16 %v1454, %v1453
      %v1502 = vpack.c.b16 %v1456, %v1455
      %v1503 = vpack.c.b16 %v1458, %v1457
      %v1504 = vpack.c.b16 %v1460, %v1459
      %v1505 = vpack.c.b16 %v1462, %v1461
      %v1506 = vpack.c.b16 %v1464, %v1463
      %v1507 = vpack.c.b16 %v1466, %v1465
      %v1508 = vpack.c.b16 %v1468, %v1467
      %1549 = vmatprep.subr.bf16.mxu0 0
      %1550 = vmatpush1.bf16.msra.mxu0 %v1476
      %1551 = vmatprep.subr.bf16.mxu0 0
      %1552 = vmatpush1.bf16.msra.mxu0 %v1475
      %1553 = vmatprep.subr.bf16.mxu0 0
      %1554 = vmatpush1.bf16.msra.mxu0 %v1474
      %1555 = vmatprep.subr.bf16.mxu0 0
      %1556 = vmatpush1.bf16.msra.mxu0 %v1473
      %1557 = vmatprep.subr.bf16.mxu0 0
      %1558 = vmatpush1.bf16.msra.mxu0 %v1472
      %1559 = vmatprep.subr.bf16.mxu0 0
      %1560 = vmatpush1.bf16.msra.mxu0 %v1471
      %1561 = vmatprep.subr.bf16.mxu0 0
      %1562 = vmatpush1.bf16.msra.mxu0 %v1470
      %1563 = vmatprep.subr.bf16.mxu0 0
      %1564 = vmatpush1.bf16.msra.mxu0 %v1469
      %1565 = vmatprep.subr.bf16.mxu0 0
      %1566 = vmatpush2.bf16.msra.mxu0 %v1484
      %1567 = vmatprep.subr.bf16.mxu0 0
      %1568 = vmatpush2.bf16.msra.mxu0 %v1483
      %1569 = vmatprep.subr.bf16.mxu0 0
      %1570 = vmatpush2.bf16.msra.mxu0 %v1482
      %1571 = vmatprep.subr.bf16.mxu0 0
      %1572 = vmatpush2.bf16.msra.mxu0 %v1481
      %1573 = vmatprep.subr.bf16.mxu0 0
      %1574 = vmatpush2.bf16.msra.mxu0 %v1480
      %1575 = vmatprep.subr.bf16.mxu0 0
      %1576 = vmatpush2.bf16.msra.mxu0 %v1479
      %1577 = vmatprep.subr.bf16.mxu0 0
      %1578 = vmatpush2.bf16.msra.mxu0 %v1478
      %1579 = vmatprep.subr.bf16.mxu0 0
      %1580 = vmatpush2.bf16.msra.mxu0 %v1477
      %1581 = vmatprep.mubr.bf16.mxu0 %v990
      %1582 = vmatmul.mubr.bf16.gmra.mxu0 %v989
      %v1583 = vpop.f32.mrf.mxu0
      %v1584 = vadd.f32 0.0, %v1583
      %v1585 = vpop.f32.mrf.mxu0
      %v1586 = vpop.f32.mrf.mxu0
      %v1587 = vadd.f32 0.0, %v1586
      %v1588 = vpop.f32.mrf.mxu0
      %1589 = vmatprep.mubr.bf16.mxu0 %v995
      %1590 = vmatmul.mubr.bf16.gmra.mxu0 %v994
      %v1591 = vpop.f32.mrf.mxu0
      %v1592 = vadd.f32 0.0, %v1591
      %v1593 = vpop.f32.mrf.mxu0
      %v1594 = vpop.f32.mrf.mxu0
      %v1595 = vadd.f32 0.0, %v1594
      %v1596 = vpop.f32.mrf.mxu0
      %1597 = vmatprep.mubr.bf16.mxu0 %v1000
      %1598 = vmatmul.mubr.bf16.gmra.mxu0 %v999
      %v1599 = vpop.f32.mrf.mxu0
      %v1600 = vadd.f32 0.0, %v1599
      %v1601 = vpop.f32.mrf.mxu0
      %v1602 = vpop.f32.mrf.mxu0
      %v1603 = vadd.f32 0.0, %v1602
      %v1604 = vpop.f32.mrf.mxu0
      %1605 = vmatprep.mubr.bf16.mxu0 %v1005
      %1606 = vmatmul.mubr.bf16.gmra.mxu0 %v1004
      %v1607 = vpop.f32.mrf.mxu0
      %v1608 = vadd.f32 0.0, %v1607
      %v1609 = vpop.f32.mrf.mxu0
      %v1610 = vpop.f32.mrf.mxu0
      %v1611 = vadd.f32 0.0, %v1610
      %v1612 = vpop.f32.mrf.mxu0
      %1613 = vmatprep.mubr.bf16.mxu0 %v1010
      %1614 = vmatmul.mubr.bf16.gmra.mxu0 %v1009
      %v1615 = vpop.f32.mrf.mxu0
      %v1616 = vadd.f32 0.0, %v1615
      %v1617 = vpop.f32.mrf.mxu0
      %v1618 = vpop.f32.mrf.mxu0
      %v1619 = vadd.f32 0.0, %v1618
      %v1620 = vpop.f32.mrf.mxu0
      %1621 = vmatprep.mubr.bf16.mxu0 %v1015
      %1622 = vmatmul.mubr.bf16.gmra.mxu0 %v1014
      %v1623 = vpop.f32.mrf.mxu0
      %v1624 = vadd.f32 0.0, %v1623
      %v1625 = vpop.f32.mrf.mxu0
      %v1626 = vpop.f32.mrf.mxu0
      %v1627 = vadd.f32 0.0, %v1626
      %v1628 = vpop.f32.mrf.mxu0
      %1629 = vmatprep.mubr.bf16.mxu0 %v1020
      %1630 = vmatmul.mubr.bf16.gmra.mxu0 %v1019
      %v1631 = vpop.f32.mrf.mxu0
      %v1632 = vadd.f32 0.0, %v1631
      %v1633 = vpop.f32.mrf.mxu0
      %v1634 = vpop.f32.mrf.mxu0
      %v1635 = vadd.f32 0.0, %v1634
      %v1636 = vpop.f32.mrf.mxu0
      %1637 = vmatprep.mubr.bf16.mxu0 %v1025
      %1638 = vmatmul.mubr.bf16.gmra.mxu0 %v1024
      %v1639 = vpop.f32.mrf.mxu0
      %v1640 = vadd.f32 0.0, %v1639
      %v1641 = vpop.f32.mrf.mxu0
      %v1642 = vpop.f32.mrf.mxu0
      %v1643 = vadd.f32 0.0, %v1642
      %v1644 = vpop.f32.mrf.mxu0
      %1645 = vmatprep.mubr.bf16.mxu0 %v1030
      %1646 = vmatmul.mubr.bf16.gmra.mxu0 %v1029
      %v1647 = vpop.f32.mrf.mxu0
      %v1648 = vadd.f32 0.0, %v1647
      %v1649 = vpop.f32.mrf.mxu0
      %v1650 = vpop.f32.mrf.mxu0
      %v1651 = vadd.f32 0.0, %v1650
      %v1652 = vpop.f32.mrf.mxu0
      %1653 = vmatprep.mubr.bf16.mxu0 %v1035
      %1654 = vmatmul.mubr.bf16.gmra.mxu0 %v1034
      %v1655 = vpop.f32.mrf.mxu0
      %v1656 = vadd.f32 0.0, %v1655
      %v1657 = vpop.f32.mrf.mxu0
      %v1658 = vpop.f32.mrf.mxu0
      %v1659 = vadd.f32 0.0, %v1658
      %v1660 = vpop.f32.mrf.mxu0
      %1661 = vmatprep.mubr.bf16.mxu0 %v1040
      %1662 = vmatmul.mubr.bf16.gmra.mxu0 %v1039
      %v1663 = vpop.f32.mrf.mxu0
      %v1664 = vadd.f32 0.0, %v1663
      %v1665 = vpop.f32.mrf.mxu0
      %v1666 = vpop.f32.mrf.mxu0
      %v1667 = vadd.f32 0.0, %v1666
      %v1668 = vpop.f32.mrf.mxu0
      %1669 = vmatprep.mubr.bf16.mxu0 %v1045
      %1670 = vmatmul.mubr.bf16.gmra.mxu0 %v1044
      %v1671 = vpop.f32.mrf.mxu0
      %v1672 = vadd.f32 0.0, %v1671
      %v1673 = vpop.f32.mrf.mxu0
      %v1674 = vpop.f32.mrf.mxu0
      %v1675 = vadd.f32 0.0, %v1674
      %v1676 = vpop.f32.mrf.mxu0
      %1677 = vmatprep.mubr.bf16.mxu0 %v1050
      %1678 = vmatmul.mubr.bf16.gmra.mxu0 %v1049
      %v1679 = vpop.f32.mrf.mxu0
      %v1680 = vadd.f32 0.0, %v1679
      %v1681 = vpop.f32.mrf.mxu0
      %v1682 = vpop.f32.mrf.mxu0
      %v1683 = vadd.f32 0.0, %v1682
      %v1684 = vpop.f32.mrf.mxu0
      %1685 = vmatprep.mubr.bf16.mxu0 %v1055
      %1686 = vmatmul.mubr.bf16.gmra.mxu0 %v1054
      %v1687 = vpop.f32.mrf.mxu0
      %v1688 = vadd.f32 0.0, %v1687
      %v1689 = vpop.f32.mrf.mxu0
      %v1690 = vpop.f32.mrf.mxu0
      %v1691 = vadd.f32 0.0, %v1690
      %v1692 = vpop.f32.mrf.mxu0
      %1693 = vmatprep.mubr.bf16.mxu0 %v1060
      %1694 = vmatmul.mubr.bf16.gmra.mxu0 %v1059
      %v1695 = vpop.f32.mrf.mxu0
      %v1696 = vadd.f32 0.0, %v1695
      %v1697 = vpop.f32.mrf.mxu0
      %v1698 = vpop.f32.mrf.mxu0
      %v1699 = vadd.f32 0.0, %v1698
      %v1700 = vpop.f32.mrf.mxu0
      %1701 = vmatprep.mubr.bf16.mxu0 %v1065
      %1702 = vmatmul.mubr.bf16.gmra.mxu0 %v1064
      %v1703 = vpop.f32.mrf.mxu0
      %v1704 = vadd.f32 0.0, %v1703
      %v1705 = vpop.f32.mrf.mxu0
      %v1706 = vpop.f32.mrf.mxu0
      %v1707 = vadd.f32 0.0, %v1706
      %v1708 = vpop.f32.mrf.mxu0
      %1709 = vmatprep.mubr.bf16.mxu0 %v1070
      %1710 = vmatmul.mubr.bf16.gmra.mxu0 %v1069
      %v1711 = vpop.f32.mrf.mxu0
      %v1712 = vadd.f32 0.0, %v1711
      %v1713 = vpop.f32.mrf.mxu0
      %v1714 = vpop.f32.mrf.mxu0
      %v1715 = vadd.f32 0.0, %v1714
      %v1716 = vpop.f32.mrf.mxu0
      %1717 = vmatprep.mubr.bf16.mxu0 %v1075
      %1718 = vmatmul.mubr.bf16.gmra.mxu0 %v1074
      %v1719 = vpop.f32.mrf.mxu0
      %v1720 = vadd.f32 0.0, %v1719
      %v1721 = vpop.f32.mrf.mxu0
      %v1722 = vpop.f32.mrf.mxu0
      %v1723 = vadd.f32 0.0, %v1722
      %v1724 = vpop.f32.mrf.mxu0
      %1725 = vmatprep.mubr.bf16.mxu0 %v1080
      %1726 = vmatmul.mubr.bf16.gmra.mxu0 %v1079
      %v1727 = vpop.f32.mrf.mxu0
      %v1728 = vadd.f32 0.0, %v1727
      %v1729 = vpop.f32.mrf.mxu0
      %v1730 = vpop.f32.mrf.mxu0
      %v1731 = vadd.f32 0.0, %v1730
      %v1732 = vpop.f32.mrf.mxu0
      %1733 = vmatprep.mubr.bf16.mxu0 %v1085
      %1734 = vmatmul.mubr.bf16.gmra.mxu0 %v1084
      %v1735 = vpop.f32.mrf.mxu0
      %v1736 = vadd.f32 0.0, %v1735
      %v1737 = vpop.f32.mrf.mxu0
      %v1738 = vpop.f32.mrf.mxu0
      %v1739 = vadd.f32 0.0, %v1738
      %v1740 = vpop.f32.mrf.mxu0
      %1741 = vmatprep.mubr.bf16.mxu0 %v1090
      %1742 = vmatmul.mubr.bf16.gmra.mxu0 %v1089
      %v1743 = vpop.f32.mrf.mxu0
      %v1744 = vadd.f32 0.0, %v1743
      %v1745 = vpop.f32.mrf.mxu0
      %v1746 = vpop.f32.mrf.mxu0
      %v1747 = vadd.f32 0.0, %v1746
      %v1748 = vpop.f32.mrf.mxu0
      %1749 = vmatprep.mubr.bf16.mxu0 %v1095
      %1750 = vmatmul.mubr.bf16.gmra.mxu0 %v1094
      %v1751 = vpop.f32.mrf.mxu0
      %v1752 = vadd.f32 0.0, %v1751
      %v1753 = vpop.f32.mrf.mxu0
      %v1754 = vpop.f32.mrf.mxu0
      %v1755 = vadd.f32 0.0, %v1754
      %v1756 = vpop.f32.mrf.mxu0
      %1757 = vmatprep.mubr.bf16.mxu0 %v1100
      %1758 = vmatmul.mubr.bf16.gmra.mxu0 %v1099
      %v1759 = vpop.f32.mrf.mxu0
      %v1760 = vadd.f32 0.0, %v1759
      %v1761 = vpop.f32.mrf.mxu0
      %v1762 = vpop.f32.mrf.mxu0
      %v1763 = vadd.f32 0.0, %v1762
      %v1764 = vpop.f32.mrf.mxu0
      %1765 = vmatprep.mubr.bf16.mxu0 %v1105
      %1766 = vmatmul.mubr.bf16.gmra.mxu0 %v1104
      %v1767 = vpop.f32.mrf.mxu0
      %v1768 = vadd.f32 0.0, %v1767
      %v1769 = vpop.f32.mrf.mxu0
      %v1770 = vpop.f32.mrf.mxu0
      %v1771 = vadd.f32 0.0, %v1770
      %v1772 = vpop.f32.mrf.mxu0
      %1773 = vmatprep.mubr.bf16.mxu0 %v1110
      %1774 = vmatmul.mubr.bf16.gmra.mxu0 %v1109
      %v1775 = vpop.f32.mrf.mxu0
      %v1776 = vadd.f32 0.0, %v1775
      %v1777 = vpop.f32.mrf.mxu0
      %v1778 = vpop.f32.mrf.mxu0
      %v1779 = vadd.f32 0.0, %v1778
      %v1780 = vpop.f32.mrf.mxu0
      %1781 = vmatprep.mubr.bf16.mxu0 %v1115
      %1782 = vmatmul.mubr.bf16.gmra.mxu0 %v1114
      %v1783 = vpop.f32.mrf.mxu0
      %v1784 = vadd.f32 0.0, %v1783
      %v1785 = vpop.f32.mrf.mxu0
      %v1786 = vpop.f32.mrf.mxu0
      %v1787 = vadd.f32 0.0, %v1786
      %v1788 = vpop.f32.mrf.mxu0
      %1789 = vmatprep.mubr.bf16.mxu0 %v1120
      %1790 = vmatmul.mubr.bf16.gmra.mxu0 %v1119
      %v1791 = vpop.f32.mrf.mxu0
      %v1792 = vadd.f32 0.0, %v1791
      %v1793 = vpop.f32.mrf.mxu0
      %v1794 = vpop.f32.mrf.mxu0
      %v1795 = vadd.f32 0.0, %v1794
      %v1796 = vpop.f32.mrf.mxu0
      %1797 = vmatprep.mubr.bf16.mxu0 %v1125
      %1798 = vmatmul.mubr.bf16.gmra.mxu0 %v1124
      %v1799 = vpop.f32.mrf.mxu0
      %v1800 = vadd.f32 0.0, %v1799
      %v1801 = vpop.f32.mrf.mxu0
      %v1802 = vpop.f32.mrf.mxu0
      %v1803 = vadd.f32 0.0, %v1802
      %v1804 = vpop.f32.mrf.mxu0
      %1805 = vmatprep.mubr.bf16.mxu0 %v1130
      %1806 = vmatmul.mubr.bf16.gmra.mxu0 %v1129
      %v1807 = vpop.f32.mrf.mxu0
      %v1808 = vadd.f32 0.0, %v1807
      %v1809 = vpop.f32.mrf.mxu0
      %v1810 = vpop.f32.mrf.mxu0
      %v1811 = vadd.f32 0.0, %v1810
      %v1812 = vpop.f32.mrf.mxu0
      %1813 = vmatprep.mubr.bf16.mxu0 %v1135
      %1814 = vmatmul.mubr.bf16.gmra.mxu0 %v1134
      %v1815 = vpop.f32.mrf.mxu0
      %v1816 = vadd.f32 0.0, %v1815
      %v1817 = vpop.f32.mrf.mxu0
      %v1818 = vpop.f32.mrf.mxu0
      %v1819 = vadd.f32 0.0, %v1818
      %v1820 = vpop.f32.mrf.mxu0
      %1821 = vmatprep.mubr.bf16.mxu0 %v1140
      %1822 = vmatmul.mubr.bf16.gmra.mxu0 %v1139
      %v1823 = vpop.f32.mrf.mxu0
      %v1824 = vadd.f32 0.0, %v1823
      %v1825 = vpop.f32.mrf.mxu0
      %v1826 = vpop.f32.mrf.mxu0
      %v1827 = vadd.f32 0.0, %v1826
      %v1828 = vpop.f32.mrf.mxu0
      %1829 = vmatprep.mubr.bf16.mxu0 %v1145
      %1830 = vmatmul.mubr.bf16.gmra.mxu0 %v1144
      %v1831 = vpop.f32.mrf.mxu0
      %v1832 = vadd.f32 0.0, %v1831
      %v1833 = vpop.f32.mrf.mxu0
      %v1834 = vpop.f32.mrf.mxu0
      %v1835 = vadd.f32 0.0, %v1834
      %v1836 = vpop.f32.mrf.mxu0
      %1837 = vdwg.mxu0
      %1838 = vmatprep.subr.bf16.mxu0 0
      %1839 = vmatpush1.bf16.msra.mxu0 %v1492
      %1840 = vmatprep.subr.bf16.mxu0 0
      %1841 = vmatpush1.bf16.msra.mxu0 %v1491
      %1842 = vmatprep.subr.bf16.mxu0 0
      %1843 = vmatpush1.bf16.msra.mxu0 %v1490
      %1844 = vmatprep.subr.bf16.mxu0 0
      %1845 = vmatpush1.bf16.msra.mxu0 %v1489
      %1846 = vmatprep.subr.bf16.mxu0 0
      %1847 = vmatpush1.bf16.msra.mxu0 %v1488
      %1848 = vmatprep.subr.bf16.mxu0 0
      %1849 = vmatpush1.bf16.msra.mxu0 %v1487
      %1850 = vmatprep.subr.bf16.mxu0 0
      %1851 = vmatpush1.bf16.msra.mxu0 %v1486
      %1852 = vmatprep.subr.bf16.mxu0 0
      %1853 = vmatpush1.bf16.msra.mxu0 %v1485
      %1854 = vmatprep.subr.bf16.mxu0 0
      %1855 = vmatpush2.bf16.msra.mxu0 %v1500
      %1856 = vmatprep.subr.bf16.mxu0 0
      %1857 = vmatpush2.bf16.msra.mxu0 %v1499
      %1858 = vmatprep.subr.bf16.mxu0 0
      %1859 = vmatpush2.bf16.msra.mxu0 %v1498
      %1860 = vmatprep.subr.bf16.mxu0 0
      %1861 = vmatpush2.bf16.msra.mxu0 %v1497
      %1862 = vmatprep.subr.bf16.mxu0 0
      %1863 = vmatpush2.bf16.msra.mxu0 %v1496
      %1864 = vmatprep.subr.bf16.mxu0 0
      %1865 = vmatpush2.bf16.msra.mxu0 %v1495
      %1866 = vmatprep.subr.bf16.mxu0 0
      %1867 = vmatpush2.bf16.msra.mxu0 %v1494
      %1868 = vmatprep.subr.bf16.mxu0 0
      %1869 = vmatpush2.bf16.msra.mxu0 %v1493
      %1870 = vmatprep.mubr.bf16.mxu0 %v992
      %1871 = vmatmul.mubr.bf16.gmra.mxu0 %v991
      %v1872 = vpop.f32.mrf.mxu0
      %v1873 = vadd.f32 %v1584, %v1872
      %v1874 = vpop.f32.mrf.mxu0
      %v1875 = vpop.f32.mrf.mxu0
      %v1876 = vadd.f32 %v1587, %v1875
      %v1877 = vpop.f32.mrf.mxu0
      %1878 = vmatprep.mubr.bf16.mxu0 %v997
      %1879 = vmatmul.mubr.bf16.gmra.mxu0 %v996
      %v1880 = vpop.f32.mrf.mxu0
      %v1881 = vadd.f32 %v1592, %v1880
      %v1882 = vpop.f32.mrf.mxu0
      %v1883 = vpop.f32.mrf.mxu0
      %v1884 = vadd.f32 %v1595, %v1883
      %v1885 = vpop.f32.mrf.mxu0
      %1886 = vmatprep.mubr.bf16.mxu0 %v1002
      %1887 = vmatmul.mubr.bf16.gmra.mxu0 %v1001
      %v1888 = vpop.f32.mrf.mxu0
      %v1889 = vadd.f32 %v1600, %v1888
      %v1890 = vpop.f32.mrf.mxu0
      %v1891 = vpop.f32.mrf.mxu0
      %v1892 = vadd.f32 %v1603, %v1891
      %v1893 = vpop.f32.mrf.mxu0
      %1894 = vmatprep.mubr.bf16.mxu0 %v1007
      %1895 = vmatmul.mubr.bf16.gmra.mxu0 %v1006
      %v1896 = vpop.f32.mrf.mxu0
      %v1897 = vadd.f32 %v1608, %v1896
      %v1898 = vpop.f32.mrf.mxu0
      %v1899 = vpop.f32.mrf.mxu0
      %v1900 = vadd.f32 %v1611, %v1899
      %v1901 = vpop.f32.mrf.mxu0
      %1902 = vmatprep.mubr.bf16.mxu0 %v1012
      %1903 = vmatmul.mubr.bf16.gmra.mxu0 %v1011
      %v1904 = vpop.f32.mrf.mxu0
      %v1905 = vadd.f32 %v1616, %v1904
      %v1906 = vpop.f32.mrf.mxu0
      %v1907 = vpop.f32.mrf.mxu0
      %v1908 = vadd.f32 %v1619, %v1907
      %v1909 = vpop.f32.mrf.mxu0
      %1910 = vmatprep.mubr.bf16.mxu0 %v1017
      %1911 = vmatmul.mubr.bf16.gmra.mxu0 %v1016
      %v1912 = vpop.f32.mrf.mxu0
      %v1913 = vadd.f32 %v1624, %v1912
      %v1914 = vpop.f32.mrf.mxu0
      %v1915 = vpop.f32.mrf.mxu0
      %v1916 = vadd.f32 %v1627, %v1915
      %v1917 = vpop.f32.mrf.mxu0
      %1918 = vmatprep.mubr.bf16.mxu0 %v1022
      %1919 = vmatmul.mubr.bf16.gmra.mxu0 %v1021
      %v1920 = vpop.f32.mrf.mxu0
      %v1921 = vadd.f32 %v1632, %v1920
      %v1922 = vpop.f32.mrf.mxu0
      %v1923 = vpop.f32.mrf.mxu0
      %v1924 = vadd.f32 %v1635, %v1923
      %v1925 = vpop.f32.mrf.mxu0
      %1926 = vmatprep.mubr.bf16.mxu0 %v1027
      %1927 = vmatmul.mubr.bf16.gmra.mxu0 %v1026
      %v1928 = vpop.f32.mrf.mxu0
      %v1929 = vadd.f32 %v1640, %v1928
      %v1930 = vpop.f32.mrf.mxu0
      %v1931 = vpop.f32.mrf.mxu0
      %v1932 = vadd.f32 %v1643, %v1931
      %v1933 = vpop.f32.mrf.mxu0
      %1934 = vmatprep.mubr.bf16.mxu0 %v1032
      %1935 = vmatmul.mubr.bf16.gmra.mxu0 %v1031
      %v1936 = vpop.f32.mrf.mxu0
      %v1937 = vadd.f32 %v1648, %v1936
      %v1938 = vpop.f32.mrf.mxu0
      %v1939 = vpop.f32.mrf.mxu0
      %v1940 = vadd.f32 %v1651, %v1939
      %v1941 = vpop.f32.mrf.mxu0
      %1942 = vmatprep.mubr.bf16.mxu0 %v1037
      %1943 = vmatmul.mubr.bf16.gmra.mxu0 %v1036
      %v1944 = vpop.f32.mrf.mxu0
      %v1945 = vadd.f32 %v1656, %v1944
      %v1946 = vpop.f32.mrf.mxu0
      %v1947 = vpop.f32.mrf.mxu0
      %v1948 = vadd.f32 %v1659, %v1947
      %v1949 = vpop.f32.mrf.mxu0
      %1950 = vmatprep.mubr.bf16.mxu0 %v1042
      %1951 = vmatmul.mubr.bf16.gmra.mxu0 %v1041
      %v1952 = vpop.f32.mrf.mxu0
      %v1953 = vadd.f32 %v1664, %v1952
      %v1954 = vpop.f32.mrf.mxu0
      %v1955 = vpop.f32.mrf.mxu0
      %v1956 = vadd.f32 %v1667, %v1955
      %v1957 = vpop.f32.mrf.mxu0
      %1958 = vmatprep.mubr.bf16.mxu0 %v1047
      %1959 = vmatmul.mubr.bf16.gmra.mxu0 %v1046
      %v1960 = vpop.f32.mrf.mxu0
      %v1961 = vadd.f32 %v1672, %v1960
      %v1962 = vpop.f32.mrf.mxu0
      %v1963 = vpop.f32.mrf.mxu0
      %v1964 = vadd.f32 %v1675, %v1963
      %v1965 = vpop.f32.mrf.mxu0
      %1966 = vmatprep.mubr.bf16.mxu0 %v1052
      %1967 = vmatmul.mubr.bf16.gmra.mxu0 %v1051
      %v1968 = vpop.f32.mrf.mxu0
      %v1969 = vadd.f32 %v1680, %v1968
      %v1970 = vpop.f32.mrf.mxu0
      %v1971 = vpop.f32.mrf.mxu0
      %v1972 = vadd.f32 %v1683, %v1971
      %v1973 = vpop.f32.mrf.mxu0
      %1974 = vmatprep.mubr.bf16.mxu0 %v1057
      %1975 = vmatmul.mubr.bf16.gmra.mxu0 %v1056
      %v1976 = vpop.f32.mrf.mxu0
      %v1977 = vadd.f32 %v1688, %v1976
      %v1978 = vpop.f32.mrf.mxu0
      %v1979 = vpop.f32.mrf.mxu0
      %v1980 = vadd.f32 %v1691, %v1979
      %v1981 = vpop.f32.mrf.mxu0
      %1982 = vmatprep.mubr.bf16.mxu0 %v1062
      %1983 = vmatmul.mubr.bf16.gmra.mxu0 %v1061
      %v1984 = vpop.f32.mrf.mxu0
      %v1985 = vadd.f32 %v1696, %v1984
      %v1986 = vpop.f32.mrf.mxu0
      %v1987 = vpop.f32.mrf.mxu0
      %v1988 = vadd.f32 %v1699, %v1987
      %v1989 = vpop.f32.mrf.mxu0
      %1990 = vmatprep.mubr.bf16.mxu0 %v1067
      %1991 = vmatmul.mubr.bf16.gmra.mxu0 %v1066
      %v1992 = vpop.f32.mrf.mxu0
      %v1993 = vadd.f32 %v1704, %v1992
      %v1994 = vpop.f32.mrf.mxu0
      %v1995 = vpop.f32.mrf.mxu0
      %v1996 = vadd.f32 %v1707, %v1995
      %v1997 = vpop.f32.mrf.mxu0
      %1998 = vmatprep.mubr.bf16.mxu0 %v1072
      %1999 = vmatmul.mubr.bf16.gmra.mxu0 %v1071
      %v2000 = vpop.f32.mrf.mxu0
      %v2001 = vadd.f32 %v1712, %v2000
      %v2002 = vpop.f32.mrf.mxu0
      %v2003 = vpop.f32.mrf.mxu0
      %v2004 = vadd.f32 %v1715, %v2003
      %v2005 = vpop.f32.mrf.mxu0
      %2006 = vmatprep.mubr.bf16.mxu0 %v1077
      %2007 = vmatmul.mubr.bf16.gmra.mxu0 %v1076
      %v2008 = vpop.f32.mrf.mxu0
      %v2009 = vadd.f32 %v1720, %v2008
      %v2010 = vpop.f32.mrf.mxu0
      %v2011 = vpop.f32.mrf.mxu0
      %v2012 = vadd.f32 %v1723, %v2011
      %v2013 = vpop.f32.mrf.mxu0
      %2014 = vmatprep.mubr.bf16.mxu0 %v1082
      %2015 = vmatmul.mubr.bf16.gmra.mxu0 %v1081
      %v2016 = vpop.f32.mrf.mxu0
      %v2017 = vadd.f32 %v1728, %v2016
      %v2018 = vpop.f32.mrf.mxu0
      %v2019 = vpop.f32.mrf.mxu0
      %v2020 = vadd.f32 %v1731, %v2019
      %v2021 = vpop.f32.mrf.mxu0
      %2022 = vmatprep.mubr.bf16.mxu0 %v1087
      %2023 = vmatmul.mubr.bf16.gmra.mxu0 %v1086
      %v2024 = vpop.f32.mrf.mxu0
      %v2025 = vadd.f32 %v1736, %v2024
      %v2026 = vpop.f32.mrf.mxu0
      %v2027 = vpop.f32.mrf.mxu0
      %v2028 = vadd.f32 %v1739, %v2027
      %v2029 = vpop.f32.mrf.mxu0
      %2030 = vmatprep.mubr.bf16.mxu0 %v1092
      %2031 = vmatmul.mubr.bf16.gmra.mxu0 %v1091
      %v2032 = vpop.f32.mrf.mxu0
      %v2033 = vadd.f32 %v1744, %v2032
      %v2034 = vpop.f32.mrf.mxu0
      %v2035 = vpop.f32.mrf.mxu0
      %v2036 = vadd.f32 %v1747, %v2035
      %v2037 = vpop.f32.mrf.mxu0
      %2038 = vmatprep.mubr.bf16.mxu0 %v1097
      %2039 = vmatmul.mubr.bf16.gmra.mxu0 %v1096
      %v2040 = vpop.f32.mrf.mxu0
      %v2041 = vadd.f32 %v1752, %v2040
      %v2042 = vpop.f32.mrf.mxu0
      %v2043 = vpop.f32.mrf.mxu0
      %v2044 = vadd.f32 %v1755, %v2043
      %v2045 = vpop.f32.mrf.mxu0
      %2046 = vmatprep.mubr.bf16.mxu0 %v1102
      %2047 = vmatmul.mubr.bf16.gmra.mxu0 %v1101
      %v2048 = vpop.f32.mrf.mxu0
      %v2049 = vadd.f32 %v1760, %v2048
      %v2050 = vpop.f32.mrf.mxu0
      %v2051 = vpop.f32.mrf.mxu0
      %v2052 = vadd.f32 %v1763, %v2051
      %v2053 = vpop.f32.mrf.mxu0
      %2054 = vmatprep.mubr.bf16.mxu0 %v1107
      %2055 = vmatmul.mubr.bf16.gmra.mxu0 %v1106
      %v2056 = vpop.f32.mrf.mxu0
      %v2057 = vadd.f32 %v1768, %v2056
      %v2058 = vpop.f32.mrf.mxu0
      %v2059 = vpop.f32.mrf.mxu0
      %v2060 = vadd.f32 %v1771, %v2059
      %v2061 = vpop.f32.mrf.mxu0
      %2062 = vmatprep.mubr.bf16.mxu0 %v1112
      %2063 = vmatmul.mubr.bf16.gmra.mxu0 %v1111
      %v2064 = vpop.f32.mrf.mxu0
      %v2065 = vadd.f32 %v1776, %v2064
      %v2066 = vpop.f32.mrf.mxu0
      %v2067 = vpop.f32.mrf.mxu0
      %v2068 = vadd.f32 %v1779, %v2067
      %v2069 = vpop.f32.mrf.mxu0
      %2070 = vmatprep.mubr.bf16.mxu0 %v1117
      %2071 = vmatmul.mubr.bf16.gmra.mxu0 %v1116
      %v2072 = vpop.f32.mrf.mxu0
      %v2073 = vadd.f32 %v1784, %v2072
      %v2074 = vpop.f32.mrf.mxu0
      %v2075 = vpop.f32.mrf.mxu0
      %v2076 = vadd.f32 %v1787, %v2075
      %v2077 = vpop.f32.mrf.mxu0
      %2078 = vmatprep.mubr.bf16.mxu0 %v1122
      %2079 = vmatmul.mubr.bf16.gmra.mxu0 %v1121
      %v2080 = vpop.f32.mrf.mxu0
      %v2081 = vadd.f32 %v1792, %v2080
      %v2082 = vpop.f32.mrf.mxu0
      %v2083 = vpop.f32.mrf.mxu0
      %v2084 = vadd.f32 %v1795, %v2083
      %v2085 = vpop.f32.mrf.mxu0
      %2086 = vmatprep.mubr.bf16.mxu0 %v1127
      %2087 = vmatmul.mubr.bf16.gmra.mxu0 %v1126
      %v2088 = vpop.f32.mrf.mxu0
      %v2089 = vadd.f32 %v1800, %v2088
      %v2090 = vpop.f32.mrf.mxu0
      %v2091 = vpop.f32.mrf.mxu0
      %v2092 = vadd.f32 %v1803, %v2091
      %v2093 = vpop.f32.mrf.mxu0
      %2094 = vmatprep.mubr.bf16.mxu0 %v1132
      %2095 = vmatmul.mubr.bf16.gmra.mxu0 %v1131
      %v2096 = vpop.f32.mrf.mxu0
      %v2097 = vadd.f32 %v1808, %v2096
      %v2098 = vpop.f32.mrf.mxu0
      %v2099 = vpop.f32.mrf.mxu0
      %v2100 = vadd.f32 %v1811, %v2099
      %v2101 = vpop.f32.mrf.mxu0
      %2102 = vmatprep.mubr.bf16.mxu0 %v1137
      %2103 = vmatmul.mubr.bf16.gmra.mxu0 %v1136
      %v2104 = vpop.f32.mrf.mxu0
      %v2105 = vadd.f32 %v1816, %v2104
      %v2106 = vpop.f32.mrf.mxu0
      %v2107 = vpop.f32.mrf.mxu0
      %v2108 = vadd.f32 %v1819, %v2107
      %v2109 = vpop.f32.mrf.mxu0
      %2110 = vmatprep.mubr.bf16.mxu0 %v1142
      %2111 = vmatmul.mubr.bf16.gmra.mxu0 %v1141
      %v2112 = vpop.f32.mrf.mxu0
      %v2113 = vadd.f32 %v1824, %v2112
      %v2114 = vpop.f32.mrf.mxu0
      %v2115 = vpop.f32.mrf.mxu0
      %v2116 = vadd.f32 %v1827, %v2115
      %v2117 = vpop.f32.mrf.mxu0
      %2118 = vmatprep.mubr.bf16.mxu0 %v1147
      %2119 = vmatmul.mubr.bf16.gmra.mxu0 %v1146
      %v2120 = vpop.f32.mrf.mxu0
      %v2121 = vadd.f32 %v1832, %v2120
      %v2122 = vpop.f32.mrf.mxu0
      %v2123 = vpop.f32.mrf.mxu0
      %v2124 = vadd.f32 %v1835, %v2123
      %v2125 = vpop.f32.mrf.mxu0
      %2126 = vdwg.mxu0
      %2127 = vmatprep.subr.bf16.mxu0 0
      %2128 = vmatpush1.bf16.msra.mxu0 %v1508
      %2129 = vmatprep.subr.bf16.mxu0 0
      %2130 = vmatpush1.bf16.msra.mxu0 %v1507
      %2131 = vmatprep.subr.bf16.mxu0 0
      %2132 = vmatpush1.bf16.msra.mxu0 %v1506
      %2133 = vmatprep.subr.bf16.mxu0 0
      %2134 = vmatpush1.bf16.msra.mxu0 %v1505
      %2135 = vmatprep.subr.bf16.mxu0 0
      %2136 = vmatpush1.bf16.msra.mxu0 %v1504
      %2137 = vmatprep.subr.bf16.mxu0 0
      %2138 = vmatpush1.bf16.msra.mxu0 %v1503
      %2139 = vmatprep.subr.bf16.mxu0 0
      %2140 = vmatpush1.bf16.msra.mxu0 %v1502
      %2141 = vmatprep.subr.bf16.mxu0 0
      %2142 = vmatpush1.bf16.msra.mxu0 %v1501
      %2143 = vmatprep.subr.bf16.mxu0 0
      %2144 = vmatpush2.bf16.msra.mxu0 0
      %2145 = vmatprep.subr.bf16.mxu0 0
      %2146 = vmatpush2.bf16.msra.mxu0 0
      %2147 = vmatprep.subr.bf16.mxu0 0
      %2148 = vmatpush2.bf16.msra.mxu0 0
      %2149 = vmatprep.subr.bf16.mxu0 0
      %2150 = vmatpush2.bf16.msra.mxu0 0
      %2151 = vmatprep.subr.bf16.mxu0 0
      %2152 = vmatpush2.bf16.msra.mxu0 0
      %2153 = vmatprep.subr.bf16.mxu0 0
      %2154 = vmatpush2.bf16.msra.mxu0 0
      %2155 = vmatprep.subr.bf16.mxu0 0
      %2156 = vmatpush2.bf16.msra.mxu0 0
      %2157 = vmatprep.subr.bf16.mxu0 0
      %2158 = vmatpush2.bf16.msra.mxu0 0
      %2159 = vmatprep.mubr.bf16.mxu0 0
      %2160 = vmatmul.mubr.bf16.gmra.mxu0 %v993
      %v2161 = vpop.f32.mrf.mxu0
      %v2162 = vadd.f32 %v1873, %v2161
      %v2163 = vpop.f32.mrf.mxu0
      %v2164 = vpop.f32.mrf.mxu0
      %v2165 = vadd.f32 %v1876, %v2164
      %v2166 = vpop.f32.mrf.mxu0
      %2167 = vmatprep.mubr.bf16.mxu0 0
      %2168 = vmatmul.mubr.bf16.gmra.mxu0 %v998
      %v2169 = vpop.f32.mrf.mxu0
      %v2170 = vadd.f32 %v1881, %v2169
      %v2171 = vpop.f32.mrf.mxu0
      %v2172 = vpop.f32.mrf.mxu0
      %v2173 = vadd.f32 %v1884, %v2172
      %v2174 = vpop.f32.mrf.mxu0
      %2175 = vmatprep.mubr.bf16.mxu0 0
      %2176 = vmatmul.mubr.bf16.gmra.mxu0 %v1003
      %v2177 = vpop.f32.mrf.mxu0
      %v2178 = vadd.f32 %v1889, %v2177
      %v2179 = vpop.f32.mrf.mxu0
      %v2180 = vpop.f32.mrf.mxu0
      %v2181 = vadd.f32 %v1892, %v2180
      %v2182 = vpop.f32.mrf.mxu0
      %2183 = vmatprep.mubr.bf16.mxu0 0
      %2184 = vmatmul.mubr.bf16.gmra.mxu0 %v1008
      %v2185 = vpop.f32.mrf.mxu0
      %v2186 = vadd.f32 %v1897, %v2185
      %v2187 = vpop.f32.mrf.mxu0
      %v2188 = vpop.f32.mrf.mxu0
      %v2189 = vadd.f32 %v1900, %v2188
      %v2190 = vpop.f32.mrf.mxu0
      %2191 = vmatprep.mubr.bf16.mxu0 0
      %2192 = vmatmul.mubr.bf16.gmra.mxu0 %v1013
      %v2193 = vpop.f32.mrf.mxu0
      %v2194 = vadd.f32 %v1905, %v2193
      %v2195 = vpop.f32.mrf.mxu0
      %v2196 = vpop.f32.mrf.mxu0
      %v2197 = vadd.f32 %v1908, %v2196
      %v2198 = vpop.f32.mrf.mxu0
      %2199 = vmatprep.mubr.bf16.mxu0 0
      %2200 = vmatmul.mubr.bf16.gmra.mxu0 %v1018
      %v2201 = vpop.f32.mrf.mxu0
      %v2202 = vadd.f32 %v1913, %v2201
      %v2203 = vpop.f32.mrf.mxu0
      %v2204 = vpop.f32.mrf.mxu0
      %v2205 = vadd.f32 %v1916, %v2204
      %v2206 = vpop.f32.mrf.mxu0
      %2207 = vmatprep.mubr.bf16.mxu0 0
      %2208 = vmatmul.mubr.bf16.gmra.mxu0 %v1023
      %v2209 = vpop.f32.mrf.mxu0
      %v2210 = vadd.f32 %v1921, %v2209
      %v2211 = vpop.f32.mrf.mxu0
      %v2212 = vpop.f32.mrf.mxu0
      %v2213 = vadd.f32 %v1924, %v2212
      %v2214 = vpop.f32.mrf.mxu0
      %2215 = vmatprep.mubr.bf16.mxu0 0
      %2216 = vmatmul.mubr.bf16.gmra.mxu0 %v1028
      %v2217 = vpop.f32.mrf.mxu0
      %v2218 = vadd.f32 %v1929, %v2217
      %v2219 = vpop.f32.mrf.mxu0
      %v2220 = vpop.f32.mrf.mxu0
      %v2221 = vadd.f32 %v1932, %v2220
      %v2222 = vpop.f32.mrf.mxu0
      %2223 = vmatprep.mubr.bf16.mxu0 0
      %2224 = vmatmul.mubr.bf16.gmra.mxu0 %v1033
      %v2225 = vpop.f32.mrf.mxu0
      %v2226 = vadd.f32 %v1937, %v2225
      %v2227 = vpop.f32.mrf.mxu0
      %v2228 = vpop.f32.mrf.mxu0
      %v2229 = vadd.f32 %v1940, %v2228
      %v2230 = vpop.f32.mrf.mxu0
      %2231 = vmatprep.mubr.bf16.mxu0 0
      %2232 = vmatmul.mubr.bf16.gmra.mxu0 %v1038
      %v2233 = vpop.f32.mrf.mxu0
      %v2234 = vadd.f32 %v1945, %v2233
      %v2235 = vpop.f32.mrf.mxu0
      %v2236 = vpop.f32.mrf.mxu0
      %v2237 = vadd.f32 %v1948, %v2236
      %v2238 = vpop.f32.mrf.mxu0
      %2239 = vmatprep.mubr.bf16.mxu0 0
      %2240 = vmatmul.mubr.bf16.gmra.mxu0 %v1043
      %v2241 = vpop.f32.mrf.mxu0
      %v2242 = vadd.f32 %v1953, %v2241
      %v2243 = vpop.f32.mrf.mxu0
      %v2244 = vpop.f32.mrf.mxu0
      %v2245 = vadd.f32 %v1956, %v2244
      %v2246 = vpop.f32.mrf.mxu0
      %2247 = vmatprep.mubr.bf16.mxu0 0
      %2248 = vmatmul.mubr.bf16.gmra.mxu0 %v1048
      %v2249 = vpop.f32.mrf.mxu0
      %v2250 = vadd.f32 %v1961, %v2249
      %v2251 = vpop.f32.mrf.mxu0
      %v2252 = vpop.f32.mrf.mxu0
      %v2253 = vadd.f32 %v1964, %v2252
      %v2254 = vpop.f32.mrf.mxu0
      %2255 = vmatprep.mubr.bf16.mxu0 0
      %2256 = vmatmul.mubr.bf16.gmra.mxu0 %v1053
      %v2257 = vpop.f32.mrf.mxu0
      %v2258 = vadd.f32 %v1969, %v2257
      %v2259 = vpop.f32.mrf.mxu0
      %v2260 = vpop.f32.mrf.mxu0
      %v2261 = vadd.f32 %v1972, %v2260
      %v2262 = vpop.f32.mrf.mxu0
      %2263 = vmatprep.mubr.bf16.mxu0 0
      %2264 = vmatmul.mubr.bf16.gmra.mxu0 %v1058
      %v2265 = vpop.f32.mrf.mxu0
      %v2266 = vadd.f32 %v1977, %v2265
      %v2267 = vpop.f32.mrf.mxu0
      %v2268 = vpop.f32.mrf.mxu0
      %v2269 = vadd.f32 %v1980, %v2268
      %v2270 = vpop.f32.mrf.mxu0
      %2271 = vmatprep.mubr.bf16.mxu0 0
      %2272 = vmatmul.mubr.bf16.gmra.mxu0 %v1063
      %v2273 = vpop.f32.mrf.mxu0
      %v2274 = vadd.f32 %v1985, %v2273
      %v2275 = vpop.f32.mrf.mxu0
      %v2276 = vpop.f32.mrf.mxu0
      %v2277 = vadd.f32 %v1988, %v2276
      %v2278 = vpop.f32.mrf.mxu0
      %2279 = vmatprep.mubr.bf16.mxu0 0
      %2280 = vmatmul.mubr.bf16.gmra.mxu0 %v1068
      %v2281 = vpop.f32.mrf.mxu0
      %v2282 = vadd.f32 %v1993, %v2281
      %v2283 = vpop.f32.mrf.mxu0
      %v2284 = vpop.f32.mrf.mxu0
      %v2285 = vadd.f32 %v1996, %v2284
      %v2286 = vpop.f32.mrf.mxu0
      %2287 = vmatprep.mubr.bf16.mxu0 0
      %2288 = vmatmul.mubr.bf16.gmra.mxu0 %v1073
      %v2289 = vpop.f32.mrf.mxu0
      %v2290 = vadd.f32 %v2001, %v2289
      %v2291 = vpop.f32.mrf.mxu0
      %v2292 = vpop.f32.mrf.mxu0
      %v2293 = vadd.f32 %v2004, %v2292
      %v2294 = vpop.f32.mrf.mxu0
      %2295 = vmatprep.mubr.bf16.mxu0 0
      %2296 = vmatmul.mubr.bf16.gmra.mxu0 %v1078
      %v2297 = vpop.f32.mrf.mxu0
      %v2298 = vadd.f32 %v2009, %v2297
      %v2299 = vpop.f32.mrf.mxu0
      %v2300 = vpop.f32.mrf.mxu0
      %v2301 = vadd.f32 %v2012, %v2300
      %v2302 = vpop.f32.mrf.mxu0
      %2303 = vmatprep.mubr.bf16.mxu0 0
      %2304 = vmatmul.mubr.bf16.gmra.mxu0 %v1083
      %v2305 = vpop.f32.mrf.mxu0
      %v2306 = vadd.f32 %v2017, %v2305
      %v2307 = vpop.f32.mrf.mxu0
      %v2308 = vpop.f32.mrf.mxu0
      %v2309 = vadd.f32 %v2020, %v2308
      %v2310 = vpop.f32.mrf.mxu0
      %2311 = vmatprep.mubr.bf16.mxu0 0
      %2312 = vmatmul.mubr.bf16.gmra.mxu0 %v1088
      %v2313 = vpop.f32.mrf.mxu0
      %v2314 = vadd.f32 %v2025, %v2313
      %v2315 = vpop.f32.mrf.mxu0
      %v2316 = vpop.f32.mrf.mxu0
      %v2317 = vadd.f32 %v2028, %v2316
      %v2318 = vpop.f32.mrf.mxu0
      %2319 = vmatprep.mubr.bf16.mxu0 0
      %2320 = vmatmul.mubr.bf16.gmra.mxu0 %v1093
      %v2321 = vpop.f32.mrf.mxu0
      %v2322 = vadd.f32 %v2033, %v2321
      %v2323 = vpop.f32.mrf.mxu0
      %v2324 = vpop.f32.mrf.mxu0
      %v2325 = vadd.f32 %v2036, %v2324
      %v2326 = vpop.f32.mrf.mxu0
      %2327 = vmatprep.mubr.bf16.mxu0 0
      %2328 = vmatmul.mubr.bf16.gmra.mxu0 %v1098
      %v2329 = vpop.f32.mrf.mxu0
      %v2330 = vadd.f32 %v2041, %v2329
      %v2331 = vpop.f32.mrf.mxu0
      %v2332 = vpop.f32.mrf.mxu0
      %v2333 = vadd.f32 %v2044, %v2332
      %v2334 = vpop.f32.mrf.mxu0
      %2335 = vmatprep.mubr.bf16.mxu0 0
      %2336 = vmatmul.mubr.bf16.gmra.mxu0 %v1103
      %v2337 = vpop.f32.mrf.mxu0
      %v2338 = vadd.f32 %v2049, %v2337
      %v2339 = vpop.f32.mrf.mxu0
      %v2340 = vpop.f32.mrf.mxu0
      %v2341 = vadd.f32 %v2052, %v2340
      %v2342 = vpop.f32.mrf.mxu0
      %2343 = vmatprep.mubr.bf16.mxu0 0
      %2344 = vmatmul.mubr.bf16.gmra.mxu0 %v1108
      %v2345 = vpop.f32.mrf.mxu0
      %v2346 = vadd.f32 %v2057, %v2345
      %v2347 = vpop.f32.mrf.mxu0
      %v2348 = vpop.f32.mrf.mxu0
      %v2349 = vadd.f32 %v2060, %v2348
      %v2350 = vpop.f32.mrf.mxu0
      %2351 = vmatprep.mubr.bf16.mxu0 0
      %2352 = vmatmul.mubr.bf16.gmra.mxu0 %v1113
      %v2353 = vpop.f32.mrf.mxu0
      %v2354 = vadd.f32 %v2065, %v2353
      %v2355 = vpop.f32.mrf.mxu0
      %v2356 = vpop.f32.mrf.mxu0
      %v2357 = vadd.f32 %v2068, %v2356
      %v2358 = vpop.f32.mrf.mxu0
      %2359 = vmatprep.mubr.bf16.mxu0 0
      %2360 = vmatmul.mubr.bf16.gmra.mxu0 %v1118
      %v2361 = vpop.f32.mrf.mxu0
      %v2362 = vadd.f32 %v2073, %v2361
      %v2363 = vpop.f32.mrf.mxu0
      %v2364 = vpop.f32.mrf.mxu0
      %v2365 = vadd.f32 %v2076, %v2364
      %v2366 = vpop.f32.mrf.mxu0
      %2367 = vmatprep.mubr.bf16.mxu0 0
      %2368 = vmatmul.mubr.bf16.gmra.mxu0 %v1123
      %v2369 = vpop.f32.mrf.mxu0
      %v2370 = vadd.f32 %v2081, %v2369
      %v2371 = vpop.f32.mrf.mxu0
      %v2372 = vpop.f32.mrf.mxu0
      %v2373 = vadd.f32 %v2084, %v2372
      %v2374 = vpop.f32.mrf.mxu0
      %2375 = vmatprep.mubr.bf16.mxu0 0
      %2376 = vmatmul.mubr.bf16.gmra.mxu0 %v1128
      %v2377 = vpop.f32.mrf.mxu0
      %v2378 = vadd.f32 %v2089, %v2377
      %v2379 = vpop.f32.mrf.mxu0
      %v2380 = vpop.f32.mrf.mxu0
      %v2381 = vadd.f32 %v2092, %v2380
      %v2382 = vpop.f32.mrf.mxu0
      %2383 = vmatprep.mubr.bf16.mxu0 0
      %2384 = vmatmul.mubr.bf16.gmra.mxu0 %v1133
      %v2385 = vpop.f32.mrf.mxu0
      %v2386 = vadd.f32 %v2097, %v2385
      %v2387 = vpop.f32.mrf.mxu0
      %v2388 = vpop.f32.mrf.mxu0
      %v2389 = vadd.f32 %v2100, %v2388
      %v2390 = vpop.f32.mrf.mxu0
      %2391 = vmatprep.mubr.bf16.mxu0 0
      %2392 = vmatmul.mubr.bf16.gmra.mxu0 %v1138
      %v2393 = vpop.f32.mrf.mxu0
      %v2394 = vadd.f32 %v2105, %v2393
      %v2395 = vpop.f32.mrf.mxu0
      %v2396 = vpop.f32.mrf.mxu0
      %v2397 = vadd.f32 %v2108, %v2396
      %v2398 = vpop.f32.mrf.mxu0
      %2399 = vmatprep.mubr.bf16.mxu0 0
      %2400 = vmatmul.mubr.bf16.gmra.mxu0 %v1143
      %v2401 = vpop.f32.mrf.mxu0
      %v2402 = vadd.f32 %v2113, %v2401
      %v2403 = vpop.f32.mrf.mxu0
      %v2404 = vpop.f32.mrf.mxu0
      %v2405 = vadd.f32 %v2116, %v2404
      %v2406 = vpop.f32.mrf.mxu0
      %2407 = vmatprep.mubr.bf16.mxu0 0
      %2408 = vmatmul.mubr.bf16.gmra.mxu0 %v1148
      %v2409 = vpop.f32.mrf.mxu0
      %v2410 = vadd.f32 %v2121, %v2409
      %v2411 = vpop.f32.mrf.mxu0
      %v2412 = vpop.f32.mrf.mxu0
      %v2413 = vadd.f32 %v2124, %v2412
      %v2414 = vpop.f32.mrf.mxu0
      %2415 = vdwg.mxu0
      %v2416 = vld [vmem:[%s2] sm:$0x1]
      %v2418 = vlaneseq
      %v2419 = vshrl.u32 %v2418, 7
      %v2420 = vsub.s32 0, %v2419
      %v2421 = vrot.slane %v2416, %v2420
      %v2423 = vmul.f32 %v2162, %v2421
      %v2424 = vmul.f32 %v2165, %v2421
      %v2425 = vmul.f32 %v2170, %v2421
      %v2426 = vmul.f32 %v2173, %v2421
      %v2427 = vmul.f32 %v2178, %v2421
      %v2428 = vmul.f32 %v2181, %v2421
      %v2429 = vmul.f32 %v2186, %v2421
      %v2430 = vmul.f32 %v2189, %v2421
      %v2431 = vmul.f32 %v2194, %v2421
      %v2432 = vmul.f32 %v2197, %v2421
      %v2433 = vmul.f32 %v2202, %v2421
      %v2434 = vmul.f32 %v2205, %v2421
      %v2435 = vmul.f32 %v2210, %v2421
      %v2436 = vmul.f32 %v2213, %v2421
      %v2437 = vmul.f32 %v2218, %v2421
      %v2438 = vmul.f32 %v2221, %v2421
      %v2439 = vmul.f32 %v2226, %v2421
      %v2440 = vmul.f32 %v2229, %v2421
      %v2441 = vmul.f32 %v2234, %v2421
      %v2442 = vmul.f32 %v2237, %v2421
      %v2443 = vmul.f32 %v2242, %v2421
      %v2444 = vmul.f32 %v2245, %v2421
      %v2445 = vmul.f32 %v2250, %v2421
      %v2446 = vmul.f32 %v2253, %v2421
      %v2447 = vmul.f32 %v2258, %v2421
      %v2448 = vmul.f32 %v2261, %v2421
      %v2449 = vmul.f32 %v2266, %v2421
      %v2450 = vmul.f32 %v2269, %v2421
      %v2451 = vmul.f32 %v2274, %v2421
      %v2452 = vmul.f32 %v2277, %v2421
      %v2453 = vmul.f32 %v2282, %v2421
      %v2454 = vmul.f32 %v2285, %v2421
      %v2455 = vmul.f32 %v2290, %v2421
      %v2456 = vmul.f32 %v2293, %v2421
      %v2457 = vmul.f32 %v2298, %v2421
      %v2458 = vmul.f32 %v2301, %v2421
      %v2459 = vmul.f32 %v2306, %v2421
      %v2460 = vmul.f32 %v2309, %v2421
      %v2461 = vmul.f32 %v2314, %v2421
      %v2462 = vmul.f32 %v2317, %v2421
      %v2463 = vmul.f32 %v2322, %v2421
      %v2464 = vmul.f32 %v2325, %v2421
      %v2465 = vmul.f32 %v2330, %v2421
      %v2466 = vmul.f32 %v2333, %v2421
      %v2467 = vmul.f32 %v2338, %v2421
      %v2468 = vmul.f32 %v2341, %v2421
      %v2469 = vmul.f32 %v2346, %v2421
      %v2470 = vmul.f32 %v2349, %v2421
      %v2471 = vmul.f32 %v2354, %v2421
      %v2472 = vmul.f32 %v2357, %v2421
      %v2473 = vmul.f32 %v2362, %v2421
      %v2474 = vmul.f32 %v2365, %v2421
      %v2475 = vmul.f32 %v2370, %v2421
      %v2476 = vmul.f32 %v2373, %v2421
      %v2477 = vmul.f32 %v2378, %v2421
      %v2478 = vmul.f32 %v2381, %v2421
      %v2479 = vmul.f32 %v2386, %v2421
      %v2480 = vmul.f32 %v2389, %v2421
      %v2481 = vmul.f32 %v2394, %v2421
      %v2482 = vmul.f32 %v2397, %v2421
      %v2483 = vmul.f32 %v2402, %v2421
      %v2484 = vmul.f32 %v2405, %v2421
      %v2485 = vmul.f32 %v2410, %v2421
      %v2486 = vmul.f32 %v2413, %v2421
      %v2487 = vld [vmem:[%s3] sm:$0x1]
      %v2489 = vlaneseq
      %v2490 = vshrl.u32 %v2489, 7
      %v2491 = vsub.s32 0, %v2490
      %v2492 = vrot.slane %v2487, %v2491
      %v2494 = vadd.f32 %v2423, %v2492
      %v2495 = vadd.f32 %v2424, %v2492
      %v2496 = vadd.f32 %v2425, %v2492
      %v2497 = vadd.f32 %v2426, %v2492
      %v2498 = vadd.f32 %v2427, %v2492
      %v2499 = vadd.f32 %v2428, %v2492
      %v2500 = vadd.f32 %v2429, %v2492
      %v2501 = vadd.f32 %v2430, %v2492
      %v2502 = vadd.f32 %v2431, %v2492
      %v2503 = vadd.f32 %v2432, %v2492
      %v2504 = vadd.f32 %v2433, %v2492
      %v2505 = vadd.f32 %v2434, %v2492
      %v2506 = vadd.f32 %v2435, %v2492
      %v2507 = vadd.f32 %v2436, %v2492
      %v2508 = vadd.f32 %v2437, %v2492
      %v2509 = vadd.f32 %v2438, %v2492
      %v2510 = vadd.f32 %v2439, %v2492
      %v2511 = vadd.f32 %v2440, %v2492
      %v2512 = vadd.f32 %v2441, %v2492
      %v2513 = vadd.f32 %v2442, %v2492
      %v2514 = vadd.f32 %v2443, %v2492
      %v2515 = vadd.f32 %v2444, %v2492
      %v2516 = vadd.f32 %v2445, %v2492
      %v2517 = vadd.f32 %v2446, %v2492
      %v2518 = vadd.f32 %v2447, %v2492
      %v2519 = vadd.f32 %v2448, %v2492
      %v2520 = vadd.f32 %v2449, %v2492
      %v2521 = vadd.f32 %v2450, %v2492
      %v2522 = vadd.f32 %v2451, %v2492
      %v2523 = vadd.f32 %v2452, %v2492
      %v2524 = vadd.f32 %v2453, %v2492
      %v2525 = vadd.f32 %v2454, %v2492
      %v2526 = vadd.f32 %v2455, %v2492
      %v2527 = vadd.f32 %v2456, %v2492
      %v2528 = vadd.f32 %v2457, %v2492
      %v2529 = vadd.f32 %v2458, %v2492
      %v2530 = vadd.f32 %v2459, %v2492
      %v2531 = vadd.f32 %v2460, %v2492
      %v2532 = vadd.f32 %v2461, %v2492
      %v2533 = vadd.f32 %v2462, %v2492
      %v2534 = vadd.f32 %v2463, %v2492
      %v2535 = vadd.f32 %v2464, %v2492
      %v2536 = vadd.f32 %v2465, %v2492
      %v2537 = vadd.f32 %v2466, %v2492
      %v2538 = vadd.f32 %v2467, %v2492
      %v2539 = vadd.f32 %v2468, %v2492
      %v2540 = vadd.f32 %v2469, %v2492
      %v2541 = vadd.f32 %v2470, %v2492
      %v2542 = vadd.f32 %v2471, %v2492
      %v2543 = vadd.f32 %v2472, %v2492
      %v2544 = vadd.f32 %v2473, %v2492
      %v2545 = vadd.f32 %v2474, %v2492
      %v2546 = vadd.f32 %v2475, %v2492
      %v2547 = vadd.f32 %v2476, %v2492
      %v2548 = vadd.f32 %v2477, %v2492
      %v2549 = vadd.f32 %v2478, %v2492
      %v2550 = vadd.f32 %v2479, %v2492
      %v2551 = vadd.f32 %v2480, %v2492
      %v2552 = vadd.f32 %v2481, %v2492
      %v2553 = vadd.f32 %v2482, %v2492
      %v2554 = vadd.f32 %v2483, %v2492
      %v2555 = vadd.f32 %v2484, %v2492
      %v2556 = vadd.f32 %v2485, %v2492
      %v2557 = vadd.f32 %v2486, %v2492
      %v2558 = vmax.f32 %v2494, 0.0
      %v2559 = vmax.f32 %v2495, 0.0
      %v2560 = vmax.f32 %v2496, 0.0
      %v2561 = vmax.f32 %v2497, 0.0
      %v2562 = vmax.f32 %v2498, 0.0
      %v2563 = vmax.f32 %v2499, 0.0
      %v2564 = vmax.f32 %v2500, 0.0
      %v2565 = vmax.f32 %v2501, 0.0
      %v2566 = vmax.f32 %v2502, 0.0
      %v2567 = vmax.f32 %v2503, 0.0
      %v2568 = vmax.f32 %v2504, 0.0
      %v2569 = vmax.f32 %v2505, 0.0
      %v2570 = vmax.f32 %v2506, 0.0
      %v2571 = vmax.f32 %v2507, 0.0
      %v2572 = vmax.f32 %v2508, 0.0
      %v2573 = vmax.f32 %v2509, 0.0
      %v2574 = vmax.f32 %v2510, 0.0
      %v2575 = vmax.f32 %v2511, 0.0
      %v2576 = vmax.f32 %v2512, 0.0
      %v2577 = vmax.f32 %v2513, 0.0
      %v2578 = vmax.f32 %v2514, 0.0
      %v2579 = vmax.f32 %v2515, 0.0
      %v2580 = vmax.f32 %v2516, 0.0
      %v2581 = vmax.f32 %v2517, 0.0
      %v2582 = vmax.f32 %v2518, 0.0
      %v2583 = vmax.f32 %v2519, 0.0
      %v2584 = vmax.f32 %v2520, 0.0
      %v2585 = vmax.f32 %v2521, 0.0
      %v2586 = vmax.f32 %v2522, 0.0
      %v2587 = vmax.f32 %v2523, 0.0
      %v2588 = vmax.f32 %v2524, 0.0
      %v2589 = vmax.f32 %v2525, 0.0
      %v2590 = vmax.f32 %v2526, 0.0
      %v2591 = vmax.f32 %v2527, 0.0
      %v2592 = vmax.f32 %v2528, 0.0
      %v2593 = vmax.f32 %v2529, 0.0
      %v2594 = vmax.f32 %v2530, 0.0
      %v2595 = vmax.f32 %v2531, 0.0
      %v2596 = vmax.f32 %v2532, 0.0
      %v2597 = vmax.f32 %v2533, 0.0
      %v2598 = vmax.f32 %v2534, 0.0
      %v2599 = vmax.f32 %v2535, 0.0
      %v2600 = vmax.f32 %v2536, 0.0
      %v2601 = vmax.f32 %v2537, 0.0
      %v2602 = vmax.f32 %v2538, 0.0
      %v2603 = vmax.f32 %v2539, 0.0
      %v2604 = vmax.f32 %v2540, 0.0
      %v2605 = vmax.f32 %v2541, 0.0
      %v2606 = vmax.f32 %v2542, 0.0
      %v2607 = vmax.f32 %v2543, 0.0
      %v2608 = vmax.f32 %v2544, 0.0
      %v2609 = vmax.f32 %v2545, 0.0
      %v2610 = vmax.f32 %v2546, 0.0
      %v2611 = vmax.f32 %v2547, 0.0
      %v2612 = vmax.f32 %v2548, 0.0
      %v2613 = vmax.f32 %v2549, 0.0
      %v2614 = vmax.f32 %v2550, 0.0
      %v2615 = vmax.f32 %v2551, 0.0
      %v2616 = vmax.f32 %v2552, 0.0
      %v2617 = vmax.f32 %v2553, 0.0
      %v2618 = vmax.f32 %v2554, 0.0
      %v2619 = vmax.f32 %v2555, 0.0
      %v2620 = vmax.f32 %v2556, 0.0
      %v2621 = vmax.f32 %v2557, 0.0
      %v2622 = vpack.c.bf16 %v2559, %v2558
      %v2623 = vpack.c.bf16 %v2561, %v2560
      %v2624 = vpack.c.bf16 %v2563, %v2562
      %v2625 = vpack.c.bf16 %v2565, %v2564
      %v2626 = vpack.c.bf16 %v2567, %v2566
      %v2627 = vpack.c.bf16 %v2569, %v2568
      %v2628 = vpack.c.bf16 %v2571, %v2570
      %v2629 = vpack.c.bf16 %v2573, %v2572
      %v2630 = vpack.c.bf16 %v2575, %v2574
      %v2631 = vpack.c.bf16 %v2577, %v2576
      %v2632 = vpack.c.bf16 %v2579, %v2578
      %v2633 = vpack.c.bf16 %v2581, %v2580
      %v2634 = vpack.c.bf16 %v2583, %v2582
      %v2635 = vpack.c.bf16 %v2585, %v2584
      %v2636 = vpack.c.bf16 %v2587, %v2586
      %v2637 = vpack.c.bf16 %v2589, %v2588
      %v2638 = vpack.c.bf16 %v2591, %v2590
      %v2639 = vpack.c.bf16 %v2593, %v2592
      %v2640 = vpack.c.bf16 %v2595, %v2594
      %v2641 = vpack.c.bf16 %v2597, %v2596
      %v2642 = vpack.c.bf16 %v2599, %v2598
      %v2643 = vpack.c.bf16 %v2601, %v2600
      %v2644 = vpack.c.bf16 %v2603, %v2602
      %v2645 = vpack.c.bf16 %v2605, %v2604
      %v2646 = vpack.c.bf16 %v2607, %v2606
      %v2647 = vpack.c.bf16 %v2609, %v2608
      %v2648 = vpack.c.bf16 %v2611, %v2610
      %v2649 = vpack.c.bf16 %v2613, %v2612
      %v2650 = vpack.c.bf16 %v2615, %v2614
      %v2651 = vpack.c.bf16 %v2617, %v2616
      %v2652 = vpack.c.bf16 %v2619, %v2618
      %v2653 = vpack.c.bf16 %v2621, %v2620
      %v2686 = vunpack.c.l.b16 %v2622
      %v2687 = vunpack.c.h.b16 %v2622
      %v2688 = vunpack.c.l.b16 %v2623
      %v2689 = vunpack.c.h.b16 %v2623
      %v2690 = vunpack.c.l.b16 %v2624
      %v2691 = vunpack.c.h.b16 %v2624
      %v2692 = vunpack.c.l.b16 %v2625
      %v2693 = vunpack.c.h.b16 %v2625
      %v2694 = vunpack.c.l.b16 %v2626
      %v2695 = vunpack.c.h.b16 %v2626
      %v2696 = vunpack.c.l.b16 %v2627
      %v2697 = vunpack.c.h.b16 %v2627
      %v2698 = vunpack.c.l.b16 %v2628
      %v2699 = vunpack.c.h.b16 %v2628
      %v2700 = vunpack.c.l.b16 %v2629
      %v2701 = vunpack.c.h.b16 %v2629
      %v2702 = vunpack.c.l.b16 %v2630
      %v2703 = vunpack.c.h.b16 %v2630
      %v2704 = vunpack.c.l.b16 %v2631
      %v2705 = vunpack.c.h.b16 %v2631
      %v2706 = vunpack.c.l.b16 %v2632
      %v2707 = vunpack.c.h.b16 %v2632
      %v2708 = vunpack.c.l.b16 %v2633
      %v2709 = vunpack.c.h.b16 %v2633
      %v2710 = vunpack.c.l.b16 %v2634
      %v2711 = vunpack.c.h.b16 %v2634
      %v2712 = vunpack.c.l.b16 %v2635
      %v2713 = vunpack.c.h.b16 %v2635
      %v2714 = vunpack.c.l.b16 %v2636
      %v2715 = vunpack.c.h.b16 %v2636
      %v2716 = vunpack.c.l.b16 %v2637
      %v2717 = vunpack.c.h.b16 %v2637
      %v2718 = vunpack.c.l.b16 %v2638
      %v2719 = vunpack.c.h.b16 %v2638
      %v2720 = vunpack.c.l.b16 %v2639
      %v2721 = vunpack.c.h.b16 %v2639
      %v2722 = vunpack.c.l.b16 %v2640
      %v2723 = vunpack.c.h.b16 %v2640
      %v2724 = vunpack.c.l.b16 %v2641
      %v2725 = vunpack.c.h.b16 %v2641
      %v2726 = vunpack.c.l.b16 %v2642
      %v2727 = vunpack.c.h.b16 %v2642
      %v2728 = vunpack.c.l.b16 %v2643
      %v2729 = vunpack.c.h.b16 %v2643
      %v2730 = vunpack.c.l.b16 %v2644
      %v2731 = vunpack.c.h.b16 %v2644
      %v2732 = vunpack.c.l.b16 %v2645
      %v2733 = vunpack.c.h.b16 %v2645
      %v2734 = vunpack.c.l.b16 %v2646
      %v2735 = vunpack.c.h.b16 %v2646
      %v2736 = vunpack.c.l.b16 %v2647
      %v2737 = vunpack.c.h.b16 %v2647
      %v2738 = vunpack.c.l.b16 %v2648
      %v2739 = vunpack.c.h.b16 %v2648
      %v2740 = vunpack.c.l.b16 %v2649
      %v2741 = vunpack.c.h.b16 %v2649
      %v2742 = vunpack.c.l.b16 %v2650
      %v2743 = vunpack.c.h.b16 %v2650
      %v2744 = vunpack.c.l.b16 %v2651
      %v2745 = vunpack.c.h.b16 %v2651
      %v2746 = vunpack.c.l.b16 %v2652
      %v2747 = vunpack.c.h.b16 %v2652
      %v2748 = vunpack.c.l.b16 %v2653
      %v2749 = vunpack.c.h.b16 %v2653
      %v2750 = vpack.c.b16 %v2686, %v2686
      %v2751 = vpack.c.b16 %v2687, %v2687
      %v2752 = vpack.c.b16 %v2688, %v2688
      %v2753 = vpack.c.b16 %v2689, %v2689
      %v2754 = vpack.c.b16 %v2690, %v2690
      %v2755 = vpack.c.b16 %v2691, %v2691
      %v2756 = vpack.c.b16 %v2692, %v2692
      %v2757 = vpack.c.b16 %v2693, %v2693
      %v2758 = vpack.c.b16 %v2694, %v2694
      %v2759 = vpack.c.b16 %v2695, %v2695
      %v2760 = vpack.c.b16 %v2696, %v2696
      %v2761 = vpack.c.b16 %v2697, %v2697
      %v2762 = vpack.c.b16 %v2698, %v2698
      %v2763 = vpack.c.b16 %v2699, %v2699
      %v2764 = vpack.c.b16 %v2700, %v2700
      %v2765 = vpack.c.b16 %v2701, %v2701
      %v2766 = vpack.c.b16 %v2702, %v2702
      %v2767 = vpack.c.b16 %v2703, %v2703
      %v2768 = vpack.c.b16 %v2704, %v2704
      %v2769 = vpack.c.b16 %v2705, %v2705
      %v2770 = vpack.c.b16 %v2706, %v2706
      %v2771 = vpack.c.b16 %v2707, %v2707
      %v2772 = vpack.c.b16 %v2708, %v2708
      %v2773 = vpack.c.b16 %v2709, %v2709
      %v2774 = vpack.c.b16 %v2710, %v2710
      %v2775 = vpack.c.b16 %v2711, %v2711
      %v2776 = vpack.c.b16 %v2712, %v2712
      %v2777 = vpack.c.b16 %v2713, %v2713
      %v2778 = vpack.c.b16 %v2714, %v2714
      %v2779 = vpack.c.b16 %v2715, %v2715
      %v2780 = vpack.c.b16 %v2716, %v2716
      %v2781 = vpack.c.b16 %v2717, %v2717
      %v2782 = vpack.c.b16 %v2718, %v2718
      %v2783 = vpack.c.b16 %v2719, %v2719
      %v2784 = vpack.c.b16 %v2720, %v2720
      %v2785 = vpack.c.b16 %v2721, %v2721
      %v2786 = vpack.c.b16 %v2722, %v2722
      %v2787 = vpack.c.b16 %v2723, %v2723
      %v2788 = vpack.c.b16 %v2724, %v2724
      %v2789 = vpack.c.b16 %v2725, %v2725
      %v2790 = vpack.c.b16 %v2726, %v2726
      %v2791 = vpack.c.b16 %v2727, %v2727
      %v2792 = vpack.c.b16 %v2728, %v2728
      %v2793 = vpack.c.b16 %v2729, %v2729
      %v2794 = vpack.c.b16 %v2730, %v2730
      %v2795 = vpack.c.b16 %v2731, %v2731
      %v2796 = vpack.c.b16 %v2732, %v2732
      %v2797 = vpack.c.b16 %v2733, %v2733
      %v2798 = vpack.c.b16 %v2734, %v2734
      %v2799 = vpack.c.b16 %v2735, %v2735
      %v2800 = vpack.c.b16 %v2736, %v2736
      %v2801 = vpack.c.b16 %v2737, %v2737
      %v2802 = vpack.c.b16 %v2738, %v2738
      %v2803 = vpack.c.b16 %v2739, %v2739
      %v2804 = vpack.c.b16 %v2740, %v2740
      %v2805 = vpack.c.b16 %v2741, %v2741
      %v2806 = vpack.c.b16 %v2742, %v2742
      %v2807 = vpack.c.b16 %v2743, %v2743
      %v2808 = vpack.c.b16 %v2744, %v2744
      %v2809 = vpack.c.b16 %v2745, %v2745
      %v2810 = vpack.c.b16 %v2746, %v2746
      %v2811 = vpack.c.b16 %v2747, %v2747
      %v2812 = vpack.c.b16 %v2748, %v2748
      %v2813 = vpack.c.b16 %v2749, %v2749
      %2878 = vst [vmem:[%s202] sm:$0xf] %v2750
      %2879 = vst [vmem:[%s202 + $0x4] sm:$0xf] %v2751
      %2880 = vst [vmem:[%s202 + $0x8] sm:$0xf] %v2752
      %2881 = vst [vmem:[%s202 + $0xc] sm:$0xf] %v2753
      %2882 = vst [vmem:[%s202 + $0x10] sm:$0xf] %v2754
      %2883 = vst [vmem:[%s202 + $0x14] sm:$0xf] %v2755
      %2884 = vst [vmem:[%s202 + $0x18] sm:$0xf] %v2756
      %2885 = vst [vmem:[%s202 + $0x1c] sm:$0xf] %v2757
      %2886 = vst [vmem:[%s202 + $0x20] sm:$0xf] %v2758
      %2887 = vst [vmem:[%s202 + $0x24] sm:$0xf] %v2759
      %2888 = vst [vmem:[%s202 + $0x28] sm:$0xf] %v2760
      %2889 = vst [vmem:[%s202 + $0x2c] sm:$0xf] %v2761
      %2890 = vst [vmem:[%s202 + $0x30] sm:$0xf] %v2762
      %2891 = vst [vmem:[%s202 + $0x34] sm:$0xf] %v2763
      %2892 = vst [vmem:[%s202 + $0x38] sm:$0xf] %v2764
      %2893 = vst [vmem:[%s202 + $0x3c] sm:$0xf] %v2765
      %2894 = vst [vmem:[%s202 + $0x40] sm:$0xf] %v2766
      %2895 = vst [vmem:[%s202 + $0x44] sm:$0xf] %v2767
      %2896 = vst [vmem:[%s202 + $0x48] sm:$0xf] %v2768
      %2897 = vst [vmem:[%s202 + $0x4c] sm:$0xf] %v2769
      %2898 = vst [vmem:[%s202 + $0x50] sm:$0xf] %v2770
      %2899 = vst [vmem:[%s202 + $0x54] sm:$0xf] %v2771
      %2900 = vst [vmem:[%s202 + $0x58] sm:$0xf] %v2772
      %2901 = vst [vmem:[%s202 + $0x5c] sm:$0xf] %v2773
      %2902 = vst [vmem:[%s202 + $0x60] sm:$0xf] %v2774
      %2903 = vst [vmem:[%s202 + $0x64] sm:$0xf] %v2775
      %2904 = vst [vmem:[%s202 + $0x68] sm:$0xf] %v2776
      %2905 = vst [vmem:[%s202 + $0x6c] sm:$0xf] %v2777
      %2906 = vst [vmem:[%s202 + $0x70] sm:$0xf] %v2778
      %2907 = vst [vmem:[%s202 + $0x74] sm:$0xf] %v2779
      %2908 = vst [vmem:[%s202 + $0x78] sm:$0xf] %v2780
      %2909 = vst [vmem:[%s202 + $0x7c] sm:$0xf] %v2781
      %2910 = vst [vmem:[%s202 + $0x80] sm:$0xf] %v2782
      %2911 = vst [vmem:[%s202 + $0x84] sm:$0xf] %v2783
      %2912 = vst [vmem:[%s202 + $0x88] sm:$0xf] %v2784
      %2913 = vst [vmem:[%s202 + $0x8c] sm:$0xf] %v2785
      %2914 = vst [vmem:[%s202 + $0x90] sm:$0xf] %v2786
      %2915 = vst [vmem:[%s202 + $0x94] sm:$0xf] %v2787
      %2916 = vst [vmem:[%s202 + $0x98] sm:$0xf] %v2788
      %2917 = vst [vmem:[%s202 + $0x9c] sm:$0xf] %v2789
      %2918 = vst [vmem:[%s202 + $0xa0] sm:$0xf] %v2790
      %2919 = vst [vmem:[%s202 + $0xa4] sm:$0xf] %v2791
      %2920 = vst [vmem:[%s202 + $0xa8] sm:$0xf] %v2792
      %2921 = vst [vmem:[%s202 + $0xac] sm:$0xf] %v2793
      %2922 = vst [vmem:[%s202 + $0xb0] sm:$0xf] %v2794
      %2923 = vst [vmem:[%s202 + $0xb4] sm:$0xf] %v2795
      %2924 = vst [vmem:[%s202 + $0xb8] sm:$0xf] %v2796
      %2925 = vst [vmem:[%s202 + $0xbc] sm:$0xf] %v2797
      %2926 = vst [vmem:[%s202 + $0xc0] sm:$0xf] %v2798
      %2927 = vst [vmem:[%s202 + $0xc4] sm:$0xf] %v2799
      %2928 = vst [vmem:[%s202 + $0xc8] sm:$0xf] %v2800
      %2929 = vst [vmem:[%s202 + $0xcc] sm:$0xf] %v2801
      %2930 = vst [vmem:[%s202 + $0xd0] sm:$0xf] %v2802
      %2931 = vst [vmem:[%s202 + $0xd4] sm:$0xf] %v2803
      %2932 = vst [vmem:[%s202 + $0xd8] sm:$0xf] %v2804
      %2933 = vst [vmem:[%s202 + $0xdc] sm:$0xf] %v2805
      %2934 = vst [vmem:[%s202 + $0xe0] sm:$0xf] %v2806
      %2935 = vst [vmem:[%s202 + $0xe4] sm:$0xf] %v2807
      %2936 = vst [vmem:[%s202 + $0xe8] sm:$0xf] %v2808
      %2937 = vst [vmem:[%s202 + $0xec] sm:$0xf] %v2809
      %2938 = vst [vmem:[%s202 + $0xf0] sm:$0xf] %v2810
      %2939 = vst [vmem:[%s202 + $0xf4] sm:$0xf] %v2811
      %2940 = vst [vmem:[%s202 + $0xf8] sm:$0xf] %v2812
      %2941 = vst [vmem:[%s202 + $0xfc] sm:$0xf] %v2813
      %s2942 = smul.u32 64, %s15
      %p2943 = scmp.lt.s32.totalorder %s2942, 127
      %s2944 = scalar_select %p2943, %s2942, 127
      %s2945 = smul.addr %s2944, 4
      %s2946 = scalar_lea.vmem %s4, %s2945
      // Predicated region
      $region37: #{hrnet_forward.23} parent=35 // pred_check
        %p2947 = pneg %p122
      $region38: #{hrnet_forward.23} parent=35 // pred_check_branch
        %2949 = sbr.rel (%p2947) target = $region40
      $region39: #{hrnet_forward.23} parent=35 // pred_region
        %s2950 = smul.u32 64, %s15
      $region40: #{hrnet_forward.23} parent=35 // pred_fallthru
        _
    $region36: #{hrnet_forward.23} parent=5 // pred_fallthru
      _
    %p2951 = scmp.le.s32.totalorder 2, %s10
    // Predicated region
    $region41: #{hrnet_forward.23} parent=5 // pred_check
      %p2952 = pneg %p2951
    $region42: #{hrnet_forward.23} parent=5 // pred_check_branch
      %2954 = sbr.rel (%p2952) target = $region44
    $region43: #{hrnet_forward.23} parent=5 // pred_region
      %s2955 = ssub.s32 %s10, 2
      // Predicated region
      $region45: #{hrnet_forward.23} parent=43 // pred_check
        %p2956 = pneg %p128
      $region46: #{hrnet_forward.23} parent=43 // pred_check_branch
        %2958 = sbr.rel (%p2956) target = $region48
      $region47: #{hrnet_forward.23} parent=43 // pred_region
        %s2959 = smul.u32 64, %s16
        %p2960 = scmp.lt.s32.totalorder %s2959, 127
        %s2961 = scalar_select %p2960, %s2959, 127
        %s2962 = smul.addr %s2961, 4
        %s2963 = scalar_lea.vmem %s4, %s2962
      $region48: #{hrnet_forward.23} parent=43 // pred_fallthru
        _
    $region44: #{hrnet_forward.23} parent=5 // pred_fallthru
      _
  $region6: #{hrnet_forward.23} parent=0 // loop_footer
    %s14 = sadd.s32 1, %s10
  $region7: #{hrnet_forward.23} parent=0 // loop_footer_branch
    %9 = sbr.rel target = $region3
  $region8: #{hrnet_forward.23} parent=0 // loop_exit
    _

// kernel: hrnet_forward.24
$region0: #{hrnet_forward.24}
  #allocation0 [shape = 'u32[]', space=smem, size = 0x4, offset = 0x4, fixed_abs, tag = 'smem constant byte address 0x4 - core index']
  #allocation1 [shape = 'u32[144,128]{1,0:T(1,128)}', space=vmem, size = 0x12000, scoped, tag = 'internal scratch']
  %s0 = inlined_call_operand.vmem [shape: bf16[256,640], index: 0, kind: input, shape index: {}]
  %s1 = inlined_call_operand.vmem [shape: bf16[640,128], index: 1, kind: input, shape index: {}]
  %s2 = inlined_call_operand.vmem [shape: f32[1,128], index: 2, kind: input, shape index: {}]
  %s3 = inlined_call_operand.vmem [shape: f32[1,128], index: 3, kind: input, shape index: {}]
  %s4 = inlined_call_operand.vmem [shape: bf16[256,128], index: 4, kind: output, shape index: {}]
  %s5 = sld [smem:[#allocation0]]
  $region26: #{hrnet_forward.24} parent=0
    _
  %s7 = ssub.s32 1, %s5
  %s8 = scalar_select 0, %s7, %s5
  // Predicated region
  $region2: #{hrnet_forward.24} parent=0 // pred_check
    _
  $region3: #{hrnet_forward.24} parent=0 // pred_check_branch
    %10 = sbr.rel (0) target = $region5
  $region4: #{hrnet_forward.24} parent=0 // pred_region
    _
  $region5: #{hrnet_forward.24} parent=0 // pred_fallthru
    _
  // Predicated region
  $region6: #{hrnet_forward.24} parent=0 // pred_check
    _
  $region7: #{hrnet_forward.24} parent=0 // pred_check_branch
    %12 = sbr.rel (0) target = $region9
  $region8: #{hrnet_forward.24} parent=0 // pred_region
    _
  $region9: #{hrnet_forward.24} parent=0 // pred_fallthru
    _
  // Predicated region
  $region10: #{hrnet_forward.24} parent=0 // pred_check
    _
  $region11: #{hrnet_forward.24} parent=0 // pred_check_branch
    %14 = sbr.rel (0) target = $region13
  $region12: #{hrnet_forward.24} parent=0 // pred_region
    _
  $region13: #{hrnet_forward.24} parent=0 // pred_fallthru
    _
  // Predicated region
  $region14: #{hrnet_forward.24} parent=0 // pred_check
    _
  $region15: #{hrnet_forward.24} parent=0 // pred_check_branch
    %16 = sbr.rel (0) target = $region17
  $region16: #{hrnet_forward.24} parent=0 // pred_region
    _
  $region17: #{hrnet_forward.24} parent=0 // pred_fallthru
    _
  %v18 = vld [vmem:[%s0] sm:$0xff]
  %v19 = vld [vmem:[%s0 + $0x8] sm:$0xff]
  %v20 = vld [vmem:[%s0 + $0x10] sm:$0xf]
  %v21 = vld [vmem:[%s0 + $0x14] sm:$0xff]
  %v22 = vld [vmem:[%s0 + $0x1c] sm:$0xff]
  %v23 = vld [vmem:[%s0 + $0x24] sm:$0xf]
  %v24 = vld [vmem:[%s0 + $0x28] sm:$0xff]
  %v25 = vld [vmem:[%s0 + $0x30] sm:$0xff]
  %v26 = vld [vmem:[%s0 + $0x38] sm:$0xf]
  %v27 = vld [vmem:[%s0 + $0x3c] sm:$0xff]
  %v28 = vld [vmem:[%s0 + $0x44] sm:$0xff]
  %v29 = vld [vmem:[%s0 + $0x4c] sm:$0xf]
  %v30 = vld [vmem:[%s0 + $0x50] sm:$0xff]
  %v31 = vld [vmem:[%s0 + $0x58] sm:$0xff]
  %v32 = vld [vmem:[%s0 + $0x60] sm:$0xf]
  %v33 = vld [vmem:[%s0 + $0x64] sm:$0xff]
  %v34 = vld [vmem:[%s0 + $0x6c] sm:$0xff]
  %v35 = vld [vmem:[%s0 + $0x74] sm:$0xf]
  %v36 = vld [vmem:[%s0 + $0x78] sm:$0xff]
  %v37 = vld [vmem:[%s0 + $0x80] sm:$0xff]
  %v38 = vld [vmem:[%s0 + $0x88] sm:$0xf]
  %v39 = vld [vmem:[%s0 + $0x8c] sm:$0xff]
  %v40 = vld [vmem:[%s0 + $0x94] sm:$0xff]
  %v41 = vld [vmem:[%s0 + $0x9c] sm:$0xf]
  %v42 = vld [vmem:[%s0 + $0xa0] sm:$0xff]
  %v43 = vld [vmem:[%s0 + $0xa8] sm:$0xff]
  %v44 = vld [vmem:[%s0 + $0xb0] sm:$0xf]
  %v45 = vld [vmem:[%s0 + $0xb4] sm:$0xff]
  %v46 = vld [vmem:[%s0 + $0xbc] sm:$0xff]
  %v47 = vld [vmem:[%s0 + $0xc4] sm:$0xf]
  %v48 = vld [vmem:[%s0 + $0xc8] sm:$0xff]
  %v49 = vld [vmem:[%s0 + $0xd0] sm:$0xff]
  %v50 = vld [vmem:[%s0 + $0xd8] sm:$0xf]
  %v51 = vld [vmem:[%s0 + $0xdc] sm:$0xff]
  %v52 = vld [vmem:[%s0 + $0xe4] sm:$0xff]
  %v53 = vld [vmem:[%s0 + $0xec] sm:$0xf]
  %v54 = vld [vmem:[%s0 + $0xf0] sm:$0xff]
  %v55 = vld [vmem:[%s0 + $0xf8] sm:$0xff]
  %v56 = vld [vmem:[%s0 + $0x100] sm:$0xf]
  %v57 = vld [vmem:[%s0 + $0x104] sm:$0xff]
  %v58 = vld [vmem:[%s0 + $0x10c] sm:$0xff]
  %v59 = vld [vmem:[%s0 + $0x114] sm:$0xf]
  %v60 = vld [vmem:[%s0 + $0x118] sm:$0xff]
  %v61 = vld [vmem:[%s0 + $0x120] sm:$0xff]
  %v62 = vld [vmem:[%s0 + $0x128] sm:$0xf]
  %v63 = vld [vmem:[%s0 + $0x12c] sm:$0xff]
  %v64 = vld [vmem:[%s0 + $0x134] sm:$0xff]
  %v65 = vld [vmem:[%s0 + $0x13c] sm:$0xf]
  %v66 = vld [vmem:[%s0 + $0x140] sm:$0xff]
  %v67 = vld [vmem:[%s0 + $0x148] sm:$0xff]
  %v68 = vld [vmem:[%s0 + $0x150] sm:$0xf]
  %v69 = vld [vmem:[%s0 + $0x154] sm:$0xff]
  %v70 = vld [vmem:[%s0 + $0x15c] sm:$0xff]
  %v71 = vld [vmem:[%s0 + $0x164] sm:$0xf]
  %v72 = vld [vmem:[%s0 + $0x168] sm:$0xff]
  %v73 = vld [vmem:[%s0 + $0x170] sm:$0xff]
  %v74 = vld [vmem:[%s0 + $0x178] sm:$0xf]
  %v75 = vld [vmem:[%s0 + $0x17c] sm:$0xff]
  %v76 = vld [vmem:[%s0 + $0x184] sm:$0xff]
  %v77 = vld [vmem:[%s0 + $0x18c] sm:$0xf]
  %v78 = vld [vmem:[%s0 + $0x190] sm:$0xff]
  %v79 = vld [vmem:[%s0 + $0x198] sm:$0xff]
  %v80 = vld [vmem:[%s0 + $0x1a0] sm:$0xf]
  %v81 = vld [vmem:[%s0 + $0x1a4] sm:$0xff]
  %v82 = vld [vmem:[%s0 + $0x1ac] sm:$0xff]
  %v83 = vld [vmem:[%s0 + $0x1b4] sm:$0xf]
  %v84 = vld [vmem:[%s0 + $0x1b8] sm:$0xff]
  %v85 = vld [vmem:[%s0 + $0x1c0] sm:$0xff]
  %v86 = vld [vmem:[%s0 + $0x1c8] sm:$0xf]
  %v87 = vld [vmem:[%s0 + $0x1cc] sm:$0xff]
  %v88 = vld [vmem:[%s0 + $0x1d4] sm:$0xff]
  %v89 = vld [vmem:[%s0 + $0x1dc] sm:$0xf]
  %v90 = vld [vmem:[%s0 + $0x1e0] sm:$0xff]
  %v91 = vld [vmem:[%s0 + $0x1e8] sm:$0xff]
  %v92 = vld [vmem:[%s0 + $0x1f0] sm:$0xf]
  %v93 = vld [vmem:[%s0 + $0x1f4] sm:$0xff]
  %v94 = vld [vmem:[%s0 + $0x1fc] sm:$0xff]
  %v95 = vld [vmem:[%s0 + $0x204] sm:$0xf]
  %v96 = vld [vmem:[%s0 + $0x208] sm:$0xff]
  %v97 = vld [vmem:[%s0 + $0x210] sm:$0xff]
  %v98 = vld [vmem:[%s0 + $0x218] sm:$0xf]
  %v99 = vld [vmem:[%s0 + $0x21c] sm:$0xff]
  %v100 = vld [vmem:[%s0 + $0x224] sm:$0xff]
  %v101 = vld [vmem:[%s0 + $0x22c] sm:$0xf]
  %v102 = vld [vmem:[%s0 + $0x230] sm:$0xff]
  %v103 = vld [vmem:[%s0 + $0x238] sm:$0xff]
  %v104 = vld [vmem:[%s0 + $0x240] sm:$0xf]
  %v105 = vld [vmem:[%s0 + $0x244] sm:$0xff]
  %v106 = vld [vmem:[%s0 + $0x24c] sm:$0xff]
  %v107 = vld [vmem:[%s0 + $0x254] sm:$0xf]
  %v108 = vld [vmem:[%s0 + $0x258] sm:$0xff]
  %v109 = vld [vmem:[%s0 + $0x260] sm:$0xff]
  %v110 = vld [vmem:[%s0 + $0x268] sm:$0xf]
  %v111 = vld [vmem:[%s0 + $0x26c] sm:$0xff]
  %v112 = vld [vmem:[%s0 + $0x274] sm:$0xff]
  %v113 = vld [vmem:[%s0 + $0x27c] sm:$0xf]
  %v114 = vld [vmem:[%s1] sm:$0xf]
  %v115 = vld [vmem:[%s1 + $0x4] sm:$0xf]
  %v116 = vld [vmem:[%s1 + $0x8] sm:$0xf]
  %v117 = vld [vmem:[%s1 + $0xc] sm:$0xf]
  %v118 = vld [vmem:[%s1 + $0x10] sm:$0xf]
  %v119 = vld [vmem:[%s1 + $0x14] sm:$0xf]
  %v120 = vld [vmem:[%s1 + $0x18] sm:$0xf]
  %v121 = vld [vmem:[%s1 + $0x1c] sm:$0xf]
  %v122 = vld [vmem:[%s1 + $0x20] sm:$0xf]
  %v123 = vld [vmem:[%s1 + $0x24] sm:$0xf]
  %v124 = vld [vmem:[%s1 + $0x28] sm:$0xf]
  %v125 = vld [vmem:[%s1 + $0x2c] sm:$0xf]
  %v126 = vld [vmem:[%s1 + $0x30] sm:$0xf]
  %v127 = vld [vmem:[%s1 + $0x34] sm:$0xf]
  %v128 = vld [vmem:[%s1 + $0x38] sm:$0xf]
  %v129 = vld [vmem:[%s1 + $0x3c] sm:$0xf]
  %v130 = vld [vmem:[%s1 + $0x40] sm:$0xf]
  %v131 = vld [vmem:[%s1 + $0x44] sm:$0xf]
  %v132 = vld [vmem:[%s1 + $0x48] sm:$0xf]
  %v133 = vld [vmem:[%s1 + $0x4c] sm:$0xf]
  %v134 = vld [vmem:[%s1 + $0x50] sm:$0xf]
  %v135 = vld [vmem:[%s1 + $0x54] sm:$0xf]
  %v136 = vld [vmem:[%s1 + $0x58] sm:$0xf]
  %v137 = vld [vmem:[%s1 + $0x5c] sm:$0xf]
  %v138 = vld [vmem:[%s1 + $0x60] sm:$0xf]
  %v139 = vld [vmem:[%s1 + $0x64] sm:$0xf]
  %v140 = vld [vmem:[%s1 + $0x68] sm:$0xf]
  %v141 = vld [vmem:[%s1 + $0x6c] sm:$0xf]
  %v142 = vld [vmem:[%s1 + $0x70] sm:$0xf]
  %v143 = vld [vmem:[%s1 + $0x74] sm:$0xf]
  %v144 = vld [vmem:[%s1 + $0x78] sm:$0xf]
  %v145 = vld [vmem:[%s1 + $0x7c] sm:$0xf]
  %v146 = vld [vmem:[%s1 + $0x80] sm:$0xf]
  %v147 = vld [vmem:[%s1 + $0x84] sm:$0xf]
  %v148 = vld [vmem:[%s1 + $0x88] sm:$0xf]
  %v149 = vld [vmem:[%s1 + $0x8c] sm:$0xf]
  %v150 = vld [vmem:[%s1 + $0x90] sm:$0xf]
  %v151 = vld [vmem:[%s1 + $0x94] sm:$0xf]
  %v152 = vld [vmem:[%s1 + $0x98] sm:$0xf]
  %v153 = vld [vmem:[%s1 + $0x9c] sm:$0xf]
  %v154 = vld [vmem:[%s1 + $0xa0] sm:$0xf]
  %v155 = vld [vmem:[%s1 + $0xa4] sm:$0xf]
  %v156 = vld [vmem:[%s1 + $0xa8] sm:$0xf]
  %v157 = vld [vmem:[%s1 + $0xac] sm:$0xf]
  %v158 = vld [vmem:[%s1 + $0xb0] sm:$0xf]
  %v159 = vld [vmem:[%s1 + $0xb4] sm:$0xf]
  %v160 = vld [vmem:[%s1 + $0xb8] sm:$0xf]
  %v161 = vld [vmem:[%s1 + $0xbc] sm:$0xf]
  %v162 = vld [vmem:[%s1 + $0xc0] sm:$0xf]
  %v163 = vld [vmem:[%s1 + $0xc4] sm:$0xf]
  %v164 = vld [vmem:[%s1 + $0xc8] sm:$0xf]
  %v165 = vld [vmem:[%s1 + $0xcc] sm:$0xf]
  %v166 = vld [vmem:[%s1 + $0xd0] sm:$0xf]
  %v167 = vld [vmem:[%s1 + $0xd4] sm:$0xf]
  %v168 = vld [vmem:[%s1 + $0xd8] sm:$0xf]
  %v169 = vld [vmem:[%s1 + $0xdc] sm:$0xf]
  %v170 = vld [vmem:[%s1 + $0xe0] sm:$0xf]
  %v171 = vld [vmem:[%s1 + $0xe4] sm:$0xf]
  %v172 = vld [vmem:[%s1 + $0xe8] sm:$0xf]
  %v173 = vld [vmem:[%s1 + $0xec] sm:$0xf]
  %v174 = vld [vmem:[%s1 + $0xf0] sm:$0xf]
  %v175 = vld [vmem:[%s1 + $0xf4] sm:$0xf]
  %v176 = vld [vmem:[%s1 + $0xf8] sm:$0xf]
  %v177 = vld [vmem:[%s1 + $0xfc] sm:$0xf]
  %v178 = vld [vmem:[%s1 + $0x100] sm:$0xf]
  %v179 = vld [vmem:[%s1 + $0x104] sm:$0xf]
  %v180 = vld [vmem:[%s1 + $0x108] sm:$0xf]
  %v181 = vld [vmem:[%s1 + $0x10c] sm:$0xf]
  %v182 = vld [vmem:[%s1 + $0x110] sm:$0xf]
  %v183 = vld [vmem:[%s1 + $0x114] sm:$0xf]
  %v184 = vld [vmem:[%s1 + $0x118] sm:$0xf]
  %v185 = vld [vmem:[%s1 + $0x11c] sm:$0xf]
  %v186 = vld [vmem:[%s1 + $0x120] sm:$0xf]
  %v187 = vld [vmem:[%s1 + $0x124] sm:$0xf]
  %v188 = vld [vmem:[%s1 + $0x128] sm:$0xf]
  %v189 = vld [vmem:[%s1 + $0x12c] sm:$0xf]
  %v190 = vld [vmem:[%s1 + $0x130] sm:$0xf]
  %v191 = vld [vmem:[%s1 + $0x134] sm:$0xf]
  %v192 = vld [vmem:[%s1 + $0x138] sm:$0xf]
  %v193 = vld [vmem:[%s1 + $0x13c] sm:$0xf]
  %v290 = vunpack.c.l.b16 %v18
  %v291 = vunpack.c.h.b16 %v18
  %v292 = vunpack.c.l.b16 %v19
  %v293 = vunpack.c.h.b16 %v19
  %v294 = vunpack.c.l.b16 %v20
  %v295 = vunpack.c.l.b16 %v21
  %v296 = vunpack.c.h.b16 %v21
  %v297 = vunpack.c.l.b16 %v22
  %v298 = vunpack.c.h.b16 %v22
  %v299 = vunpack.c.l.b16 %v23
  %v300 = vunpack.c.l.b16 %v24
  %v301 = vunpack.c.h.b16 %v24
  %v302 = vunpack.c.l.b16 %v25
  %v303 = vunpack.c.h.b16 %v25
  %v304 = vunpack.c.l.b16 %v26
  %v305 = vunpack.c.l.b16 %v27
  %v306 = vunpack.c.h.b16 %v27
  %v307 = vunpack.c.l.b16 %v28
  %v308 = vunpack.c.h.b16 %v28
  %v309 = vunpack.c.l.b16 %v29
  %v310 = vunpack.c.l.b16 %v30
  %v311 = vunpack.c.h.b16 %v30
  %v312 = vunpack.c.l.b16 %v31
  %v313 = vunpack.c.h.b16 %v31
  %v314 = vunpack.c.l.b16 %v32
  %v315 = vunpack.c.l.b16 %v33
  %v316 = vunpack.c.h.b16 %v33
  %v317 = vunpack.c.l.b16 %v34
  %v318 = vunpack.c.h.b16 %v34
  %v319 = vunpack.c.l.b16 %v35
  %v320 = vunpack.c.l.b16 %v36
  %v321 = vunpack.c.h.b16 %v36
  %v322 = vunpack.c.l.b16 %v37
  %v323 = vunpack.c.h.b16 %v37
  %v324 = vunpack.c.l.b16 %v38
  %v325 = vunpack.c.l.b16 %v39
  %v326 = vunpack.c.h.b16 %v39
  %v327 = vunpack.c.l.b16 %v40
  %v328 = vunpack.c.h.b16 %v40
  %v329 = vunpack.c.l.b16 %v41
  %v330 = vunpack.c.l.b16 %v42
  %v331 = vunpack.c.h.b16 %v42
  %v332 = vunpack.c.l.b16 %v43
  %v333 = vunpack.c.h.b16 %v43
  %v334 = vunpack.c.l.b16 %v44
  %v335 = vunpack.c.l.b16 %v45
  %v336 = vunpack.c.h.b16 %v45
  %v337 = vunpack.c.l.b16 %v46
  %v338 = vunpack.c.h.b16 %v46
  %v339 = vunpack.c.l.b16 %v47
  %v340 = vunpack.c.l.b16 %v48
  %v341 = vunpack.c.h.b16 %v48
  %v342 = vunpack.c.l.b16 %v49
  %v343 = vunpack.c.h.b16 %v49
  %v344 = vunpack.c.l.b16 %v50
  %v345 = vunpack.c.l.b16 %v51
  %v346 = vunpack.c.h.b16 %v51
  %v347 = vunpack.c.l.b16 %v52
  %v348 = vunpack.c.h.b16 %v52
  %v349 = vunpack.c.l.b16 %v53
  %v350 = vunpack.c.l.b16 %v54
  %v351 = vunpack.c.h.b16 %v54
  %v352 = vunpack.c.l.b16 %v55
  %v353 = vunpack.c.h.b16 %v55
  %v354 = vunpack.c.l.b16 %v56
  %v355 = vunpack.c.l.b16 %v57
  %v356 = vunpack.c.h.b16 %v57
  %v357 = vunpack.c.l.b16 %v58
  %v358 = vunpack.c.h.b16 %v58
  %v359 = vunpack.c.l.b16 %v59
  %v360 = vunpack.c.l.b16 %v60
  %v361 = vunpack.c.h.b16 %v60
  %v362 = vunpack.c.l.b16 %v61
  %v363 = vunpack.c.h.b16 %v61
  %v364 = vunpack.c.l.b16 %v62
  %v365 = vunpack.c.l.b16 %v63
  %v366 = vunpack.c.h.b16 %v63
  %v367 = vunpack.c.l.b16 %v64
  %v368 = vunpack.c.h.b16 %v64
  %v369 = vunpack.c.l.b16 %v65
  %v370 = vunpack.c.l.b16 %v66
  %v371 = vunpack.c.h.b16 %v66
  %v372 = vunpack.c.l.b16 %v67
  %v373 = vunpack.c.h.b16 %v67
  %v374 = vunpack.c.l.b16 %v68
  %v375 = vunpack.c.l.b16 %v69
  %v376 = vunpack.c.h.b16 %v69
  %v377 = vunpack.c.l.b16 %v70
  %v378 = vunpack.c.h.b16 %v70
  %v379 = vunpack.c.l.b16 %v71
  %v380 = vunpack.c.l.b16 %v72
  %v381 = vunpack.c.h.b16 %v72
  %v382 = vunpack.c.l.b16 %v73
  %v383 = vunpack.c.h.b16 %v73
  %v384 = vunpack.c.l.b16 %v74
  %v385 = vunpack.c.l.b16 %v75
  %v386 = vunpack.c.h.b16 %v75
  %v387 = vunpack.c.l.b16 %v76
  %v388 = vunpack.c.h.b16 %v76
  %v389 = vunpack.c.l.b16 %v77
  %v390 = vunpack.c.l.b16 %v78
  %v391 = vunpack.c.h.b16 %v78
  %v392 = vunpack.c.l.b16 %v79
  %v393 = vunpack.c.h.b16 %v79
  %v394 = vunpack.c.l.b16 %v80
  %v395 = vunpack.c.l.b16 %v81
  %v396 = vunpack.c.h.b16 %v81
  %v397 = vunpack.c.l.b16 %v82
  %v398 = vunpack.c.h.b16 %v82
  %v399 = vunpack.c.l.b16 %v83
  %v400 = vunpack.c.l.b16 %v84
  %v401 = vunpack.c.h.b16 %v84
  %v402 = vunpack.c.l.b16 %v85
  %v403 = vunpack.c.h.b16 %v85
  %v404 = vunpack.c.l.b16 %v86
  %v405 = vunpack.c.l.b16 %v87
  %v406 = vunpack.c.h.b16 %v87
  %v407 = vunpack.c.l.b16 %v88
  %v408 = vunpack.c.h.b16 %v88
  %v409 = vunpack.c.l.b16 %v89
  %v410 = vunpack.c.l.b16 %v90
  %v411 = vunpack.c.h.b16 %v90
  %v412 = vunpack.c.l.b16 %v91
  %v413 = vunpack.c.h.b16 %v91
  %v414 = vunpack.c.l.b16 %v92
  %v415 = vunpack.c.l.b16 %v93
  %v416 = vunpack.c.h.b16 %v93
  %v417 = vunpack.c.l.b16 %v94
  %v418 = vunpack.c.h.b16 %v94
  %v419 = vunpack.c.l.b16 %v95
  %v420 = vunpack.c.l.b16 %v96
  %v421 = vunpack.c.h.b16 %v96
  %v422 = vunpack.c.l.b16 %v97
  %v423 = vunpack.c.h.b16 %v97
  %v424 = vunpack.c.l.b16 %v98
  %v425 = vunpack.c.l.b16 %v99
  %v426 = vunpack.c.h.b16 %v99
  %v427 = vunpack.c.l.b16 %v100
  %v428 = vunpack.c.h.b16 %v100
  %v429 = vunpack.c.l.b16 %v101
  %v430 = vunpack.c.l.b16 %v102
  %v431 = vunpack.c.h.b16 %v102
  %v432 = vunpack.c.l.b16 %v103
  %v433 = vunpack.c.h.b16 %v103
  %v434 = vunpack.c.l.b16 %v104
  %v435 = vunpack.c.l.b16 %v105
  %v436 = vunpack.c.h.b16 %v105
  %v437 = vunpack.c.l.b16 %v106
  %v438 = vunpack.c.h.b16 %v106
  %v439 = vunpack.c.l.b16 %v107
  %v440 = vunpack.c.l.b16 %v108
  %v441 = vunpack.c.h.b16 %v108
  %v442 = vunpack.c.l.b16 %v109
  %v443 = vunpack.c.h.b16 %v109
  %v444 = vunpack.c.l.b16 %v110
  %v445 = vunpack.c.l.b16 %v111
  %v446 = vunpack.c.h.b16 %v111
  %v447 = vunpack.c.l.b16 %v112
  %v448 = vunpack.c.h.b16 %v112
  %v449 = vunpack.c.l.b16 %v113
  %v450 = vpack.c.b16 %v295, %v290
  %v451 = vpack.c.b16 %v296, %v291
  %v452 = vpack.c.b16 %v297, %v292
  %v453 = vpack.c.b16 %v298, %v293
  %v454 = vpack.c.b16 %v299, %v294
  %v455 = vpack.c.b16 %v305, %v300
  %v456 = vpack.c.b16 %v306, %v301
  %v457 = vpack.c.b16 %v307, %v302
  %v458 = vpack.c.b16 %v308, %v303
  %v459 = vpack.c.b16 %v309, %v304
  %v460 = vpack.c.b16 %v315, %v310
  %v461 = vpack.c.b16 %v316, %v311
  %v462 = vpack.c.b16 %v317, %v312
  %v463 = vpack.c.b16 %v318, %v313
  %v464 = vpack.c.b16 %v319, %v314
  %v465 = vpack.c.b16 %v325, %v320
  %v466 = vpack.c.b16 %v326, %v321
  %v467 = vpack.c.b16 %v327, %v322
  %v468 = vpack.c.b16 %v328, %v323
  %v469 = vpack.c.b16 %v329, %v324
  %v470 = vpack.c.b16 %v335, %v330
  %v471 = vpack.c.b16 %v336, %v331
  %v472 = vpack.c.b16 %v337, %v332
  %v473 = vpack.c.b16 %v338, %v333
  %v474 = vpack.c.b16 %v339, %v334
  %v475 = vpack.c.b16 %v345, %v340
  %v476 = vpack.c.b16 %v346, %v341
  %v477 = vpack.c.b16 %v347, %v342
  %v478 = vpack.c.b16 %v348, %v343
  %v479 = vpack.c.b16 %v349, %v344
  %v480 = vpack.c.b16 %v355, %v350
  %v481 = vpack.c.b16 %v356, %v351
  %v482 = vpack.c.b16 %v357, %v352
  %v483 = vpack.c.b16 %v358, %v353
  %v484 = vpack.c.b16 %v359, %v354
  %v485 = vpack.c.b16 %v365, %v360
  %v486 = vpack.c.b16 %v366, %v361
  %v487 = vpack.c.b16 %v367, %v362
  %v488 = vpack.c.b16 %v368, %v363
  %v489 = vpack.c.b16 %v369, %v364
  %v490 = vpack.c.b16 %v375, %v370
  %v491 = vpack.c.b16 %v376, %v371
  %v492 = vpack.c.b16 %v377, %v372
  %v493 = vpack.c.b16 %v378, %v373
  %v494 = vpack.c.b16 %v379, %v374
  %v495 = vpack.c.b16 %v385, %v380
  %v496 = vpack.c.b16 %v386, %v381
  %v497 = vpack.c.b16 %v387, %v382
  %v498 = vpack.c.b16 %v388, %v383
  %v499 = vpack.c.b16 %v389, %v384
  %v500 = vpack.c.b16 %v395, %v390
  %v501 = vpack.c.b16 %v396, %v391
  %v502 = vpack.c.b16 %v397, %v392
  %v503 = vpack.c.b16 %v398, %v393
  %v504 = vpack.c.b16 %v399, %v394
  %v505 = vpack.c.b16 %v405, %v400
  %v506 = vpack.c.b16 %v406, %v401
  %v507 = vpack.c.b16 %v407, %v402
  %v508 = vpack.c.b16 %v408, %v403
  %v509 = vpack.c.b16 %v409, %v404
  %v510 = vpack.c.b16 %v415, %v410
  %v511 = vpack.c.b16 %v416, %v411
  %v512 = vpack.c.b16 %v417, %v412
  %v513 = vpack.c.b16 %v418, %v413
  %v514 = vpack.c.b16 %v419, %v414
  %v515 = vpack.c.b16 %v425, %v420
  %v516 = vpack.c.b16 %v426, %v421
  %v517 = vpack.c.b16 %v427, %v422
  %v518 = vpack.c.b16 %v428, %v423
  %v519 = vpack.c.b16 %v429, %v424
  %v520 = vpack.c.b16 %v435, %v430
  %v521 = vpack.c.b16 %v436, %v431
  %v522 = vpack.c.b16 %v437, %v432
  %v523 = vpack.c.b16 %v438, %v433
  %v524 = vpack.c.b16 %v439, %v434
  %v525 = vpack.c.b16 %v445, %v440
  %v526 = vpack.c.b16 %v446, %v441
  %v527 = vpack.c.b16 %v447, %v442
  %v528 = vpack.c.b16 %v448, %v443
  %v529 = vpack.c.b16 %v449, %v444
  %v690 = vunpack.c.l.b16 %v114
  %v691 = vunpack.c.l.b16 %v115
  %v692 = vunpack.c.l.b16 %v116
  %v693 = vunpack.c.l.b16 %v117
  %v694 = vunpack.c.l.b16 %v118
  %v695 = vunpack.c.l.b16 %v119
  %v696 = vunpack.c.l.b16 %v120
  %v697 = vunpack.c.l.b16 %v121
  %v698 = vunpack.c.l.b16 %v122
  %v699 = vunpack.c.l.b16 %v123
  %v700 = vunpack.c.l.b16 %v124
  %v701 = vunpack.c.l.b16 %v125
  %v702 = vunpack.c.l.b16 %v126
  %v703 = vunpack.c.l.b16 %v127
  %v704 = vunpack.c.l.b16 %v128
  %v705 = vunpack.c.l.b16 %v129
  %v706 = vunpack.c.l.b16 %v130
  %v707 = vunpack.c.l.b16 %v131
  %v708 = vunpack.c.l.b16 %v132
  %v709 = vunpack.c.l.b16 %v133
  %v710 = vunpack.c.l.b16 %v134
  %v711 = vunpack.c.l.b16 %v135
  %v712 = vunpack.c.l.b16 %v136
  %v713 = vunpack.c.l.b16 %v137
  %v714 = vunpack.c.l.b16 %v138
  %v715 = vunpack.c.l.b16 %v139
  %v716 = vunpack.c.l.b16 %v140
  %v717 = vunpack.c.l.b16 %v141
  %v718 = vunpack.c.l.b16 %v142
  %v719 = vunpack.c.l.b16 %v143
  %v720 = vunpack.c.l.b16 %v144
  %v721 = vunpack.c.l.b16 %v145
  %v722 = vunpack.c.l.b16 %v146
  %v723 = vunpack.c.l.b16 %v147
  %v724 = vunpack.c.l.b16 %v148
  %v725 = vunpack.c.l.b16 %v149
  %v726 = vunpack.c.l.b16 %v150
  %v727 = vunpack.c.l.b16 %v151
  %v728 = vunpack.c.l.b16 %v152
  %v729 = vunpack.c.l.b16 %v153
  %v730 = vunpack.c.l.b16 %v154
  %v731 = vunpack.c.l.b16 %v155
  %v732 = vunpack.c.l.b16 %v156
  %v733 = vunpack.c.l.b16 %v157
  %v734 = vunpack.c.l.b16 %v158
  %v735 = vunpack.c.l.b16 %v159
  %v736 = vunpack.c.l.b16 %v160
  %v737 = vunpack.c.l.b16 %v161
  %v738 = vunpack.c.l.b16 %v162
  %v739 = vunpack.c.l.b16 %v163
  %v740 = vunpack.c.l.b16 %v164
  %v741 = vunpack.c.l.b16 %v165
  %v742 = vunpack.c.l.b16 %v166
  %v743 = vunpack.c.l.b16 %v167
  %v744 = vunpack.c.l.b16 %v168
  %v745 = vunpack.c.l.b16 %v169
  %v746 = vunpack.c.l.b16 %v170
  %v747 = vunpack.c.l.b16 %v171
  %v748 = vunpack.c.l.b16 %v172
  %v749 = vunpack.c.l.b16 %v173
  %v750 = vunpack.c.l.b16 %v174
  %v751 = vunpack.c.l.b16 %v175
  %v752 = vunpack.c.l.b16 %v176
  %v753 = vunpack.c.l.b16 %v177
  %v754 = vunpack.c.l.b16 %v178
  %v755 = vunpack.c.l.b16 %v179
  %v756 = vunpack.c.l.b16 %v180
  %v757 = vunpack.c.l.b16 %v181
  %v758 = vunpack.c.l.b16 %v182
  %v759 = vunpack.c.l.b16 %v183
  %v760 = vunpack.c.l.b16 %v184
  %v761 = vunpack.c.l.b16 %v185
  %v762 = vunpack.c.l.b16 %v186
  %v763 = vunpack.c.l.b16 %v187
  %v764 = vunpack.c.l.b16 %v188
  %v765 = vunpack.c.l.b16 %v189
  %v766 = vunpack.c.l.b16 %v190
  %v767 = vunpack.c.l.b16 %v191
  %v768 = vunpack.c.l.b16 %v192
  %v769 = vunpack.c.l.b16 %v193
  %v770 = vpack.c.b16 %v691, %v690
  %v771 = vpack.c.b16 %v693, %v692
  %v772 = vpack.c.b16 %v695, %v694
  %v773 = vpack.c.b16 %v697, %v696
  %v774 = vpack.c.b16 %v699, %v698
  %v775 = vpack.c.b16 %v701, %v700
  %v776 = vpack.c.b16 %v703, %v702
  %v777 = vpack.c.b16 %v705, %v704
  %v778 = vpack.c.b16 %v707, %v706
  %v779 = vpack.c.b16 %v709, %v708
  %v780 = vpack.c.b16 %v711, %v710
  %v781 = vpack.c.b16 %v713, %v712
  %v782 = vpack.c.b16 %v715, %v714
  %v783 = vpack.c.b16 %v717, %v716
  %v784 = vpack.c.b16 %v719, %v718
  %v785 = vpack.c.b16 %v721, %v720
  %v786 = vpack.c.b16 %v723, %v722
  %v787 = vpack.c.b16 %v725, %v724
  %v788 = vpack.c.b16 %v727, %v726
  %v789 = vpack.c.b16 %v729, %v728
  %v790 = vpack.c.b16 %v731, %v730
  %v791 = vpack.c.b16 %v733, %v732
  %v792 = vpack.c.b16 %v735, %v734
  %v793 = vpack.c.b16 %v737, %v736
  %v794 = vpack.c.b16 %v739, %v738
  %v795 = vpack.c.b16 %v741, %v740
  %v796 = vpack.c.b16 %v743, %v742
  %v797 = vpack.c.b16 %v745, %v744
  %v798 = vpack.c.b16 %v747, %v746
  %v799 = vpack.c.b16 %v749, %v748
  %v800 = vpack.c.b16 %v751, %v750
  %v801 = vpack.c.b16 %v753, %v752
  %v802 = vpack.c.b16 %v755, %v754
  %v803 = vpack.c.b16 %v757, %v756
  %v804 = vpack.c.b16 %v759, %v758
  %v805 = vpack.c.b16 %v761, %v760
  %v806 = vpack.c.b16 %v763, %v762
  %v807 = vpack.c.b16 %v765, %v764
  %v808 = vpack.c.b16 %v767, %v766
  %v809 = vpack.c.b16 %v769, %v768
  %850 = vmatprep.subr.bf16.mxu0 0
  %851 = vmatpush1.bf16.msra.mxu0 %v777
  %852 = vmatprep.subr.bf16.mxu0 0
  %853 = vmatpush1.bf16.msra.mxu0 %v776
  %854 = vmatprep.subr.bf16.mxu0 0
  %855 = vmatpush1.bf16.msra.mxu0 %v775
  %856 = vmatprep.subr.bf16.mxu0 0
  %857 = vmatpush1.bf16.msra.mxu0 %v774
  %858 = vmatprep.subr.bf16.mxu0 0
  %859 = vmatpush1.bf16.msra.mxu0 %v773
  %860 = vmatprep.subr.bf16.mxu0 0
  %861 = vmatpush1.bf16.msra.mxu0 %v772
  %862 = vmatprep.subr.bf16.mxu0 0
  %863 = vmatpush1.bf16.msra.mxu0 %v771
  %864 = vmatprep.subr.bf16.mxu0 0
  %865 = vmatpush1.bf16.msra.mxu0 %v770
  %866 = vmatprep.subr.bf16.mxu0 0
  %867 = vmatpush2.bf16.msra.mxu0 %v785
  %868 = vmatprep.subr.bf16.mxu0 0
  %869 = vmatpush2.bf16.msra.mxu0 %v784
  %870 = vmatprep.subr.bf16.mxu0 0
  %871 = vmatpush2.bf16.msra.mxu0 %v783
  %872 = vmatprep.subr.bf16.mxu0 0
  %873 = vmatpush2.bf16.msra.mxu0 %v782
  %874 = vmatprep.subr.bf16.mxu0 0
  %875 = vmatpush2.bf16.msra.mxu0 %v781
  %876 = vmatprep.subr.bf16.mxu0 0
  %877 = vmatpush2.bf16.msra.mxu0 %v780
  %878 = vmatprep.subr.bf16.mxu0 0
  %879 = vmatpush2.bf16.msra.mxu0 %v779
  %880 = vmatprep.subr.bf16.mxu0 0
  %881 = vmatpush2.bf16.msra.mxu0 %v778
  %882 = vmatprep.mubr.bf16.mxu0 %v451
  %883 = vmatmul.mubr.bf16.gmra.mxu0 %v450
  %v884 = vpop.f32.mrf.mxu0
  %v885 = vadd.f32 0.0, %v884
  %v886 = vpop.f32.mrf.mxu0
  %v887 = vpop.f32.mrf.mxu0
  %v888 = vadd.f32 0.0, %v887
  %v889 = vpop.f32.mrf.mxu0
  %890 = vmatprep.mubr.bf16.mxu0 %v456
  %891 = vmatmul.mubr.bf16.gmra.mxu0 %v455
  %v892 = vpop.f32.mrf.mxu0
  %v893 = vadd.f32 0.0, %v892
  %v894 = vpop.f32.mrf.mxu0
  %v895 = vpop.f32.mrf.mxu0
  %v896 = vadd.f32 0.0, %v895
  %v897 = vpop.f32.mrf.mxu0
  %898 = vmatprep.mubr.bf16.mxu0 %v461
  %899 = vmatmul.mubr.bf16.gmra.mxu0 %v460
  %v900 = vpop.f32.mrf.mxu0
  %v901 = vadd.f32 0.0, %v900
  %v902 = vpop.f32.mrf.mxu0
  %v903 = vpop.f32.mrf.mxu0
  %v904 = vadd.f32 0.0, %v903
  %v905 = vpop.f32.mrf.mxu0
  %906 = vmatprep.mubr.bf16.mxu0 %v466
  %907 = vmatmul.mubr.bf16.gmra.mxu0 %v465
  %v908 = vpop.f32.mrf.mxu0
  %v909 = vadd.f32 0.0, %v908
  %v910 = vpop.f32.mrf.mxu0
  %v911 = vpop.f32.mrf.mxu0
  %v912 = vadd.f32 0.0, %v911
  %v913 = vpop.f32.mrf.mxu0
  %914 = vmatprep.mubr.bf16.mxu0 %v471
  %915 = vmatmul.mubr.bf16.gmra.mxu0 %v470
  %v916 = vpop.f32.mrf.mxu0
  %v917 = vadd.f32 0.0, %v916
  %v918 = vpop.f32.mrf.mxu0
  %v919 = vpop.f32.mrf.mxu0
  %v920 = vadd.f32 0.0, %v919
  %v921 = vpop.f32.mrf.mxu0
  %922 = vmatprep.mubr.bf16.mxu0 %v476
  %923 = vmatmul.mubr.bf16.gmra.mxu0 %v475
  %v924 = vpop.f32.mrf.mxu0
  %v925 = vadd.f32 0.0, %v924
  %v926 = vpop.f32.mrf.mxu0
  %v927 = vpop.f32.mrf.mxu0
  %v928 = vadd.f32 0.0, %v927
  %v929 = vpop.f32.mrf.mxu0
  %930 = vmatprep.mubr.bf16.mxu0 %v481
  %931 = vmatmul.mubr.bf16.gmra.mxu0 %v480
  %v932 = vpop.f32.mrf.mxu0
  %v933 = vadd.f32 0.0, %v932
  %v934 = vpop.f32.mrf.mxu0
  %v935 = vpop.f32.mrf.mxu0
  %v936 = vadd.f32 0.0, %v935
  %v937 = vpop.f32.mrf.mxu0
  %938 = vmatprep.mubr.bf16.mxu0 %v486
  %939 = vmatmul.mubr.bf16.gmra.mxu0 %v485
  %v940 = vpop.f32.mrf.mxu0
  %v941 = vadd.f32 0.0, %v940
  %v942 = vpop.f32.mrf.mxu0
  %v943 = vpop.f32.mrf.mxu0
  %v944 = vadd.f32 0.0, %v943
  %v945 = vpop.f32.mrf.mxu0
  %946 = vmatprep.mubr.bf16.mxu0 %v491
  %947 = vmatmul.mubr.bf16.gmra.mxu0 %v490
  %v948 = vpop.f32.mrf.mxu0
  %v949 = vadd.f32 0.0, %v948
  %v950 = vpop.f32.mrf.mxu0
  %v951 = vpop.f32.mrf.mxu0
  %v952 = vadd.f32 0.0, %v951
  %v953 = vpop.f32.mrf.mxu0
  %954 = vmatprep.mubr.bf16.mxu0 %v496
  %955 = vmatmul.mubr.bf16.gmra.mxu0 %v495
  %v956 = vpop.f32.mrf.mxu0
  %v957 = vadd.f32 0.0, %v956
  %v958 = vpop.f32.mrf.mxu0
  %v959 = vpop.f32.mrf.mxu0
  %v960 = vadd.f32 0.0, %v959
  %v961 = vpop.f32.mrf.mxu0
  %962 = vmatprep.mubr.bf16.mxu0 %v501
  %963 = vmatmul.mubr.bf16.gmra.mxu0 %v500
  %v964 = vpop.f32.mrf.mxu0
  %v965 = vadd.f32 0.0, %v964
  %v966 = vpop.f32.mrf.mxu0
  %v967 = vpop.f32.mrf.mxu0
  %v968 = vadd.f32 0.0, %v967
  %v969 = vpop.f32.mrf.mxu0
  %970 = vmatprep.mubr.bf16.mxu0 %v506
  %971 = vmatmul.mubr.bf16.gmra.mxu0 %v505
  %v972 = vpop.f32.mrf.mxu0
  %v973 = vadd.f32 0.0, %v972
  %v974 = vpop.f32.mrf.mxu0
  %v975 = vpop.f32.mrf.mxu0
  %v976 = vadd.f32 0.0, %v975
  %v977 = vpop.f32.mrf.mxu0
  %978 = vmatprep.mubr.bf16.mxu0 %v511
  %979 = vmatmul.mubr.bf16.gmra.mxu0 %v510
  %v980 = vpop.f32.mrf.mxu0
  %v981 = vadd.f32 0.0, %v980
  %v982 = vpop.f32.mrf.mxu0
  %v983 = vpop.f32.mrf.mxu0
  %v984 = vadd.f32 0.0, %v983
  %v985 = vpop.f32.mrf.mxu0
  %986 = vmatprep.mubr.bf16.mxu0 %v516
  %987 = vmatmul.mubr.bf16.gmra.mxu0 %v515
  %v988 = vpop.f32.mrf.mxu0
  %v989 = vadd.f32 0.0, %v988
  %v990 = vpop.f32.mrf.mxu0
  %v991 = vpop.f32.mrf.mxu0
  %v992 = vadd.f32 0.0, %v991
  %v993 = vpop.f32.mrf.mxu0
  %994 = vmatprep.mubr.bf16.mxu0 %v521
  %995 = vmatmul.mubr.bf16.gmra.mxu0 %v520
  %v996 = vpop.f32.mrf.mxu0
  %v997 = vadd.f32 0.0, %v996
  %v998 = vpop.f32.mrf.mxu0
  %v999 = vpop.f32.mrf.mxu0
  %v1000 = vadd.f32 0.0, %v999
  %v1001 = vpop.f32.mrf.mxu0
  %1002 = vmatprep.mubr.bf16.mxu0 %v526
  %1003 = vmatmul.mubr.bf16.gmra.mxu0 %v525
  %v1004 = vpop.f32.mrf.mxu0
  %v1005 = vadd.f32 0.0, %v1004
  %v1006 = vpop.f32.mrf.mxu0
  %v1007 = vpop.f32.mrf.mxu0
  %v1008 = vadd.f32 0.0, %v1007
  %v1009 = vpop.f32.mrf.mxu0
  %1010 = vdwg.mxu0
  %1011 = vmatprep.subr.bf16.mxu0 0
  %1012 = vmatpush1.bf16.msra.mxu0 %v793
  %1013 = vmatprep.subr.bf16.mxu0 0
  %1014 = vmatpush1.bf16.msra.mxu0 %v792
  %1015 = vmatprep.subr.bf16.mxu0 0
  %1016 = vmatpush1.bf16.msra.mxu0 %v791
  %1017 = vmatprep.subr.bf16.mxu0 0
  %1018 = vmatpush1.bf16.msra.mxu0 %v790
  %1019 = vmatprep.subr.bf16.mxu0 0
  %1020 = vmatpush1.bf16.msra.mxu0 %v789
  %1021 = vmatprep.subr.bf16.mxu0 0
  %1022 = vmatpush1.bf16.msra.mxu0 %v788
  %1023 = vmatprep.subr.bf16.mxu0 0
  %1024 = vmatpush1.bf16.msra.mxu0 %v787
  %1025 = vmatprep.subr.bf16.mxu0 0
  %1026 = vmatpush1.bf16.msra.mxu0 %v786
  %1027 = vmatprep.subr.bf16.mxu0 0
  %1028 = vmatpush2.bf16.msra.mxu0 %v801
  %1029 = vmatprep.subr.bf16.mxu0 0
  %1030 = vmatpush2.bf16.msra.mxu0 %v800
  %1031 = vmatprep.subr.bf16.mxu0 0
  %1032 = vmatpush2.bf16.msra.mxu0 %v799
  %1033 = vmatprep.subr.bf16.mxu0 0
  %1034 = vmatpush2.bf16.msra.mxu0 %v798
  %1035 = vmatprep.subr.bf16.mxu0 0
  %1036 = vmatpush2.bf16.msra.mxu0 %v797
  %1037 = vmatprep.subr.bf16.mxu0 0
  %1038 = vmatpush2.bf16.msra.mxu0 %v796
  %1039 = vmatprep.subr.bf16.mxu0 0
  %1040 = vmatpush2.bf16.msra.mxu0 %v795
  %1041 = vmatprep.subr.bf16.mxu0 0
  %1042 = vmatpush2.bf16.msra.mxu0 %v794
  %1043 = vmatprep.mubr.bf16.mxu0 %v453
  %1044 = vmatmul.mubr.bf16.gmra.mxu0 %v452
  %v1045 = vpop.f32.mrf.mxu0
  %v1046 = vadd.f32 %v885, %v1045
  %v1047 = vpop.f32.mrf.mxu0
  %v1048 = vpop.f32.mrf.mxu0
  %v1049 = vadd.f32 %v888, %v1048
  %v1050 = vpop.f32.mrf.mxu0
  %1051 = vmatprep.mubr.bf16.mxu0 %v458
  %1052 = vmatmul.mubr.bf16.gmra.mxu0 %v457
  %v1053 = vpop.f32.mrf.mxu0
  %v1054 = vadd.f32 %v893, %v1053
  %v1055 = vpop.f32.mrf.mxu0
  %v1056 = vpop.f32.mrf.mxu0
  %v1057 = vadd.f32 %v896, %v1056
  %v1058 = vpop.f32.mrf.mxu0
  %1059 = vmatprep.mubr.bf16.mxu0 %v463
  %1060 = vmatmul.mubr.bf16.gmra.mxu0 %v462
  %v1061 = vpop.f32.mrf.mxu0
  %v1062 = vadd.f32 %v901, %v1061
  %v1063 = vpop.f32.mrf.mxu0
  %v1064 = vpop.f32.mrf.mxu0
  %v1065 = vadd.f32 %v904, %v1064
  %v1066 = vpop.f32.mrf.mxu0
  %1067 = vmatprep.mubr.bf16.mxu0 %v468
  %1068 = vmatmul.mubr.bf16.gmra.mxu0 %v467
  %v1069 = vpop.f32.mrf.mxu0
  %v1070 = vadd.f32 %v909, %v1069
  %v1071 = vpop.f32.mrf.mxu0
  %v1072 = vpop.f32.mrf.mxu0
  %v1073 = vadd.f32 %v912, %v1072
  %v1074 = vpop.f32.mrf.mxu0
  %1075 = vmatprep.mubr.bf16.mxu0 %v473
  %1076 = vmatmul.mubr.bf16.gmra.mxu0 %v472
  %v1077 = vpop.f32.mrf.mxu0
  %v1078 = vadd.f32 %v917, %v1077
  %v1079 = vpop.f32.mrf.mxu0
  %v1080 = vpop.f32.mrf.mxu0
  %v1081 = vadd.f32 %v920, %v1080
  %v1082 = vpop.f32.mrf.mxu0
  %1083 = vmatprep.mubr.bf16.mxu0 %v478
  %1084 = vmatmul.mubr.bf16.gmra.mxu0 %v477
  %v1085 = vpop.f32.mrf.mxu0
  %v1086 = vadd.f32 %v925, %v1085
  %v1087 = vpop.f32.mrf.mxu0
  %v1088 = vpop.f32.mrf.mxu0
  %v1089 = vadd.f32 %v928, %v1088
  %v1090 = vpop.f32.mrf.mxu0
  %1091 = vmatprep.mubr.bf16.mxu0 %v483
  %1092 = vmatmul.mubr.bf16.gmra.mxu0 %v482
  %v1093 = vpop.f32.mrf.mxu0
  %v1094 = vadd.f32 %v933, %v1093
  %v1095 = vpop.f32.mrf.mxu0
  %v1096 = vpop.f32.mrf.mxu0
  %v1097 = vadd.f32 %v936, %v1096
  %v1098 = vpop.f32.mrf.mxu0
  %1099 = vmatprep.mubr.bf16.mxu0 %v488
  %1100 = vmatmul.mubr.bf16.gmra.mxu0 %v487
  %v1101 = vpop.f32.mrf.mxu0
  %v1102 = vadd.f32 %v941, %v1101
  %v1103 = vpop.f32.mrf.mxu0
  %v1104 = vpop.f32.mrf.mxu0
  %v1105 = vadd.f32 %v944, %v1104
  %v1106 = vpop.f32.mrf.mxu0
  %1107 = vmatprep.mubr.bf16.mxu0 %v493
  %1108 = vmatmul.mubr.bf16.gmra.mxu0 %v492
  %v1109 = vpop.f32.mrf.mxu0
  %v1110 = vadd.f32 %v949, %v1109
  %v1111 = vpop.f32.mrf.mxu0
  %v1112 = vpop.f32.mrf.mxu0
  %v1113 = vadd.f32 %v952, %v1112
  %v1114 = vpop.f32.mrf.mxu0
  %1115 = vmatprep.mubr.bf16.mxu0 %v498
  %1116 = vmatmul.mubr.bf16.gmra.mxu0 %v497
  %v1117 = vpop.f32.mrf.mxu0
  %v1118 = vadd.f32 %v957, %v1117
  %v1119 = vpop.f32.mrf.mxu0
  %v1120 = vpop.f32.mrf.mxu0
  %v1121 = vadd.f32 %v960, %v1120
  %v1122 = vpop.f32.mrf.mxu0
  %1123 = vmatprep.mubr.bf16.mxu0 %v503
  %1124 = vmatmul.mubr.bf16.gmra.mxu0 %v502
  %v1125 = vpop.f32.mrf.mxu0
  %v1126 = vadd.f32 %v965, %v1125
  %v1127 = vpop.f32.mrf.mxu0
  %v1128 = vpop.f32.mrf.mxu0
  %v1129 = vadd.f32 %v968, %v1128
  %v1130 = vpop.f32.mrf.mxu0
  %1131 = vmatprep.mubr.bf16.mxu0 %v508
  %1132 = vmatmul.mubr.bf16.gmra.mxu0 %v507
  %v1133 = vpop.f32.mrf.mxu0
  %v1134 = vadd.f32 %v973, %v1133
  %v1135 = vpop.f32.mrf.mxu0
  %v1136 = vpop.f32.mrf.mxu0
  %v1137 = vadd.f32 %v976, %v1136
  %v1138 = vpop.f32.mrf.mxu0
  %1139 = vmatprep.mubr.bf16.mxu0 %v513
  %1140 = vmatmul.mubr.bf16.gmra.mxu0 %v512
  %v1141 = vpop.f32.mrf.mxu0
  %v1142 = vadd.f32 %v981, %v1141
  %v1143 = vpop.f32.mrf.mxu0
  %v1144 = vpop.f32.mrf.mxu0
  %v1145 = vadd.f32 %v984, %v1144
  %v1146 = vpop.f32.mrf.mxu0
  %1147 = vmatprep.mubr.bf16.mxu0 %v518
  %1148 = vmatmul.mubr.bf16.gmra.mxu0 %v517
  %v1149 = vpop.f32.mrf.mxu0
  %v1150 = vadd.f32 %v989, %v1149
  %v1151 = vpop.f32.mrf.mxu0
  %v1152 = vpop.f32.mrf.mxu0
  %v1153 = vadd.f32 %v992, %v1152
  %v1154 = vpop.f32.mrf.mxu0
  %1155 = vmatprep.mubr.bf16.mxu0 %v523
  %1156 = vmatmul.mubr.bf16.gmra.mxu0 %v522
  %v1157 = vpop.f32.mrf.mxu0
  %v1158 = vadd.f32 %v997, %v1157
  %v1159 = vpop.f32.mrf.mxu0
  %v1160 = vpop.f32.mrf.mxu0
  %v1161 = vadd.f32 %v1000, %v1160
  %v1162 = vpop.f32.mrf.mxu0
  %1163 = vmatprep.mubr.bf16.mxu0 %v528
  %1164 = vmatmul.mubr.bf16.gmra.mxu0 %v527
  %v1165 = vpop.f32.mrf.mxu0
  %v1166 = vadd.f32 %v1005, %v1165
  %v1167 = vpop.f32.mrf.mxu0
  %v1168 = vpop.f32.mrf.mxu0
  %v1169 = vadd.f32 %v1008, %v1168
  %v1170 = vpop.f32.mrf.mxu0
  %1171 = vdwg.mxu0
  %1172 = vmatprep.subr.bf16.mxu0 0
  %1173 = vmatpush1.bf16.msra.mxu0 %v809
  %1174 = vmatprep.subr.bf16.mxu0 0
  %1175 = vmatpush1.bf16.msra.mxu0 %v808
  %1176 = vmatprep.subr.bf16.mxu0 0
  %1177 = vmatpush1.bf16.msra.mxu0 %v807
  %1178 = vmatprep.subr.bf16.mxu0 0
  %1179 = vmatpush1.bf16.msra.mxu0 %v806
  %1180 = vmatprep.subr.bf16.mxu0 0
  %1181 = vmatpush1.bf16.msra.mxu0 %v805
  %1182 = vmatprep.subr.bf16.mxu0 0
  %1183 = vmatpush1.bf16.msra.mxu0 %v804
  %1184 = vmatprep.subr.bf16.mxu0 0
  %1185 = vmatpush1.bf16.msra.mxu0 %v803
  %1186 = vmatprep.subr.bf16.mxu0 0
  %1187 = vmatpush1.bf16.msra.mxu0 %v802
  %1188 = vmatprep.subr.bf16.mxu0 0
  %1189 = vmatpush2.bf16.msra.mxu0 0
  %1190 = vmatprep.subr.bf16.mxu0 0
  %1191 = vmatpush2.bf16.msra.mxu0 0
  %1192 = vmatprep.subr.bf16.mxu0 0
  %1193 = vmatpush2.bf16.msra.mxu0 0
  %1194 = vmatprep.subr.bf16.mxu0 0
  %1195 = vmatpush2.bf16.msra.mxu0 0
  %1196 = vmatprep.subr.bf16.mxu0 0
  %1197 = vmatpush2.bf16.msra.mxu0 0
  %1198 = vmatprep.subr.bf16.mxu0 0
  %1199 = vmatpush2.bf16.msra.mxu0 0
  %1200 = vmatprep.subr.bf16.mxu0 0
  %1201 = vmatpush2.bf16.msra.mxu0 0
  %1202 = vmatprep.subr.bf16.mxu0 0
  %1203 = vmatpush2.bf16.msra.mxu0 0
  %1204 = vmatprep.mubr.bf16.mxu0 0
  %1205 = vmatmul.mubr.bf16.gmra.mxu0 %v454
  %v1206 = vpop.f32.mrf.mxu0
  %v1207 = vadd.f32 %v1046, %v1206
  %v1208 = vpop.f32.mrf.mxu0
  %v1209 = vpop.f32.mrf.mxu0
  %v1210 = vadd.f32 %v1049, %v1209
  %v1211 = vpop.f32.mrf.mxu0
  %1212 = vmatprep.mubr.bf16.mxu0 0
  %1213 = vmatmul.mubr.bf16.gmra.mxu0 %v459
  %v1214 = vpop.f32.mrf.mxu0
  %v1215 = vadd.f32 %v1054, %v1214
  %v1216 = vpop.f32.mrf.mxu0
  %v1217 = vpop.f32.mrf.mxu0
  %v1218 = vadd.f32 %v1057, %v1217
  %v1219 = vpop.f32.mrf.mxu0
  %1220 = vmatprep.mubr.bf16.mxu0 0
  %1221 = vmatmul.mubr.bf16.gmra.mxu0 %v464
  %v1222 = vpop.f32.mrf.mxu0
  %v1223 = vadd.f32 %v1062, %v1222
  %v1224 = vpop.f32.mrf.mxu0
  %v1225 = vpop.f32.mrf.mxu0
  %v1226 = vadd.f32 %v1065, %v1225
  %v1227 = vpop.f32.mrf.mxu0
  %1228 = vmatprep.mubr.bf16.mxu0 0
  %1229 = vmatmul.mubr.bf16.gmra.mxu0 %v469
  %v1230 = vpop.f32.mrf.mxu0
  %v1231 = vadd.f32 %v1070, %v1230
  %v1232 = vpop.f32.mrf.mxu0
  %v1233 = vpop.f32.mrf.mxu0
  %v1234 = vadd.f32 %v1073, %v1233
  %v1235 = vpop.f32.mrf.mxu0
  %1236 = vmatprep.mubr.bf16.mxu0 0
  %1237 = vmatmul.mubr.bf16.gmra.mxu0 %v474
  %v1238 = vpop.f32.mrf.mxu0
  %v1239 = vadd.f32 %v1078, %v1238
  %v1240 = vpop.f32.mrf.mxu0
  %v1241 = vpop.f32.mrf.mxu0
  %v1242 = vadd.f32 %v1081, %v1241
  %v1243 = vpop.f32.mrf.mxu0
  %1244 = vmatprep.mubr.bf16.mxu0 0
  %1245 = vmatmul.mubr.bf16.gmra.mxu0 %v479
  %v1246 = vpop.f32.mrf.mxu0
  %v1247 = vadd.f32 %v1086, %v1246
  %v1248 = vpop.f32.mrf.mxu0
  %v1249 = vpop.f32.mrf.mxu0
  %v1250 = vadd.f32 %v1089, %v1249
  %v1251 = vpop.f32.mrf.mxu0
  %1252 = vmatprep.mubr.bf16.mxu0 0
  %1253 = vmatmul.mubr.bf16.gmra.mxu0 %v484
  %v1254 = vpop.f32.mrf.mxu0
  %v1255 = vadd.f32 %v1094, %v1254
  %v1256 = vpop.f32.mrf.mxu0
  %v1257 = vpop.f32.mrf.mxu0
  %v1258 = vadd.f32 %v1097, %v1257
  %v1259 = vpop.f32.mrf.mxu0
  %1260 = vmatprep.mubr.bf16.mxu0 0
  %1261 = vmatmul.mubr.bf16.gmra.mxu0 %v489
  %v1262 = vpop.f32.mrf.mxu0
  %v1263 = vadd.f32 %v1102, %v1262
  %v1264 = vpop.f32.mrf.mxu0
  %v1265 = vpop.f32.mrf.mxu0
  %v1266 = vadd.f32 %v1105, %v1265
  %v1267 = vpop.f32.mrf.mxu0
  %1268 = vmatprep.mubr.bf16.mxu0 0
  %1269 = vmatmul.mubr.bf16.gmra.mxu0 %v494
  %v1270 = vpop.f32.mrf.mxu0
  %v1271 = vadd.f32 %v1110, %v1270
  %v1272 = vpop.f32.mrf.mxu0
  %v1273 = vpop.f32.mrf.mxu0
  %v1274 = vadd.f32 %v1113, %v1273
  %v1275 = vpop.f32.mrf.mxu0
  %1276 = vmatprep.mubr.bf16.mxu0 0
  %1277 = vmatmul.mubr.bf16.gmra.mxu0 %v499
  %v1278 = vpop.f32.mrf.mxu0
  %v1279 = vadd.f32 %v1118, %v1278
  %v1280 = vpop.f32.mrf.mxu0
  %v1281 = vpop.f32.mrf.mxu0
  %v1282 = vadd.f32 %v1121, %v1281
  %v1283 = vpop.f32.mrf.mxu0
  %1284 = vmatprep.mubr.bf16.mxu0 0
  %1285 = vmatmul.mubr.bf16.gmra.mxu0 %v504
  %v1286 = vpop.f32.mrf.mxu0
  %v1287 = vadd.f32 %v1126, %v1286
  %v1288 = vpop.f32.mrf.mxu0
  %v1289 = vpop.f32.mrf.mxu0
  %v1290 = vadd.f32 %v1129, %v1289
  %v1291 = vpop.f32.mrf.mxu0
  %1292 = vmatprep.mubr.bf16.mxu0 0
  %1293 = vmatmul.mubr.bf16.gmra.mxu0 %v509
  %v1294 = vpop.f32.mrf.mxu0
  %v1295 = vadd.f32 %v1134, %v1294
  %v1296 = vpop.f32.mrf.mxu0
  %v1297 = vpop.f32.mrf.mxu0
  %v1298 = vadd.f32 %v1137, %v1297
  %v1299 = vpop.f32.mrf.mxu0
  %1300 = vmatprep.mubr.bf16.mxu0 0
  %1301 = vmatmul.mubr.bf16.gmra.mxu0 %v514
  %v1302 = vpop.f32.mrf.mxu0
  %v1303 = vadd.f32 %v1142, %v1302
  %v1304 = vpop.f32.mrf.mxu0
  %v1305 = vpop.f32.mrf.mxu0
  %v1306 = vadd.f32 %v1145, %v1305
  %v1307 = vpop.f32.mrf.mxu0
  %1308 = vmatprep.mubr.bf16.mxu0 0
  %1309 = vmatmul.mubr.bf16.gmra.mxu0 %v519
  %v1310 = vpop.f32.mrf.mxu0
  %v1311 = vadd.f32 %v1150, %v1310
  %v1312 = vpop.f32.mrf.mxu0
  %v1313 = vpop.f32.mrf.mxu0
  %v1314 = vadd.f32 %v1153, %v1313
  %v1315 = vpop.f32.mrf.mxu0
  %1316 = vmatprep.mubr.bf16.mxu0 0
  %1317 = vmatmul.mubr.bf16.gmra.mxu0 %v524
  %v1318 = vpop.f32.mrf.mxu0
  %v1319 = vadd.f32 %v1158, %v1318
  %v1320 = vpop.f32.mrf.mxu0
  %v1321 = vpop.f32.mrf.mxu0
  %v1322 = vadd.f32 %v1161, %v1321
  %v1323 = vpop.f32.mrf.mxu0
  %1324 = vmatprep.mubr.bf16.mxu0 0
  %1325 = vmatmul.mubr.bf16.gmra.mxu0 %v529
  %v1326 = vpop.f32.mrf.mxu0
  %v1327 = vadd.f32 %v1166, %v1326
  %v1328 = vpop.f32.mrf.mxu0
  %v1329 = vpop.f32.mrf.mxu0
  %v1330 = vadd.f32 %v1169, %v1329
  %v1331 = vpop.f32.mrf.mxu0
  %1332 = vdwg.mxu0
  %v1333 = vld [vmem:[%s2] sm:$0x1]
  %v1335 = vlaneseq
  %v1336 = vshrl.u32 %v1335, 7
  %v1337 = vsub.s32 0, %v1336
  %v1338 = vrot.slane %v1333, %v1337
  %v1340 = vmul.f32 %v1207, %v1338
  %v1341 = vmul.f32 %v1210, %v1338
  %v1342 = vmul.f32 %v1215, %v1338
  %v1343 = vmul.f32 %v1218, %v1338
  %v1344 = vmul.f32 %v1223, %v1338
  %v1345 = vmul.f32 %v1226, %v1338
  %v1346 = vmul.f32 %v1231, %v1338
  %v1347 = vmul.f32 %v1234, %v1338
  %v1348 = vmul.f32 %v1239, %v1338
  %v1349 = vmul.f32 %v1242, %v1338
  %v1350 = vmul.f32 %v1247, %v1338
  %v1351 = vmul.f32 %v1250, %v1338
  %v1352 = vmul.f32 %v1255, %v1338
  %v1353 = vmul.f32 %v1258, %v1338
  %v1354 = vmul.f32 %v1263, %v1338
  %v1355 = vmul.f32 %v1266, %v1338
  %v1356 = vmul.f32 %v1271, %v1338
  %v1357 = vmul.f32 %v1274, %v1338
  %v1358 = vmul.f32 %v1279, %v1338
  %v1359 = vmul.f32 %v1282, %v1338
  %v1360 = vmul.f32 %v1287, %v1338
  %v1361 = vmul.f32 %v1290, %v1338
  %v1362 = vmul.f32 %v1295, %v1338
  %v1363 = vmul.f32 %v1298, %v1338
  %v1364 = vmul.f32 %v1303, %v1338
  %v1365 = vmul.f32 %v1306, %v1338
  %v1366 = vmul.f32 %v1311, %v1338
  %v1367 = vmul.f32 %v1314, %v1338
  %v1368 = vmul.f32 %v1319, %v1338
  %v1369 = vmul.f32 %v1322, %v1338
  %v1370 = vmul.f32 %v1327, %v1338
  %v1371 = vmul.f32 %v1330, %v1338
  %v1372 = vld [vmem:[%s3] sm:$0x1]
  %v1374 = vlaneseq
  %v1375 = vshrl.u32 %v1374, 7
  %v1376 = vsub.s32 0, %v1375
  %v1377 = vrot.slane %v1372, %v1376
  %v1379 = vadd.f32 %v1340, %v1377
  %v1380 = vadd.f32 %v1341, %v1377
  %v1381 = vadd.f32 %v1342, %v1377
  %v1382 = vadd.f32 %v1343, %v1377
  %v1383 = vadd.f32 %v1344, %v1377
  %v1384 = vadd.f32 %v1345, %v1377
  %v1385 = vadd.f32 %v1346, %v1377
  %v1386 = vadd.f32 %v1347, %v1377
  %v1387 = vadd.f32 %v1348, %v1377
  %v1388 = vadd.f32 %v1349, %v1377
  %v1389 = vadd.f32 %v1350, %v1377
  %v1390 = vadd.f32 %v1351, %v1377
  %v1391 = vadd.f32 %v1352, %v1377
  %v1392 = vadd.f32 %v1353, %v1377
  %v1393 = vadd.f32 %v1354, %v1377
  %v1394 = vadd.f32 %v1355, %v1377
  %v1395 = vadd.f32 %v1356, %v1377
  %v1396 = vadd.f32 %v1357, %v1377
  %v1397 = vadd.f32 %v1358, %v1377
  %v1398 = vadd.f32 %v1359, %v1377
  %v1399 = vadd.f32 %v1360, %v1377
  %v1400 = vadd.f32 %v1361, %v1377
  %v1401 = vadd.f32 %v1362, %v1377
  %v1402 = vadd.f32 %v1363, %v1377
  %v1403 = vadd.f32 %v1364, %v1377
  %v1404 = vadd.f32 %v1365, %v1377
  %v1405 = vadd.f32 %v1366, %v1377
  %v1406 = vadd.f32 %v1367, %v1377
  %v1407 = vadd.f32 %v1368, %v1377
  %v1408 = vadd.f32 %v1369, %v1377
  %v1409 = vadd.f32 %v1370, %v1377
  %v1410 = vadd.f32 %v1371, %v1377
  %v1411 = vmax.f32 %v1379, 0.0
  %v1412 = vmax.f32 %v1380, 0.0
  %v1413 = vmax.f32 %v1381, 0.0
  %v1414 = vmax.f32 %v1382, 0.0
  %v1415 = vmax.f32 %v1383, 0.0
  %v1416 = vmax.f32 %v1384, 0.0
  %v1417 = vmax.f32 %v1385, 0.0
  %v1418 = vmax.f32 %v1386, 0.0
  %v1419 = vmax.f32 %v1387, 0.0
  %v1420 = vmax.f32 %v1388, 0.0
  %v1421 = vmax.f32 %v1389, 0.0
  %v1422 = vmax.f32 %v1390, 0.0
  %v1423 = vmax.f32 %v1391, 0.0
  %v1424 = vmax.f32 %v1392, 0.0
  %v1425 = vmax.f32 %v1393, 0.0
  %v1426 = vmax.f32 %v1394, 0.0
  %v1427 = vmax.f32 %v1395, 0.0
  %v1428 = vmax.f32 %v1396, 0.0
  %v1429 = vmax.f32 %v1397, 0.0
  %v1430 = vmax.f32 %v1398, 0.0
  %v1431 = vmax.f32 %v1399, 0.0
  %v1432 = vmax.f32 %v1400, 0.0
  %v1433 = vmax.f32 %v1401, 0.0
  %v1434 = vmax.f32 %v1402, 0.0
  %v1435 = vmax.f32 %v1403, 0.0
  %v1436 = vmax.f32 %v1404, 0.0
  %v1437 = vmax.f32 %v1405, 0.0
  %v1438 = vmax.f32 %v1406, 0.0
  %v1439 = vmax.f32 %v1407, 0.0
  %v1440 = vmax.f32 %v1408, 0.0
  %v1441 = vmax.f32 %v1409, 0.0
  %v1442 = vmax.f32 %v1410, 0.0
  %v1443 = vpack.c.bf16 %v1412, %v1411
  %v1444 = vpack.c.bf16 %v1414, %v1413
  %v1445 = vpack.c.bf16 %v1416, %v1415
  %v1446 = vpack.c.bf16 %v1418, %v1417
  %v1447 = vpack.c.bf16 %v1420, %v1419
  %v1448 = vpack.c.bf16 %v1422, %v1421
  %v1449 = vpack.c.bf16 %v1424, %v1423
  %v1450 = vpack.c.bf16 %v1426, %v1425
  %v1451 = vpack.c.bf16 %v1428, %v1427
  %v1452 = vpack.c.bf16 %v1430, %v1429
  %v1453 = vpack.c.bf16 %v1432, %v1431
  %v1454 = vpack.c.bf16 %v1434, %v1433
  %v1455 = vpack.c.bf16 %v1436, %v1435
  %v1456 = vpack.c.bf16 %v1438, %v1437
  %v1457 = vpack.c.bf16 %v1440, %v1439
  %v1458 = vpack.c.bf16 %v1442, %v1441
  %v1475 = vunpack.c.l.b16 %v1443
  %v1476 = vunpack.c.h.b16 %v1443
  %v1477 = vunpack.c.l.b16 %v1444
  %v1478 = vunpack.c.h.b16 %v1444
  %v1479 = vunpack.c.l.b16 %v1445
  %v1480 = vunpack.c.h.b16 %v1445
  %v1481 = vunpack.c.l.b16 %v1446
  %v1482 = vunpack.c.h.b16 %v1446
  %v1483 = vunpack.c.l.b16 %v1447
  %v1484 = vunpack.c.h.b16 %v1447
  %v1485 = vunpack.c.l.b16 %v1448
  %v1486 = vunpack.c.h.b16 %v1448
  %v1487 = vunpack.c.l.b16 %v1449
  %v1488 = vunpack.c.h.b16 %v1449
  %v1489 = vunpack.c.l.b16 %v1450
  %v1490 = vunpack.c.h.b16 %v1450
  %v1491 = vunpack.c.l.b16 %v1451
  %v1492 = vunpack.c.h.b16 %v1451
  %v1493 = vunpack.c.l.b16 %v1452
  %v1494 = vunpack.c.h.b16 %v1452
  %v1495 = vunpack.c.l.b16 %v1453
  %v1496 = vunpack.c.h.b16 %v1453
  %v1497 = vunpack.c.l.b16 %v1454
  %v1498 = vunpack.c.h.b16 %v1454
  %v1499 = vunpack.c.l.b16 %v1455
  %v1500 = vunpack.c.h.b16 %v1455
  %v1501 = vunpack.c.l.b16 %v1456
  %v1502 = vunpack.c.h.b16 %v1456
  %v1503 = vunpack.c.l.b16 %v1457
  %v1504 = vunpack.c.h.b16 %v1457
  %v1505 = vunpack.c.l.b16 %v1458
  %v1506 = vunpack.c.h.b16 %v1458
  %v1507 = vpack.c.b16 %v1475, %v1475
  %v1508 = vpack.c.b16 %v1476, %v1476
  %v1509 = vpack.c.b16 %v1477, %v1477
  %v1510 = vpack.c.b16 %v1478, %v1478
  %v1511 = vpack.c.b16 %v1479, %v1479
  %v1512 = vpack.c.b16 %v1480, %v1480
  %v1513 = vpack.c.b16 %v1481, %v1481
  %v1514 = vpack.c.b16 %v1482, %v1482
  %v1515 = vpack.c.b16 %v1483, %v1483
  %v1516 = vpack.c.b16 %v1484, %v1484
  %v1517 = vpack.c.b16 %v1485, %v1485
  %v1518 = vpack.c.b16 %v1486, %v1486
  %v1519 = vpack.c.b16 %v1487, %v1487
  %v1520 = vpack.c.b16 %v1488, %v1488
  %v1521 = vpack.c.b16 %v1489, %v1489
  %v1522 = vpack.c.b16 %v1490, %v1490
  %v1523 = vpack.c.b16 %v1491, %v1491
  %v1524 = vpack.c.b16 %v1492, %v1492
  %v1525 = vpack.c.b16 %v1493, %v1493
  %v1526 = vpack.c.b16 %v1494, %v1494
  %v1527 = vpack.c.b16 %v1495, %v1495
  %v1528 = vpack.c.b16 %v1496, %v1496
  %v1529 = vpack.c.b16 %v1497, %v1497
  %v1530 = vpack.c.b16 %v1498, %v1498
  %v1531 = vpack.c.b16 %v1499, %v1499
  %v1532 = vpack.c.b16 %v1500, %v1500
  %v1533 = vpack.c.b16 %v1501, %v1501
  %v1534 = vpack.c.b16 %v1502, %v1502
  %v1535 = vpack.c.b16 %v1503, %v1503
  %v1536 = vpack.c.b16 %v1504, %v1504
  %v1537 = vpack.c.b16 %v1505, %v1505
  %v1538 = vpack.c.b16 %v1506, %v1506
  %1571 = vst [vmem:[%s4] sm:$0xf] %v1507
  %1572 = vst [vmem:[%s4 + $0x4] sm:$0xf] %v1508
  %1573 = vst [vmem:[%s4 + $0x8] sm:$0xf] %v1509
  %1574 = vst [vmem:[%s4 + $0xc] sm:$0xf] %v1510
  %1575 = vst [vmem:[%s4 + $0x10] sm:$0xf] %v1511
  %1576 = vst [vmem:[%s4 + $0x14] sm:$0xf] %v1512
  %1577 = vst [vmem:[%s4 + $0x18] sm:$0xf] %v1513
  %1578 = vst [vmem:[%s4 + $0x1c] sm:$0xf] %v1514
  %1579 = vst [vmem:[%s4 + $0x20] sm:$0xf] %v1515
  %1580 = vst [vmem:[%s4 + $0x24] sm:$0xf] %v1516
  %1581 = vst [vmem:[%s4 + $0x28] sm:$0xf] %v1517
  %1582 = vst [vmem:[%s4 + $0x2c] sm:$0xf] %v1518
  %1583 = vst [vmem:[%s4 + $0x30] sm:$0xf] %v1519
  %1584 = vst [vmem:[%s4 + $0x34] sm:$0xf] %v1520
  %1585 = vst [vmem:[%s4 + $0x38] sm:$0xf] %v1521
  %1586 = vst [vmem:[%s4 + $0x3c] sm:$0xf] %v1522
  %1587 = vst [vmem:[%s4 + $0x40] sm:$0xf] %v1523
  %1588 = vst [vmem:[%s4 + $0x44] sm:$0xf] %v1524
  %1589 = vst [vmem:[%s4 + $0x48] sm:$0xf] %v1525
  %1590 = vst [vmem:[%s4 + $0x4c] sm:$0xf] %v1526
  %1591 = vst [vmem:[%s4 + $0x50] sm:$0xf] %v1527
  %1592 = vst [vmem:[%s4 + $0x54] sm:$0xf] %v1528
  %1593 = vst [vmem:[%s4 + $0x58] sm:$0xf] %v1529
  %1594 = vst [vmem:[%s4 + $0x5c] sm:$0xf] %v1530
  %1595 = vst [vmem:[%s4 + $0x60] sm:$0xf] %v1531
  %1596 = vst [vmem:[%s4 + $0x64] sm:$0xf] %v1532
  %1597 = vst [vmem:[%s4 + $0x68] sm:$0xf] %v1533
  %1598 = vst [vmem:[%s4 + $0x6c] sm:$0xf] %v1534
  %1599 = vst [vmem:[%s4 + $0x70] sm:$0xf] %v1535
  %1600 = vst [vmem:[%s4 + $0x74] sm:$0xf] %v1536
  %1601 = vst [vmem:[%s4 + $0x78] sm:$0xf] %v1537
  %1602 = vst [vmem:[%s4 + $0x7c] sm:$0xf] %v1538
  // Predicated region
  $region18: #{hrnet_forward.24} parent=0 // pred_check
    _
  $region19: #{hrnet_forward.24} parent=0 // pred_check_branch
    %1604 = sbr.rel (0) target = $region21
  $region20: #{hrnet_forward.24} parent=0 // pred_region
    _
  $region21: #{hrnet_forward.24} parent=0 // pred_fallthru
    _
  // Predicated region
  $region22: #{hrnet_forward.24} parent=0 // pred_check
    _
  $region23: #{hrnet_forward.24} parent=0 // pred_check_branch
    %1606 = sbr.rel (0) target = $region25
  $region24: #{hrnet_forward.24} parent=0 // pred_region
    _
  $region25: #{hrnet_forward.24} parent=0 // pred_fallthru
    _

// kernel: hrnet_forward.25
$region0: #{hrnet_forward.25}
  #allocation0 [shape = 'u32[]', space=smem, size = 0x4, offset = 0x4, fixed_abs, tag = 'smem constant byte address 0x4 - core index']
  #allocation1 [shape = 'u32[144,128]{1,0:T(1,128)}', space=vmem, size = 0x12000, scoped, tag = 'internal scratch']
  %s0 = inlined_call_operand.vmem [shape: bf16[64,768], index: 0, kind: input, shape index: {}]
  %s1 = inlined_call_operand.vmem [shape: bf16[768,256], index: 1, kind: input, shape index: {}]
  %s2 = inlined_call_operand.vmem [shape: f32[1,256], index: 2, kind: input, shape index: {}]
  %s3 = inlined_call_operand.vmem [shape: f32[1,256], index: 3, kind: input, shape index: {}]
  %s4 = inlined_call_operand.vmem [shape: bf16[64,256], index: 4, kind: output, shape index: {}]
  %s5 = sld [smem:[#allocation0]]
  $region26: #{hrnet_forward.25} parent=0
    _
  %s7 = ssub.s32 1, %s5
  %s8 = scalar_select 0, %s7, %s5
  // Predicated region
  $region2: #{hrnet_forward.25} parent=0 // pred_check
    _
  $region3: #{hrnet_forward.25} parent=0 // pred_check_branch
    %10 = sbr.rel (0) target = $region5
  $region4: #{hrnet_forward.25} parent=0 // pred_region
    _
  $region5: #{hrnet_forward.25} parent=0 // pred_fallthru
    _
  // Predicated region
  $region6: #{hrnet_forward.25} parent=0 // pred_check
    _
  $region7: #{hrnet_forward.25} parent=0 // pred_check_branch
    %12 = sbr.rel (0) target = $region9
  $region8: #{hrnet_forward.25} parent=0 // pred_region
    _
  $region9: #{hrnet_forward.25} parent=0 // pred_fallthru
    _
  // Predicated region
  $region10: #{hrnet_forward.25} parent=0 // pred_check
    _
  $region11: #{hrnet_forward.25} parent=0 // pred_check_branch
    %14 = sbr.rel (0) target = $region13
  $region12: #{hrnet_forward.25} parent=0 // pred_region
    _
  $region13: #{hrnet_forward.25} parent=0 // pred_fallthru
    _
  // Predicated region
  $region14: #{hrnet_forward.25} parent=0 // pred_check
    _
  $region15: #{hrnet_forward.25} parent=0 // pred_check_branch
    %16 = sbr.rel (0) target = $region17
  $region16: #{hrnet_forward.25} parent=0 // pred_region
    _
  $region17: #{hrnet_forward.25} parent=0 // pred_fallthru
    _
  %v17 = vld [vmem:[%s0] sm:$0xff]
  %v18 = vld [vmem:[%s0 + $0x8] sm:$0xff]
  %v19 = vld [vmem:[%s0 + $0x10] sm:$0xff]
  %v20 = vld [vmem:[%s0 + $0x18] sm:$0xff]
  %v21 = vld [vmem:[%s0 + $0x20] sm:$0xff]
  %v22 = vld [vmem:[%s0 + $0x28] sm:$0xff]
  %v23 = vld [vmem:[%s0 + $0x30] sm:$0xff]
  %v24 = vld [vmem:[%s0 + $0x38] sm:$0xff]
  %v25 = vld [vmem:[%s0 + $0x40] sm:$0xff]
  %v26 = vld [vmem:[%s0 + $0x48] sm:$0xff]
  %v27 = vld [vmem:[%s0 + $0x50] sm:$0xff]
  %v28 = vld [vmem:[%s0 + $0x58] sm:$0xff]
  %v29 = vld [vmem:[%s0 + $0x60] sm:$0xff]
  %v30 = vld [vmem:[%s0 + $0x68] sm:$0xff]
  %v31 = vld [vmem:[%s0 + $0x70] sm:$0xff]
  %v32 = vld [vmem:[%s0 + $0x78] sm:$0xff]
  %v33 = vld [vmem:[%s0 + $0x80] sm:$0xff]
  %v34 = vld [vmem:[%s0 + $0x88] sm:$0xff]
  %v35 = vld [vmem:[%s0 + $0x90] sm:$0xff]
  %v36 = vld [vmem:[%s0 + $0x98] sm:$0xff]
  %v37 = vld [vmem:[%s0 + $0xa0] sm:$0xff]
  %v38 = vld [vmem:[%s0 + $0xa8] sm:$0xff]
  %v39 = vld [vmem:[%s0 + $0xb0] sm:$0xff]
  %v40 = vld [vmem:[%s0 + $0xb8] sm:$0xff]
  %v41 = vld [vmem:[%s1] sm:$0xff]
  %v42 = vld [vmem:[%s1 + $0x8] sm:$0xff]
  %v43 = vld [vmem:[%s1 + $0x10] sm:$0xff]
  %v44 = vld [vmem:[%s1 + $0x18] sm:$0xff]
  %v45 = vld [vmem:[%s1 + $0x20] sm:$0xff]
  %v46 = vld [vmem:[%s1 + $0x28] sm:$0xff]
  %v47 = vld [vmem:[%s1 + $0x30] sm:$0xff]
  %v48 = vld [vmem:[%s1 + $0x38] sm:$0xff]
  %v49 = vld [vmem:[%s1 + $0x40] sm:$0xff]
  %v50 = vld [vmem:[%s1 + $0x48] sm:$0xff]
  %v51 = vld [vmem:[%s1 + $0x50] sm:$0xff]
  %v52 = vld [vmem:[%s1 + $0x58] sm:$0xff]
  %v53 = vld [vmem:[%s1 + $0x60] sm:$0xff]
  %v54 = vld [vmem:[%s1 + $0x68] sm:$0xff]
  %v55 = vld [vmem:[%s1 + $0x70] sm:$0xff]
  %v56 = vld [vmem:[%s1 + $0x78] sm:$0xff]
  %v57 = vld [vmem:[%s1 + $0x80] sm:$0xff]
  %v58 = vld [vmem:[%s1 + $0x88] sm:$0xff]
  %v59 = vld [vmem:[%s1 + $0x90] sm:$0xff]
  %v60 = vld [vmem:[%s1 + $0x98] sm:$0xff]
  %v61 = vld [vmem:[%s1 + $0xa0] sm:$0xff]
  %v62 = vld [vmem:[%s1 + $0xa8] sm:$0xff]
  %v63 = vld [vmem:[%s1 + $0xb0] sm:$0xff]
  %v64 = vld [vmem:[%s1 + $0xb8] sm:$0xff]
  %v65 = vld [vmem:[%s1 + $0xc0] sm:$0xff]
  %v66 = vld [vmem:[%s1 + $0xc8] sm:$0xff]
  %v67 = vld [vmem:[%s1 + $0xd0] sm:$0xff]
  %v68 = vld [vmem:[%s1 + $0xd8] sm:$0xff]
  %v69 = vld [vmem:[%s1 + $0xe0] sm:$0xff]
  %v70 = vld [vmem:[%s1 + $0xe8] sm:$0xff]
  %v71 = vld [vmem:[%s1 + $0xf0] sm:$0xff]
  %v72 = vld [vmem:[%s1 + $0xf8] sm:$0xff]
  %v73 = vld [vmem:[%s1 + $0x100] sm:$0xff]
  %v74 = vld [vmem:[%s1 + $0x108] sm:$0xff]
  %v75 = vld [vmem:[%s1 + $0x110] sm:$0xff]
  %v76 = vld [vmem:[%s1 + $0x118] sm:$0xff]
  %v77 = vld [vmem:[%s1 + $0x120] sm:$0xff]
  %v78 = vld [vmem:[%s1 + $0x128] sm:$0xff]
  %v79 = vld [vmem:[%s1 + $0x130] sm:$0xff]
  %v80 = vld [vmem:[%s1 + $0x138] sm:$0xff]
  %v81 = vld [vmem:[%s1 + $0x140] sm:$0xff]
  %v82 = vld [vmem:[%s1 + $0x148] sm:$0xff]
  %v83 = vld [vmem:[%s1 + $0x150] sm:$0xff]
  %v84 = vld [vmem:[%s1 + $0x158] sm:$0xff]
  %v85 = vld [vmem:[%s1 + $0x160] sm:$0xff]
  %v86 = vld [vmem:[%s1 + $0x168] sm:$0xff]
  %v87 = vld [vmem:[%s1 + $0x170] sm:$0xff]
  %v88 = vld [vmem:[%s1 + $0x178] sm:$0xff]
  %v89 = vld [vmem:[%s1 + $0x180] sm:$0xff]
  %v90 = vld [vmem:[%s1 + $0x188] sm:$0xff]
  %v91 = vld [vmem:[%s1 + $0x190] sm:$0xff]
  %v92 = vld [vmem:[%s1 + $0x198] sm:$0xff]
  %v93 = vld [vmem:[%s1 + $0x1a0] sm:$0xff]
  %v94 = vld [vmem:[%s1 + $0x1a8] sm:$0xff]
  %v95 = vld [vmem:[%s1 + $0x1b0] sm:$0xff]
  %v96 = vld [vmem:[%s1 + $0x1b8] sm:$0xff]
  %v97 = vld [vmem:[%s1 + $0x1c0] sm:$0xff]
  %v98 = vld [vmem:[%s1 + $0x1c8] sm:$0xff]
  %v99 = vld [vmem:[%s1 + $0x1d0] sm:$0xff]
  %v100 = vld [vmem:[%s1 + $0x1d8] sm:$0xff]
  %v101 = vld [vmem:[%s1 + $0x1e0] sm:$0xff]
  %v102 = vld [vmem:[%s1 + $0x1e8] sm:$0xff]
  %v103 = vld [vmem:[%s1 + $0x1f0] sm:$0xff]
  %v104 = vld [vmem:[%s1 + $0x1f8] sm:$0xff]
  %v105 = vld [vmem:[%s1 + $0x200] sm:$0xff]
  %v106 = vld [vmem:[%s1 + $0x208] sm:$0xff]
  %v107 = vld [vmem:[%s1 + $0x210] sm:$0xff]
  %v108 = vld [vmem:[%s1 + $0x218] sm:$0xff]
  %v109 = vld [vmem:[%s1 + $0x220] sm:$0xff]
  %v110 = vld [vmem:[%s1 + $0x228] sm:$0xff]
  %v111 = vld [vmem:[%s1 + $0x230] sm:$0xff]
  %v112 = vld [vmem:[%s1 + $0x238] sm:$0xff]
  %v113 = vld [vmem:[%s1 + $0x240] sm:$0xff]
  %v114 = vld [vmem:[%s1 + $0x248] sm:$0xff]
  %v115 = vld [vmem:[%s1 + $0x250] sm:$0xff]
  %v116 = vld [vmem:[%s1 + $0x258] sm:$0xff]
  %v117 = vld [vmem:[%s1 + $0x260] sm:$0xff]
  %v118 = vld [vmem:[%s1 + $0x268] sm:$0xff]
  %v119 = vld [vmem:[%s1 + $0x270] sm:$0xff]
  %v120 = vld [vmem:[%s1 + $0x278] sm:$0xff]
  %v121 = vld [vmem:[%s1 + $0x280] sm:$0xff]
  %v122 = vld [vmem:[%s1 + $0x288] sm:$0xff]
  %v123 = vld [vmem:[%s1 + $0x290] sm:$0xff]
  %v124 = vld [vmem:[%s1 + $0x298] sm:$0xff]
  %v125 = vld [vmem:[%s1 + $0x2a0] sm:$0xff]
  %v126 = vld [vmem:[%s1 + $0x2a8] sm:$0xff]
  %v127 = vld [vmem:[%s1 + $0x2b0] sm:$0xff]
  %v128 = vld [vmem:[%s1 + $0x2b8] sm:$0xff]
  %v129 = vld [vmem:[%s1 + $0x2c0] sm:$0xff]
  %v130 = vld [vmem:[%s1 + $0x2c8] sm:$0xff]
  %v131 = vld [vmem:[%s1 + $0x2d0] sm:$0xff]
  %v132 = vld [vmem:[%s1 + $0x2d8] sm:$0xff]
  %v133 = vld [vmem:[%s1 + $0x2e0] sm:$0xff]
  %v134 = vld [vmem:[%s1 + $0x2e8] sm:$0xff]
  %v135 = vld [vmem:[%s1 + $0x2f0] sm:$0xff]
  %v136 = vld [vmem:[%s1 + $0x2f8] sm:$0xff]
  %v161 = vunpack.c.l.b16 %v17
  %v162 = vunpack.c.h.b16 %v17
  %v163 = vunpack.c.l.b16 %v18
  %v164 = vunpack.c.h.b16 %v18
  %v165 = vunpack.c.l.b16 %v19
  %v166 = vunpack.c.h.b16 %v19
  %v167 = vunpack.c.l.b16 %v20
  %v168 = vunpack.c.h.b16 %v20
  %v169 = vunpack.c.l.b16 %v21
  %v170 = vunpack.c.h.b16 %v21
  %v171 = vunpack.c.l.b16 %v22
  %v172 = vunpack.c.h.b16 %v22
  %v173 = vunpack.c.l.b16 %v23
  %v174 = vunpack.c.h.b16 %v23
  %v175 = vunpack.c.l.b16 %v24
  %v176 = vunpack.c.h.b16 %v24
  %v177 = vunpack.c.l.b16 %v25
  %v178 = vunpack.c.h.b16 %v25
  %v179 = vunpack.c.l.b16 %v26
  %v180 = vunpack.c.h.b16 %v26
  %v181 = vunpack.c.l.b16 %v27
  %v182 = vunpack.c.h.b16 %v27
  %v183 = vunpack.c.l.b16 %v28
  %v184 = vunpack.c.h.b16 %v28
  %v185 = vunpack.c.l.b16 %v29
  %v186 = vunpack.c.h.b16 %v29
  %v187 = vunpack.c.l.b16 %v30
  %v188 = vunpack.c.h.b16 %v30
  %v189 = vunpack.c.l.b16 %v31
  %v190 = vunpack.c.h.b16 %v31
  %v191 = vunpack.c.l.b16 %v32
  %v192 = vunpack.c.h.b16 %v32
  %v193 = vunpack.c.l.b16 %v33
  %v194 = vunpack.c.h.b16 %v33
  %v195 = vunpack.c.l.b16 %v34
  %v196 = vunpack.c.h.b16 %v34
  %v197 = vunpack.c.l.b16 %v35
  %v198 = vunpack.c.h.b16 %v35
  %v199 = vunpack.c.l.b16 %v36
  %v200 = vunpack.c.h.b16 %v36
  %v201 = vunpack.c.l.b16 %v37
  %v202 = vunpack.c.h.b16 %v37
  %v203 = vunpack.c.l.b16 %v38
  %v204 = vunpack.c.h.b16 %v38
  %v205 = vunpack.c.l.b16 %v39
  %v206 = vunpack.c.h.b16 %v39
  %v207 = vunpack.c.l.b16 %v40
  %v208 = vunpack.c.h.b16 %v40
  %v209 = vpack.c.b16 %v167, %v161
  %v210 = vpack.c.b16 %v168, %v162
  %v211 = vpack.c.b16 %v169, %v163
  %v212 = vpack.c.b16 %v170, %v164
  %v213 = vpack.c.b16 %v171, %v165
  %v214 = vpack.c.b16 %v172, %v166
  %v215 = vpack.c.b16 %v179, %v173
  %v216 = vpack.c.b16 %v180, %v174
  %v217 = vpack.c.b16 %v181, %v175
  %v218 = vpack.c.b16 %v182, %v176
  %v219 = vpack.c.b16 %v183, %v177
  %v220 = vpack.c.b16 %v184, %v178
  %v221 = vpack.c.b16 %v191, %v185
  %v222 = vpack.c.b16 %v192, %v186
  %v223 = vpack.c.b16 %v193, %v187
  %v224 = vpack.c.b16 %v194, %v188
  %v225 = vpack.c.b16 %v195, %v189
  %v226 = vpack.c.b16 %v196, %v190
  %v227 = vpack.c.b16 %v203, %v197
  %v228 = vpack.c.b16 %v204, %v198
  %v229 = vpack.c.b16 %v205, %v199
  %v230 = vpack.c.b16 %v206, %v200
  %v231 = vpack.c.b16 %v207, %v201
  %v232 = vpack.c.b16 %v208, %v202
  %v353 = vunpack.c.l.b16 %v41
  %v354 = vunpack.c.h.b16 %v41
  %v355 = vunpack.c.l.b16 %v42
  %v356 = vunpack.c.h.b16 %v42
  %v357 = vunpack.c.l.b16 %v43
  %v358 = vunpack.c.h.b16 %v43
  %v359 = vunpack.c.l.b16 %v44
  %v360 = vunpack.c.h.b16 %v44
  %v361 = vunpack.c.l.b16 %v45
  %v362 = vunpack.c.h.b16 %v45
  %v363 = vunpack.c.l.b16 %v46
  %v364 = vunpack.c.h.b16 %v46
  %v365 = vunpack.c.l.b16 %v47
  %v366 = vunpack.c.h.b16 %v47
  %v367 = vunpack.c.l.b16 %v48
  %v368 = vunpack.c.h.b16 %v48
  %v369 = vunpack.c.l.b16 %v49
  %v370 = vunpack.c.h.b16 %v49
  %v371 = vunpack.c.l.b16 %v50
  %v372 = vunpack.c.h.b16 %v50
  %v373 = vunpack.c.l.b16 %v51
  %v374 = vunpack.c.h.b16 %v51
  %v375 = vunpack.c.l.b16 %v52
  %v376 = vunpack.c.h.b16 %v52
  %v377 = vunpack.c.l.b16 %v53
  %v378 = vunpack.c.h.b16 %v53
  %v379 = vunpack.c.l.b16 %v54
  %v380 = vunpack.c.h.b16 %v54
  %v381 = vunpack.c.l.b16 %v55
  %v382 = vunpack.c.h.b16 %v55
  %v383 = vunpack.c.l.b16 %v56
  %v384 = vunpack.c.h.b16 %v56
  %v385 = vunpack.c.l.b16 %v57
  %v386 = vunpack.c.h.b16 %v57
  %v387 = vunpack.c.l.b16 %v58
  %v388 = vunpack.c.h.b16 %v58
  %v389 = vunpack.c.l.b16 %v59
  %v390 = vunpack.c.h.b16 %v59
  %v391 = vunpack.c.l.b16 %v60
  %v392 = vunpack.c.h.b16 %v60
  %v393 = vunpack.c.l.b16 %v61
  %v394 = vunpack.c.h.b16 %v61
  %v395 = vunpack.c.l.b16 %v62
  %v396 = vunpack.c.h.b16 %v62
  %v397 = vunpack.c.l.b16 %v63
  %v398 = vunpack.c.h.b16 %v63
  %v399 = vunpack.c.l.b16 %v64
  %v400 = vunpack.c.h.b16 %v64
  %v401 = vunpack.c.l.b16 %v65
  %v402 = vunpack.c.h.b16 %v65
  %v403 = vunpack.c.l.b16 %v66
  %v404 = vunpack.c.h.b16 %v66
  %v405 = vunpack.c.l.b16 %v67
  %v406 = vunpack.c.h.b16 %v67
  %v407 = vunpack.c.l.b16 %v68
  %v408 = vunpack.c.h.b16 %v68
  %v409 = vunpack.c.l.b16 %v69
  %v410 = vunpack.c.h.b16 %v69
  %v411 = vunpack.c.l.b16 %v70
  %v412 = vunpack.c.h.b16 %v70
  %v413 = vunpack.c.l.b16 %v71
  %v414 = vunpack.c.h.b16 %v71
  %v415 = vunpack.c.l.b16 %v72
  %v416 = vunpack.c.h.b16 %v72
  %v417 = vunpack.c.l.b16 %v73
  %v418 = vunpack.c.h.b16 %v73
  %v419 = vunpack.c.l.b16 %v74
  %v420 = vunpack.c.h.b16 %v74
  %v421 = vunpack.c.l.b16 %v75
  %v422 = vunpack.c.h.b16 %v75
  %v423 = vunpack.c.l.b16 %v76
  %v424 = vunpack.c.h.b16 %v76
  %v425 = vunpack.c.l.b16 %v77
  %v426 = vunpack.c.h.b16 %v77
  %v427 = vunpack.c.l.b16 %v78
  %v428 = vunpack.c.h.b16 %v78
  %v429 = vunpack.c.l.b16 %v79
  %v430 = vunpack.c.h.b16 %v79
  %v431 = vunpack.c.l.b16 %v80
  %v432 = vunpack.c.h.b16 %v80
  %v433 = vunpack.c.l.b16 %v81
  %v434 = vunpack.c.h.b16 %v81
  %v435 = vunpack.c.l.b16 %v82
  %v436 = vunpack.c.h.b16 %v82
  %v437 = vunpack.c.l.b16 %v83
  %v438 = vunpack.c.h.b16 %v83
  %v439 = vunpack.c.l.b16 %v84
  %v440 = vunpack.c.h.b16 %v84
  %v441 = vunpack.c.l.b16 %v85
  %v442 = vunpack.c.h.b16 %v85
  %v443 = vunpack.c.l.b16 %v86
  %v444 = vunpack.c.h.b16 %v86
  %v445 = vunpack.c.l.b16 %v87
  %v446 = vunpack.c.h.b16 %v87
  %v447 = vunpack.c.l.b16 %v88
  %v448 = vunpack.c.h.b16 %v88
  %v449 = vunpack.c.l.b16 %v89
  %v450 = vunpack.c.h.b16 %v89
  %v451 = vunpack.c.l.b16 %v90
  %v452 = vunpack.c.h.b16 %v90
  %v453 = vunpack.c.l.b16 %v91
  %v454 = vunpack.c.h.b16 %v91
  %v455 = vunpack.c.l.b16 %v92
  %v456 = vunpack.c.h.b16 %v92
  %v457 = vunpack.c.l.b16 %v93
  %v458 = vunpack.c.h.b16 %v93
  %v459 = vunpack.c.l.b16 %v94
  %v460 = vunpack.c.h.b16 %v94
  %v461 = vunpack.c.l.b16 %v95
  %v462 = vunpack.c.h.b16 %v95
  %v463 = vunpack.c.l.b16 %v96
  %v464 = vunpack.c.h.b16 %v96
  %v465 = vunpack.c.l.b16 %v97
  %v466 = vunpack.c.h.b16 %v97
  %v467 = vunpack.c.l.b16 %v98
  %v468 = vunpack.c.h.b16 %v98
  %v469 = vunpack.c.l.b16 %v99
  %v470 = vunpack.c.h.b16 %v99
  %v471 = vunpack.c.l.b16 %v100
  %v472 = vunpack.c.h.b16 %v100
  %v473 = vunpack.c.l.b16 %v101
  %v474 = vunpack.c.h.b16 %v101
  %v475 = vunpack.c.l.b16 %v102
  %v476 = vunpack.c.h.b16 %v102
  %v477 = vunpack.c.l.b16 %v103
  %v478 = vunpack.c.h.b16 %v103
  %v479 = vunpack.c.l.b16 %v104
  %v480 = vunpack.c.h.b16 %v104
  %v481 = vunpack.c.l.b16 %v105
  %v482 = vunpack.c.h.b16 %v105
  %v483 = vunpack.c.l.b16 %v106
  %v484 = vunpack.c.h.b16 %v106
  %v485 = vunpack.c.l.b16 %v107
  %v486 = vunpack.c.h.b16 %v107
  %v487 = vunpack.c.l.b16 %v108
  %v488 = vunpack.c.h.b16 %v108
  %v489 = vunpack.c.l.b16 %v109
  %v490 = vunpack.c.h.b16 %v109
  %v491 = vunpack.c.l.b16 %v110
  %v492 = vunpack.c.h.b16 %v110
  %v493 = vunpack.c.l.b16 %v111
  %v494 = vunpack.c.h.b16 %v111
  %v495 = vunpack.c.l.b16 %v112
  %v496 = vunpack.c.h.b16 %v112
  %v497 = vunpack.c.l.b16 %v113
  %v498 = vunpack.c.h.b16 %v113
  %v499 = vunpack.c.l.b16 %v114
  %v500 = vunpack.c.h.b16 %v114
  %v501 = vunpack.c.l.b16 %v115
  %v502 = vunpack.c.h.b16 %v115
  %v503 = vunpack.c.l.b16 %v116
  %v504 = vunpack.c.h.b16 %v116
  %v505 = vunpack.c.l.b16 %v117
  %v506 = vunpack.c.h.b16 %v117
  %v507 = vunpack.c.l.b16 %v118
  %v508 = vunpack.c.h.b16 %v118
  %v509 = vunpack.c.l.b16 %v119
  %v510 = vunpack.c.h.b16 %v119
  %v511 = vunpack.c.l.b16 %v120
  %v512 = vunpack.c.h.b16 %v120
  %v513 = vunpack.c.l.b16 %v121
  %v514 = vunpack.c.h.b16 %v121
  %v515 = vunpack.c.l.b16 %v122
  %v516 = vunpack.c.h.b16 %v122
  %v517 = vunpack.c.l.b16 %v123
  %v518 = vunpack.c.h.b16 %v123
  %v519 = vunpack.c.l.b16 %v124
  %v520 = vunpack.c.h.b16 %v124
  %v521 = vunpack.c.l.b16 %v125
  %v522 = vunpack.c.h.b16 %v125
  %v523 = vunpack.c.l.b16 %v126
  %v524 = vunpack.c.h.b16 %v126
  %v525 = vunpack.c.l.b16 %v127
  %v526 = vunpack.c.h.b16 %v127
  %v527 = vunpack.c.l.b16 %v128
  %v528 = vunpack.c.h.b16 %v128
  %v529 = vunpack.c.l.b16 %v129
  %v530 = vunpack.c.h.b16 %v129
  %v531 = vunpack.c.l.b16 %v130
  %v532 = vunpack.c.h.b16 %v130
  %v533 = vunpack.c.l.b16 %v131
  %v534 = vunpack.c.h.b16 %v131
  %v535 = vunpack.c.l.b16 %v132
  %v536 = vunpack.c.h.b16 %v132
  %v537 = vunpack.c.l.b16 %v133
  %v538 = vunpack.c.h.b16 %v133
  %v539 = vunpack.c.l.b16 %v134
  %v540 = vunpack.c.h.b16 %v134
  %v541 = vunpack.c.l.b16 %v135
  %v542 = vunpack.c.h.b16 %v135
  %v543 = vunpack.c.l.b16 %v136
  %v544 = vunpack.c.h.b16 %v136
  %v545 = vpack.c.b16 %v355, %v353
  %v546 = vpack.c.b16 %v356, %v354
  %v547 = vpack.c.b16 %v359, %v357
  %v548 = vpack.c.b16 %v360, %v358
  %v549 = vpack.c.b16 %v363, %v361
  %v550 = vpack.c.b16 %v364, %v362
  %v551 = vpack.c.b16 %v367, %v365
  %v552 = vpack.c.b16 %v368, %v366
  %v553 = vpack.c.b16 %v371, %v369
  %v554 = vpack.c.b16 %v372, %v370
  %v555 = vpack.c.b16 %v375, %v373
  %v556 = vpack.c.b16 %v376, %v374
  %v557 = vpack.c.b16 %v379, %v377
  %v558 = vpack.c.b16 %v380, %v378
  %v559 = vpack.c.b16 %v383, %v381
  %v560 = vpack.c.b16 %v384, %v382
  %v561 = vpack.c.b16 %v387, %v385
  %v562 = vpack.c.b16 %v388, %v386
  %v563 = vpack.c.b16 %v391, %v389
  %v564 = vpack.c.b16 %v392, %v390
  %v565 = vpack.c.b16 %v395, %v393
  %v566 = vpack.c.b16 %v396, %v394
  %v567 = vpack.c.b16 %v399, %v397
  %v568 = vpack.c.b16 %v400, %v398
  %v569 = vpack.c.b16 %v403, %v401
  %v570 = vpack.c.b16 %v404, %v402
  %v571 = vpack.c.b16 %v407, %v405
  %v572 = vpack.c.b16 %v408, %v406
  %v573 = vpack.c.b16 %v411, %v409
  %v574 = vpack.c.b16 %v412, %v410
  %v575 = vpack.c.b16 %v415, %v413
  %v576 = vpack.c.b16 %v416, %v414
  %v577 = vpack.c.b16 %v419, %v417
  %v578 = vpack.c.b16 %v420, %v418
  %v579 = vpack.c.b16 %v423, %v421
  %v580 = vpack.c.b16 %v424, %v422
  %v581 = vpack.c.b16 %v427, %v425
  %v582 = vpack.c.b16 %v428, %v426
  %v583 = vpack.c.b16 %v431, %v429
  %v584 = vpack.c.b16 %v432, %v430
  %v585 = vpack.c.b16 %v435, %v433
  %v586 = vpack.c.b16 %v436, %v434
  %v587 = vpack.c.b16 %v439, %v437
  %v588 = vpack.c.b16 %v440, %v438
  %v589 = vpack.c.b16 %v443, %v441
  %v590 = vpack.c.b16 %v444, %v442
  %v591 = vpack.c.b16 %v447, %v445
  %v592 = vpack.c.b16 %v448, %v446
  %v593 = vpack.c.b16 %v451, %v449
  %v594 = vpack.c.b16 %v452, %v450
  %v595 = vpack.c.b16 %v455, %v453
  %v596 = vpack.c.b16 %v456, %v454
  %v597 = vpack.c.b16 %v459, %v457
  %v598 = vpack.c.b16 %v460, %v458
  %v599 = vpack.c.b16 %v463, %v461
  %v600 = vpack.c.b16 %v464, %v462
  %v601 = vpack.c.b16 %v467, %v465
  %v602 = vpack.c.b16 %v468, %v466
  %v603 = vpack.c.b16 %v471, %v469
  %v604 = vpack.c.b16 %v472, %v470
  %v605 = vpack.c.b16 %v475, %v473
  %v606 = vpack.c.b16 %v476, %v474
  %v607 = vpack.c.b16 %v479, %v477
  %v608 = vpack.c.b16 %v480, %v478
  %v609 = vpack.c.b16 %v483, %v481
  %v610 = vpack.c.b16 %v484, %v482
  %v611 = vpack.c.b16 %v487, %v485
  %v612 = vpack.c.b16 %v488, %v486
  %v613 = vpack.c.b16 %v491, %v489
  %v614 = vpack.c.b16 %v492, %v490
  %v615 = vpack.c.b16 %v495, %v493
  %v616 = vpack.c.b16 %v496, %v494
  %v617 = vpack.c.b16 %v499, %v497
  %v618 = vpack.c.b16 %v500, %v498
  %v619 = vpack.c.b16 %v503, %v501
  %v620 = vpack.c.b16 %v504, %v502
  %v621 = vpack.c.b16 %v507, %v505
  %v622 = vpack.c.b16 %v508, %v506
  %v623 = vpack.c.b16 %v511, %v509
  %v624 = vpack.c.b16 %v512, %v510
  %v625 = vpack.c.b16 %v515, %v513
  %v626 = vpack.c.b16 %v516, %v514
  %v627 = vpack.c.b16 %v519, %v517
  %v628 = vpack.c.b16 %v520, %v518
  %v629 = vpack.c.b16 %v523, %v521
  %v630 = vpack.c.b16 %v524, %v522
  %v631 = vpack.c.b16 %v527, %v525
  %v632 = vpack.c.b16 %v528, %v526
  %v633 = vpack.c.b16 %v531, %v529
  %v634 = vpack.c.b16 %v532, %v530
  %v635 = vpack.c.b16 %v535, %v533
  %v636 = vpack.c.b16 %v536, %v534
  %v637 = vpack.c.b16 %v539, %v537
  %v638 = vpack.c.b16 %v540, %v538
  %v639 = vpack.c.b16 %v543, %v541
  %v640 = vpack.c.b16 %v544, %v542
  %737 = vmatprep.subr.bf16.mxu0 %v560
  %738 = vmatpush1.bf16.msra.mxu0 %v559
  %739 = vmatprep.subr.bf16.mxu0 %v558
  %740 = vmatpush1.bf16.msra.mxu0 %v557
  %741 = vmatprep.subr.bf16.mxu0 %v556
  %742 = vmatpush1.bf16.msra.mxu0 %v555
  %743 = vmatprep.subr.bf16.mxu0 %v554
  %744 = vmatpush1.bf16.msra.mxu0 %v553
  %745 = vmatprep.subr.bf16.mxu0 %v552
  %746 = vmatpush1.bf16.msra.mxu0 %v551
  %747 = vmatprep.subr.bf16.mxu0 %v550
  %748 = vmatpush1.bf16.msra.mxu0 %v549
  %749 = vmatprep.subr.bf16.mxu0 %v548
  %750 = vmatpush1.bf16.msra.mxu0 %v547
  %751 = vmatprep.subr.bf16.mxu0 %v546
  %752 = vmatpush1.bf16.msra.mxu0 %v545
  %753 = vmatprep.subr.bf16.mxu0 %v576
  %754 = vmatpush2.bf16.msra.mxu0 %v575
  %755 = vmatprep.subr.bf16.mxu0 %v574
  %756 = vmatpush2.bf16.msra.mxu0 %v573
  %757 = vmatprep.subr.bf16.mxu0 %v572
  %758 = vmatpush2.bf16.msra.mxu0 %v571
  %759 = vmatprep.subr.bf16.mxu0 %v570
  %760 = vmatpush2.bf16.msra.mxu0 %v569
  %761 = vmatprep.subr.bf16.mxu0 %v568
  %762 = vmatpush2.bf16.msra.mxu0 %v567
  %763 = vmatprep.subr.bf16.mxu0 %v566
  %764 = vmatpush2.bf16.msra.mxu0 %v565
  %765 = vmatprep.subr.bf16.mxu0 %v564
  %766 = vmatpush2.bf16.msra.mxu0 %v563
  %767 = vmatprep.subr.bf16.mxu0 %v562
  %768 = vmatpush2.bf16.msra.mxu0 %v561
  %769 = vmatprep.mubr.bf16.mxu0 %v210
  %770 = vmatmul.mubr.bf16.gmra.mxu0 %v209
  %v771 = vpop.f32.mrf.mxu0
  %v772 = vadd.f32 0.0, %v771
  %v773 = vpop.f32.mrf.mxu0
  %v774 = vadd.f32 0.0, %v773
  %v775 = vpop.f32.mrf.mxu0
  %v776 = vadd.f32 0.0, %v775
  %v777 = vpop.f32.mrf.mxu0
  %v778 = vadd.f32 0.0, %v777
  %779 = vmatprep.mubr.bf16.mxu0 %v216
  %780 = vmatmul.mubr.bf16.gmra.mxu0 %v215
  %v781 = vpop.f32.mrf.mxu0
  %v782 = vadd.f32 0.0, %v781
  %v783 = vpop.f32.mrf.mxu0
  %v784 = vadd.f32 0.0, %v783
  %v785 = vpop.f32.mrf.mxu0
  %v786 = vadd.f32 0.0, %v785
  %v787 = vpop.f32.mrf.mxu0
  %v788 = vadd.f32 0.0, %v787
  %789 = vmatprep.mubr.bf16.mxu0 %v222
  %790 = vmatmul.mubr.bf16.gmra.mxu0 %v221
  %v791 = vpop.f32.mrf.mxu0
  %v792 = vadd.f32 0.0, %v791
  %v793 = vpop.f32.mrf.mxu0
  %v794 = vadd.f32 0.0, %v793
  %v795 = vpop.f32.mrf.mxu0
  %v796 = vadd.f32 0.0, %v795
  %v797 = vpop.f32.mrf.mxu0
  %v798 = vadd.f32 0.0, %v797
  %799 = vmatprep.mubr.bf16.mxu0 %v228
  %800 = vmatmul.mubr.bf16.gmra.mxu0 %v227
  %v801 = vpop.f32.mrf.mxu0
  %v802 = vadd.f32 0.0, %v801
  %v803 = vpop.f32.mrf.mxu0
  %v804 = vadd.f32 0.0, %v803
  %v805 = vpop.f32.mrf.mxu0
  %v806 = vadd.f32 0.0, %v805
  %v807 = vpop.f32.mrf.mxu0
  %v808 = vadd.f32 0.0, %v807
  %809 = vdwg.mxu0
  %810 = vmatprep.subr.bf16.mxu0 %v592
  %811 = vmatpush1.bf16.msra.mxu0 %v591
  %812 = vmatprep.subr.bf16.mxu0 %v590
  %813 = vmatpush1.bf16.msra.mxu0 %v589
  %814 = vmatprep.subr.bf16.mxu0 %v588
  %815 = vmatpush1.bf16.msra.mxu0 %v587
  %816 = vmatprep.subr.bf16.mxu0 %v586
  %817 = vmatpush1.bf16.msra.mxu0 %v585
  %818 = vmatprep.subr.bf16.mxu0 %v584
  %819 = vmatpush1.bf16.msra.mxu0 %v583
  %820 = vmatprep.subr.bf16.mxu0 %v582
  %821 = vmatpush1.bf16.msra.mxu0 %v581
  %822 = vmatprep.subr.bf16.mxu0 %v580
  %823 = vmatpush1.bf16.msra.mxu0 %v579
  %824 = vmatprep.subr.bf16.mxu0 %v578
  %825 = vmatpush1.bf16.msra.mxu0 %v577
  %826 = vmatprep.subr.bf16.mxu0 %v608
  %827 = vmatpush2.bf16.msra.mxu0 %v607
  %828 = vmatprep.subr.bf16.mxu0 %v606
  %829 = vmatpush2.bf16.msra.mxu0 %v605
  %830 = vmatprep.subr.bf16.mxu0 %v604
  %831 = vmatpush2.bf16.msra.mxu0 %v603
  %832 = vmatprep.subr.bf16.mxu0 %v602
  %833 = vmatpush2.bf16.msra.mxu0 %v601
  %834 = vmatprep.subr.bf16.mxu0 %v600
  %835 = vmatpush2.bf16.msra.mxu0 %v599
  %836 = vmatprep.subr.bf16.mxu0 %v598
  %837 = vmatpush2.bf16.msra.mxu0 %v597
  %838 = vmatprep.subr.bf16.mxu0 %v596
  %839 = vmatpush2.bf16.msra.mxu0 %v595
  %840 = vmatprep.subr.bf16.mxu0 %v594
  %841 = vmatpush2.bf16.msra.mxu0 %v593
  %842 = vmatprep.mubr.bf16.mxu0 %v212
  %843 = vmatmul.mubr.bf16.gmra.mxu0 %v211
  %v844 = vpop.f32.mrf.mxu0
  %v845 = vadd.f32 %v772, %v844
  %v846 = vpop.f32.mrf.mxu0
  %v847 = vadd.f32 %v774, %v846
  %v848 = vpop.f32.mrf.mxu0
  %v849 = vadd.f32 %v776, %v848
  %v850 = vpop.f32.mrf.mxu0
  %v851 = vadd.f32 %v778, %v850
  %852 = vmatprep.mubr.bf16.mxu0 %v218
  %853 = vmatmul.mubr.bf16.gmra.mxu0 %v217
  %v854 = vpop.f32.mrf.mxu0
  %v855 = vadd.f32 %v782, %v854
  %v856 = vpop.f32.mrf.mxu0
  %v857 = vadd.f32 %v784, %v856
  %v858 = vpop.f32.mrf.mxu0
  %v859 = vadd.f32 %v786, %v858
  %v860 = vpop.f32.mrf.mxu0
  %v861 = vadd.f32 %v788, %v860
  %862 = vmatprep.mubr.bf16.mxu0 %v224
  %863 = vmatmul.mubr.bf16.gmra.mxu0 %v223
  %v864 = vpop.f32.mrf.mxu0
  %v865 = vadd.f32 %v792, %v864
  %v866 = vpop.f32.mrf.mxu0
  %v867 = vadd.f32 %v794, %v866
  %v868 = vpop.f32.mrf.mxu0
  %v869 = vadd.f32 %v796, %v868
  %v870 = vpop.f32.mrf.mxu0
  %v871 = vadd.f32 %v798, %v870
  %872 = vmatprep.mubr.bf16.mxu0 %v230
  %873 = vmatmul.mubr.bf16.gmra.mxu0 %v229
  %v874 = vpop.f32.mrf.mxu0
  %v875 = vadd.f32 %v802, %v874
  %v876 = vpop.f32.mrf.mxu0
  %v877 = vadd.f32 %v804, %v876
  %v878 = vpop.f32.mrf.mxu0
  %v879 = vadd.f32 %v806, %v878
  %v880 = vpop.f32.mrf.mxu0
  %v881 = vadd.f32 %v808, %v880
  %882 = vdwg.mxu0
  %883 = vmatprep.subr.bf16.mxu0 %v624
  %884 = vmatpush1.bf16.msra.mxu0 %v623
  %885 = vmatprep.subr.bf16.mxu0 %v622
  %886 = vmatpush1.bf16.msra.mxu0 %v621
  %887 = vmatprep.subr.bf16.mxu0 %v620
  %888 = vmatpush1.bf16.msra.mxu0 %v619
  %889 = vmatprep.subr.bf16.mxu0 %v618
  %890 = vmatpush1.bf16.msra.mxu0 %v617
  %891 = vmatprep.subr.bf16.mxu0 %v616
  %892 = vmatpush1.bf16.msra.mxu0 %v615
  %893 = vmatprep.subr.bf16.mxu0 %v614
  %894 = vmatpush1.bf16.msra.mxu0 %v613
  %895 = vmatprep.subr.bf16.mxu0 %v612
  %896 = vmatpush1.bf16.msra.mxu0 %v611
  %897 = vmatprep.subr.bf16.mxu0 %v610
  %898 = vmatpush1.bf16.msra.mxu0 %v609
  %899 = vmatprep.subr.bf16.mxu0 %v640
  %900 = vmatpush2.bf16.msra.mxu0 %v639
  %901 = vmatprep.subr.bf16.mxu0 %v638
  %902 = vmatpush2.bf16.msra.mxu0 %v637
  %903 = vmatprep.subr.bf16.mxu0 %v636
  %904 = vmatpush2.bf16.msra.mxu0 %v635
  %905 = vmatprep.subr.bf16.mxu0 %v634
  %906 = vmatpush2.bf16.msra.mxu0 %v633
  %907 = vmatprep.subr.bf16.mxu0 %v632
  %908 = vmatpush2.bf16.msra.mxu0 %v631
  %909 = vmatprep.subr.bf16.mxu0 %v630
  %910 = vmatpush2.bf16.msra.mxu0 %v629
  %911 = vmatprep.subr.bf16.mxu0 %v628
  %912 = vmatpush2.bf16.msra.mxu0 %v627
  %913 = vmatprep.subr.bf16.mxu0 %v626
  %914 = vmatpush2.bf16.msra.mxu0 %v625
  %915 = vmatprep.mubr.bf16.mxu0 %v214
  %916 = vmatmul.mubr.bf16.gmra.mxu0 %v213
  %v917 = vpop.f32.mrf.mxu0
  %v918 = vadd.f32 %v845, %v917
  %v919 = vpop.f32.mrf.mxu0
  %v920 = vadd.f32 %v847, %v919
  %v921 = vpop.f32.mrf.mxu0
  %v922 = vadd.f32 %v849, %v921
  %v923 = vpop.f32.mrf.mxu0
  %v924 = vadd.f32 %v851, %v923
  %925 = vmatprep.mubr.bf16.mxu0 %v220
  %926 = vmatmul.mubr.bf16.gmra.mxu0 %v219
  %v927 = vpop.f32.mrf.mxu0
  %v928 = vadd.f32 %v855, %v927
  %v929 = vpop.f32.mrf.mxu0
  %v930 = vadd.f32 %v857, %v929
  %v931 = vpop.f32.mrf.mxu0
  %v932 = vadd.f32 %v859, %v931
  %v933 = vpop.f32.mrf.mxu0
  %v934 = vadd.f32 %v861, %v933
  %935 = vmatprep.mubr.bf16.mxu0 %v226
  %936 = vmatmul.mubr.bf16.gmra.mxu0 %v225
  %v937 = vpop.f32.mrf.mxu0
  %v938 = vadd.f32 %v865, %v937
  %v939 = vpop.f32.mrf.mxu0
  %v940 = vadd.f32 %v867, %v939
  %v941 = vpop.f32.mrf.mxu0
  %v942 = vadd.f32 %v869, %v941
  %v943 = vpop.f32.mrf.mxu0
  %v944 = vadd.f32 %v871, %v943
  %945 = vmatprep.mubr.bf16.mxu0 %v232
  %946 = vmatmul.mubr.bf16.gmra.mxu0 %v231
  %v947 = vpop.f32.mrf.mxu0
  %v948 = vadd.f32 %v875, %v947
  %v949 = vpop.f32.mrf.mxu0
  %v950 = vadd.f32 %v877, %v949
  %v951 = vpop.f32.mrf.mxu0
  %v952 = vadd.f32 %v879, %v951
  %v953 = vpop.f32.mrf.mxu0
  %v954 = vadd.f32 %v881, %v953
  %955 = vdwg.mxu0
  %v956 = vld [vmem:[%s2] sm:$0x3]
  %v958 = vlaneseq
  %v959 = vshrl.u32 %v958, 7
  %v960 = vsub.s32 0, %v959
  %v961 = vrot.slane %v956, %v960
  %v962 = vlaneseq
  %v963 = vshrl.u32 %v962, 7
  %v964 = vsub.s32 1, %v963
  %v965 = vrot.slane %v956, %v964
  %v968 = vmul.f32 %v918, %v961
  %v969 = vmul.f32 %v920, %v965
  %v970 = vmul.f32 %v922, %v961
  %v971 = vmul.f32 %v924, %v965
  %v972 = vmul.f32 %v928, %v961
  %v973 = vmul.f32 %v930, %v965
  %v974 = vmul.f32 %v932, %v961
  %v975 = vmul.f32 %v934, %v965
  %v976 = vmul.f32 %v938, %v961
  %v977 = vmul.f32 %v940, %v965
  %v978 = vmul.f32 %v942, %v961
  %v979 = vmul.f32 %v944, %v965
  %v980 = vmul.f32 %v948, %v961
  %v981 = vmul.f32 %v950, %v965
  %v982 = vmul.f32 %v952, %v961
  %v983 = vmul.f32 %v954, %v965
  %v984 = vld [vmem:[%s3] sm:$0x3]
  %v986 = vlaneseq
  %v987 = vshrl.u32 %v986, 7
  %v988 = vsub.s32 0, %v987
  %v989 = vrot.slane %v984, %v988
  %v990 = vlaneseq
  %v991 = vshrl.u32 %v990, 7
  %v992 = vsub.s32 1, %v991
  %v993 = vrot.slane %v984, %v992
  %v996 = vadd.f32 %v968, %v989
  %v997 = vadd.f32 %v969, %v993
  %v998 = vadd.f32 %v970, %v989
  %v999 = vadd.f32 %v971, %v993
  %v1000 = vadd.f32 %v972, %v989
  %v1001 = vadd.f32 %v973, %v993
  %v1002 = vadd.f32 %v974, %v989
  %v1003 = vadd.f32 %v975, %v993
  %v1004 = vadd.f32 %v976, %v989
  %v1005 = vadd.f32 %v977, %v993
  %v1006 = vadd.f32 %v978, %v989
  %v1007 = vadd.f32 %v979, %v993
  %v1008 = vadd.f32 %v980, %v989
  %v1009 = vadd.f32 %v981, %v993
  %v1010 = vadd.f32 %v982, %v989
  %v1011 = vadd.f32 %v983, %v993
  %v1012 = vmax.f32 %v996, 0.0
  %v1013 = vmax.f32 %v997, 0.0
  %v1014 = vmax.f32 %v998, 0.0
  %v1015 = vmax.f32 %v999, 0.0
  %v1016 = vmax.f32 %v1000, 0.0
  %v1017 = vmax.f32 %v1001, 0.0
  %v1018 = vmax.f32 %v1002, 0.0
  %v1019 = vmax.f32 %v1003, 0.0
  %v1020 = vmax.f32 %v1004, 0.0
  %v1021 = vmax.f32 %v1005, 0.0
  %v1022 = vmax.f32 %v1006, 0.0
  %v1023 = vmax.f32 %v1007, 0.0
  %v1024 = vmax.f32 %v1008, 0.0
  %v1025 = vmax.f32 %v1009, 0.0
  %v1026 = vmax.f32 %v1010, 0.0
  %v1027 = vmax.f32 %v1011, 0.0
  %v1028 = vpack.c.bf16 %v1014, %v1012
  %v1029 = vpack.c.bf16 %v1015, %v1013
  %v1030 = vpack.c.bf16 %v1018, %v1016
  %v1031 = vpack.c.bf16 %v1019, %v1017
  %v1032 = vpack.c.bf16 %v1022, %v1020
  %v1033 = vpack.c.bf16 %v1023, %v1021
  %v1034 = vpack.c.bf16 %v1026, %v1024
  %v1035 = vpack.c.bf16 %v1027, %v1025
  %v1044 = vunpack.c.l.b16 %v1028
  %v1045 = vunpack.c.l.b16 %v1029
  %v1046 = vunpack.c.h.b16 %v1028
  %v1047 = vunpack.c.h.b16 %v1029
  %v1048 = vunpack.c.l.b16 %v1030
  %v1049 = vunpack.c.l.b16 %v1031
  %v1050 = vunpack.c.h.b16 %v1030
  %v1051 = vunpack.c.h.b16 %v1031
  %v1052 = vunpack.c.l.b16 %v1032
  %v1053 = vunpack.c.l.b16 %v1033
  %v1054 = vunpack.c.h.b16 %v1032
  %v1055 = vunpack.c.h.b16 %v1033
  %v1056 = vunpack.c.l.b16 %v1034
  %v1057 = vunpack.c.l.b16 %v1035
  %v1058 = vunpack.c.h.b16 %v1034
  %v1059 = vunpack.c.h.b16 %v1035
  %v1060 = vpack.c.b16 %v1045, %v1044
  %v1061 = vpack.c.b16 %v1047, %v1046
  %v1062 = vpack.c.b16 %v1049, %v1048
  %v1063 = vpack.c.b16 %v1051, %v1050
  %v1064 = vpack.c.b16 %v1053, %v1052
  %v1065 = vpack.c.b16 %v1055, %v1054
  %v1066 = vpack.c.b16 %v1057, %v1056
  %v1067 = vpack.c.b16 %v1059, %v1058
  %1076 = vst [vmem:[%s4] sm:$0xff] %v1060
  %1077 = vst [vmem:[%s4 + $0x8] sm:$0xff] %v1061
  %1078 = vst [vmem:[%s4 + $0x10] sm:$0xff] %v1062
  %1079 = vst [vmem:[%s4 + $0x18] sm:$0xff] %v1063
  %1080 = vst [vmem:[%s4 + $0x20] sm:$0xff] %v1064
  %1081 = vst [vmem:[%s4 + $0x28] sm:$0xff] %v1065
  %1082 = vst [vmem:[%s4 + $0x30] sm:$0xff] %v1066
  %1083 = vst [vmem:[%s4 + $0x38] sm:$0xff] %v1067
  // Predicated region
  $region18: #{hrnet_forward.25} parent=0 // pred_check
    _
  $region19: #{hrnet_forward.25} parent=0 // pred_check_branch
    %1085 = sbr.rel (0) target = $region21
  $region20: #{hrnet_forward.25} parent=0 // pred_region
    _
  $region21: #{hrnet_forward.25} parent=0 // pred_fallthru
    _
  // Predicated region
  $region22: #{hrnet_forward.25} parent=0 // pred_check
    _
  $region23: #{hrnet_forward.25} parent=0 // pred_check_branch
    %1087 = sbr.rel (0) target = $region25
  $region24: #{hrnet_forward.25} parent=0 // pred_region
    _
  $region25: #{hrnet_forward.25} parent=0 // pred_fallthru
    _

// kernel: hrnet_forward.26
$region0: #{hrnet_forward.26}
  #allocation0 [shape = 'u32[]', space=smem, size = 0x4, offset = 0x4, fixed_abs, tag = 'smem constant byte address 0x4 - core index']
  #allocation1 [shape = 'u32[144,128]{1,0:T(1,128)}', space=vmem, size = 0x12000, scoped, tag = 'internal scratch']
  %s0 = inlined_call_operand.vmem [shape: bf16[16,1408], index: 0, kind: input, shape index: {}]
  %s1 = inlined_call_operand.vmem [shape: bf16[1408,256], index: 1, kind: input, shape index: {}]
  %s2 = inlined_call_operand.vmem [shape: f32[1,256], index: 2, kind: input, shape index: {}]
  %s3 = inlined_call_operand.vmem [shape: f32[1,256], index: 3, kind: input, shape index: {}]
  %s4 = inlined_call_operand.vmem [shape: bf16[16,256], index: 4, kind: output, shape index: {}]
  %s5 = sld [smem:[#allocation0]]
  $region26: #{hrnet_forward.26} parent=0
    _
  %s7 = ssub.s32 1, %s5
  %s8 = scalar_select 0, %s7, %s5
  // Predicated region
  $region2: #{hrnet_forward.26} parent=0 // pred_check
    _
  $region3: #{hrnet_forward.26} parent=0 // pred_check_branch
    %10 = sbr.rel (0) target = $region5
  $region4: #{hrnet_forward.26} parent=0 // pred_region
    _
  $region5: #{hrnet_forward.26} parent=0 // pred_fallthru
    _
  // Predicated region
  $region6: #{hrnet_forward.26} parent=0 // pred_check
    _
  $region7: #{hrnet_forward.26} parent=0 // pred_check_branch
    %12 = sbr.rel (0) target = $region9
  $region8: #{hrnet_forward.26} parent=0 // pred_region
    _
  $region9: #{hrnet_forward.26} parent=0 // pred_fallthru
    _
  // Predicated region
  $region10: #{hrnet_forward.26} parent=0 // pred_check
    _
  $region11: #{hrnet_forward.26} parent=0 // pred_check_branch
    %14 = sbr.rel (0) target = $region13
  $region12: #{hrnet_forward.26} parent=0 // pred_region
    _
  $region13: #{hrnet_forward.26} parent=0 // pred_fallthru
    _
  // Predicated region
  $region14: #{hrnet_forward.26} parent=0 // pred_check
    _
  $region15: #{hrnet_forward.26} parent=0 // pred_check_branch
    %16 = sbr.rel (0) target = $region17
  $region16: #{hrnet_forward.26} parent=0 // pred_region
    _
  $region17: #{hrnet_forward.26} parent=0 // pred_fallthru
    _
  %v18 = vld [vmem:[%s0] sm:$0xff]
  %v19 = vld [vmem:[%s0 + $0x8] sm:$0xff]
  %v20 = vld [vmem:[%s0 + $0x10] sm:$0xff]
  %v21 = vld [vmem:[%s0 + $0x18] sm:$0xff]
  %v22 = vld [vmem:[%s0 + $0x20] sm:$0xff]
  %v23 = vld [vmem:[%s0 + $0x28] sm:$0xf]
  %v24 = vld [vmem:[%s0 + $0x2c] sm:$0xff]
  %v25 = vld [vmem:[%s0 + $0x34] sm:$0xff]
  %v26 = vld [vmem:[%s0 + $0x3c] sm:$0xff]
  %v27 = vld [vmem:[%s0 + $0x44] sm:$0xff]
  %v28 = vld [vmem:[%s0 + $0x4c] sm:$0xff]
  %v29 = vld [vmem:[%s0 + $0x54] sm:$0xf]
  %v30 = vld [vmem:[%s1] sm:$0xff]
  %v31 = vld [vmem:[%s1 + $0x8] sm:$0xff]
  %v32 = vld [vmem:[%s1 + $0x10] sm:$0xff]
  %v33 = vld [vmem:[%s1 + $0x18] sm:$0xff]
  %v34 = vld [vmem:[%s1 + $0x20] sm:$0xff]
  %v35 = vld [vmem:[%s1 + $0x28] sm:$0xff]
  %v36 = vld [vmem:[%s1 + $0x30] sm:$0xff]
  %v37 = vld [vmem:[%s1 + $0x38] sm:$0xff]
  %v38 = vld [vmem:[%s1 + $0x40] sm:$0xff]
  %v39 = vld [vmem:[%s1 + $0x48] sm:$0xff]
  %v40 = vld [vmem:[%s1 + $0x50] sm:$0xff]
  %v41 = vld [vmem:[%s1 + $0x58] sm:$0xff]
  %v42 = vld [vmem:[%s1 + $0x60] sm:$0xff]
  %v43 = vld [vmem:[%s1 + $0x68] sm:$0xff]
  %v44 = vld [vmem:[%s1 + $0x70] sm:$0xff]
  %v45 = vld [vmem:[%s1 + $0x78] sm:$0xff]
  %v46 = vld [vmem:[%s1 + $0x80] sm:$0xff]
  %v47 = vld [vmem:[%s1 + $0x88] sm:$0xff]
  %v48 = vld [vmem:[%s1 + $0x90] sm:$0xff]
  %v49 = vld [vmem:[%s1 + $0x98] sm:$0xff]
  %v50 = vld [vmem:[%s1 + $0xa0] sm:$0xff]
  %v51 = vld [vmem:[%s1 + $0xa8] sm:$0xff]
  %v52 = vld [vmem:[%s1 + $0xb0] sm:$0xff]
  %v53 = vld [vmem:[%s1 + $0xb8] sm:$0xff]
  %v54 = vld [vmem:[%s1 + $0xc0] sm:$0xff]
  %v55 = vld [vmem:[%s1 + $0xc8] sm:$0xff]
  %v56 = vld [vmem:[%s1 + $0xd0] sm:$0xff]
  %v57 = vld [vmem:[%s1 + $0xd8] sm:$0xff]
  %v58 = vld [vmem:[%s1 + $0xe0] sm:$0xff]
  %v59 = vld [vmem:[%s1 + $0xe8] sm:$0xff]
  %v60 = vld [vmem:[%s1 + $0xf0] sm:$0xff]
  %v61 = vld [vmem:[%s1 + $0xf8] sm:$0xff]
  %v62 = vld [vmem:[%s1 + $0x100] sm:$0xff]
  %v63 = vld [vmem:[%s1 + $0x108] sm:$0xff]
  %v64 = vld [vmem:[%s1 + $0x110] sm:$0xff]
  %v65 = vld [vmem:[%s1 + $0x118] sm:$0xff]
  %v66 = vld [vmem:[%s1 + $0x120] sm:$0xff]
  %v67 = vld [vmem:[%s1 + $0x128] sm:$0xff]
  %v68 = vld [vmem:[%s1 + $0x130] sm:$0xff]
  %v69 = vld [vmem:[%s1 + $0x138] sm:$0xff]
  %v70 = vld [vmem:[%s1 + $0x140] sm:$0xff]
  %v71 = vld [vmem:[%s1 + $0x148] sm:$0xff]
  %v72 = vld [vmem:[%s1 + $0x150] sm:$0xff]
  %v73 = vld [vmem:[%s1 + $0x158] sm:$0xff]
  %v74 = vld [vmem:[%s1 + $0x160] sm:$0xff]
  %v75 = vld [vmem:[%s1 + $0x168] sm:$0xff]
  %v76 = vld [vmem:[%s1 + $0x170] sm:$0xff]
  %v77 = vld [vmem:[%s1 + $0x178] sm:$0xff]
  %v78 = vld [vmem:[%s1 + $0x180] sm:$0xff]
  %v79 = vld [vmem:[%s1 + $0x188] sm:$0xff]
  %v80 = vld [vmem:[%s1 + $0x190] sm:$0xff]
  %v81 = vld [vmem:[%s1 + $0x198] sm:$0xff]
  %v82 = vld [vmem:[%s1 + $0x1a0] sm:$0xff]
  %v83 = vld [vmem:[%s1 + $0x1a8] sm:$0xff]
  %v84 = vld [vmem:[%s1 + $0x1b0] sm:$0xff]
  %v85 = vld [vmem:[%s1 + $0x1b8] sm:$0xff]
  %v86 = vld [vmem:[%s1 + $0x1c0] sm:$0xff]
  %v87 = vld [vmem:[%s1 + $0x1c8] sm:$0xff]
  %v88 = vld [vmem:[%s1 + $0x1d0] sm:$0xff]
  %v89 = vld [vmem:[%s1 + $0x1d8] sm:$0xff]
  %v90 = vld [vmem:[%s1 + $0x1e0] sm:$0xff]
  %v91 = vld [vmem:[%s1 + $0x1e8] sm:$0xff]
  %v92 = vld [vmem:[%s1 + $0x1f0] sm:$0xff]
  %v93 = vld [vmem:[%s1 + $0x1f8] sm:$0xff]
  %v94 = vld [vmem:[%s1 + $0x200] sm:$0xff]
  %v95 = vld [vmem:[%s1 + $0x208] sm:$0xff]
  %v96 = vld [vmem:[%s1 + $0x210] sm:$0xff]
  %v97 = vld [vmem:[%s1 + $0x218] sm:$0xff]
  %v98 = vld [vmem:[%s1 + $0x220] sm:$0xff]
  %v99 = vld [vmem:[%s1 + $0x228] sm:$0xff]
  %v100 = vld [vmem:[%s1 + $0x230] sm:$0xff]
  %v101 = vld [vmem:[%s1 + $0x238] sm:$0xff]
  %v102 = vld [vmem:[%s1 + $0x240] sm:$0xff]
  %v103 = vld [vmem:[%s1 + $0x248] sm:$0xff]
  %v104 = vld [vmem:[%s1 + $0x250] sm:$0xff]
  %v105 = vld [vmem:[%s1 + $0x258] sm:$0xff]
  %v106 = vld [vmem:[%s1 + $0x260] sm:$0xff]
  %v107 = vld [vmem:[%s1 + $0x268] sm:$0xff]
  %v108 = vld [vmem:[%s1 + $0x270] sm:$0xff]
  %v109 = vld [vmem:[%s1 + $0x278] sm:$0xff]
  %v110 = vld [vmem:[%s1 + $0x280] sm:$0xff]
  %v111 = vld [vmem:[%s1 + $0x288] sm:$0xff]
  %v112 = vld [vmem:[%s1 + $0x290] sm:$0xff]
  %v113 = vld [vmem:[%s1 + $0x298] sm:$0xff]
  %v114 = vld [vmem:[%s1 + $0x2a0] sm:$0xff]
  %v115 = vld [vmem:[%s1 + $0x2a8] sm:$0xff]
  %v116 = vld [vmem:[%s1 + $0x2b0] sm:$0xff]
  %v117 = vld [vmem:[%s1 + $0x2b8] sm:$0xff]
  %v118 = vld [vmem:[%s1 + $0x2c0] sm:$0xff]
  %v119 = vld [vmem:[%s1 + $0x2c8] sm:$0xff]
  %v120 = vld [vmem:[%s1 + $0x2d0] sm:$0xff]
  %v121 = vld [vmem:[%s1 + $0x2d8] sm:$0xff]
  %v122 = vld [vmem:[%s1 + $0x2e0] sm:$0xff]
  %v123 = vld [vmem:[%s1 + $0x2e8] sm:$0xff]
  %v124 = vld [vmem:[%s1 + $0x2f0] sm:$0xff]
  %v125 = vld [vmem:[%s1 + $0x2f8] sm:$0xff]
  %v126 = vld [vmem:[%s1 + $0x300] sm:$0xff]
  %v127 = vld [vmem:[%s1 + $0x308] sm:$0xff]
  %v128 = vld [vmem:[%s1 + $0x310] sm:$0xff]
  %v129 = vld [vmem:[%s1 + $0x318] sm:$0xff]
  %v130 = vld [vmem:[%s1 + $0x320] sm:$0xff]
  %v131 = vld [vmem:[%s1 + $0x328] sm:$0xff]
  %v132 = vld [vmem:[%s1 + $0x330] sm:$0xff]
  %v133 = vld [vmem:[%s1 + $0x338] sm:$0xff]
  %v134 = vld [vmem:[%s1 + $0x340] sm:$0xff]
  %v135 = vld [vmem:[%s1 + $0x348] sm:$0xff]
  %v136 = vld [vmem:[%s1 + $0x350] sm:$0xff]
  %v137 = vld [vmem:[%s1 + $0x358] sm:$0xff]
  %v138 = vld [vmem:[%s1 + $0x360] sm:$0xff]
  %v139 = vld [vmem:[%s1 + $0x368] sm:$0xff]
  %v140 = vld [vmem:[%s1 + $0x370] sm:$0xff]
  %v141 = vld [vmem:[%s1 + $0x378] sm:$0xff]
  %v142 = vld [vmem:[%s1 + $0x380] sm:$0xff]
  %v143 = vld [vmem:[%s1 + $0x388] sm:$0xff]
  %v144 = vld [vmem:[%s1 + $0x390] sm:$0xff]
  %v145 = vld [vmem:[%s1 + $0x398] sm:$0xff]
  %v146 = vld [vmem:[%s1 + $0x3a0] sm:$0xff]
  %v147 = vld [vmem:[%s1 + $0x3a8] sm:$0xff]
  %v148 = vld [vmem:[%s1 + $0x3b0] sm:$0xff]
  %v149 = vld [vmem:[%s1 + $0x3b8] sm:$0xff]
  %v150 = vld [vmem:[%s1 + $0x3c0] sm:$0xff]
  %v151 = vld [vmem:[%s1 + $0x3c8] sm:$0xff]
  %v152 = vld [vmem:[%s1 + $0x3d0] sm:$0xff]
  %v153 = vld [vmem:[%s1 + $0x3d8] sm:$0xff]
  %v154 = vld [vmem:[%s1 + $0x3e0] sm:$0xff]
  %v155 = vld [vmem:[%s1 + $0x3e8] sm:$0xff]
  %v156 = vld [vmem:[%s1 + $0x3f0] sm:$0xff]
  %v157 = vld [vmem:[%s1 + $0x3f8] sm:$0xff]
  %v158 = vld [vmem:[%s1 + $0x400] sm:$0xff]
  %v159 = vld [vmem:[%s1 + $0x408] sm:$0xff]
  %v160 = vld [vmem:[%s1 + $0x410] sm:$0xff]
  %v161 = vld [vmem:[%s1 + $0x418] sm:$0xff]
  %v162 = vld [vmem:[%s1 + $0x420] sm:$0xff]
  %v163 = vld [vmem:[%s1 + $0x428] sm:$0xff]
  %v164 = vld [vmem:[%s1 + $0x430] sm:$0xff]
  %v165 = vld [vmem:[%s1 + $0x438] sm:$0xff]
  %v166 = vld [vmem:[%s1 + $0x440] sm:$0xff]
  %v167 = vld [vmem:[%s1 + $0x448] sm:$0xff]
  %v168 = vld [vmem:[%s1 + $0x450] sm:$0xff]
  %v169 = vld [vmem:[%s1 + $0x458] sm:$0xff]
  %v170 = vld [vmem:[%s1 + $0x460] sm:$0xff]
  %v171 = vld [vmem:[%s1 + $0x468] sm:$0xff]
  %v172 = vld [vmem:[%s1 + $0x470] sm:$0xff]
  %v173 = vld [vmem:[%s1 + $0x478] sm:$0xff]
  %v174 = vld [vmem:[%s1 + $0x480] sm:$0xff]
  %v175 = vld [vmem:[%s1 + $0x488] sm:$0xff]
  %v176 = vld [vmem:[%s1 + $0x490] sm:$0xff]
  %v177 = vld [vmem:[%s1 + $0x498] sm:$0xff]
  %v178 = vld [vmem:[%s1 + $0x4a0] sm:$0xff]
  %v179 = vld [vmem:[%s1 + $0x4a8] sm:$0xff]
  %v180 = vld [vmem:[%s1 + $0x4b0] sm:$0xff]
  %v181 = vld [vmem:[%s1 + $0x4b8] sm:$0xff]
  %v182 = vld [vmem:[%s1 + $0x4c0] sm:$0xff]
  %v183 = vld [vmem:[%s1 + $0x4c8] sm:$0xff]
  %v184 = vld [vmem:[%s1 + $0x4d0] sm:$0xff]
  %v185 = vld [vmem:[%s1 + $0x4d8] sm:$0xff]
  %v186 = vld [vmem:[%s1 + $0x4e0] sm:$0xff]
  %v187 = vld [vmem:[%s1 + $0x4e8] sm:$0xff]
  %v188 = vld [vmem:[%s1 + $0x4f0] sm:$0xff]
  %v189 = vld [vmem:[%s1 + $0x4f8] sm:$0xff]
  %v190 = vld [vmem:[%s1 + $0x500] sm:$0xff]
  %v191 = vld [vmem:[%s1 + $0x508] sm:$0xff]
  %v192 = vld [vmem:[%s1 + $0x510] sm:$0xff]
  %v193 = vld [vmem:[%s1 + $0x518] sm:$0xff]
  %v194 = vld [vmem:[%s1 + $0x520] sm:$0xff]
  %v195 = vld [vmem:[%s1 + $0x528] sm:$0xff]
  %v196 = vld [vmem:[%s1 + $0x530] sm:$0xff]
  %v197 = vld [vmem:[%s1 + $0x538] sm:$0xff]
  %v198 = vld [vmem:[%s1 + $0x540] sm:$0xff]
  %v199 = vld [vmem:[%s1 + $0x548] sm:$0xff]
  %v200 = vld [vmem:[%s1 + $0x550] sm:$0xff]
  %v201 = vld [vmem:[%s1 + $0x558] sm:$0xff]
  %v202 = vld [vmem:[%s1 + $0x560] sm:$0xff]
  %v203 = vld [vmem:[%s1 + $0x568] sm:$0xff]
  %v204 = vld [vmem:[%s1 + $0x570] sm:$0xff]
  %v205 = vld [vmem:[%s1 + $0x578] sm:$0xff]
  %v218 = vunpack.c.l.b16 %v18
  %v219 = vunpack.c.h.b16 %v18
  %v220 = vunpack.c.l.b16 %v19
  %v221 = vunpack.c.h.b16 %v19
  %v222 = vunpack.c.l.b16 %v20
  %v223 = vunpack.c.h.b16 %v20
  %v224 = vunpack.c.l.b16 %v21
  %v225 = vunpack.c.h.b16 %v21
  %v226 = vunpack.c.l.b16 %v22
  %v227 = vunpack.c.h.b16 %v22
  %v228 = vunpack.c.l.b16 %v23
  %v229 = vunpack.c.l.b16 %v24
  %v230 = vunpack.c.h.b16 %v24
  %v231 = vunpack.c.l.b16 %v25
  %v232 = vunpack.c.h.b16 %v25
  %v233 = vunpack.c.l.b16 %v26
  %v234 = vunpack.c.h.b16 %v26
  %v235 = vunpack.c.l.b16 %v27
  %v236 = vunpack.c.h.b16 %v27
  %v237 = vunpack.c.l.b16 %v28
  %v238 = vunpack.c.h.b16 %v28
  %v239 = vunpack.c.l.b16 %v29
  %v240 = vpack.c.b16 %v229, %v218
  %v241 = vpack.c.b16 %v230, %v219
  %v242 = vpack.c.b16 %v231, %v220
  %v243 = vpack.c.b16 %v232, %v221
  %v244 = vpack.c.b16 %v233, %v222
  %v245 = vpack.c.b16 %v234, %v223
  %v246 = vpack.c.b16 %v235, %v224
  %v247 = vpack.c.b16 %v236, %v225
  %v248 = vpack.c.b16 %v237, %v226
  %v249 = vpack.c.b16 %v238, %v227
  %v250 = vpack.c.b16 %v239, %v228
  %v438 = vunpack.c.l.b16 %v30
  %v439 = vunpack.c.h.b16 %v30
  %v440 = vunpack.c.l.b16 %v31
  %v441 = vunpack.c.h.b16 %v31
  %v442 = vunpack.c.l.b16 %v32
  %v443 = vunpack.c.h.b16 %v32
  %v444 = vunpack.c.l.b16 %v33
  %v445 = vunpack.c.h.b16 %v33
  %v446 = vunpack.c.l.b16 %v34
  %v447 = vunpack.c.h.b16 %v34
  %v448 = vunpack.c.l.b16 %v35
  %v449 = vunpack.c.h.b16 %v35
  %v450 = vunpack.c.l.b16 %v36
  %v451 = vunpack.c.h.b16 %v36
  %v452 = vunpack.c.l.b16 %v37
  %v453 = vunpack.c.h.b16 %v37
  %v454 = vunpack.c.l.b16 %v38
  %v455 = vunpack.c.h.b16 %v38
  %v456 = vunpack.c.l.b16 %v39
  %v457 = vunpack.c.h.b16 %v39
  %v458 = vunpack.c.l.b16 %v40
  %v459 = vunpack.c.h.b16 %v40
  %v460 = vunpack.c.l.b16 %v41
  %v461 = vunpack.c.h.b16 %v41
  %v462 = vunpack.c.l.b16 %v42
  %v463 = vunpack.c.h.b16 %v42
  %v464 = vunpack.c.l.b16 %v43
  %v465 = vunpack.c.h.b16 %v43
  %v466 = vunpack.c.l.b16 %v44
  %v467 = vunpack.c.h.b16 %v44
  %v468 = vunpack.c.l.b16 %v45
  %v469 = vunpack.c.h.b16 %v45
  %v470 = vunpack.c.l.b16 %v46
  %v471 = vunpack.c.h.b16 %v46
  %v472 = vunpack.c.l.b16 %v47
  %v473 = vunpack.c.h.b16 %v47
  %v474 = vunpack.c.l.b16 %v48
  %v475 = vunpack.c.h.b16 %v48
  %v476 = vunpack.c.l.b16 %v49
  %v477 = vunpack.c.h.b16 %v49
  %v478 = vunpack.c.l.b16 %v50
  %v479 = vunpack.c.h.b16 %v50
  %v480 = vunpack.c.l.b16 %v51
  %v481 = vunpack.c.h.b16 %v51
  %v482 = vunpack.c.l.b16 %v52
  %v483 = vunpack.c.h.b16 %v52
  %v484 = vunpack.c.l.b16 %v53
  %v485 = vunpack.c.h.b16 %v53
  %v486 = vunpack.c.l.b16 %v54
  %v487 = vunpack.c.h.b16 %v54
  %v488 = vunpack.c.l.b16 %v55
  %v489 = vunpack.c.h.b16 %v55
  %v490 = vunpack.c.l.b16 %v56
  %v491 = vunpack.c.h.b16 %v56
  %v492 = vunpack.c.l.b16 %v57
  %v493 = vunpack.c.h.b16 %v57
  %v494 = vunpack.c.l.b16 %v58
  %v495 = vunpack.c.h.b16 %v58
  %v496 = vunpack.c.l.b16 %v59
  %v497 = vunpack.c.h.b16 %v59
  %v498 = vunpack.c.l.b16 %v60
  %v499 = vunpack.c.h.b16 %v60
  %v500 = vunpack.c.l.b16 %v61
  %v501 = vunpack.c.h.b16 %v61
  %v502 = vunpack.c.l.b16 %v62
  %v503 = vunpack.c.h.b16 %v62
  %v504 = vunpack.c.l.b16 %v63
  %v505 = vunpack.c.h.b16 %v63
  %v506 = vunpack.c.l.b16 %v64
  %v507 = vunpack.c.h.b16 %v64
  %v508 = vunpack.c.l.b16 %v65
  %v509 = vunpack.c.h.b16 %v65
  %v510 = vunpack.c.l.b16 %v66
  %v511 = vunpack.c.h.b16 %v66
  %v512 = vunpack.c.l.b16 %v67
  %v513 = vunpack.c.h.b16 %v67
  %v514 = vunpack.c.l.b16 %v68
  %v515 = vunpack.c.h.b16 %v68
  %v516 = vunpack.c.l.b16 %v69
  %v517 = vunpack.c.h.b16 %v69
  %v518 = vunpack.c.l.b16 %v70
  %v519 = vunpack.c.h.b16 %v70
  %v520 = vunpack.c.l.b16 %v71
  %v521 = vunpack.c.h.b16 %v71
  %v522 = vunpack.c.l.b16 %v72
  %v523 = vunpack.c.h.b16 %v72
  %v524 = vunpack.c.l.b16 %v73
  %v525 = vunpack.c.h.b16 %v73
  %v526 = vunpack.c.l.b16 %v74
  %v527 = vunpack.c.h.b16 %v74
  %v528 = vunpack.c.l.b16 %v75
  %v529 = vunpack.c.h.b16 %v75
  %v530 = vunpack.c.l.b16 %v76
  %v531 = vunpack.c.h.b16 %v76
  %v532 = vunpack.c.l.b16 %v77
  %v533 = vunpack.c.h.b16 %v77
  %v534 = vunpack.c.l.b16 %v78
  %v535 = vunpack.c.h.b16 %v78
  %v536 = vunpack.c.l.b16 %v79
  %v537 = vunpack.c.h.b16 %v79
  %v538 = vunpack.c.l.b16 %v80
  %v539 = vunpack.c.h.b16 %v80
  %v540 = vunpack.c.l.b16 %v81
  %v541 = vunpack.c.h.b16 %v81
  %v542 = vunpack.c.l.b16 %v82
  %v543 = vunpack.c.h.b16 %v82
  %v544 = vunpack.c.l.b16 %v83
  %v545 = vunpack.c.h.b16 %v83
  %v546 = vunpack.c.l.b16 %v84
  %v547 = vunpack.c.h.b16 %v84
  %v548 = vunpack.c.l.b16 %v85
  %v549 = vunpack.c.h.b16 %v85
  %v550 = vunpack.c.l.b16 %v86
  %v551 = vunpack.c.h.b16 %v86
  %v552 = vunpack.c.l.b16 %v87
  %v553 = vunpack.c.h.b16 %v87
  %v554 = vunpack.c.l.b16 %v88
  %v555 = vunpack.c.h.b16 %v88
  %v556 = vunpack.c.l.b16 %v89
  %v557 = vunpack.c.h.b16 %v89
  %v558 = vunpack.c.l.b16 %v90
  %v559 = vunpack.c.h.b16 %v90
  %v560 = vunpack.c.l.b16 %v91
  %v561 = vunpack.c.h.b16 %v91
  %v562 = vunpack.c.l.b16 %v92
  %v563 = vunpack.c.h.b16 %v92
  %v564 = vunpack.c.l.b16 %v93
  %v565 = vunpack.c.h.b16 %v93
  %v566 = vunpack.c.l.b16 %v94
  %v567 = vunpack.c.h.b16 %v94
  %v568 = vunpack.c.l.b16 %v95
  %v569 = vunpack.c.h.b16 %v95
  %v570 = vunpack.c.l.b16 %v96
  %v571 = vunpack.c.h.b16 %v96
  %v572 = vunpack.c.l.b16 %v97
  %v573 = vunpack.c.h.b16 %v97
  %v574 = vunpack.c.l.b16 %v98
  %v575 = vunpack.c.h.b16 %v98
  %v576 = vunpack.c.l.b16 %v99
  %v577 = vunpack.c.h.b16 %v99
  %v578 = vunpack.c.l.b16 %v100
  %v579 = vunpack.c.h.b16 %v100
  %v580 = vunpack.c.l.b16 %v101
  %v581 = vunpack.c.h.b16 %v101
  %v582 = vunpack.c.l.b16 %v102
  %v583 = vunpack.c.h.b16 %v102
  %v584 = vunpack.c.l.b16 %v103
  %v585 = vunpack.c.h.b16 %v103
  %v586 = vunpack.c.l.b16 %v104
  %v587 = vunpack.c.h.b16 %v104
  %v588 = vunpack.c.l.b16 %v105
  %v589 = vunpack.c.h.b16 %v105
  %v590 = vunpack.c.l.b16 %v106
  %v591 = vunpack.c.h.b16 %v106
  %v592 = vunpack.c.l.b16 %v107
  %v593 = vunpack.c.h.b16 %v107
  %v594 = vunpack.c.l.b16 %v108
  %v595 = vunpack.c.h.b16 %v108
  %v596 = vunpack.c.l.b16 %v109
  %v597 = vunpack.c.h.b16 %v109
  %v598 = vunpack.c.l.b16 %v110
  %v599 = vunpack.c.h.b16 %v110
  %v600 = vunpack.c.l.b16 %v111
  %v601 = vunpack.c.h.b16 %v111
  %v602 = vunpack.c.l.b16 %v112
  %v603 = vunpack.c.h.b16 %v112
  %v604 = vunpack.c.l.b16 %v113
  %v605 = vunpack.c.h.b16 %v113
  %v606 = vunpack.c.l.b16 %v114
  %v607 = vunpack.c.h.b16 %v114
  %v608 = vunpack.c.l.b16 %v115
  %v609 = vunpack.c.h.b16 %v115
  %v610 = vunpack.c.l.b16 %v116
  %v611 = vunpack.c.h.b16 %v116
  %v612 = vunpack.c.l.b16 %v117
  %v613 = vunpack.c.h.b16 %v117
  %v614 = vunpack.c.l.b16 %v118
  %v615 = vunpack.c.h.b16 %v118
  %v616 = vunpack.c.l.b16 %v119
  %v617 = vunpack.c.h.b16 %v119
  %v618 = vunpack.c.l.b16 %v120
  %v619 = vunpack.c.h.b16 %v120
  %v620 = vunpack.c.l.b16 %v121
  %v621 = vunpack.c.h.b16 %v121
  %v622 = vunpack.c.l.b16 %v122
  %v623 = vunpack.c.h.b16 %v122
  %v624 = vunpack.c.l.b16 %v123
  %v625 = vunpack.c.h.b16 %v123
  %v626 = vunpack.c.l.b16 %v124
  %v627 = vunpack.c.h.b16 %v124
  %v628 = vunpack.c.l.b16 %v125
  %v629 = vunpack.c.h.b16 %v125
  %v630 = vunpack.c.l.b16 %v126
  %v631 = vunpack.c.h.b16 %v126
  %v632 = vunpack.c.l.b16 %v127
  %v633 = vunpack.c.h.b16 %v127
  %v634 = vunpack.c.l.b16 %v128
  %v635 = vunpack.c.h.b16 %v128
  %v636 = vunpack.c.l.b16 %v129
  %v637 = vunpack.c.h.b16 %v129
  %v638 = vunpack.c.l.b16 %v130
  %v639 = vunpack.c.h.b16 %v130
  %v640 = vunpack.c.l.b16 %v131
  %v641 = vunpack.c.h.b16 %v131
  %v642 = vunpack.c.l.b16 %v132
  %v643 = vunpack.c.h.b16 %v132
  %v644 = vunpack.c.l.b16 %v133
  %v645 = vunpack.c.h.b16 %v133
  %v646 = vunpack.c.l.b16 %v134
  %v647 = vunpack.c.h.b16 %v134
  %v648 = vunpack.c.l.b16 %v135
  %v649 = vunpack.c.h.b16 %v135
  %v650 = vunpack.c.l.b16 %v136
  %v651 = vunpack.c.h.b16 %v136
  %v652 = vunpack.c.l.b16 %v137
  %v653 = vunpack.c.h.b16 %v137
  %v654 = vunpack.c.l.b16 %v138
  %v655 = vunpack.c.h.b16 %v138
  %v656 = vunpack.c.l.b16 %v139
  %v657 = vunpack.c.h.b16 %v139
  %v658 = vunpack.c.l.b16 %v140
  %v659 = vunpack.c.h.b16 %v140
  %v660 = vunpack.c.l.b16 %v141
  %v661 = vunpack.c.h.b16 %v141
  %v662 = vunpack.c.l.b16 %v142
  %v663 = vunpack.c.h.b16 %v142
  %v664 = vunpack.c.l.b16 %v143
  %v665 = vunpack.c.h.b16 %v143
  %v666 = vunpack.c.l.b16 %v144
  %v667 = vunpack.c.h.b16 %v144
  %v668 = vunpack.c.l.b16 %v145
  %v669 = vunpack.c.h.b16 %v145
  %v670 = vunpack.c.l.b16 %v146
  %v671 = vunpack.c.h.b16 %v146
  %v672 = vunpack.c.l.b16 %v147
  %v673 = vunpack.c.h.b16 %v147
  %v674 = vunpack.c.l.b16 %v148
  %v675 = vunpack.c.h.b16 %v148
  %v676 = vunpack.c.l.b16 %v149
  %v677 = vunpack.c.h.b16 %v149
  %v678 = vunpack.c.l.b16 %v150
  %v679 = vunpack.c.h.b16 %v150
  %v680 = vunpack.c.l.b16 %v151
  %v681 = vunpack.c.h.b16 %v151
  %v682 = vunpack.c.l.b16 %v152
  %v683 = vunpack.c.h.b16 %v152
  %v684 = vunpack.c.l.b16 %v153
  %v685 = vunpack.c.h.b16 %v153
  %v686 = vunpack.c.l.b16 %v154
  %v687 = vunpack.c.h.b16 %v154
  %v688 = vunpack.c.l.b16 %v155
  %v689 = vunpack.c.h.b16 %v155
  %v690 = vunpack.c.l.b16 %v156
  %v691 = vunpack.c.h.b16 %v156
  %v692 = vunpack.c.l.b16 %v157
  %v693 = vunpack.c.h.b16 %v157
  %v694 = vunpack.c.l.b16 %v158
  %v695 = vunpack.c.h.b16 %v158
  %v696 = vunpack.c.l.b16 %v159
  %v697 = vunpack.c.h.b16 %v159
  %v698 = vunpack.c.l.b16 %v160
  %v699 = vunpack.c.h.b16 %v160
  %v700 = vunpack.c.l.b16 %v161
  %v701 = vunpack.c.h.b16 %v161
  %v702 = vunpack.c.l.b16 %v162
  %v703 = vunpack.c.h.b16 %v162
  %v704 = vunpack.c.l.b16 %v163
  %v705 = vunpack.c.h.b16 %v163
  %v706 = vunpack.c.l.b16 %v164
  %v707 = vunpack.c.h.b16 %v164
  %v708 = vunpack.c.l.b16 %v165
  %v709 = vunpack.c.h.b16 %v165
  %v710 = vunpack.c.l.b16 %v166
  %v711 = vunpack.c.h.b16 %v166
  %v712 = vunpack.c.l.b16 %v167
  %v713 = vunpack.c.h.b16 %v167
  %v714 = vunpack.c.l.b16 %v168
  %v715 = vunpack.c.h.b16 %v168
  %v716 = vunpack.c.l.b16 %v169
  %v717 = vunpack.c.h.b16 %v169
  %v718 = vunpack.c.l.b16 %v170
  %v719 = vunpack.c.h.b16 %v170
  %v720 = vunpack.c.l.b16 %v171
  %v721 = vunpack.c.h.b16 %v171
  %v722 = vunpack.c.l.b16 %v172
  %v723 = vunpack.c.h.b16 %v172
  %v724 = vunpack.c.l.b16 %v173
  %v725 = vunpack.c.h.b16 %v173
  %v726 = vunpack.c.l.b16 %v174
  %v727 = vunpack.c.h.b16 %v174
  %v728 = vunpack.c.l.b16 %v175
  %v729 = vunpack.c.h.b16 %v175
  %v730 = vunpack.c.l.b16 %v176
  %v731 = vunpack.c.h.b16 %v176
  %v732 = vunpack.c.l.b16 %v177
  %v733 = vunpack.c.h.b16 %v177
  %v734 = vunpack.c.l.b16 %v178
  %v735 = vunpack.c.h.b16 %v178
  %v736 = vunpack.c.l.b16 %v179
  %v737 = vunpack.c.h.b16 %v179
  %v738 = vunpack.c.l.b16 %v180
  %v739 = vunpack.c.h.b16 %v180
  %v740 = vunpack.c.l.b16 %v181
  %v741 = vunpack.c.h.b16 %v181
  %v742 = vunpack.c.l.b16 %v182
  %v743 = vunpack.c.h.b16 %v182
  %v744 = vunpack.c.l.b16 %v183
  %v745 = vunpack.c.h.b16 %v183
  %v746 = vunpack.c.l.b16 %v184
  %v747 = vunpack.c.h.b16 %v184
  %v748 = vunpack.c.l.b16 %v185
  %v749 = vunpack.c.h.b16 %v185
  %v750 = vunpack.c.l.b16 %v186
  %v751 = vunpack.c.h.b16 %v186
  %v752 = vunpack.c.l.b16 %v187
  %v753 = vunpack.c.h.b16 %v187
  %v754 = vunpack.c.l.b16 %v188
  %v755 = vunpack.c.h.b16 %v188
  %v756 = vunpack.c.l.b16 %v189
  %v757 = vunpack.c.h.b16 %v189
  %v758 = vunpack.c.l.b16 %v190
  %v759 = vunpack.c.h.b16 %v190
  %v760 = vunpack.c.l.b16 %v191
  %v761 = vunpack.c.h.b16 %v191
  %v762 = vunpack.c.l.b16 %v192
  %v763 = vunpack.c.h.b16 %v192
  %v764 = vunpack.c.l.b16 %v193
  %v765 = vunpack.c.h.b16 %v193
  %v766 = vunpack.c.l.b16 %v194
  %v767 = vunpack.c.h.b16 %v194
  %v768 = vunpack.c.l.b16 %v195
  %v769 = vunpack.c.h.b16 %v195
  %v770 = vunpack.c.l.b16 %v196
  %v771 = vunpack.c.h.b16 %v196
  %v772 = vunpack.c.l.b16 %v197
  %v773 = vunpack.c.h.b16 %v197
  %v774 = vunpack.c.l.b16 %v198
  %v775 = vunpack.c.h.b16 %v198
  %v776 = vunpack.c.l.b16 %v199
  %v777 = vunpack.c.h.b16 %v199
  %v778 = vunpack.c.l.b16 %v200
  %v779 = vunpack.c.h.b16 %v200
  %v780 = vunpack.c.l.b16 %v201
  %v781 = vunpack.c.h.b16 %v201
  %v782 = vunpack.c.l.b16 %v202
  %v783 = vunpack.c.h.b16 %v202
  %v784 = vunpack.c.l.b16 %v203
  %v785 = vunpack.c.h.b16 %v203
  %v786 = vunpack.c.l.b16 %v204
  %v787 = vunpack.c.h.b16 %v204
  %v788 = vunpack.c.l.b16 %v205
  %v789 = vunpack.c.h.b16 %v205
  %v790 = vpack.c.b16 %v440, %v438
  %v791 = vpack.c.b16 %v441, %v439
  %v792 = vpack.c.b16 %v444, %v442
  %v793 = vpack.c.b16 %v445, %v443
  %v794 = vpack.c.b16 %v448, %v446
  %v795 = vpack.c.b16 %v449, %v447
  %v796 = vpack.c.b16 %v452, %v450
  %v797 = vpack.c.b16 %v453, %v451
  %v798 = vpack.c.b16 %v456, %v454
  %v799 = vpack.c.b16 %v457, %v455
  %v800 = vpack.c.b16 %v460, %v458
  %v801 = vpack.c.b16 %v461, %v459
  %v802 = vpack.c.b16 %v464, %v462
  %v803 = vpack.c.b16 %v465, %v463
  %v804 = vpack.c.b16 %v468, %v466
  %v805 = vpack.c.b16 %v469, %v467
  %v806 = vpack.c.b16 %v472, %v470
  %v807 = vpack.c.b16 %v473, %v471
  %v808 = vpack.c.b16 %v476, %v474
  %v809 = vpack.c.b16 %v477, %v475
  %v810 = vpack.c.b16 %v480, %v478
  %v811 = vpack.c.b16 %v481, %v479
  %v812 = vpack.c.b16 %v484, %v482
  %v813 = vpack.c.b16 %v485, %v483
  %v814 = vpack.c.b16 %v488, %v486
  %v815 = vpack.c.b16 %v489, %v487
  %v816 = vpack.c.b16 %v492, %v490
  %v817 = vpack.c.b16 %v493, %v491
  %v818 = vpack.c.b16 %v496, %v494
  %v819 = vpack.c.b16 %v497, %v495
  %v820 = vpack.c.b16 %v500, %v498
  %v821 = vpack.c.b16 %v501, %v499
  %v822 = vpack.c.b16 %v504, %v502
  %v823 = vpack.c.b16 %v505, %v503
  %v824 = vpack.c.b16 %v508, %v506
  %v825 = vpack.c.b16 %v509, %v507
  %v826 = vpack.c.b16 %v512, %v510
  %v827 = vpack.c.b16 %v513, %v511
  %v828 = vpack.c.b16 %v516, %v514
  %v829 = vpack.c.b16 %v517, %v515
  %v830 = vpack.c.b16 %v520, %v518
  %v831 = vpack.c.b16 %v521, %v519
  %v832 = vpack.c.b16 %v524, %v522
  %v833 = vpack.c.b16 %v525, %v523
  %v834 = vpack.c.b16 %v528, %v526
  %v835 = vpack.c.b16 %v529, %v527
  %v836 = vpack.c.b16 %v532, %v530
  %v837 = vpack.c.b16 %v533, %v531
  %v838 = vpack.c.b16 %v536, %v534
  %v839 = vpack.c.b16 %v537, %v535
  %v840 = vpack.c.b16 %v540, %v538
  %v841 = vpack.c.b16 %v541, %v539
  %v842 = vpack.c.b16 %v544, %v542
  %v843 = vpack.c.b16 %v545, %v543
  %v844 = vpack.c.b16 %v548, %v546
  %v845 = vpack.c.b16 %v549, %v547
  %v846 = vpack.c.b16 %v552, %v550
  %v847 = vpack.c.b16 %v553, %v551
  %v848 = vpack.c.b16 %v556, %v554
  %v849 = vpack.c.b16 %v557, %v555
  %v850 = vpack.c.b16 %v560, %v558
  %v851 = vpack.c.b16 %v561, %v559
  %v852 = vpack.c.b16 %v564, %v562
  %v853 = vpack.c.b16 %v565, %v563
  %v854 = vpack.c.b16 %v568, %v566
  %v855 = vpack.c.b16 %v569, %v567
  %v856 = vpack.c.b16 %v572, %v570
  %v857 = vpack.c.b16 %v573, %v571
  %v858 = vpack.c.b16 %v576, %v574
  %v859 = vpack.c.b16 %v577, %v575
  %v860 = vpack.c.b16 %v580, %v578
  %v861 = vpack.c.b16 %v581, %v579
  %v862 = vpack.c.b16 %v584, %v582
  %v863 = vpack.c.b16 %v585, %v583
  %v864 = vpack.c.b16 %v588, %v586
  %v865 = vpack.c.b16 %v589, %v587
  %v866 = vpack.c.b16 %v592, %v590
  %v867 = vpack.c.b16 %v593, %v591
  %v868 = vpack.c.b16 %v596, %v594
  %v869 = vpack.c.b16 %v597, %v595
  %v870 = vpack.c.b16 %v600, %v598
  %v871 = vpack.c.b16 %v601, %v599
  %v872 = vpack.c.b16 %v604, %v602
  %v873 = vpack.c.b16 %v605, %v603
  %v874 = vpack.c.b16 %v608, %v606
  %v875 = vpack.c.b16 %v609, %v607
  %v876 = vpack.c.b16 %v612, %v610
  %v877 = vpack.c.b16 %v613, %v611
  %v878 = vpack.c.b16 %v616, %v614
  %v879 = vpack.c.b16 %v617, %v615
  %v880 = vpack.c.b16 %v620, %v618
  %v881 = vpack.c.b16 %v621, %v619
  %v882 = vpack.c.b16 %v624, %v622
  %v883 = vpack.c.b16 %v625, %v623
  %v884 = vpack.c.b16 %v628, %v626
  %v885 = vpack.c.b16 %v629, %v627
  %v886 = vpack.c.b16 %v632, %v630
  %v887 = vpack.c.b16 %v633, %v631
  %v888 = vpack.c.b16 %v636, %v634
  %v889 = vpack.c.b16 %v637, %v635
  %v890 = vpack.c.b16 %v640, %v638
  %v891 = vpack.c.b16 %v641, %v639
  %v892 = vpack.c.b16 %v644, %v642
  %v893 = vpack.c.b16 %v645, %v643
  %v894 = vpack.c.b16 %v648, %v646
  %v895 = vpack.c.b16 %v649, %v647
  %v896 = vpack.c.b16 %v652, %v650
  %v897 = vpack.c.b16 %v653, %v651
  %v898 = vpack.c.b16 %v656, %v654
  %v899 = vpack.c.b16 %v657, %v655
  %v900 = vpack.c.b16 %v660, %v658
  %v901 = vpack.c.b16 %v661, %v659
  %v902 = vpack.c.b16 %v664, %v662
  %v903 = vpack.c.b16 %v665, %v663
  %v904 = vpack.c.b16 %v668, %v666
  %v905 = vpack.c.b16 %v669, %v667
  %v906 = vpack.c.b16 %v672, %v670
  %v907 = vpack.c.b16 %v673, %v671
  %v908 = vpack.c.b16 %v676, %v674
  %v909 = vpack.c.b16 %v677, %v675
  %v910 = vpack.c.b16 %v680, %v678
  %v911 = vpack.c.b16 %v681, %v679
  %v912 = vpack.c.b16 %v684, %v682
  %v913 = vpack.c.b16 %v685, %v683
  %v914 = vpack.c.b16 %v688, %v686
  %v915 = vpack.c.b16 %v689, %v687
  %v916 = vpack.c.b16 %v692, %v690
  %v917 = vpack.c.b16 %v693, %v691
  %v918 = vpack.c.b16 %v696, %v694
  %v919 = vpack.c.b16 %v697, %v695
  %v920 = vpack.c.b16 %v700, %v698
  %v921 = vpack.c.b16 %v701, %v699
  %v922 = vpack.c.b16 %v704, %v702
  %v923 = vpack.c.b16 %v705, %v703
  %v924 = vpack.c.b16 %v708, %v706
  %v925 = vpack.c.b16 %v709, %v707
  %v926 = vpack.c.b16 %v712, %v710
  %v927 = vpack.c.b16 %v713, %v711
  %v928 = vpack.c.b16 %v716, %v714
  %v929 = vpack.c.b16 %v717, %v715
  %v930 = vpack.c.b16 %v720, %v718
  %v931 = vpack.c.b16 %v721, %v719
  %v932 = vpack.c.b16 %v724, %v722
  %v933 = vpack.c.b16 %v725, %v723
  %v934 = vpack.c.b16 %v728, %v726
  %v935 = vpack.c.b16 %v729, %v727
  %v936 = vpack.c.b16 %v732, %v730
  %v937 = vpack.c.b16 %v733, %v731
  %v938 = vpack.c.b16 %v736, %v734
  %v939 = vpack.c.b16 %v737, %v735
  %v940 = vpack.c.b16 %v740, %v738
  %v941 = vpack.c.b16 %v741, %v739
  %v942 = vpack.c.b16 %v744, %v742
  %v943 = vpack.c.b16 %v745, %v743
  %v944 = vpack.c.b16 %v748, %v746
  %v945 = vpack.c.b16 %v749, %v747
  %v946 = vpack.c.b16 %v752, %v750
  %v947 = vpack.c.b16 %v753, %v751
  %v948 = vpack.c.b16 %v756, %v754
  %v949 = vpack.c.b16 %v757, %v755
  %v950 = vpack.c.b16 %v760, %v758
  %v951 = vpack.c.b16 %v761, %v759
  %v952 = vpack.c.b16 %v764, %v762
  %v953 = vpack.c.b16 %v765, %v763
  %v954 = vpack.c.b16 %v768, %v766
  %v955 = vpack.c.b16 %v769, %v767
  %v956 = vpack.c.b16 %v772, %v770
  %v957 = vpack.c.b16 %v773, %v771
  %v958 = vpack.c.b16 %v776, %v774
  %v959 = vpack.c.b16 %v777, %v775
  %v960 = vpack.c.b16 %v780, %v778
  %v961 = vpack.c.b16 %v781, %v779
  %v962 = vpack.c.b16 %v784, %v782
  %v963 = vpack.c.b16 %v785, %v783
  %v964 = vpack.c.b16 %v788, %v786
  %v965 = vpack.c.b16 %v789, %v787
  %1142 = vmatprep.subr.bf16.mxu0 %v805
  %1143 = vmatpush1.bf16.msra.mxu0 %v804
  %1144 = vmatprep.subr.bf16.mxu0 %v803
  %1145 = vmatpush1.bf16.msra.mxu0 %v802
  %1146 = vmatprep.subr.bf16.mxu0 %v801
  %1147 = vmatpush1.bf16.msra.mxu0 %v800
  %1148 = vmatprep.subr.bf16.mxu0 %v799
  %1149 = vmatpush1.bf16.msra.mxu0 %v798
  %1150 = vmatprep.subr.bf16.mxu0 %v797
  %1151 = vmatpush1.bf16.msra.mxu0 %v796
  %1152 = vmatprep.subr.bf16.mxu0 %v795
  %1153 = vmatpush1.bf16.msra.mxu0 %v794
  %1154 = vmatprep.subr.bf16.mxu0 %v793
  %1155 = vmatpush1.bf16.msra.mxu0 %v792
  %1156 = vmatprep.subr.bf16.mxu0 %v791
  %1157 = vmatpush1.bf16.msra.mxu0 %v790
  %1158 = vmatprep.subr.bf16.mxu0 %v821
  %1159 = vmatpush2.bf16.msra.mxu0 %v820
  %1160 = vmatprep.subr.bf16.mxu0 %v819
  %1161 = vmatpush2.bf16.msra.mxu0 %v818
  %1162 = vmatprep.subr.bf16.mxu0 %v817
  %1163 = vmatpush2.bf16.msra.mxu0 %v816
  %1164 = vmatprep.subr.bf16.mxu0 %v815
  %1165 = vmatpush2.bf16.msra.mxu0 %v814
  %1166 = vmatprep.subr.bf16.mxu0 %v813
  %1167 = vmatpush2.bf16.msra.mxu0 %v812
  %1168 = vmatprep.subr.bf16.mxu0 %v811
  %1169 = vmatpush2.bf16.msra.mxu0 %v810
  %1170 = vmatprep.subr.bf16.mxu0 %v809
  %1171 = vmatpush2.bf16.msra.mxu0 %v808
  %1172 = vmatprep.subr.bf16.mxu0 %v807
  %1173 = vmatpush2.bf16.msra.mxu0 %v806
  %1174 = vmatprep.mubr.bf16.mxu0 %v241
  %1175 = vmatmul.mubr.bf16.gmra.mxu0 %v240
  %v1176 = vpop.f32.mrf.mxu0
  %v1177 = vadd.f32 0.0, %v1176
  %v1178 = vpop.f32.mrf.mxu0
  %v1179 = vadd.f32 0.0, %v1178
  %v1180 = vpop.f32.mrf.mxu0
  %v1181 = vadd.f32 0.0, %v1180
  %v1182 = vpop.f32.mrf.mxu0
  %v1183 = vadd.f32 0.0, %v1182
  %1184 = vdwg.mxu0
  %1185 = vmatprep.subr.bf16.mxu0 %v837
  %1186 = vmatpush1.bf16.msra.mxu0 %v836
  %1187 = vmatprep.subr.bf16.mxu0 %v835
  %1188 = vmatpush1.bf16.msra.mxu0 %v834
  %1189 = vmatprep.subr.bf16.mxu0 %v833
  %1190 = vmatpush1.bf16.msra.mxu0 %v832
  %1191 = vmatprep.subr.bf16.mxu0 %v831
  %1192 = vmatpush1.bf16.msra.mxu0 %v830
  %1193 = vmatprep.subr.bf16.mxu0 %v829
  %1194 = vmatpush1.bf16.msra.mxu0 %v828
  %1195 = vmatprep.subr.bf16.mxu0 %v827
  %1196 = vmatpush1.bf16.msra.mxu0 %v826
  %1197 = vmatprep.subr.bf16.mxu0 %v825
  %1198 = vmatpush1.bf16.msra.mxu0 %v824
  %1199 = vmatprep.subr.bf16.mxu0 %v823
  %1200 = vmatpush1.bf16.msra.mxu0 %v822
  %1201 = vmatprep.subr.bf16.mxu0 %v853
  %1202 = vmatpush2.bf16.msra.mxu0 %v852
  %1203 = vmatprep.subr.bf16.mxu0 %v851
  %1204 = vmatpush2.bf16.msra.mxu0 %v850
  %1205 = vmatprep.subr.bf16.mxu0 %v849
  %1206 = vmatpush2.bf16.msra.mxu0 %v848
  %1207 = vmatprep.subr.bf16.mxu0 %v847
  %1208 = vmatpush2.bf16.msra.mxu0 %v846
  %1209 = vmatprep.subr.bf16.mxu0 %v845
  %1210 = vmatpush2.bf16.msra.mxu0 %v844
  %1211 = vmatprep.subr.bf16.mxu0 %v843
  %1212 = vmatpush2.bf16.msra.mxu0 %v842
  %1213 = vmatprep.subr.bf16.mxu0 %v841
  %1214 = vmatpush2.bf16.msra.mxu0 %v840
  %1215 = vmatprep.subr.bf16.mxu0 %v839
  %1216 = vmatpush2.bf16.msra.mxu0 %v838
  %1217 = vmatprep.mubr.bf16.mxu0 %v243
  %1218 = vmatmul.mubr.bf16.gmra.mxu0 %v242
  %v1219 = vpop.f32.mrf.mxu0
  %v1220 = vadd.f32 %v1177, %v1219
  %v1221 = vpop.f32.mrf.mxu0
  %v1222 = vadd.f32 %v1179, %v1221
  %v1223 = vpop.f32.mrf.mxu0
  %v1224 = vadd.f32 %v1181, %v1223
  %v1225 = vpop.f32.mrf.mxu0
  %v1226 = vadd.f32 %v1183, %v1225
  %1227 = vdwg.mxu0
  %1228 = vmatprep.subr.bf16.mxu0 %v869
  %1229 = vmatpush1.bf16.msra.mxu0 %v868
  %1230 = vmatprep.subr.bf16.mxu0 %v867
  %1231 = vmatpush1.bf16.msra.mxu0 %v866
  %1232 = vmatprep.subr.bf16.mxu0 %v865
  %1233 = vmatpush1.bf16.msra.mxu0 %v864
  %1234 = vmatprep.subr.bf16.mxu0 %v863
  %1235 = vmatpush1.bf16.msra.mxu0 %v862
  %1236 = vmatprep.subr.bf16.mxu0 %v861
  %1237 = vmatpush1.bf16.msra.mxu0 %v860
  %1238 = vmatprep.subr.bf16.mxu0 %v859
  %1239 = vmatpush1.bf16.msra.mxu0 %v858
  %1240 = vmatprep.subr.bf16.mxu0 %v857
  %1241 = vmatpush1.bf16.msra.mxu0 %v856
  %1242 = vmatprep.subr.bf16.mxu0 %v855
  %1243 = vmatpush1.bf16.msra.mxu0 %v854
  %1244 = vmatprep.subr.bf16.mxu0 %v885
  %1245 = vmatpush2.bf16.msra.mxu0 %v884
  %1246 = vmatprep.subr.bf16.mxu0 %v883
  %1247 = vmatpush2.bf16.msra.mxu0 %v882
  %1248 = vmatprep.subr.bf16.mxu0 %v881
  %1249 = vmatpush2.bf16.msra.mxu0 %v880
  %1250 = vmatprep.subr.bf16.mxu0 %v879
  %1251 = vmatpush2.bf16.msra.mxu0 %v878
  %1252 = vmatprep.subr.bf16.mxu0 %v877
  %1253 = vmatpush2.bf16.msra.mxu0 %v876
  %1254 = vmatprep.subr.bf16.mxu0 %v875
  %1255 = vmatpush2.bf16.msra.mxu0 %v874
  %1256 = vmatprep.subr.bf16.mxu0 %v873
  %1257 = vmatpush2.bf16.msra.mxu0 %v872
  %1258 = vmatprep.subr.bf16.mxu0 %v871
  %1259 = vmatpush2.bf16.msra.mxu0 %v870
  %1260 = vmatprep.mubr.bf16.mxu0 %v245
  %1261 = vmatmul.mubr.bf16.gmra.mxu0 %v244
  %v1262 = vpop.f32.mrf.mxu0
  %v1263 = vadd.f32 %v1220, %v1262
  %v1264 = vpop.f32.mrf.mxu0
  %v1265 = vadd.f32 %v1222, %v1264
  %v1266 = vpop.f32.mrf.mxu0
  %v1267 = vadd.f32 %v1224, %v1266
  %v1268 = vpop.f32.mrf.mxu0
  %v1269 = vadd.f32 %v1226, %v1268
  %1270 = vdwg.mxu0
  %1271 = vmatprep.subr.bf16.mxu0 %v901
  %1272 = vmatpush1.bf16.msra.mxu0 %v900
  %1273 = vmatprep.subr.bf16.mxu0 %v899
  %1274 = vmatpush1.bf16.msra.mxu0 %v898
  %1275 = vmatprep.subr.bf16.mxu0 %v897
  %1276 = vmatpush1.bf16.msra.mxu0 %v896
  %1277 = vmatprep.subr.bf16.mxu0 %v895
  %1278 = vmatpush1.bf16.msra.mxu0 %v894
  %1279 = vmatprep.subr.bf16.mxu0 %v893
  %1280 = vmatpush1.bf16.msra.mxu0 %v892
  %1281 = vmatprep.subr.bf16.mxu0 %v891
  %1282 = vmatpush1.bf16.msra.mxu0 %v890
  %1283 = vmatprep.subr.bf16.mxu0 %v889
  %1284 = vmatpush1.bf16.msra.mxu0 %v888
  %1285 = vmatprep.subr.bf16.mxu0 %v887
  %1286 = vmatpush1.bf16.msra.mxu0 %v886
  %1287 = vmatprep.subr.bf16.mxu0 %v917
  %1288 = vmatpush2.bf16.msra.mxu0 %v916
  %1289 = vmatprep.subr.bf16.mxu0 %v915
  %1290 = vmatpush2.bf16.msra.mxu0 %v914
  %1291 = vmatprep.subr.bf16.mxu0 %v913
  %1292 = vmatpush2.bf16.msra.mxu0 %v912
  %1293 = vmatprep.subr.bf16.mxu0 %v911
  %1294 = vmatpush2.bf16.msra.mxu0 %v910
  %1295 = vmatprep.subr.bf16.mxu0 %v909
  %1296 = vmatpush2.bf16.msra.mxu0 %v908
  %1297 = vmatprep.subr.bf16.mxu0 %v907
  %1298 = vmatpush2.bf16.msra.mxu0 %v906
  %1299 = vmatprep.subr.bf16.mxu0 %v905
  %1300 = vmatpush2.bf16.msra.mxu0 %v904
  %1301 = vmatprep.subr.bf16.mxu0 %v903
  %1302 = vmatpush2.bf16.msra.mxu0 %v902
  %1303 = vmatprep.mubr.bf16.mxu0 %v247
  %1304 = vmatmul.mubr.bf16.gmra.mxu0 %v246
  %v1305 = vpop.f32.mrf.mxu0
  %v1306 = vadd.f32 %v1263, %v1305
  %v1307 = vpop.f32.mrf.mxu0
  %v1308 = vadd.f32 %v1265, %v1307
  %v1309 = vpop.f32.mrf.mxu0
  %v1310 = vadd.f32 %v1267, %v1309
  %v1311 = vpop.f32.mrf.mxu0
  %v1312 = vadd.f32 %v1269, %v1311
  %1313 = vdwg.mxu0
  %1314 = vmatprep.subr.bf16.mxu0 %v933
  %1315 = vmatpush1.bf16.msra.mxu0 %v932
  %1316 = vmatprep.subr.bf16.mxu0 %v931
  %1317 = vmatpush1.bf16.msra.mxu0 %v930
  %1318 = vmatprep.subr.bf16.mxu0 %v929
  %1319 = vmatpush1.bf16.msra.mxu0 %v928
  %1320 = vmatprep.subr.bf16.mxu0 %v927
  %1321 = vmatpush1.bf16.msra.mxu0 %v926
  %1322 = vmatprep.subr.bf16.mxu0 %v925
  %1323 = vmatpush1.bf16.msra.mxu0 %v924
  %1324 = vmatprep.subr.bf16.mxu0 %v923
  %1325 = vmatpush1.bf16.msra.mxu0 %v922
  %1326 = vmatprep.subr.bf16.mxu0 %v921
  %1327 = vmatpush1.bf16.msra.mxu0 %v920
  %1328 = vmatprep.subr.bf16.mxu0 %v919
  %1329 = vmatpush1.bf16.msra.mxu0 %v918
  %1330 = vmatprep.subr.bf16.mxu0 %v949
  %1331 = vmatpush2.bf16.msra.mxu0 %v948
  %1332 = vmatprep.subr.bf16.mxu0 %v947
  %1333 = vmatpush2.bf16.msra.mxu0 %v946
  %1334 = vmatprep.subr.bf16.mxu0 %v945
  %1335 = vmatpush2.bf16.msra.mxu0 %v944
  %1336 = vmatprep.subr.bf16.mxu0 %v943
  %1337 = vmatpush2.bf16.msra.mxu0 %v942
  %1338 = vmatprep.subr.bf16.mxu0 %v941
  %1339 = vmatpush2.bf16.msra.mxu0 %v940
  %1340 = vmatprep.subr.bf16.mxu0 %v939
  %1341 = vmatpush2.bf16.msra.mxu0 %v938
  %1342 = vmatprep.subr.bf16.mxu0 %v937
  %1343 = vmatpush2.bf16.msra.mxu0 %v936
  %1344 = vmatprep.subr.bf16.mxu0 %v935
  %1345 = vmatpush2.bf16.msra.mxu0 %v934
  %1346 = vmatprep.mubr.bf16.mxu0 %v249
  %1347 = vmatmul.mubr.bf16.gmra.mxu0 %v248
  %v1348 = vpop.f32.mrf.mxu0
  %v1349 = vadd.f32 %v1306, %v1348
  %v1350 = vpop.f32.mrf.mxu0
  %v1351 = vadd.f32 %v1308, %v1350
  %v1352 = vpop.f32.mrf.mxu0
  %v1353 = vadd.f32 %v1310, %v1352
  %v1354 = vpop.f32.mrf.mxu0
  %v1355 = vadd.f32 %v1312, %v1354
  %1356 = vdwg.mxu0
  %1357 = vmatprep.subr.bf16.mxu0 %v965
  %1358 = vmatpush1.bf16.msra.mxu0 %v964
  %1359 = vmatprep.subr.bf16.mxu0 %v963
  %1360 = vmatpush1.bf16.msra.mxu0 %v962
  %1361 = vmatprep.subr.bf16.mxu0 %v961
  %1362 = vmatpush1.bf16.msra.mxu0 %v960
  %1363 = vmatprep.subr.bf16.mxu0 %v959
  %1364 = vmatpush1.bf16.msra.mxu0 %v958
  %1365 = vmatprep.subr.bf16.mxu0 %v957
  %1366 = vmatpush1.bf16.msra.mxu0 %v956
  %1367 = vmatprep.subr.bf16.mxu0 %v955
  %1368 = vmatpush1.bf16.msra.mxu0 %v954
  %1369 = vmatprep.subr.bf16.mxu0 %v953
  %1370 = vmatpush1.bf16.msra.mxu0 %v952
  %1371 = vmatprep.subr.bf16.mxu0 %v951
  %1372 = vmatpush1.bf16.msra.mxu0 %v950
  %1373 = vmatprep.subr.bf16.mxu0 0
  %1374 = vmatpush2.bf16.msra.mxu0 0
  %1375 = vmatprep.subr.bf16.mxu0 0
  %1376 = vmatpush2.bf16.msra.mxu0 0
  %1377 = vmatprep.subr.bf16.mxu0 0
  %1378 = vmatpush2.bf16.msra.mxu0 0
  %1379 = vmatprep.subr.bf16.mxu0 0
  %1380 = vmatpush2.bf16.msra.mxu0 0
  %1381 = vmatprep.subr.bf16.mxu0 0
  %1382 = vmatpush2.bf16.msra.mxu0 0
  %1383 = vmatprep.subr.bf16.mxu0 0
  %1384 = vmatpush2.bf16.msra.mxu0 0
  %1385 = vmatprep.subr.bf16.mxu0 0
  %1386 = vmatpush2.bf16.msra.mxu0 0
  %1387 = vmatprep.subr.bf16.mxu0 0
  %1388 = vmatpush2.bf16.msra.mxu0 0
  %1389 = vmatprep.mubr.bf16.mxu0 0
  %1390 = vmatmul.mubr.bf16.gmra.mxu0 %v250
  %v1391 = vpop.f32.mrf.mxu0
  %v1392 = vadd.f32 %v1349, %v1391
  %v1393 = vpop.f32.mrf.mxu0
  %v1394 = vadd.f32 %v1351, %v1393
  %v1395 = vpop.f32.mrf.mxu0
  %v1396 = vadd.f32 %v1353, %v1395
  %v1397 = vpop.f32.mrf.mxu0
  %v1398 = vadd.f32 %v1355, %v1397
  %1399 = vdwg.mxu0
  %v1400 = vld [vmem:[%s2] sm:$0x3]
  %v1402 = vlaneseq
  %v1403 = vshrl.u32 %v1402, 7
  %v1404 = vsub.s32 0, %v1403
  %v1405 = vrot.slane %v1400, %v1404
  %v1406 = vlaneseq
  %v1407 = vshrl.u32 %v1406, 7
  %v1408 = vsub.s32 1, %v1407
  %v1409 = vrot.slane %v1400, %v1408
  %v1412 = vmul.f32 %v1392, %v1405
  %v1413 = vmul.f32 %v1394, %v1409
  %v1414 = vmul.f32 %v1396, %v1405
  %v1415 = vmul.f32 %v1398, %v1409
  %v1416 = vld [vmem:[%s3] sm:$0x3]
  %v1418 = vlaneseq
  %v1419 = vshrl.u32 %v1418, 7
  %v1420 = vsub.s32 0, %v1419
  %v1421 = vrot.slane %v1416, %v1420
  %v1422 = vlaneseq
  %v1423 = vshrl.u32 %v1422, 7
  %v1424 = vsub.s32 1, %v1423
  %v1425 = vrot.slane %v1416, %v1424
  %v1428 = vadd.f32 %v1412, %v1421
  %v1429 = vadd.f32 %v1413, %v1425
  %v1430 = vadd.f32 %v1414, %v1421
  %v1431 = vadd.f32 %v1415, %v1425
  %v1432 = vmax.f32 %v1428, 0.0
  %v1433 = vmax.f32 %v1429, 0.0
  %v1434 = vmax.f32 %v1430, 0.0
  %v1435 = vmax.f32 %v1431, 0.0
  %v1436 = vpack.c.bf16 %v1434, %v1432
  %v1437 = vpack.c.bf16 %v1435, %v1433
  %v1440 = vunpack.c.l.b16 %v1436
  %v1441 = vunpack.c.l.b16 %v1437
  %v1442 = vunpack.c.h.b16 %v1436
  %v1443 = vunpack.c.h.b16 %v1437
  %v1444 = vpack.c.b16 %v1441, %v1440
  %v1445 = vpack.c.b16 %v1443, %v1442
  %1448 = vst [vmem:[%s4] sm:$0xff] %v1444
  %1449 = vst [vmem:[%s4 + $0x8] sm:$0xff] %v1445
  // Predicated region
  $region18: #{hrnet_forward.26} parent=0 // pred_check
    _
  $region19: #{hrnet_forward.26} parent=0 // pred_check_branch
    %1451 = sbr.rel (0) target = $region21
  $region20: #{hrnet_forward.26} parent=0 // pred_region
    _
  $region21: #{hrnet_forward.26} parent=0 // pred_fallthru
    _
  // Predicated region
  $region22: #{hrnet_forward.26} parent=0 // pred_check
    _
  $region23: #{hrnet_forward.26} parent=0 // pred_check_branch
    %1453 = sbr.rel (0) target = $region25
  $region24: #{hrnet_forward.26} parent=0 // pred_region
    _
  $region25: #{hrnet_forward.26} parent=0 // pred_fallthru
    _

// kernel: hrnet_forward.27
$region0: #{hrnet_forward.27}
  #allocation0 [shape = 'u32[]', space=smem, size = 0x4, offset = 0x4, fixed_abs, tag = 'smem constant byte address 0x4 - core index']
  #allocation1 [shape = 'u32[144,128]{1,0:T(1,128)}', space=vmem, size = 0x12000, scoped, tag = 'internal scratch']
  %s0 = inlined_call_operand.vmem [shape: bf16[16,384], index: 0, kind: input, shape index: {}]
  %s1 = inlined_call_operand.vmem [shape: bf16[384,256], index: 1, kind: input, shape index: {}]
  %s2 = inlined_call_operand.vmem [shape: f32[1,256], index: 2, kind: input, shape index: {}]
  %s3 = inlined_call_operand.vmem [shape: f32[1,256], index: 3, kind: input, shape index: {}]
  %s4 = inlined_call_operand.vmem [shape: bf16[16,256], index: 4, kind: output, shape index: {}]
  %s5 = sld [smem:[#allocation0]]
  $region26: #{hrnet_forward.27} parent=0
    _
  %s7 = ssub.s32 1, %s5
  %s8 = scalar_select 0, %s7, %s5
  // Predicated region
  $region2: #{hrnet_forward.27} parent=0 // pred_check
    _
  $region3: #{hrnet_forward.27} parent=0 // pred_check_branch
    %10 = sbr.rel (0) target = $region5
  $region4: #{hrnet_forward.27} parent=0 // pred_region
    _
  $region5: #{hrnet_forward.27} parent=0 // pred_fallthru
    _
  // Predicated region
  $region6: #{hrnet_forward.27} parent=0 // pred_check
    _
  $region7: #{hrnet_forward.27} parent=0 // pred_check_branch
    %12 = sbr.rel (0) target = $region9
  $region8: #{hrnet_forward.27} parent=0 // pred_region
    _
  $region9: #{hrnet_forward.27} parent=0 // pred_fallthru
    _
  // Predicated region
  $region10: #{hrnet_forward.27} parent=0 // pred_check
    _
  $region11: #{hrnet_forward.27} parent=0 // pred_check_branch
    %14 = sbr.rel (0) target = $region13
  $region12: #{hrnet_forward.27} parent=0 // pred_region
    _
  $region13: #{hrnet_forward.27} parent=0 // pred_fallthru
    _
  // Predicated region
  $region14: #{hrnet_forward.27} parent=0 // pred_check
    _
  $region15: #{hrnet_forward.27} parent=0 // pred_check_branch
    %16 = sbr.rel (0) target = $region17
  $region16: #{hrnet_forward.27} parent=0 // pred_region
    _
  $region17: #{hrnet_forward.27} parent=0 // pred_fallthru
    _
  %v18 = vld [vmem:[%s0] sm:$0xff]
  %v19 = vld [vmem:[%s0 + $0x8] sm:$0xf]
  %v20 = vld [vmem:[%s0 + $0xc] sm:$0xff]
  %v21 = vld [vmem:[%s0 + $0x14] sm:$0xf]
  %v22 = vld [vmem:[%s1] sm:$0xff]
  %v23 = vld [vmem:[%s1 + $0x8] sm:$0xff]
  %v24 = vld [vmem:[%s1 + $0x10] sm:$0xff]
  %v25 = vld [vmem:[%s1 + $0x18] sm:$0xff]
  %v26 = vld [vmem:[%s1 + $0x20] sm:$0xff]
  %v27 = vld [vmem:[%s1 + $0x28] sm:$0xff]
  %v28 = vld [vmem:[%s1 + $0x30] sm:$0xff]
  %v29 = vld [vmem:[%s1 + $0x38] sm:$0xff]
  %v30 = vld [vmem:[%s1 + $0x40] sm:$0xff]
  %v31 = vld [vmem:[%s1 + $0x48] sm:$0xff]
  %v32 = vld [vmem:[%s1 + $0x50] sm:$0xff]
  %v33 = vld [vmem:[%s1 + $0x58] sm:$0xff]
  %v34 = vld [vmem:[%s1 + $0x60] sm:$0xff]
  %v35 = vld [vmem:[%s1 + $0x68] sm:$0xff]
  %v36 = vld [vmem:[%s1 + $0x70] sm:$0xff]
  %v37 = vld [vmem:[%s1 + $0x78] sm:$0xff]
  %v38 = vld [vmem:[%s1 + $0x80] sm:$0xff]
  %v39 = vld [vmem:[%s1 + $0x88] sm:$0xff]
  %v40 = vld [vmem:[%s1 + $0x90] sm:$0xff]
  %v41 = vld [vmem:[%s1 + $0x98] sm:$0xff]
  %v42 = vld [vmem:[%s1 + $0xa0] sm:$0xff]
  %v43 = vld [vmem:[%s1 + $0xa8] sm:$0xff]
  %v44 = vld [vmem:[%s1 + $0xb0] sm:$0xff]
  %v45 = vld [vmem:[%s1 + $0xb8] sm:$0xff]
  %v46 = vld [vmem:[%s1 + $0xc0] sm:$0xff]
  %v47 = vld [vmem:[%s1 + $0xc8] sm:$0xff]
  %v48 = vld [vmem:[%s1 + $0xd0] sm:$0xff]
  %v49 = vld [vmem:[%s1 + $0xd8] sm:$0xff]
  %v50 = vld [vmem:[%s1 + $0xe0] sm:$0xff]
  %v51 = vld [vmem:[%s1 + $0xe8] sm:$0xff]
  %v52 = vld [vmem:[%s1 + $0xf0] sm:$0xff]
  %v53 = vld [vmem:[%s1 + $0xf8] sm:$0xff]
  %v54 = vld [vmem:[%s1 + $0x100] sm:$0xff]
  %v55 = vld [vmem:[%s1 + $0x108] sm:$0xff]
  %v56 = vld [vmem:[%s1 + $0x110] sm:$0xff]
  %v57 = vld [vmem:[%s1 + $0x118] sm:$0xff]
  %v58 = vld [vmem:[%s1 + $0x120] sm:$0xff]
  %v59 = vld [vmem:[%s1 + $0x128] sm:$0xff]
  %v60 = vld [vmem:[%s1 + $0x130] sm:$0xff]
  %v61 = vld [vmem:[%s1 + $0x138] sm:$0xff]
  %v62 = vld [vmem:[%s1 + $0x140] sm:$0xff]
  %v63 = vld [vmem:[%s1 + $0x148] sm:$0xff]
  %v64 = vld [vmem:[%s1 + $0x150] sm:$0xff]
  %v65 = vld [vmem:[%s1 + $0x158] sm:$0xff]
  %v66 = vld [vmem:[%s1 + $0x160] sm:$0xff]
  %v67 = vld [vmem:[%s1 + $0x168] sm:$0xff]
  %v68 = vld [vmem:[%s1 + $0x170] sm:$0xff]
  %v69 = vld [vmem:[%s1 + $0x178] sm:$0xff]
  %v74 = vunpack.c.l.b16 %v18
  %v75 = vunpack.c.h.b16 %v18
  %v76 = vunpack.c.l.b16 %v19
  %v77 = vunpack.c.l.b16 %v20
  %v78 = vunpack.c.h.b16 %v20
  %v79 = vunpack.c.l.b16 %v21
  %v80 = vpack.c.b16 %v77, %v74
  %v81 = vpack.c.b16 %v78, %v75
  %v82 = vpack.c.b16 %v79, %v76
  %v134 = vunpack.c.l.b16 %v22
  %v135 = vunpack.c.h.b16 %v22
  %v136 = vunpack.c.l.b16 %v23
  %v137 = vunpack.c.h.b16 %v23
  %v138 = vunpack.c.l.b16 %v24
  %v139 = vunpack.c.h.b16 %v24
  %v140 = vunpack.c.l.b16 %v25
  %v141 = vunpack.c.h.b16 %v25
  %v142 = vunpack.c.l.b16 %v26
  %v143 = vunpack.c.h.b16 %v26
  %v144 = vunpack.c.l.b16 %v27
  %v145 = vunpack.c.h.b16 %v27
  %v146 = vunpack.c.l.b16 %v28
  %v147 = vunpack.c.h.b16 %v28
  %v148 = vunpack.c.l.b16 %v29
  %v149 = vunpack.c.h.b16 %v29
  %v150 = vunpack.c.l.b16 %v30
  %v151 = vunpack.c.h.b16 %v30
  %v152 = vunpack.c.l.b16 %v31
  %v153 = vunpack.c.h.b16 %v31
  %v154 = vunpack.c.l.b16 %v32
  %v155 = vunpack.c.h.b16 %v32
  %v156 = vunpack.c.l.b16 %v33
  %v157 = vunpack.c.h.b16 %v33
  %v158 = vunpack.c.l.b16 %v34
  %v159 = vunpack.c.h.b16 %v34
  %v160 = vunpack.c.l.b16 %v35
  %v161 = vunpack.c.h.b16 %v35
  %v162 = vunpack.c.l.b16 %v36
  %v163 = vunpack.c.h.b16 %v36
  %v164 = vunpack.c.l.b16 %v37
  %v165 = vunpack.c.h.b16 %v37
  %v166 = vunpack.c.l.b16 %v38
  %v167 = vunpack.c.h.b16 %v38
  %v168 = vunpack.c.l.b16 %v39
  %v169 = vunpack.c.h.b16 %v39
  %v170 = vunpack.c.l.b16 %v40
  %v171 = vunpack.c.h.b16 %v40
  %v172 = vunpack.c.l.b16 %v41
  %v173 = vunpack.c.h.b16 %v41
  %v174 = vunpack.c.l.b16 %v42
  %v175 = vunpack.c.h.b16 %v42
  %v176 = vunpack.c.l.b16 %v43
  %v177 = vunpack.c.h.b16 %v43
  %v178 = vunpack.c.l.b16 %v44
  %v179 = vunpack.c.h.b16 %v44
  %v180 = vunpack.c.l.b16 %v45
  %v181 = vunpack.c.h.b16 %v45
  %v182 = vunpack.c.l.b16 %v46
  %v183 = vunpack.c.h.b16 %v46
  %v184 = vunpack.c.l.b16 %v47
  %v185 = vunpack.c.h.b16 %v47
  %v186 = vunpack.c.l.b16 %v48
  %v187 = vunpack.c.h.b16 %v48
  %v188 = vunpack.c.l.b16 %v49
  %v189 = vunpack.c.h.b16 %v49
  %v190 = vunpack.c.l.b16 %v50
  %v191 = vunpack.c.h.b16 %v50
  %v192 = vunpack.c.l.b16 %v51
  %v193 = vunpack.c.h.b16 %v51
  %v194 = vunpack.c.l.b16 %v52
  %v195 = vunpack.c.h.b16 %v52
  %v196 = vunpack.c.l.b16 %v53
  %v197 = vunpack.c.h.b16 %v53
  %v198 = vunpack.c.l.b16 %v54
  %v199 = vunpack.c.h.b16 %v54
  %v200 = vunpack.c.l.b16 %v55
  %v201 = vunpack.c.h.b16 %v55
  %v202 = vunpack.c.l.b16 %v56
  %v203 = vunpack.c.h.b16 %v56
  %v204 = vunpack.c.l.b16 %v57
  %v205 = vunpack.c.h.b16 %v57
  %v206 = vunpack.c.l.b16 %v58
  %v207 = vunpack.c.h.b16 %v58
  %v208 = vunpack.c.l.b16 %v59
  %v209 = vunpack.c.h.b16 %v59
  %v210 = vunpack.c.l.b16 %v60
  %v211 = vunpack.c.h.b16 %v60
  %v212 = vunpack.c.l.b16 %v61
  %v213 = vunpack.c.h.b16 %v61
  %v214 = vunpack.c.l.b16 %v62
  %v215 = vunpack.c.h.b16 %v62
  %v216 = vunpack.c.l.b16 %v63
  %v217 = vunpack.c.h.b16 %v63
  %v218 = vunpack.c.l.b16 %v64
  %v219 = vunpack.c.h.b16 %v64
  %v220 = vunpack.c.l.b16 %v65
  %v221 = vunpack.c.h.b16 %v65
  %v222 = vunpack.c.l.b16 %v66
  %v223 = vunpack.c.h.b16 %v66
  %v224 = vunpack.c.l.b16 %v67
  %v225 = vunpack.c.h.b16 %v67
  %v226 = vunpack.c.l.b16 %v68
  %v227 = vunpack.c.h.b16 %v68
  %v228 = vunpack.c.l.b16 %v69
  %v229 = vunpack.c.h.b16 %v69
  %v230 = vpack.c.b16 %v136, %v134
  %v231 = vpack.c.b16 %v137, %v135
  %v232 = vpack.c.b16 %v140, %v138
  %v233 = vpack.c.b16 %v141, %v139
  %v234 = vpack.c.b16 %v144, %v142
  %v235 = vpack.c.b16 %v145, %v143
  %v236 = vpack.c.b16 %v148, %v146
  %v237 = vpack.c.b16 %v149, %v147
  %v238 = vpack.c.b16 %v152, %v150
  %v239 = vpack.c.b16 %v153, %v151
  %v240 = vpack.c.b16 %v156, %v154
  %v241 = vpack.c.b16 %v157, %v155
  %v242 = vpack.c.b16 %v160, %v158
  %v243 = vpack.c.b16 %v161, %v159
  %v244 = vpack.c.b16 %v164, %v162
  %v245 = vpack.c.b16 %v165, %v163
  %v246 = vpack.c.b16 %v168, %v166
  %v247 = vpack.c.b16 %v169, %v167
  %v248 = vpack.c.b16 %v172, %v170
  %v249 = vpack.c.b16 %v173, %v171
  %v250 = vpack.c.b16 %v176, %v174
  %v251 = vpack.c.b16 %v177, %v175
  %v252 = vpack.c.b16 %v180, %v178
  %v253 = vpack.c.b16 %v181, %v179
  %v254 = vpack.c.b16 %v184, %v182
  %v255 = vpack.c.b16 %v185, %v183
  %v256 = vpack.c.b16 %v188, %v186
  %v257 = vpack.c.b16 %v189, %v187
  %v258 = vpack.c.b16 %v192, %v190
  %v259 = vpack.c.b16 %v193, %v191
  %v260 = vpack.c.b16 %v196, %v194
  %v261 = vpack.c.b16 %v197, %v195
  %v262 = vpack.c.b16 %v200, %v198
  %v263 = vpack.c.b16 %v201, %v199
  %v264 = vpack.c.b16 %v204, %v202
  %v265 = vpack.c.b16 %v205, %v203
  %v266 = vpack.c.b16 %v208, %v206
  %v267 = vpack.c.b16 %v209, %v207
  %v268 = vpack.c.b16 %v212, %v210
  %v269 = vpack.c.b16 %v213, %v211
  %v270 = vpack.c.b16 %v216, %v214
  %v271 = vpack.c.b16 %v217, %v215
  %v272 = vpack.c.b16 %v220, %v218
  %v273 = vpack.c.b16 %v221, %v219
  %v274 = vpack.c.b16 %v224, %v222
  %v275 = vpack.c.b16 %v225, %v223
  %v276 = vpack.c.b16 %v228, %v226
  %v277 = vpack.c.b16 %v229, %v227
  %326 = vmatprep.subr.bf16.mxu0 %v245
  %327 = vmatpush1.bf16.msra.mxu0 %v244
  %328 = vmatprep.subr.bf16.mxu0 %v243
  %329 = vmatpush1.bf16.msra.mxu0 %v242
  %330 = vmatprep.subr.bf16.mxu0 %v241
  %331 = vmatpush1.bf16.msra.mxu0 %v240
  %332 = vmatprep.subr.bf16.mxu0 %v239
  %333 = vmatpush1.bf16.msra.mxu0 %v238
  %334 = vmatprep.subr.bf16.mxu0 %v237
  %335 = vmatpush1.bf16.msra.mxu0 %v236
  %336 = vmatprep.subr.bf16.mxu0 %v235
  %337 = vmatpush1.bf16.msra.mxu0 %v234
  %338 = vmatprep.subr.bf16.mxu0 %v233
  %339 = vmatpush1.bf16.msra.mxu0 %v232
  %340 = vmatprep.subr.bf16.mxu0 %v231
  %341 = vmatpush1.bf16.msra.mxu0 %v230
  %342 = vmatprep.subr.bf16.mxu0 %v261
  %343 = vmatpush2.bf16.msra.mxu0 %v260
  %344 = vmatprep.subr.bf16.mxu0 %v259
  %345 = vmatpush2.bf16.msra.mxu0 %v258
  %346 = vmatprep.subr.bf16.mxu0 %v257
  %347 = vmatpush2.bf16.msra.mxu0 %v256
  %348 = vmatprep.subr.bf16.mxu0 %v255
  %349 = vmatpush2.bf16.msra.mxu0 %v254
  %350 = vmatprep.subr.bf16.mxu0 %v253
  %351 = vmatpush2.bf16.msra.mxu0 %v252
  %352 = vmatprep.subr.bf16.mxu0 %v251
  %353 = vmatpush2.bf16.msra.mxu0 %v250
  %354 = vmatprep.subr.bf16.mxu0 %v249
  %355 = vmatpush2.bf16.msra.mxu0 %v248
  %356 = vmatprep.subr.bf16.mxu0 %v247
  %357 = vmatpush2.bf16.msra.mxu0 %v246
  %358 = vmatprep.mubr.bf16.mxu0 %v81
  %359 = vmatmul.mubr.bf16.gmra.mxu0 %v80
  %v360 = vpop.f32.mrf.mxu0
  %v361 = vadd.f32 0.0, %v360
  %v362 = vpop.f32.mrf.mxu0
  %v363 = vadd.f32 0.0, %v362
  %v364 = vpop.f32.mrf.mxu0
  %v365 = vadd.f32 0.0, %v364
  %v366 = vpop.f32.mrf.mxu0
  %v367 = vadd.f32 0.0, %v366
  %368 = vdwg.mxu0
  %369 = vmatprep.subr.bf16.mxu0 %v277
  %370 = vmatpush1.bf16.msra.mxu0 %v276
  %371 = vmatprep.subr.bf16.mxu0 %v275
  %372 = vmatpush1.bf16.msra.mxu0 %v274
  %373 = vmatprep.subr.bf16.mxu0 %v273
  %374 = vmatpush1.bf16.msra.mxu0 %v272
  %375 = vmatprep.subr.bf16.mxu0 %v271
  %376 = vmatpush1.bf16.msra.mxu0 %v270
  %377 = vmatprep.subr.bf16.mxu0 %v269
  %378 = vmatpush1.bf16.msra.mxu0 %v268
  %379 = vmatprep.subr.bf16.mxu0 %v267
  %380 = vmatpush1.bf16.msra.mxu0 %v266
  %381 = vmatprep.subr.bf16.mxu0 %v265
  %382 = vmatpush1.bf16.msra.mxu0 %v264
  %383 = vmatprep.subr.bf16.mxu0 %v263
  %384 = vmatpush1.bf16.msra.mxu0 %v262
  %385 = vmatprep.subr.bf16.mxu0 0
  %386 = vmatpush2.bf16.msra.mxu0 0
  %387 = vmatprep.subr.bf16.mxu0 0
  %388 = vmatpush2.bf16.msra.mxu0 0
  %389 = vmatprep.subr.bf16.mxu0 0
  %390 = vmatpush2.bf16.msra.mxu0 0
  %391 = vmatprep.subr.bf16.mxu0 0
  %392 = vmatpush2.bf16.msra.mxu0 0
  %393 = vmatprep.subr.bf16.mxu0 0
  %394 = vmatpush2.bf16.msra.mxu0 0
  %395 = vmatprep.subr.bf16.mxu0 0
  %396 = vmatpush2.bf16.msra.mxu0 0
  %397 = vmatprep.subr.bf16.mxu0 0
  %398 = vmatpush2.bf16.msra.mxu0 0
  %399 = vmatprep.subr.bf16.mxu0 0
  %400 = vmatpush2.bf16.msra.mxu0 0
  %401 = vmatprep.mubr.bf16.mxu0 0
  %402 = vmatmul.mubr.bf16.gmra.mxu0 %v82
  %v403 = vpop.f32.mrf.mxu0
  %v404 = vadd.f32 %v361, %v403
  %v405 = vpop.f32.mrf.mxu0
  %v406 = vadd.f32 %v363, %v405
  %v407 = vpop.f32.mrf.mxu0
  %v408 = vadd.f32 %v365, %v407
  %v409 = vpop.f32.mrf.mxu0
  %v410 = vadd.f32 %v367, %v409
  %411 = vdwg.mxu0
  %v412 = vld [vmem:[%s2] sm:$0x3]
  %v414 = vlaneseq
  %v415 = vshrl.u32 %v414, 7
  %v416 = vsub.s32 0, %v415
  %v417 = vrot.slane %v412, %v416
  %v418 = vlaneseq
  %v419 = vshrl.u32 %v418, 7
  %v420 = vsub.s32 1, %v419
  %v421 = vrot.slane %v412, %v420
  %v424 = vmul.f32 %v404, %v417
  %v425 = vmul.f32 %v406, %v421
  %v426 = vmul.f32 %v408, %v417
  %v427 = vmul.f32 %v410, %v421
  %v428 = vld [vmem:[%s3] sm:$0x3]
  %v430 = vlaneseq
  %v431 = vshrl.u32 %v430, 7
  %v432 = vsub.s32 0, %v431
  %v433 = vrot.slane %v428, %v432
  %v434 = vlaneseq
  %v435 = vshrl.u32 %v434, 7
  %v436 = vsub.s32 1, %v435
  %v437 = vrot.slane %v428, %v436
  %v440 = vadd.f32 %v424, %v433
  %v441 = vadd.f32 %v425, %v437
  %v442 = vadd.f32 %v426, %v433
  %v443 = vadd.f32 %v427, %v437
  %v444 = vpack.c.bf16 %v442, %v440
  %v445 = vpack.c.bf16 %v443, %v441
  %v448 = vunpack.c.l.b16 %v444
  %v449 = vunpack.c.l.b16 %v445
  %v450 = vunpack.c.h.b16 %v444
  %v451 = vunpack.c.h.b16 %v445
  %v452 = vpack.c.b16 %v449, %v448
  %v453 = vpack.c.b16 %v451, %v450
  %456 = vst [vmem:[%s4] sm:$0xff] %v452
  %457 = vst [vmem:[%s4 + $0x8] sm:$0xff] %v453
  // Predicated region
  $region18: #{hrnet_forward.27} parent=0 // pred_check
    _
  $region19: #{hrnet_forward.27} parent=0 // pred_check_branch
    %459 = sbr.rel (0) target = $region21
  $region20: #{hrnet_forward.27} parent=0 // pred_region
    _
  $region21: #{hrnet_forward.27} parent=0 // pred_fallthru
    _
  // Predicated region
  $region22: #{hrnet_forward.27} parent=0 // pred_check
    _
  $region23: #{hrnet_forward.27} parent=0 // pred_check_branch
    %461 = sbr.rel (0) target = $region25
  $region24: #{hrnet_forward.27} parent=0 // pred_region
    _
  $region25: #{hrnet_forward.27} parent=0 // pred_fallthru
    _

// kernel: hrnet_forward.40
$region0: #{hrnet_forward.40}
  #allocation0 [shape = 'u32[]', space=smem, size = 0x4, offset = 0x4, fixed_abs, tag = 'smem constant byte address 0x4 - core index']
  #allocation1 [shape = 'u32[144,128]{1,0:T(1,128)}', space=vmem, size = 0x12000, scoped, tag = 'internal scratch']
  %s0 = inlined_call_operand.vmem [shape: bf16[16,256], index: 0, kind: input, shape index: {}]
  %s1 = inlined_call_operand.vmem [shape: bf16[256,128], index: 1, kind: input, shape index: {}]
  %s2 = inlined_call_operand.vmem [shape: f32[1,128], index: 2, kind: input, shape index: {}]
  %s3 = inlined_call_operand.vmem [shape: f32[1,128], index: 3, kind: input, shape index: {}]
  %s4 = inlined_call_operand.vmem [shape: bf16[16,128], index: 4, kind: output, shape index: {}]
  %s5 = sld [smem:[#allocation0]]
  $region26: #{hrnet_forward.40} parent=0
    _
  %s7 = ssub.s32 1, %s5
  %s8 = scalar_select 0, %s7, %s5
  // Predicated region
  $region2: #{hrnet_forward.40} parent=0 // pred_check
    _
  $region3: #{hrnet_forward.40} parent=0 // pred_check_branch
    %10 = sbr.rel (0) target = $region5
  $region4: #{hrnet_forward.40} parent=0 // pred_region
    _
  $region5: #{hrnet_forward.40} parent=0 // pred_fallthru
    _
  // Predicated region
  $region6: #{hrnet_forward.40} parent=0 // pred_check
    _
  $region7: #{hrnet_forward.40} parent=0 // pred_check_branch
    %12 = sbr.rel (0) target = $region9
  $region8: #{hrnet_forward.40} parent=0 // pred_region
    _
  $region9: #{hrnet_forward.40} parent=0 // pred_fallthru
    _
  // Predicated region
  $region10: #{hrnet_forward.40} parent=0 // pred_check
    _
  $region11: #{hrnet_forward.40} parent=0 // pred_check_branch
    %14 = sbr.rel (0) target = $region13
  $region12: #{hrnet_forward.40} parent=0 // pred_region
    _
  $region13: #{hrnet_forward.40} parent=0 // pred_fallthru
    _
  // Predicated region
  $region14: #{hrnet_forward.40} parent=0 // pred_check
    _
  $region15: #{hrnet_forward.40} parent=0 // pred_check_branch
    %16 = sbr.rel (0) target = $region17
  $region16: #{hrnet_forward.40} parent=0 // pred_region
    _
  $region17: #{hrnet_forward.40} parent=0 // pred_fallthru
    _
  %v18 = vld [vmem:[%s0] sm:$0xff]
  %v19 = vld [vmem:[%s0 + $0x8] sm:$0xff]
  %v20 = vld [vmem:[%s1] sm:$0xf]
  %v21 = vld [vmem:[%s1 + $0x4] sm:$0xf]
  %v22 = vld [vmem:[%s1 + $0x8] sm:$0xf]
  %v23 = vld [vmem:[%s1 + $0xc] sm:$0xf]
  %v24 = vld [vmem:[%s1 + $0x10] sm:$0xf]
  %v25 = vld [vmem:[%s1 + $0x14] sm:$0xf]
  %v26 = vld [vmem:[%s1 + $0x18] sm:$0xf]
  %v27 = vld [vmem:[%s1 + $0x1c] sm:$0xf]
  %v28 = vld [vmem:[%s1 + $0x20] sm:$0xf]
  %v29 = vld [vmem:[%s1 + $0x24] sm:$0xf]
  %v30 = vld [vmem:[%s1 + $0x28] sm:$0xf]
  %v31 = vld [vmem:[%s1 + $0x2c] sm:$0xf]
  %v32 = vld [vmem:[%s1 + $0x30] sm:$0xf]
  %v33 = vld [vmem:[%s1 + $0x34] sm:$0xf]
  %v34 = vld [vmem:[%s1 + $0x38] sm:$0xf]
  %v35 = vld [vmem:[%s1 + $0x3c] sm:$0xf]
  %v36 = vld [vmem:[%s1 + $0x40] sm:$0xf]
  %v37 = vld [vmem:[%s1 + $0x44] sm:$0xf]
  %v38 = vld [vmem:[%s1 + $0x48] sm:$0xf]
  %v39 = vld [vmem:[%s1 + $0x4c] sm:$0xf]
  %v40 = vld [vmem:[%s1 + $0x50] sm:$0xf]
  %v41 = vld [vmem:[%s1 + $0x54] sm:$0xf]
  %v42 = vld [vmem:[%s1 + $0x58] sm:$0xf]
  %v43 = vld [vmem:[%s1 + $0x5c] sm:$0xf]
  %v44 = vld [vmem:[%s1 + $0x60] sm:$0xf]
  %v45 = vld [vmem:[%s1 + $0x64] sm:$0xf]
  %v46 = vld [vmem:[%s1 + $0x68] sm:$0xf]
  %v47 = vld [vmem:[%s1 + $0x6c] sm:$0xf]
  %v48 = vld [vmem:[%s1 + $0x70] sm:$0xf]
  %v49 = vld [vmem:[%s1 + $0x74] sm:$0xf]
  %v50 = vld [vmem:[%s1 + $0x78] sm:$0xf]
  %v51 = vld [vmem:[%s1 + $0x7c] sm:$0xf]
  %v54 = vunpack.c.l.b16 %v18
  %v55 = vunpack.c.h.b16 %v18
  %v56 = vunpack.c.l.b16 %v19
  %v57 = vunpack.c.h.b16 %v19
  %v58 = vpack.c.b16 %v56, %v54
  %v59 = vpack.c.b16 %v57, %v55
  %v94 = vunpack.c.l.b16 %v20
  %v95 = vunpack.c.l.b16 %v21
  %v96 = vunpack.c.l.b16 %v22
  %v97 = vunpack.c.l.b16 %v23
  %v98 = vunpack.c.l.b16 %v24
  %v99 = vunpack.c.l.b16 %v25
  %v100 = vunpack.c.l.b16 %v26
  %v101 = vunpack.c.l.b16 %v27
  %v102 = vunpack.c.l.b16 %v28
  %v103 = vunpack.c.l.b16 %v29
  %v104 = vunpack.c.l.b16 %v30
  %v105 = vunpack.c.l.b16 %v31
  %v106 = vunpack.c.l.b16 %v32
  %v107 = vunpack.c.l.b16 %v33
  %v108 = vunpack.c.l.b16 %v34
  %v109 = vunpack.c.l.b16 %v35
  %v110 = vunpack.c.l.b16 %v36
  %v111 = vunpack.c.l.b16 %v37
  %v112 = vunpack.c.l.b16 %v38
  %v113 = vunpack.c.l.b16 %v39
  %v114 = vunpack.c.l.b16 %v40
  %v115 = vunpack.c.l.b16 %v41
  %v116 = vunpack.c.l.b16 %v42
  %v117 = vunpack.c.l.b16 %v43
  %v118 = vunpack.c.l.b16 %v44
  %v119 = vunpack.c.l.b16 %v45
  %v120 = vunpack.c.l.b16 %v46
  %v121 = vunpack.c.l.b16 %v47
  %v122 = vunpack.c.l.b16 %v48
  %v123 = vunpack.c.l.b16 %v49
  %v124 = vunpack.c.l.b16 %v50
  %v125 = vunpack.c.l.b16 %v51
  %v126 = vpack.c.b16 %v95, %v94
  %v127 = vpack.c.b16 %v97, %v96
  %v128 = vpack.c.b16 %v99, %v98
  %v129 = vpack.c.b16 %v101, %v100
  %v130 = vpack.c.b16 %v103, %v102
  %v131 = vpack.c.b16 %v105, %v104
  %v132 = vpack.c.b16 %v107, %v106
  %v133 = vpack.c.b16 %v109, %v108
  %v134 = vpack.c.b16 %v111, %v110
  %v135 = vpack.c.b16 %v113, %v112
  %v136 = vpack.c.b16 %v115, %v114
  %v137 = vpack.c.b16 %v117, %v116
  %v138 = vpack.c.b16 %v119, %v118
  %v139 = vpack.c.b16 %v121, %v120
  %v140 = vpack.c.b16 %v123, %v122
  %v141 = vpack.c.b16 %v125, %v124
  %158 = vmatprep.subr.bf16.mxu0 0
  %159 = vmatpush1.bf16.msra.mxu0 %v133
  %160 = vmatprep.subr.bf16.mxu0 0
  %161 = vmatpush1.bf16.msra.mxu0 %v132
  %162 = vmatprep.subr.bf16.mxu0 0
  %163 = vmatpush1.bf16.msra.mxu0 %v131
  %164 = vmatprep.subr.bf16.mxu0 0
  %165 = vmatpush1.bf16.msra.mxu0 %v130
  %166 = vmatprep.subr.bf16.mxu0 0
  %167 = vmatpush1.bf16.msra.mxu0 %v129
  %168 = vmatprep.subr.bf16.mxu0 0
  %169 = vmatpush1.bf16.msra.mxu0 %v128
  %170 = vmatprep.subr.bf16.mxu0 0
  %171 = vmatpush1.bf16.msra.mxu0 %v127
  %172 = vmatprep.subr.bf16.mxu0 0
  %173 = vmatpush1.bf16.msra.mxu0 %v126
  %174 = vmatprep.subr.bf16.mxu0 0
  %175 = vmatpush2.bf16.msra.mxu0 %v141
  %176 = vmatprep.subr.bf16.mxu0 0
  %177 = vmatpush2.bf16.msra.mxu0 %v140
  %178 = vmatprep.subr.bf16.mxu0 0
  %179 = vmatpush2.bf16.msra.mxu0 %v139
  %180 = vmatprep.subr.bf16.mxu0 0
  %181 = vmatpush2.bf16.msra.mxu0 %v138
  %182 = vmatprep.subr.bf16.mxu0 0
  %183 = vmatpush2.bf16.msra.mxu0 %v137
  %184 = vmatprep.subr.bf16.mxu0 0
  %185 = vmatpush2.bf16.msra.mxu0 %v136
  %186 = vmatprep.subr.bf16.mxu0 0
  %187 = vmatpush2.bf16.msra.mxu0 %v135
  %188 = vmatprep.subr.bf16.mxu0 0
  %189 = vmatpush2.bf16.msra.mxu0 %v134
  %190 = vmatprep.mubr.bf16.mxu0 %v59
  %191 = vmatmul.mubr.bf16.gmra.mxu0 %v58
  %v192 = vpop.f32.mrf.mxu0
  %v193 = vadd.f32 0.0, %v192
  %v194 = vpop.f32.mrf.mxu0
  %v195 = vpop.f32.mrf.mxu0
  %v196 = vadd.f32 0.0, %v195
  %v197 = vpop.f32.mrf.mxu0
  %198 = vdwg.mxu0
  %v199 = vld [vmem:[%s2] sm:$0x1]
  %v201 = vlaneseq
  %v202 = vshrl.u32 %v201, 7
  %v203 = vsub.s32 0, %v202
  %v204 = vrot.slane %v199, %v203
  %v206 = vmul.f32 %v193, %v204
  %v207 = vmul.f32 %v196, %v204
  %v208 = vld [vmem:[%s3] sm:$0x1]
  %v210 = vlaneseq
  %v211 = vshrl.u32 %v210, 7
  %v212 = vsub.s32 0, %v211
  %v213 = vrot.slane %v208, %v212
  %v215 = vadd.f32 %v206, %v213
  %v216 = vadd.f32 %v207, %v213
  %v217 = vmax.f32 %v215, 0.0
  %v218 = vmax.f32 %v216, 0.0
  %v219 = vpack.c.bf16 %v218, %v217
  %v221 = vunpack.c.l.b16 %v219
  %v222 = vunpack.c.h.b16 %v219
  %v223 = vpack.c.b16 %v221, %v221
  %v224 = vpack.c.b16 %v222, %v222
  %227 = vst [vmem:[%s4] sm:$0xf] %v223
  %228 = vst [vmem:[%s4 + $0x4] sm:$0xf] %v224
  // Predicated region
  $region18: #{hrnet_forward.40} parent=0 // pred_check
    _
  $region19: #{hrnet_forward.40} parent=0 // pred_check_branch
    %230 = sbr.rel (0) target = $region21
  $region20: #{hrnet_forward.40} parent=0 // pred_region
    _
  $region21: #{hrnet_forward.40} parent=0 // pred_fallthru
    _
  // Predicated region
  $region22: #{hrnet_forward.40} parent=0 // pred_check
    _
  $region23: #{hrnet_forward.40} parent=0 // pred_check_branch
    %232 = sbr.rel (0) target = $region25
  $region24: #{hrnet_forward.40} parent=0 // pred_region
    _
  $region25: #{hrnet_forward.40} parent=0 // pred_fallthru
    _

// kernel: hrnet_forward.41
$region0: #{hrnet_forward.41}
  #allocation0 [shape = 'u32[]', space=smem, size = 0x4, offset = 0x4, fixed_abs, tag = 'smem constant byte address 0x4 - core index']
  #allocation1 [shape = 'u32[144,128]{1,0:T(1,128)}', space=vmem, size = 0x12000, scoped, tag = 'internal scratch']
  %s0 = inlined_call_operand.vmem [shape: bf16[16,128], index: 0, kind: input, shape index: {}]
  %s1 = inlined_call_operand.vmem [shape: bf16[128,128], index: 1, kind: input, shape index: {}]
  %s2 = inlined_call_operand.vmem [shape: f32[1,128], index: 2, kind: input, shape index: {}]
  %s3 = inlined_call_operand.vmem [shape: f32[1,128], index: 3, kind: input, shape index: {}]
  %s4 = inlined_call_operand.vmem [shape: bf16[16,128], index: 4, kind: output, shape index: {}]
  %s5 = sld [smem:[#allocation0]]
  $region26: #{hrnet_forward.41} parent=0
    _
  %s7 = ssub.s32 1, %s5
  %s8 = scalar_select 0, %s7, %s5
  // Predicated region
  $region2: #{hrnet_forward.41} parent=0 // pred_check
    _
  $region3: #{hrnet_forward.41} parent=0 // pred_check_branch
    %10 = sbr.rel (0) target = $region5
  $region4: #{hrnet_forward.41} parent=0 // pred_region
    _
  $region5: #{hrnet_forward.41} parent=0 // pred_fallthru
    _
  // Predicated region
  $region6: #{hrnet_forward.41} parent=0 // pred_check
    _
  $region7: #{hrnet_forward.41} parent=0 // pred_check_branch
    %12 = sbr.rel (0) target = $region9
  $region8: #{hrnet_forward.41} parent=0 // pred_region
    _
  $region9: #{hrnet_forward.41} parent=0 // pred_fallthru
    _
  // Predicated region
  $region10: #{hrnet_forward.41} parent=0 // pred_check
    _
  $region11: #{hrnet_forward.41} parent=0 // pred_check_branch
    %14 = sbr.rel (0) target = $region13
  $region12: #{hrnet_forward.41} parent=0 // pred_region
    _
  $region13: #{hrnet_forward.41} parent=0 // pred_fallthru
    _
  // Predicated region
  $region14: #{hrnet_forward.41} parent=0 // pred_check
    _
  $region15: #{hrnet_forward.41} parent=0 // pred_check_branch
    %16 = sbr.rel (0) target = $region17
  $region16: #{hrnet_forward.41} parent=0 // pred_region
    _
  $region17: #{hrnet_forward.41} parent=0 // pred_fallthru
    _
  %v18 = vld [vmem:[%s0] sm:$0xf]
  %v19 = vld [vmem:[%s0 + $0x4] sm:$0xf]
  %v20 = vld [vmem:[%s1] sm:$0xf]
  %v21 = vld [vmem:[%s1 + $0x4] sm:$0xf]
  %v22 = vld [vmem:[%s1 + $0x8] sm:$0xf]
  %v23 = vld [vmem:[%s1 + $0xc] sm:$0xf]
  %v24 = vld [vmem:[%s1 + $0x10] sm:$0xf]
  %v25 = vld [vmem:[%s1 + $0x14] sm:$0xf]
  %v26 = vld [vmem:[%s1 + $0x18] sm:$0xf]
  %v27 = vld [vmem:[%s1 + $0x1c] sm:$0xf]
  %v28 = vld [vmem:[%s1 + $0x20] sm:$0xf]
  %v29 = vld [vmem:[%s1 + $0x24] sm:$0xf]
  %v30 = vld [vmem:[%s1 + $0x28] sm:$0xf]
  %v31 = vld [vmem:[%s1 + $0x2c] sm:$0xf]
  %v32 = vld [vmem:[%s1 + $0x30] sm:$0xf]
  %v33 = vld [vmem:[%s1 + $0x34] sm:$0xf]
  %v34 = vld [vmem:[%s1 + $0x38] sm:$0xf]
  %v35 = vld [vmem:[%s1 + $0x3c] sm:$0xf]
  %v38 = vunpack.c.l.b16 %v18
  %v39 = vunpack.c.l.b16 %v19
  %v40 = vpack.c.b16 %v39, %v38
  %v58 = vunpack.c.l.b16 %v20
  %v59 = vunpack.c.l.b16 %v21
  %v60 = vunpack.c.l.b16 %v22
  %v61 = vunpack.c.l.b16 %v23
  %v62 = vunpack.c.l.b16 %v24
  %v63 = vunpack.c.l.b16 %v25
  %v64 = vunpack.c.l.b16 %v26
  %v65 = vunpack.c.l.b16 %v27
  %v66 = vunpack.c.l.b16 %v28
  %v67 = vunpack.c.l.b16 %v29
  %v68 = vunpack.c.l.b16 %v30
  %v69 = vunpack.c.l.b16 %v31
  %v70 = vunpack.c.l.b16 %v32
  %v71 = vunpack.c.l.b16 %v33
  %v72 = vunpack.c.l.b16 %v34
  %v73 = vunpack.c.l.b16 %v35
  %v74 = vpack.c.b16 %v59, %v58
  %v75 = vpack.c.b16 %v61, %v60
  %v76 = vpack.c.b16 %v63, %v62
  %v77 = vpack.c.b16 %v65, %v64
  %v78 = vpack.c.b16 %v67, %v66
  %v79 = vpack.c.b16 %v69, %v68
  %v80 = vpack.c.b16 %v71, %v70
  %v81 = vpack.c.b16 %v73, %v72
  %90 = vmatprep.subr.bf16.mxu0 0
  %91 = vmatpush1.bf16.msra.mxu0 %v81
  %92 = vmatprep.subr.bf16.mxu0 0
  %93 = vmatpush1.bf16.msra.mxu0 %v80
  %94 = vmatprep.subr.bf16.mxu0 0
  %95 = vmatpush1.bf16.msra.mxu0 %v79
  %96 = vmatprep.subr.bf16.mxu0 0
  %97 = vmatpush1.bf16.msra.mxu0 %v78
  %98 = vmatprep.subr.bf16.mxu0 0
  %99 = vmatpush1.bf16.msra.mxu0 %v77
  %100 = vmatprep.subr.bf16.mxu0 0
  %101 = vmatpush1.bf16.msra.mxu0 %v76
  %102 = vmatprep.subr.bf16.mxu0 0
  %103 = vmatpush1.bf16.msra.mxu0 %v75
  %104 = vmatprep.subr.bf16.mxu0 0
  %105 = vmatpush1.bf16.msra.mxu0 %v74
  %106 = vmatprep.subr.bf16.mxu0 0
  %107 = vmatpush2.bf16.msra.mxu0 0
  %108 = vmatprep.subr.bf16.mxu0 0
  %109 = vmatpush2.bf16.msra.mxu0 0
  %110 = vmatprep.subr.bf16.mxu0 0
  %111 = vmatpush2.bf16.msra.mxu0 0
  %112 = vmatprep.subr.bf16.mxu0 0
  %113 = vmatpush2.bf16.msra.mxu0 0
  %114 = vmatprep.subr.bf16.mxu0 0
  %115 = vmatpush2.bf16.msra.mxu0 0
  %116 = vmatprep.subr.bf16.mxu0 0
  %117 = vmatpush2.bf16.msra.mxu0 0
  %118 = vmatprep.subr.bf16.mxu0 0
  %119 = vmatpush2.bf16.msra.mxu0 0
  %120 = vmatprep.subr.bf16.mxu0 0
  %121 = vmatpush2.bf16.msra.mxu0 0
  %122 = vmatprep.mubr.bf16.mxu0 0
  %123 = vmatmul.mubr.bf16.gmra.mxu0 %v40
  %v124 = vpop.f32.mrf.mxu0
  %v125 = vadd.f32 0.0, %v124
  %v126 = vpop.f32.mrf.mxu0
  %v127 = vpop.f32.mrf.mxu0
  %v128 = vadd.f32 0.0, %v127
  %v129 = vpop.f32.mrf.mxu0
  %130 = vdwg.mxu0
  %v131 = vld [vmem:[%s2] sm:$0x1]
  %v133 = vlaneseq
  %v134 = vshrl.u32 %v133, 7
  %v135 = vsub.s32 0, %v134
  %v136 = vrot.slane %v131, %v135
  %v138 = vmul.f32 %v125, %v136
  %v139 = vmul.f32 %v128, %v136
  %v140 = vld [vmem:[%s3] sm:$0x1]
  %v142 = vlaneseq
  %v143 = vshrl.u32 %v142, 7
  %v144 = vsub.s32 0, %v143
  %v145 = vrot.slane %v140, %v144
  %v147 = vadd.f32 %v138, %v145
  %v148 = vadd.f32 %v139, %v145
  %v149 = vpack.c.bf16 %v148, %v147
  %v151 = vunpack.c.l.b16 %v149
  %v152 = vunpack.c.h.b16 %v149
  %v153 = vpack.c.b16 %v151, %v151
  %v154 = vpack.c.b16 %v152, %v152
  %157 = vst [vmem:[%s4] sm:$0xf] %v153
  %158 = vst [vmem:[%s4 + $0x4] sm:$0xf] %v154
  // Predicated region
  $region18: #{hrnet_forward.41} parent=0 // pred_check
    _
  $region19: #{hrnet_forward.41} parent=0 // pred_check_branch
    %160 = sbr.rel (0) target = $region21
  $region20: #{hrnet_forward.41} parent=0 // pred_region
    _
  $region21: #{hrnet_forward.41} parent=0 // pred_fallthru
    _
  // Predicated region
  $region22: #{hrnet_forward.41} parent=0 // pred_check
    _
  $region23: #{hrnet_forward.41} parent=0 // pred_check_branch
    %162 = sbr.rel (0) target = $region25
  $region24: #{hrnet_forward.41} parent=0 // pred_region
    _
  $region25: #{hrnet_forward.41} parent=0 // pred_fallthru
    _

// kernel: hrnet_forward.29
$region0: #{hrnet_forward.29}
  #allocation0 [shape = 'u32[]', space=smem, size = 0x4, offset = 0x4, fixed_abs, tag = 'smem constant byte address 0x4 - core index']
  #allocation1 [shape = 'u32[144,128]{1,0:T(1,128)}', space=vmem, size = 0x12000, scoped, tag = 'internal scratch']
  %s0 = inlined_call_operand.vmem [shape: bf16[16,1408], index: 0, kind: input, shape index: {}]
  %s1 = inlined_call_operand.vmem [shape: bf16[1408,256], index: 1, kind: input, shape index: {}]
  %s2 = inlined_call_operand.vmem [shape: f32[1,256], index: 2, kind: input, shape index: {}]
  %s3 = inlined_call_operand.vmem [shape: f32[1,256], index: 3, kind: input, shape index: {}]
  %s4 = inlined_call_operand.vmem [shape: bf16[16,256], index: 4, kind: input, shape index: {}]
  %s5 = inlined_call_operand.vmem [shape: bf16[16,256], index: 5, kind: output, shape index: {}]
  %s6 = sld [smem:[#allocation0]]
  $region30: #{hrnet_forward.29} parent=0
    _
  %s8 = ssub.s32 1, %s6
  %s9 = scalar_select 0, %s8, %s6
  // Predicated region
  $region2: #{hrnet_forward.29} parent=0 // pred_check
    _
  $region3: #{hrnet_forward.29} parent=0 // pred_check_branch
    %11 = sbr.rel (0) target = $region5
  $region4: #{hrnet_forward.29} parent=0 // pred_region
    _
  $region5: #{hrnet_forward.29} parent=0 // pred_fallthru
    _
  // Predicated region
  $region6: #{hrnet_forward.29} parent=0 // pred_check
    _
  $region7: #{hrnet_forward.29} parent=0 // pred_check_branch
    %13 = sbr.rel (0) target = $region9
  $region8: #{hrnet_forward.29} parent=0 // pred_region
    _
  $region9: #{hrnet_forward.29} parent=0 // pred_fallthru
    _
  // Predicated region
  $region10: #{hrnet_forward.29} parent=0 // pred_check
    _
  $region11: #{hrnet_forward.29} parent=0 // pred_check_branch
    %15 = sbr.rel (0) target = $region13
  $region12: #{hrnet_forward.29} parent=0 // pred_region
    _
  $region13: #{hrnet_forward.29} parent=0 // pred_fallthru
    _
  // Predicated region
  $region14: #{hrnet_forward.29} parent=0 // pred_check
    _
  $region15: #{hrnet_forward.29} parent=0 // pred_check_branch
    %17 = sbr.rel (0) target = $region17
  $region16: #{hrnet_forward.29} parent=0 // pred_region
    _
  $region17: #{hrnet_forward.29} parent=0 // pred_fallthru
    _
  // Predicated region
  $region18: #{hrnet_forward.29} parent=0 // pred_check
    _
  $region19: #{hrnet_forward.29} parent=0 // pred_check_branch
    %19 = sbr.rel (0) target = $region21
  $region20: #{hrnet_forward.29} parent=0 // pred_region
    _
  $region21: #{hrnet_forward.29} parent=0 // pred_fallthru
    _
  %v21 = vld [vmem:[%s0] sm:$0xff]
  %v22 = vld [vmem:[%s0 + $0x8] sm:$0xff]
  %v23 = vld [vmem:[%s0 + $0x10] sm:$0xff]
  %v24 = vld [vmem:[%s0 + $0x18] sm:$0xff]
  %v25 = vld [vmem:[%s0 + $0x20] sm:$0xff]
  %v26 = vld [vmem:[%s0 + $0x28] sm:$0xf]
  %v27 = vld [vmem:[%s0 + $0x2c] sm:$0xff]
  %v28 = vld [vmem:[%s0 + $0x34] sm:$0xff]
  %v29 = vld [vmem:[%s0 + $0x3c] sm:$0xff]
  %v30 = vld [vmem:[%s0 + $0x44] sm:$0xff]
  %v31 = vld [vmem:[%s0 + $0x4c] sm:$0xff]
  %v32 = vld [vmem:[%s0 + $0x54] sm:$0xf]
  %v33 = vld [vmem:[%s1] sm:$0xff]
  %v34 = vld [vmem:[%s1 + $0x8] sm:$0xff]
  %v35 = vld [vmem:[%s1 + $0x10] sm:$0xff]
  %v36 = vld [vmem:[%s1 + $0x18] sm:$0xff]
  %v37 = vld [vmem:[%s1 + $0x20] sm:$0xff]
  %v38 = vld [vmem:[%s1 + $0x28] sm:$0xff]
  %v39 = vld [vmem:[%s1 + $0x30] sm:$0xff]
  %v40 = vld [vmem:[%s1 + $0x38] sm:$0xff]
  %v41 = vld [vmem:[%s1 + $0x40] sm:$0xff]
  %v42 = vld [vmem:[%s1 + $0x48] sm:$0xff]
  %v43 = vld [vmem:[%s1 + $0x50] sm:$0xff]
  %v44 = vld [vmem:[%s1 + $0x58] sm:$0xff]
  %v45 = vld [vmem:[%s1 + $0x60] sm:$0xff]
  %v46 = vld [vmem:[%s1 + $0x68] sm:$0xff]
  %v47 = vld [vmem:[%s1 + $0x70] sm:$0xff]
  %v48 = vld [vmem:[%s1 + $0x78] sm:$0xff]
  %v49 = vld [vmem:[%s1 + $0x80] sm:$0xff]
  %v50 = vld [vmem:[%s1 + $0x88] sm:$0xff]
  %v51 = vld [vmem:[%s1 + $0x90] sm:$0xff]
  %v52 = vld [vmem:[%s1 + $0x98] sm:$0xff]
  %v53 = vld [vmem:[%s1 + $0xa0] sm:$0xff]
  %v54 = vld [vmem:[%s1 + $0xa8] sm:$0xff]
  %v55 = vld [vmem:[%s1 + $0xb0] sm:$0xff]
  %v56 = vld [vmem:[%s1 + $0xb8] sm:$0xff]
  %v57 = vld [vmem:[%s1 + $0xc0] sm:$0xff]
  %v58 = vld [vmem:[%s1 + $0xc8] sm:$0xff]
  %v59 = vld [vmem:[%s1 + $0xd0] sm:$0xff]
  %v60 = vld [vmem:[%s1 + $0xd8] sm:$0xff]
  %v61 = vld [vmem:[%s1 + $0xe0] sm:$0xff]
  %v62 = vld [vmem:[%s1 + $0xe8] sm:$0xff]
  %v63 = vld [vmem:[%s1 + $0xf0] sm:$0xff]
  %v64 = vld [vmem:[%s1 + $0xf8] sm:$0xff]
  %v65 = vld [vmem:[%s1 + $0x100] sm:$0xff]
  %v66 = vld [vmem:[%s1 + $0x108] sm:$0xff]
  %v67 = vld [vmem:[%s1 + $0x110] sm:$0xff]
  %v68 = vld [vmem:[%s1 + $0x118] sm:$0xff]
  %v69 = vld [vmem:[%s1 + $0x120] sm:$0xff]
  %v70 = vld [vmem:[%s1 + $0x128] sm:$0xff]
  %v71 = vld [vmem:[%s1 + $0x130] sm:$0xff]
  %v72 = vld [vmem:[%s1 + $0x138] sm:$0xff]
  %v73 = vld [vmem:[%s1 + $0x140] sm:$0xff]
  %v74 = vld [vmem:[%s1 + $0x148] sm:$0xff]
  %v75 = vld [vmem:[%s1 + $0x150] sm:$0xff]
  %v76 = vld [vmem:[%s1 + $0x158] sm:$0xff]
  %v77 = vld [vmem:[%s1 + $0x160] sm:$0xff]
  %v78 = vld [vmem:[%s1 + $0x168] sm:$0xff]
  %v79 = vld [vmem:[%s1 + $0x170] sm:$0xff]
  %v80 = vld [vmem:[%s1 + $0x178] sm:$0xff]
  %v81 = vld [vmem:[%s1 + $0x180] sm:$0xff]
  %v82 = vld [vmem:[%s1 + $0x188] sm:$0xff]
  %v83 = vld [vmem:[%s1 + $0x190] sm:$0xff]
  %v84 = vld [vmem:[%s1 + $0x198] sm:$0xff]
  %v85 = vld [vmem:[%s1 + $0x1a0] sm:$0xff]
  %v86 = vld [vmem:[%s1 + $0x1a8] sm:$0xff]
  %v87 = vld [vmem:[%s1 + $0x1b0] sm:$0xff]
  %v88 = vld [vmem:[%s1 + $0x1b8] sm:$0xff]
  %v89 = vld [vmem:[%s1 + $0x1c0] sm:$0xff]
  %v90 = vld [vmem:[%s1 + $0x1c8] sm:$0xff]
  %v91 = vld [vmem:[%s1 + $0x1d0] sm:$0xff]
  %v92 = vld [vmem:[%s1 + $0x1d8] sm:$0xff]
  %v93 = vld [vmem:[%s1 + $0x1e0] sm:$0xff]
  %v94 = vld [vmem:[%s1 + $0x1e8] sm:$0xff]
  %v95 = vld [vmem:[%s1 + $0x1f0] sm:$0xff]
  %v96 = vld [vmem:[%s1 + $0x1f8] sm:$0xff]
  %v97 = vld [vmem:[%s1 + $0x200] sm:$0xff]
  %v98 = vld [vmem:[%s1 + $0x208] sm:$0xff]
  %v99 = vld [vmem:[%s1 + $0x210] sm:$0xff]
  %v100 = vld [vmem:[%s1 + $0x218] sm:$0xff]
  %v101 = vld [vmem:[%s1 + $0x220] sm:$0xff]
  %v102 = vld [vmem:[%s1 + $0x228] sm:$0xff]
  %v103 = vld [vmem:[%s1 + $0x230] sm:$0xff]
  %v104 = vld [vmem:[%s1 + $0x238] sm:$0xff]
  %v105 = vld [vmem:[%s1 + $0x240] sm:$0xff]
  %v106 = vld [vmem:[%s1 + $0x248] sm:$0xff]
  %v107 = vld [vmem:[%s1 + $0x250] sm:$0xff]
  %v108 = vld [vmem:[%s1 + $0x258] sm:$0xff]
  %v109 = vld [vmem:[%s1 + $0x260] sm:$0xff]
  %v110 = vld [vmem:[%s1 + $0x268] sm:$0xff]
  %v111 = vld [vmem:[%s1 + $0x270] sm:$0xff]
  %v112 = vld [vmem:[%s1 + $0x278] sm:$0xff]
  %v113 = vld [vmem:[%s1 + $0x280] sm:$0xff]
  %v114 = vld [vmem:[%s1 + $0x288] sm:$0xff]
  %v115 = vld [vmem:[%s1 + $0x290] sm:$0xff]
  %v116 = vld [vmem:[%s1 + $0x298] sm:$0xff]
  %v117 = vld [vmem:[%s1 + $0x2a0] sm:$0xff]
  %v118 = vld [vmem:[%s1 + $0x2a8] sm:$0xff]
  %v119 = vld [vmem:[%s1 + $0x2b0] sm:$0xff]
  %v120 = vld [vmem:[%s1 + $0x2b8] sm:$0xff]
  %v121 = vld [vmem:[%s1 + $0x2c0] sm:$0xff]
  %v122 = vld [vmem:[%s1 + $0x2c8] sm:$0xff]
  %v123 = vld [vmem:[%s1 + $0x2d0] sm:$0xff]
  %v124 = vld [vmem:[%s1 + $0x2d8] sm:$0xff]
  %v125 = vld [vmem:[%s1 + $0x2e0] sm:$0xff]
  %v126 = vld [vmem:[%s1 + $0x2e8] sm:$0xff]
  %v127 = vld [vmem:[%s1 + $0x2f0] sm:$0xff]
  %v128 = vld [vmem:[%s1 + $0x2f8] sm:$0xff]
  %v129 = vld [vmem:[%s1 + $0x300] sm:$0xff]
  %v130 = vld [vmem:[%s1 + $0x308] sm:$0xff]
  %v131 = vld [vmem:[%s1 + $0x310] sm:$0xff]
  %v132 = vld [vmem:[%s1 + $0x318] sm:$0xff]
  %v133 = vld [vmem:[%s1 + $0x320] sm:$0xff]
  %v134 = vld [vmem:[%s1 + $0x328] sm:$0xff]
  %v135 = vld [vmem:[%s1 + $0x330] sm:$0xff]
  %v136 = vld [vmem:[%s1 + $0x338] sm:$0xff]
  %v137 = vld [vmem:[%s1 + $0x340] sm:$0xff]
  %v138 = vld [vmem:[%s1 + $0x348] sm:$0xff]
  %v139 = vld [vmem:[%s1 + $0x350] sm:$0xff]
  %v140 = vld [vmem:[%s1 + $0x358] sm:$0xff]
  %v141 = vld [vmem:[%s1 + $0x360] sm:$0xff]
  %v142 = vld [vmem:[%s1 + $0x368] sm:$0xff]
  %v143 = vld [vmem:[%s1 + $0x370] sm:$0xff]
  %v144 = vld [vmem:[%s1 + $0x378] sm:$0xff]
  %v145 = vld [vmem:[%s1 + $0x380] sm:$0xff]
  %v146 = vld [vmem:[%s1 + $0x388] sm:$0xff]
  %v147 = vld [vmem:[%s1 + $0x390] sm:$0xff]
  %v148 = vld [vmem:[%s1 + $0x398] sm:$0xff]
  %v149 = vld [vmem:[%s1 + $0x3a0] sm:$0xff]
  %v150 = vld [vmem:[%s1 + $0x3a8] sm:$0xff]
  %v151 = vld [vmem:[%s1 + $0x3b0] sm:$0xff]
  %v152 = vld [vmem:[%s1 + $0x3b8] sm:$0xff]
  %v153 = vld [vmem:[%s1 + $0x3c0] sm:$0xff]
  %v154 = vld [vmem:[%s1 + $0x3c8] sm:$0xff]
  %v155 = vld [vmem:[%s1 + $0x3d0] sm:$0xff]
  %v156 = vld [vmem:[%s1 + $0x3d8] sm:$0xff]
  %v157 = vld [vmem:[%s1 + $0x3e0] sm:$0xff]
  %v158 = vld [vmem:[%s1 + $0x3e8] sm:$0xff]
  %v159 = vld [vmem:[%s1 + $0x3f0] sm:$0xff]
  %v160 = vld [vmem:[%s1 + $0x3f8] sm:$0xff]
  %v161 = vld [vmem:[%s1 + $0x400] sm:$0xff]
  %v162 = vld [vmem:[%s1 + $0x408] sm:$0xff]
  %v163 = vld [vmem:[%s1 + $0x410] sm:$0xff]
  %v164 = vld [vmem:[%s1 + $0x418] sm:$0xff]
  %v165 = vld [vmem:[%s1 + $0x420] sm:$0xff]
  %v166 = vld [vmem:[%s1 + $0x428] sm:$0xff]
  %v167 = vld [vmem:[%s1 + $0x430] sm:$0xff]
  %v168 = vld [vmem:[%s1 + $0x438] sm:$0xff]
  %v169 = vld [vmem:[%s1 + $0x440] sm:$0xff]
  %v170 = vld [vmem:[%s1 + $0x448] sm:$0xff]
  %v171 = vld [vmem:[%s1 + $0x450] sm:$0xff]
  %v172 = vld [vmem:[%s1 + $0x458] sm:$0xff]
  %v173 = vld [vmem:[%s1 + $0x460] sm:$0xff]
  %v174 = vld [vmem:[%s1 + $0x468] sm:$0xff]
  %v175 = vld [vmem:[%s1 + $0x470] sm:$0xff]
  %v176 = vld [vmem:[%s1 + $0x478] sm:$0xff]
  %v177 = vld [vmem:[%s1 + $0x480] sm:$0xff]
  %v178 = vld [vmem:[%s1 + $0x488] sm:$0xff]
  %v179 = vld [vmem:[%s1 + $0x490] sm:$0xff]
  %v180 = vld [vmem:[%s1 + $0x498] sm:$0xff]
  %v181 = vld [vmem:[%s1 + $0x4a0] sm:$0xff]
  %v182 = vld [vmem:[%s1 + $0x4a8] sm:$0xff]
  %v183 = vld [vmem:[%s1 + $0x4b0] sm:$0xff]
  %v184 = vld [vmem:[%s1 + $0x4b8] sm:$0xff]
  %v185 = vld [vmem:[%s1 + $0x4c0] sm:$0xff]
  %v186 = vld [vmem:[%s1 + $0x4c8] sm:$0xff]
  %v187 = vld [vmem:[%s1 + $0x4d0] sm:$0xff]
  %v188 = vld [vmem:[%s1 + $0x4d8] sm:$0xff]
  %v189 = vld [vmem:[%s1 + $0x4e0] sm:$0xff]
  %v190 = vld [vmem:[%s1 + $0x4e8] sm:$0xff]
  %v191 = vld [vmem:[%s1 + $0x4f0] sm:$0xff]
  %v192 = vld [vmem:[%s1 + $0x4f8] sm:$0xff]
  %v193 = vld [vmem:[%s1 + $0x500] sm:$0xff]
  %v194 = vld [vmem:[%s1 + $0x508] sm:$0xff]
  %v195 = vld [vmem:[%s1 + $0x510] sm:$0xff]
  %v196 = vld [vmem:[%s1 + $0x518] sm:$0xff]
  %v197 = vld [vmem:[%s1 + $0x520] sm:$0xff]
  %v198 = vld [vmem:[%s1 + $0x528] sm:$0xff]
  %v199 = vld [vmem:[%s1 + $0x530] sm:$0xff]
  %v200 = vld [vmem:[%s1 + $0x538] sm:$0xff]
  %v201 = vld [vmem:[%s1 + $0x540] sm:$0xff]
  %v202 = vld [vmem:[%s1 + $0x548] sm:$0xff]
  %v203 = vld [vmem:[%s1 + $0x550] sm:$0xff]
  %v204 = vld [vmem:[%s1 + $0x558] sm:$0xff]
  %v205 = vld [vmem:[%s1 + $0x560] sm:$0xff]
  %v206 = vld [vmem:[%s1 + $0x568] sm:$0xff]
  %v207 = vld [vmem:[%s1 + $0x570] sm:$0xff]
  %v208 = vld [vmem:[%s1 + $0x578] sm:$0xff]
  %v221 = vunpack.c.l.b16 %v21
  %v222 = vunpack.c.h.b16 %v21
  %v223 = vunpack.c.l.b16 %v22
  %v224 = vunpack.c.h.b16 %v22
  %v225 = vunpack.c.l.b16 %v23
  %v226 = vunpack.c.h.b16 %v23
  %v227 = vunpack.c.l.b16 %v24
  %v228 = vunpack.c.h.b16 %v24
  %v229 = vunpack.c.l.b16 %v25
  %v230 = vunpack.c.h.b16 %v25
  %v231 = vunpack.c.l.b16 %v26
  %v232 = vunpack.c.l.b16 %v27
  %v233 = vunpack.c.h.b16 %v27
  %v234 = vunpack.c.l.b16 %v28
  %v235 = vunpack.c.h.b16 %v28
  %v236 = vunpack.c.l.b16 %v29
  %v237 = vunpack.c.h.b16 %v29
  %v238 = vunpack.c.l.b16 %v30
  %v239 = vunpack.c.h.b16 %v30
  %v240 = vunpack.c.l.b16 %v31
  %v241 = vunpack.c.h.b16 %v31
  %v242 = vunpack.c.l.b16 %v32
  %v243 = vpack.c.b16 %v232, %v221
  %v244 = vpack.c.b16 %v233, %v222
  %v245 = vpack.c.b16 %v234, %v223
  %v246 = vpack.c.b16 %v235, %v224
  %v247 = vpack.c.b16 %v236, %v225
  %v248 = vpack.c.b16 %v237, %v226
  %v249 = vpack.c.b16 %v238, %v227
  %v250 = vpack.c.b16 %v239, %v228
  %v251 = vpack.c.b16 %v240, %v229
  %v252 = vpack.c.b16 %v241, %v230
  %v253 = vpack.c.b16 %v242, %v231
  %v441 = vunpack.c.l.b16 %v33
  %v442 = vunpack.c.h.b16 %v33
  %v443 = vunpack.c.l.b16 %v34
  %v444 = vunpack.c.h.b16 %v34
  %v445 = vunpack.c.l.b16 %v35
  %v446 = vunpack.c.h.b16 %v35
  %v447 = vunpack.c.l.b16 %v36
  %v448 = vunpack.c.h.b16 %v36
  %v449 = vunpack.c.l.b16 %v37
  %v450 = vunpack.c.h.b16 %v37
  %v451 = vunpack.c.l.b16 %v38
  %v452 = vunpack.c.h.b16 %v38
  %v453 = vunpack.c.l.b16 %v39
  %v454 = vunpack.c.h.b16 %v39
  %v455 = vunpack.c.l.b16 %v40
  %v456 = vunpack.c.h.b16 %v40
  %v457 = vunpack.c.l.b16 %v41
  %v458 = vunpack.c.h.b16 %v41
  %v459 = vunpack.c.l.b16 %v42
  %v460 = vunpack.c.h.b16 %v42
  %v461 = vunpack.c.l.b16 %v43
  %v462 = vunpack.c.h.b16 %v43
  %v463 = vunpack.c.l.b16 %v44
  %v464 = vunpack.c.h.b16 %v44
  %v465 = vunpack.c.l.b16 %v45
  %v466 = vunpack.c.h.b16 %v45
  %v467 = vunpack.c.l.b16 %v46
  %v468 = vunpack.c.h.b16 %v46
  %v469 = vunpack.c.l.b16 %v47
  %v470 = vunpack.c.h.b16 %v47
  %v471 = vunpack.c.l.b16 %v48
  %v472 = vunpack.c.h.b16 %v48
  %v473 = vunpack.c.l.b16 %v49
  %v474 = vunpack.c.h.b16 %v49
  %v475 = vunpack.c.l.b16 %v50
  %v476 = vunpack.c.h.b16 %v50
  %v477 = vunpack.c.l.b16 %v51
  %v478 = vunpack.c.h.b16 %v51
  %v479 = vunpack.c.l.b16 %v52
  %v480 = vunpack.c.h.b16 %v52
  %v481 = vunpack.c.l.b16 %v53
  %v482 = vunpack.c.h.b16 %v53
  %v483 = vunpack.c.l.b16 %v54
  %v484 = vunpack.c.h.b16 %v54
  %v485 = vunpack.c.l.b16 %v55
  %v486 = vunpack.c.h.b16 %v55
  %v487 = vunpack.c.l.b16 %v56
  %v488 = vunpack.c.h.b16 %v56
  %v489 = vunpack.c.l.b16 %v57
  %v490 = vunpack.c.h.b16 %v57
  %v491 = vunpack.c.l.b16 %v58
  %v492 = vunpack.c.h.b16 %v58
  %v493 = vunpack.c.l.b16 %v59
  %v494 = vunpack.c.h.b16 %v59
  %v495 = vunpack.c.l.b16 %v60
  %v496 = vunpack.c.h.b16 %v60
  %v497 = vunpack.c.l.b16 %v61
  %v498 = vunpack.c.h.b16 %v61
  %v499 = vunpack.c.l.b16 %v62
  %v500 = vunpack.c.h.b16 %v62
  %v501 = vunpack.c.l.b16 %v63
  %v502 = vunpack.c.h.b16 %v63
  %v503 = vunpack.c.l.b16 %v64
  %v504 = vunpack.c.h.b16 %v64
  %v505 = vunpack.c.l.b16 %v65
  %v506 = vunpack.c.h.b16 %v65
  %v507 = vunpack.c.l.b16 %v66
  %v508 = vunpack.c.h.b16 %v66
  %v509 = vunpack.c.l.b16 %v67
  %v510 = vunpack.c.h.b16 %v67
  %v511 = vunpack.c.l.b16 %v68
  %v512 = vunpack.c.h.b16 %v68
  %v513 = vunpack.c.l.b16 %v69
  %v514 = vunpack.c.h.b16 %v69
  %v515 = vunpack.c.l.b16 %v70
  %v516 = vunpack.c.h.b16 %v70
  %v517 = vunpack.c.l.b16 %v71
  %v518 = vunpack.c.h.b16 %v71
  %v519 = vunpack.c.l.b16 %v72
  %v520 = vunpack.c.h.b16 %v72
  %v521 = vunpack.c.l.b16 %v73
  %v522 = vunpack.c.h.b16 %v73
  %v523 = vunpack.c.l.b16 %v74
  %v524 = vunpack.c.h.b16 %v74
  %v525 = vunpack.c.l.b16 %v75
  %v526 = vunpack.c.h.b16 %v75
  %v527 = vunpack.c.l.b16 %v76
  %v528 = vunpack.c.h.b16 %v76
  %v529 = vunpack.c.l.b16 %v77
  %v530 = vunpack.c.h.b16 %v77
  %v531 = vunpack.c.l.b16 %v78
  %v532 = vunpack.c.h.b16 %v78
  %v533 = vunpack.c.l.b16 %v79
  %v534 = vunpack.c.h.b16 %v79
  %v535 = vunpack.c.l.b16 %v80
  %v536 = vunpack.c.h.b16 %v80
  %v537 = vunpack.c.l.b16 %v81
  %v538 = vunpack.c.h.b16 %v81
  %v539 = vunpack.c.l.b16 %v82
  %v540 = vunpack.c.h.b16 %v82
  %v541 = vunpack.c.l.b16 %v83
  %v542 = vunpack.c.h.b16 %v83
  %v543 = vunpack.c.l.b16 %v84
  %v544 = vunpack.c.h.b16 %v84
  %v545 = vunpack.c.l.b16 %v85
  %v546 = vunpack.c.h.b16 %v85
  %v547 = vunpack.c.l.b16 %v86
  %v548 = vunpack.c.h.b16 %v86
  %v549 = vunpack.c.l.b16 %v87
  %v550 = vunpack.c.h.b16 %v87
  %v551 = vunpack.c.l.b16 %v88
  %v552 = vunpack.c.h.b16 %v88
  %v553 = vunpack.c.l.b16 %v89
  %v554 = vunpack.c.h.b16 %v89
  %v555 = vunpack.c.l.b16 %v90
  %v556 = vunpack.c.h.b16 %v90
  %v557 = vunpack.c.l.b16 %v91
  %v558 = vunpack.c.h.b16 %v91
  %v559 = vunpack.c.l.b16 %v92
  %v560 = vunpack.c.h.b16 %v92
  %v561 = vunpack.c.l.b16 %v93
  %v562 = vunpack.c.h.b16 %v93
  %v563 = vunpack.c.l.b16 %v94
  %v564 = vunpack.c.h.b16 %v94
  %v565 = vunpack.c.l.b16 %v95
  %v566 = vunpack.c.h.b16 %v95
  %v567 = vunpack.c.l.b16 %v96
  %v568 = vunpack.c.h.b16 %v96
  %v569 = vunpack.c.l.b16 %v97
  %v570 = vunpack.c.h.b16 %v97
  %v571 = vunpack.c.l.b16 %v98
  %v572 = vunpack.c.h.b16 %v98
  %v573 = vunpack.c.l.b16 %v99
  %v574 = vunpack.c.h.b16 %v99
  %v575 = vunpack.c.l.b16 %v100
  %v576 = vunpack.c.h.b16 %v100
  %v577 = vunpack.c.l.b16 %v101
  %v578 = vunpack.c.h.b16 %v101
  %v579 = vunpack.c.l.b16 %v102
  %v580 = vunpack.c.h.b16 %v102
  %v581 = vunpack.c.l.b16 %v103
  %v582 = vunpack.c.h.b16 %v103
  %v583 = vunpack.c.l.b16 %v104
  %v584 = vunpack.c.h.b16 %v104
  %v585 = vunpack.c.l.b16 %v105
  %v586 = vunpack.c.h.b16 %v105
  %v587 = vunpack.c.l.b16 %v106
  %v588 = vunpack.c.h.b16 %v106
  %v589 = vunpack.c.l.b16 %v107
  %v590 = vunpack.c.h.b16 %v107
  %v591 = vunpack.c.l.b16 %v108
  %v592 = vunpack.c.h.b16 %v108
  %v593 = vunpack.c.l.b16 %v109
  %v594 = vunpack.c.h.b16 %v109
  %v595 = vunpack.c.l.b16 %v110
  %v596 = vunpack.c.h.b16 %v110
  %v597 = vunpack.c.l.b16 %v111
  %v598 = vunpack.c.h.b16 %v111
  %v599 = vunpack.c.l.b16 %v112
  %v600 = vunpack.c.h.b16 %v112
  %v601 = vunpack.c.l.b16 %v113
  %v602 = vunpack.c.h.b16 %v113
  %v603 = vunpack.c.l.b16 %v114
  %v604 = vunpack.c.h.b16 %v114
  %v605 = vunpack.c.l.b16 %v115
  %v606 = vunpack.c.h.b16 %v115
  %v607 = vunpack.c.l.b16 %v116
  %v608 = vunpack.c.h.b16 %v116
  %v609 = vunpack.c.l.b16 %v117
  %v610 = vunpack.c.h.b16 %v117
  %v611 = vunpack.c.l.b16 %v118
  %v612 = vunpack.c.h.b16 %v118
  %v613 = vunpack.c.l.b16 %v119
  %v614 = vunpack.c.h.b16 %v119
  %v615 = vunpack.c.l.b16 %v120
  %v616 = vunpack.c.h.b16 %v120
  %v617 = vunpack.c.l.b16 %v121
  %v618 = vunpack.c.h.b16 %v121
  %v619 = vunpack.c.l.b16 %v122
  %v620 = vunpack.c.h.b16 %v122
  %v621 = vunpack.c.l.b16 %v123
  %v622 = vunpack.c.h.b16 %v123
  %v623 = vunpack.c.l.b16 %v124
  %v624 = vunpack.c.h.b16 %v124
  %v625 = vunpack.c.l.b16 %v125
  %v626 = vunpack.c.h.b16 %v125
  %v627 = vunpack.c.l.b16 %v126
  %v628 = vunpack.c.h.b16 %v126
  %v629 = vunpack.c.l.b16 %v127
  %v630 = vunpack.c.h.b16 %v127
  %v631 = vunpack.c.l.b16 %v128
  %v632 = vunpack.c.h.b16 %v128
  %v633 = vunpack.c.l.b16 %v129
  %v634 = vunpack.c.h.b16 %v129
  %v635 = vunpack.c.l.b16 %v130
  %v636 = vunpack.c.h.b16 %v130
  %v637 = vunpack.c.l.b16 %v131
  %v638 = vunpack.c.h.b16 %v131
  %v639 = vunpack.c.l.b16 %v132
  %v640 = vunpack.c.h.b16 %v132
  %v641 = vunpack.c.l.b16 %v133
  %v642 = vunpack.c.h.b16 %v133
  %v643 = vunpack.c.l.b16 %v134
  %v644 = vunpack.c.h.b16 %v134
  %v645 = vunpack.c.l.b16 %v135
  %v646 = vunpack.c.h.b16 %v135
  %v647 = vunpack.c.l.b16 %v136
  %v648 = vunpack.c.h.b16 %v136
  %v649 = vunpack.c.l.b16 %v137
  %v650 = vunpack.c.h.b16 %v137
  %v651 = vunpack.c.l.b16 %v138
  %v652 = vunpack.c.h.b16 %v138
  %v653 = vunpack.c.l.b16 %v139
  %v654 = vunpack.c.h.b16 %v139
  %v655 = vunpack.c.l.b16 %v140
  %v656 = vunpack.c.h.b16 %v140
  %v657 = vunpack.c.l.b16 %v141
  %v658 = vunpack.c.h.b16 %v141
  %v659 = vunpack.c.l.b16 %v142
  %v660 = vunpack.c.h.b16 %v142
  %v661 = vunpack.c.l.b16 %v143
  %v662 = vunpack.c.h.b16 %v143
  %v663 = vunpack.c.l.b16 %v144
  %v664 = vunpack.c.h.b16 %v144
  %v665 = vunpack.c.l.b16 %v145
  %v666 = vunpack.c.h.b16 %v145
  %v667 = vunpack.c.l.b16 %v146
  %v668 = vunpack.c.h.b16 %v146
  %v669 = vunpack.c.l.b16 %v147
  %v670 = vunpack.c.h.b16 %v147
  %v671 = vunpack.c.l.b16 %v148
  %v672 = vunpack.c.h.b16 %v148
  %v673 = vunpack.c.l.b16 %v149
  %v674 = vunpack.c.h.b16 %v149
  %v675 = vunpack.c.l.b16 %v150
  %v676 = vunpack.c.h.b16 %v150
  %v677 = vunpack.c.l.b16 %v151
  %v678 = vunpack.c.h.b16 %v151
  %v679 = vunpack.c.l.b16 %v152
  %v680 = vunpack.c.h.b16 %v152
  %v681 = vunpack.c.l.b16 %v153
  %v682 = vunpack.c.h.b16 %v153
  %v683 = vunpack.c.l.b16 %v154
  %v684 = vunpack.c.h.b16 %v154
  %v685 = vunpack.c.l.b16 %v155
  %v686 = vunpack.c.h.b16 %v155
  %v687 = vunpack.c.l.b16 %v156
  %v688 = vunpack.c.h.b16 %v156
  %v689 = vunpack.c.l.b16 %v157
  %v690 = vunpack.c.h.b16 %v157
  %v691 = vunpack.c.l.b16 %v158
  %v692 = vunpack.c.h.b16 %v158
  %v693 = vunpack.c.l.b16 %v159
  %v694 = vunpack.c.h.b16 %v159
  %v695 = vunpack.c.l.b16 %v160
  %v696 = vunpack.c.h.b16 %v160
  %v697 = vunpack.c.l.b16 %v161
  %v698 = vunpack.c.h.b16 %v161
  %v699 = vunpack.c.l.b16 %v162
  %v700 = vunpack.c.h.b16 %v162
  %v701 = vunpack.c.l.b16 %v163
  %v702 = vunpack.c.h.b16 %v163
  %v703 = vunpack.c.l.b16 %v164
  %v704 = vunpack.c.h.b16 %v164
  %v705 = vunpack.c.l.b16 %v165
  %v706 = vunpack.c.h.b16 %v165
  %v707 = vunpack.c.l.b16 %v166
  %v708 = vunpack.c.h.b16 %v166
  %v709 = vunpack.c.l.b16 %v167
  %v710 = vunpack.c.h.b16 %v167
  %v711 = vunpack.c.l.b16 %v168
  %v712 = vunpack.c.h.b16 %v168
  %v713 = vunpack.c.l.b16 %v169
  %v714 = vunpack.c.h.b16 %v169
  %v715 = vunpack.c.l.b16 %v170
  %v716 = vunpack.c.h.b16 %v170
  %v717 = vunpack.c.l.b16 %v171
  %v718 = vunpack.c.h.b16 %v171
  %v719 = vunpack.c.l.b16 %v172
  %v720 = vunpack.c.h.b16 %v172
  %v721 = vunpack.c.l.b16 %v173
  %v722 = vunpack.c.h.b16 %v173
  %v723 = vunpack.c.l.b16 %v174
  %v724 = vunpack.c.h.b16 %v174
  %v725 = vunpack.c.l.b16 %v175
  %v726 = vunpack.c.h.b16 %v175
  %v727 = vunpack.c.l.b16 %v176
  %v728 = vunpack.c.h.b16 %v176
  %v729 = vunpack.c.l.b16 %v177
  %v730 = vunpack.c.h.b16 %v177
  %v731 = vunpack.c.l.b16 %v178
  %v732 = vunpack.c.h.b16 %v178
  %v733 = vunpack.c.l.b16 %v179
  %v734 = vunpack.c.h.b16 %v179
  %v735 = vunpack.c.l.b16 %v180
  %v736 = vunpack.c.h.b16 %v180
  %v737 = vunpack.c.l.b16 %v181
  %v738 = vunpack.c.h.b16 %v181
  %v739 = vunpack.c.l.b16 %v182
  %v740 = vunpack.c.h.b16 %v182
  %v741 = vunpack.c.l.b16 %v183
  %v742 = vunpack.c.h.b16 %v183
  %v743 = vunpack.c.l.b16 %v184
  %v744 = vunpack.c.h.b16 %v184
  %v745 = vunpack.c.l.b16 %v185
  %v746 = vunpack.c.h.b16 %v185
  %v747 = vunpack.c.l.b16 %v186
  %v748 = vunpack.c.h.b16 %v186
  %v749 = vunpack.c.l.b16 %v187
  %v750 = vunpack.c.h.b16 %v187
  %v751 = vunpack.c.l.b16 %v188
  %v752 = vunpack.c.h.b16 %v188
  %v753 = vunpack.c.l.b16 %v189
  %v754 = vunpack.c.h.b16 %v189
  %v755 = vunpack.c.l.b16 %v190
  %v756 = vunpack.c.h.b16 %v190
  %v757 = vunpack.c.l.b16 %v191
  %v758 = vunpack.c.h.b16 %v191
  %v759 = vunpack.c.l.b16 %v192
  %v760 = vunpack.c.h.b16 %v192
  %v761 = vunpack.c.l.b16 %v193
  %v762 = vunpack.c.h.b16 %v193
  %v763 = vunpack.c.l.b16 %v194
  %v764 = vunpack.c.h.b16 %v194
  %v765 = vunpack.c.l.b16 %v195
  %v766 = vunpack.c.h.b16 %v195
  %v767 = vunpack.c.l.b16 %v196
  %v768 = vunpack.c.h.b16 %v196
  %v769 = vunpack.c.l.b16 %v197
  %v770 = vunpack.c.h.b16 %v197
  %v771 = vunpack.c.l.b16 %v198
  %v772 = vunpack.c.h.b16 %v198
  %v773 = vunpack.c.l.b16 %v199
  %v774 = vunpack.c.h.b16 %v199
  %v775 = vunpack.c.l.b16 %v200
  %v776 = vunpack.c.h.b16 %v200
  %v777 = vunpack.c.l.b16 %v201
  %v778 = vunpack.c.h.b16 %v201
  %v779 = vunpack.c.l.b16 %v202
  %v780 = vunpack.c.h.b16 %v202
  %v781 = vunpack.c.l.b16 %v203
  %v782 = vunpack.c.h.b16 %v203
  %v783 = vunpack.c.l.b16 %v204
  %v784 = vunpack.c.h.b16 %v204
  %v785 = vunpack.c.l.b16 %v205
  %v786 = vunpack.c.h.b16 %v205
  %v787 = vunpack.c.l.b16 %v206
  %v788 = vunpack.c.h.b16 %v206
  %v789 = vunpack.c.l.b16 %v207
  %v790 = vunpack.c.h.b16 %v207
  %v791 = vunpack.c.l.b16 %v208
  %v792 = vunpack.c.h.b16 %v208
  %v793 = vpack.c.b16 %v443, %v441
  %v794 = vpack.c.b16 %v444, %v442
  %v795 = vpack.c.b16 %v447, %v445
  %v796 = vpack.c.b16 %v448, %v446
  %v797 = vpack.c.b16 %v451, %v449
  %v798 = vpack.c.b16 %v452, %v450
  %v799 = vpack.c.b16 %v455, %v453
  %v800 = vpack.c.b16 %v456, %v454
  %v801 = vpack.c.b16 %v459, %v457
  %v802 = vpack.c.b16 %v460, %v458
  %v803 = vpack.c.b16 %v463, %v461
  %v804 = vpack.c.b16 %v464, %v462
  %v805 = vpack.c.b16 %v467, %v465
  %v806 = vpack.c.b16 %v468, %v466
  %v807 = vpack.c.b16 %v471, %v469
  %v808 = vpack.c.b16 %v472, %v470
  %v809 = vpack.c.b16 %v475, %v473
  %v810 = vpack.c.b16 %v476, %v474
  %v811 = vpack.c.b16 %v479, %v477
  %v812 = vpack.c.b16 %v480, %v478
  %v813 = vpack.c.b16 %v483, %v481
  %v814 = vpack.c.b16 %v484, %v482
  %v815 = vpack.c.b16 %v487, %v485
  %v816 = vpack.c.b16 %v488, %v486
  %v817 = vpack.c.b16 %v491, %v489
  %v818 = vpack.c.b16 %v492, %v490
  %v819 = vpack.c.b16 %v495, %v493
  %v820 = vpack.c.b16 %v496, %v494
  %v821 = vpack.c.b16 %v499, %v497
  %v822 = vpack.c.b16 %v500, %v498
  %v823 = vpack.c.b16 %v503, %v501
  %v824 = vpack.c.b16 %v504, %v502
  %v825 = vpack.c.b16 %v507, %v505
  %v826 = vpack.c.b16 %v508, %v506
  %v827 = vpack.c.b16 %v511, %v509
  %v828 = vpack.c.b16 %v512, %v510
  %v829 = vpack.c.b16 %v515, %v513
  %v830 = vpack.c.b16 %v516, %v514
  %v831 = vpack.c.b16 %v519, %v517
  %v832 = vpack.c.b16 %v520, %v518
  %v833 = vpack.c.b16 %v523, %v521
  %v834 = vpack.c.b16 %v524, %v522
  %v835 = vpack.c.b16 %v527, %v525
  %v836 = vpack.c.b16 %v528, %v526
  %v837 = vpack.c.b16 %v531, %v529
  %v838 = vpack.c.b16 %v532, %v530
  %v839 = vpack.c.b16 %v535, %v533
  %v840 = vpack.c.b16 %v536, %v534
  %v841 = vpack.c.b16 %v539, %v537
  %v842 = vpack.c.b16 %v540, %v538
  %v843 = vpack.c.b16 %v543, %v541
  %v844 = vpack.c.b16 %v544, %v542
  %v845 = vpack.c.b16 %v547, %v545
  %v846 = vpack.c.b16 %v548, %v546
  %v847 = vpack.c.b16 %v551, %v549
  %v848 = vpack.c.b16 %v552, %v550
  %v849 = vpack.c.b16 %v555, %v553
  %v850 = vpack.c.b16 %v556, %v554
  %v851 = vpack.c.b16 %v559, %v557
  %v852 = vpack.c.b16 %v560, %v558
  %v853 = vpack.c.b16 %v563, %v561
  %v854 = vpack.c.b16 %v564, %v562
  %v855 = vpack.c.b16 %v567, %v565
  %v856 = vpack.c.b16 %v568, %v566
  %v857 = vpack.c.b16 %v571, %v569
  %v858 = vpack.c.b16 %v572, %v570
  %v859 = vpack.c.b16 %v575, %v573
  %v860 = vpack.c.b16 %v576, %v574
  %v861 = vpack.c.b16 %v579, %v577
  %v862 = vpack.c.b16 %v580, %v578
  %v863 = vpack.c.b16 %v583, %v581
  %v864 = vpack.c.b16 %v584, %v582
  %v865 = vpack.c.b16 %v587, %v585
  %v866 = vpack.c.b16 %v588, %v586
  %v867 = vpack.c.b16 %v591, %v589
  %v868 = vpack.c.b16 %v592, %v590
  %v869 = vpack.c.b16 %v595, %v593
  %v870 = vpack.c.b16 %v596, %v594
  %v871 = vpack.c.b16 %v599, %v597
  %v872 = vpack.c.b16 %v600, %v598
  %v873 = vpack.c.b16 %v603, %v601
  %v874 = vpack.c.b16 %v604, %v602
  %v875 = vpack.c.b16 %v607, %v605
  %v876 = vpack.c.b16 %v608, %v606
  %v877 = vpack.c.b16 %v611, %v609
  %v878 = vpack.c.b16 %v612, %v610
  %v879 = vpack.c.b16 %v615, %v613
  %v880 = vpack.c.b16 %v616, %v614
  %v881 = vpack.c.b16 %v619, %v617
  %v882 = vpack.c.b16 %v620, %v618
  %v883 = vpack.c.b16 %v623, %v621
  %v884 = vpack.c.b16 %v624, %v622
  %v885 = vpack.c.b16 %v627, %v625
  %v886 = vpack.c.b16 %v628, %v626
  %v887 = vpack.c.b16 %v631, %v629
  %v888 = vpack.c.b16 %v632, %v630
  %v889 = vpack.c.b16 %v635, %v633
  %v890 = vpack.c.b16 %v636, %v634
  %v891 = vpack.c.b16 %v639, %v637
  %v892 = vpack.c.b16 %v640, %v638
  %v893 = vpack.c.b16 %v643, %v641
  %v894 = vpack.c.b16 %v644, %v642
  %v895 = vpack.c.b16 %v647, %v645
  %v896 = vpack.c.b16 %v648, %v646
  %v897 = vpack.c.b16 %v651, %v649
  %v898 = vpack.c.b16 %v652, %v650
  %v899 = vpack.c.b16 %v655, %v653
  %v900 = vpack.c.b16 %v656, %v654
  %v901 = vpack.c.b16 %v659, %v657
  %v902 = vpack.c.b16 %v660, %v658
  %v903 = vpack.c.b16 %v663, %v661
  %v904 = vpack.c.b16 %v664, %v662
  %v905 = vpack.c.b16 %v667, %v665
  %v906 = vpack.c.b16 %v668, %v666
  %v907 = vpack.c.b16 %v671, %v669
  %v908 = vpack.c.b16 %v672, %v670
  %v909 = vpack.c.b16 %v675, %v673
  %v910 = vpack.c.b16 %v676, %v674
  %v911 = vpack.c.b16 %v679, %v677
  %v912 = vpack.c.b16 %v680, %v678
  %v913 = vpack.c.b16 %v683, %v681
  %v914 = vpack.c.b16 %v684, %v682
  %v915 = vpack.c.b16 %v687, %v685
  %v916 = vpack.c.b16 %v688, %v686
  %v917 = vpack.c.b16 %v691, %v689
  %v918 = vpack.c.b16 %v692, %v690
  %v919 = vpack.c.b16 %v695, %v693
  %v920 = vpack.c.b16 %v696, %v694
  %v921 = vpack.c.b16 %v699, %v697
  %v922 = vpack.c.b16 %v700, %v698
  %v923 = vpack.c.b16 %v703, %v701
  %v924 = vpack.c.b16 %v704, %v702
  %v925 = vpack.c.b16 %v707, %v705
  %v926 = vpack.c.b16 %v708, %v706
  %v927 = vpack.c.b16 %v711, %v709
  %v928 = vpack.c.b16 %v712, %v710
  %v929 = vpack.c.b16 %v715, %v713
  %v930 = vpack.c.b16 %v716, %v714
  %v931 = vpack.c.b16 %v719, %v717
  %v932 = vpack.c.b16 %v720, %v718
  %v933 = vpack.c.b16 %v723, %v721
  %v934 = vpack.c.b16 %v724, %v722
  %v935 = vpack.c.b16 %v727, %v725
  %v936 = vpack.c.b16 %v728, %v726
  %v937 = vpack.c.b16 %v731, %v729
  %v938 = vpack.c.b16 %v732, %v730
  %v939 = vpack.c.b16 %v735, %v733
  %v940 = vpack.c.b16 %v736, %v734
  %v941 = vpack.c.b16 %v739, %v737
  %v942 = vpack.c.b16 %v740, %v738
  %v943 = vpack.c.b16 %v743, %v741
  %v944 = vpack.c.b16 %v744, %v742
  %v945 = vpack.c.b16 %v747, %v745
  %v946 = vpack.c.b16 %v748, %v746
  %v947 = vpack.c.b16 %v751, %v749
  %v948 = vpack.c.b16 %v752, %v750
  %v949 = vpack.c.b16 %v755, %v753
  %v950 = vpack.c.b16 %v756, %v754
  %v951 = vpack.c.b16 %v759, %v757
  %v952 = vpack.c.b16 %v760, %v758
  %v953 = vpack.c.b16 %v763, %v761
  %v954 = vpack.c.b16 %v764, %v762
  %v955 = vpack.c.b16 %v767, %v765
  %v956 = vpack.c.b16 %v768, %v766
  %v957 = vpack.c.b16 %v771, %v769
  %v958 = vpack.c.b16 %v772, %v770
  %v959 = vpack.c.b16 %v775, %v773
  %v960 = vpack.c.b16 %v776, %v774
  %v961 = vpack.c.b16 %v779, %v777
  %v962 = vpack.c.b16 %v780, %v778
  %v963 = vpack.c.b16 %v783, %v781
  %v964 = vpack.c.b16 %v784, %v782
  %v965 = vpack.c.b16 %v787, %v785
  %v966 = vpack.c.b16 %v788, %v786
  %v967 = vpack.c.b16 %v791, %v789
  %v968 = vpack.c.b16 %v792, %v790
  %1145 = vmatprep.subr.bf16.mxu0 %v808
  %1146 = vmatpush1.bf16.msra.mxu0 %v807
  %1147 = vmatprep.subr.bf16.mxu0 %v806
  %1148 = vmatpush1.bf16.msra.mxu0 %v805
  %1149 = vmatprep.subr.bf16.mxu0 %v804
  %1150 = vmatpush1.bf16.msra.mxu0 %v803
  %1151 = vmatprep.subr.bf16.mxu0 %v802
  %1152 = vmatpush1.bf16.msra.mxu0 %v801
  %1153 = vmatprep.subr.bf16.mxu0 %v800
  %1154 = vmatpush1.bf16.msra.mxu0 %v799
  %1155 = vmatprep.subr.bf16.mxu0 %v798
  %1156 = vmatpush1.bf16.msra.mxu0 %v797
  %1157 = vmatprep.subr.bf16.mxu0 %v796
  %1158 = vmatpush1.bf16.msra.mxu0 %v795
  %1159 = vmatprep.subr.bf16.mxu0 %v794
  %1160 = vmatpush1.bf16.msra.mxu0 %v793
  %1161 = vmatprep.subr.bf16.mxu0 %v824
  %1162 = vmatpush2.bf16.msra.mxu0 %v823
  %1163 = vmatprep.subr.bf16.mxu0 %v822
  %1164 = vmatpush2.bf16.msra.mxu0 %v821
  %1165 = vmatprep.subr.bf16.mxu0 %v820
  %1166 = vmatpush2.bf16.msra.mxu0 %v819
  %1167 = vmatprep.subr.bf16.mxu0 %v818
  %1168 = vmatpush2.bf16.msra.mxu0 %v817
  %1169 = vmatprep.subr.bf16.mxu0 %v816
  %1170 = vmatpush2.bf16.msra.mxu0 %v815
  %1171 = vmatprep.subr.bf16.mxu0 %v814
  %1172 = vmatpush2.bf16.msra.mxu0 %v813
  %1173 = vmatprep.subr.bf16.mxu0 %v812
  %1174 = vmatpush2.bf16.msra.mxu0 %v811
  %1175 = vmatprep.subr.bf16.mxu0 %v810
  %1176 = vmatpush2.bf16.msra.mxu0 %v809
  %1177 = vmatprep.mubr.bf16.mxu0 %v244
  %1178 = vmatmul.mubr.bf16.gmra.mxu0 %v243
  %v1179 = vpop.f32.mrf.mxu0
  %v1180 = vadd.f32 0.0, %v1179
  %v1181 = vpop.f32.mrf.mxu0
  %v1182 = vadd.f32 0.0, %v1181
  %v1183 = vpop.f32.mrf.mxu0
  %v1184 = vadd.f32 0.0, %v1183
  %v1185 = vpop.f32.mrf.mxu0
  %v1186 = vadd.f32 0.0, %v1185
  %1187 = vdwg.mxu0
  %1188 = vmatprep.subr.bf16.mxu0 %v840
  %1189 = vmatpush1.bf16.msra.mxu0 %v839
  %1190 = vmatprep.subr.bf16.mxu0 %v838
  %1191 = vmatpush1.bf16.msra.mxu0 %v837
  %1192 = vmatprep.subr.bf16.mxu0 %v836
  %1193 = vmatpush1.bf16.msra.mxu0 %v835
  %1194 = vmatprep.subr.bf16.mxu0 %v834
  %1195 = vmatpush1.bf16.msra.mxu0 %v833
  %1196 = vmatprep.subr.bf16.mxu0 %v832
  %1197 = vmatpush1.bf16.msra.mxu0 %v831
  %1198 = vmatprep.subr.bf16.mxu0 %v830
  %1199 = vmatpush1.bf16.msra.mxu0 %v829
  %1200 = vmatprep.subr.bf16.mxu0 %v828
  %1201 = vmatpush1.bf16.msra.mxu0 %v827
  %1202 = vmatprep.subr.bf16.mxu0 %v826
  %1203 = vmatpush1.bf16.msra.mxu0 %v825
  %1204 = vmatprep.subr.bf16.mxu0 %v856
  %1205 = vmatpush2.bf16.msra.mxu0 %v855
  %1206 = vmatprep.subr.bf16.mxu0 %v854
  %1207 = vmatpush2.bf16.msra.mxu0 %v853
  %1208 = vmatprep.subr.bf16.mxu0 %v852
  %1209 = vmatpush2.bf16.msra.mxu0 %v851
  %1210 = vmatprep.subr.bf16.mxu0 %v850
  %1211 = vmatpush2.bf16.msra.mxu0 %v849
  %1212 = vmatprep.subr.bf16.mxu0 %v848
  %1213 = vmatpush2.bf16.msra.mxu0 %v847
  %1214 = vmatprep.subr.bf16.mxu0 %v846
  %1215 = vmatpush2.bf16.msra.mxu0 %v845
  %1216 = vmatprep.subr.bf16.mxu0 %v844
  %1217 = vmatpush2.bf16.msra.mxu0 %v843
  %1218 = vmatprep.subr.bf16.mxu0 %v842
  %1219 = vmatpush2.bf16.msra.mxu0 %v841
  %1220 = vmatprep.mubr.bf16.mxu0 %v246
  %1221 = vmatmul.mubr.bf16.gmra.mxu0 %v245
  %v1222 = vpop.f32.mrf.mxu0
  %v1223 = vadd.f32 %v1180, %v1222
  %v1224 = vpop.f32.mrf.mxu0
  %v1225 = vadd.f32 %v1182, %v1224
  %v1226 = vpop.f32.mrf.mxu0
  %v1227 = vadd.f32 %v1184, %v1226
  %v1228 = vpop.f32.mrf.mxu0
  %v1229 = vadd.f32 %v1186, %v1228
  %1230 = vdwg.mxu0
  %1231 = vmatprep.subr.bf16.mxu0 %v872
  %1232 = vmatpush1.bf16.msra.mxu0 %v871
  %1233 = vmatprep.subr.bf16.mxu0 %v870
  %1234 = vmatpush1.bf16.msra.mxu0 %v869
  %1235 = vmatprep.subr.bf16.mxu0 %v868
  %1236 = vmatpush1.bf16.msra.mxu0 %v867
  %1237 = vmatprep.subr.bf16.mxu0 %v866
  %1238 = vmatpush1.bf16.msra.mxu0 %v865
  %1239 = vmatprep.subr.bf16.mxu0 %v864
  %1240 = vmatpush1.bf16.msra.mxu0 %v863
  %1241 = vmatprep.subr.bf16.mxu0 %v862
  %1242 = vmatpush1.bf16.msra.mxu0 %v861
  %1243 = vmatprep.subr.bf16.mxu0 %v860
  %1244 = vmatpush1.bf16.msra.mxu0 %v859
  %1245 = vmatprep.subr.bf16.mxu0 %v858
  %1246 = vmatpush1.bf16.msra.mxu0 %v857
  %1247 = vmatprep.subr.bf16.mxu0 %v888
  %1248 = vmatpush2.bf16.msra.mxu0 %v887
  %1249 = vmatprep.subr.bf16.mxu0 %v886
  %1250 = vmatpush2.bf16.msra.mxu0 %v885
  %1251 = vmatprep.subr.bf16.mxu0 %v884
  %1252 = vmatpush2.bf16.msra.mxu0 %v883
  %1253 = vmatprep.subr.bf16.mxu0 %v882
  %1254 = vmatpush2.bf16.msra.mxu0 %v881
  %1255 = vmatprep.subr.bf16.mxu0 %v880
  %1256 = vmatpush2.bf16.msra.mxu0 %v879
  %1257 = vmatprep.subr.bf16.mxu0 %v878
  %1258 = vmatpush2.bf16.msra.mxu0 %v877
  %1259 = vmatprep.subr.bf16.mxu0 %v876
  %1260 = vmatpush2.bf16.msra.mxu0 %v875
  %1261 = vmatprep.subr.bf16.mxu0 %v874
  %1262 = vmatpush2.bf16.msra.mxu0 %v873
  %1263 = vmatprep.mubr.bf16.mxu0 %v248
  %1264 = vmatmul.mubr.bf16.gmra.mxu0 %v247
  %v1265 = vpop.f32.mrf.mxu0
  %v1266 = vadd.f32 %v1223, %v1265
  %v1267 = vpop.f32.mrf.mxu0
  %v1268 = vadd.f32 %v1225, %v1267
  %v1269 = vpop.f32.mrf.mxu0
  %v1270 = vadd.f32 %v1227, %v1269
  %v1271 = vpop.f32.mrf.mxu0
  %v1272 = vadd.f32 %v1229, %v1271
  %1273 = vdwg.mxu0
  %1274 = vmatprep.subr.bf16.mxu0 %v904
  %1275 = vmatpush1.bf16.msra.mxu0 %v903
  %1276 = vmatprep.subr.bf16.mxu0 %v902
  %1277 = vmatpush1.bf16.msra.mxu0 %v901
  %1278 = vmatprep.subr.bf16.mxu0 %v900
  %1279 = vmatpush1.bf16.msra.mxu0 %v899
  %1280 = vmatprep.subr.bf16.mxu0 %v898
  %1281 = vmatpush1.bf16.msra.mxu0 %v897
  %1282 = vmatprep.subr.bf16.mxu0 %v896
  %1283 = vmatpush1.bf16.msra.mxu0 %v895
  %1284 = vmatprep.subr.bf16.mxu0 %v894
  %1285 = vmatpush1.bf16.msra.mxu0 %v893
  %1286 = vmatprep.subr.bf16.mxu0 %v892
  %1287 = vmatpush1.bf16.msra.mxu0 %v891
  %1288 = vmatprep.subr.bf16.mxu0 %v890
  %1289 = vmatpush1.bf16.msra.mxu0 %v889
  %1290 = vmatprep.subr.bf16.mxu0 %v920
  %1291 = vmatpush2.bf16.msra.mxu0 %v919
  %1292 = vmatprep.subr.bf16.mxu0 %v918
  %1293 = vmatpush2.bf16.msra.mxu0 %v917
  %1294 = vmatprep.subr.bf16.mxu0 %v916
  %1295 = vmatpush2.bf16.msra.mxu0 %v915
  %1296 = vmatprep.subr.bf16.mxu0 %v914
  %1297 = vmatpush2.bf16.msra.mxu0 %v913
  %1298 = vmatprep.subr.bf16.mxu0 %v912
  %1299 = vmatpush2.bf16.msra.mxu0 %v911
  %1300 = vmatprep.subr.bf16.mxu0 %v910
  %1301 = vmatpush2.bf16.msra.mxu0 %v909
  %1302 = vmatprep.subr.bf16.mxu0 %v908
  %1303 = vmatpush2.bf16.msra.mxu0 %v907
  %1304 = vmatprep.subr.bf16.mxu0 %v906
  %1305 = vmatpush2.bf16.msra.mxu0 %v905
  %1306 = vmatprep.mubr.bf16.mxu0 %v250
  %1307 = vmatmul.mubr.bf16.gmra.mxu0 %v249
  %v1308 = vpop.f32.mrf.mxu0
  %v1309 = vadd.f32 %v1266, %v1308
  %v1310 = vpop.f32.mrf.mxu0
  %v1311 = vadd.f32 %v1268, %v1310
  %v1312 = vpop.f32.mrf.mxu0
  %v1313 = vadd.f32 %v1270, %v1312
  %v1314 = vpop.f32.mrf.mxu0
  %v1315 = vadd.f32 %v1272, %v1314
  %1316 = vdwg.mxu0
  %1317 = vmatprep.subr.bf16.mxu0 %v936
  %1318 = vmatpush1.bf16.msra.mxu0 %v935
  %1319 = vmatprep.subr.bf16.mxu0 %v934
  %1320 = vmatpush1.bf16.msra.mxu0 %v933
  %1321 = vmatprep.subr.bf16.mxu0 %v932
  %1322 = vmatpush1.bf16.msra.mxu0 %v931
  %1323 = vmatprep.subr.bf16.mxu0 %v930
  %1324 = vmatpush1.bf16.msra.mxu0 %v929
  %1325 = vmatprep.subr.bf16.mxu0 %v928
  %1326 = vmatpush1.bf16.msra.mxu0 %v927
  %1327 = vmatprep.subr.bf16.mxu0 %v926
  %1328 = vmatpush1.bf16.msra.mxu0 %v925
  %1329 = vmatprep.subr.bf16.mxu0 %v924
  %1330 = vmatpush1.bf16.msra.mxu0 %v923
  %1331 = vmatprep.subr.bf16.mxu0 %v922
  %1332 = vmatpush1.bf16.msra.mxu0 %v921
  %1333 = vmatprep.subr.bf16.mxu0 %v952
  %1334 = vmatpush2.bf16.msra.mxu0 %v951
  %1335 = vmatprep.subr.bf16.mxu0 %v950
  %1336 = vmatpush2.bf16.msra.mxu0 %v949
  %1337 = vmatprep.subr.bf16.mxu0 %v948
  %1338 = vmatpush2.bf16.msra.mxu0 %v947
  %1339 = vmatprep.subr.bf16.mxu0 %v946
  %1340 = vmatpush2.bf16.msra.mxu0 %v945
  %1341 = vmatprep.subr.bf16.mxu0 %v944
  %1342 = vmatpush2.bf16.msra.mxu0 %v943
  %1343 = vmatprep.subr.bf16.mxu0 %v942
  %1344 = vmatpush2.bf16.msra.mxu0 %v941
  %1345 = vmatprep.subr.bf16.mxu0 %v940
  %1346 = vmatpush2.bf16.msra.mxu0 %v939
  %1347 = vmatprep.subr.bf16.mxu0 %v938
  %1348 = vmatpush2.bf16.msra.mxu0 %v937
  %1349 = vmatprep.mubr.bf16.mxu0 %v252
  %1350 = vmatmul.mubr.bf16.gmra.mxu0 %v251
  %v1351 = vpop.f32.mrf.mxu0
  %v1352 = vadd.f32 %v1309, %v1351
  %v1353 = vpop.f32.mrf.mxu0
  %v1354 = vadd.f32 %v1311, %v1353
  %v1355 = vpop.f32.mrf.mxu0
  %v1356 = vadd.f32 %v1313, %v1355
  %v1357 = vpop.f32.mrf.mxu0
  %v1358 = vadd.f32 %v1315, %v1357
  %1359 = vdwg.mxu0
  %1360 = vmatprep.subr.bf16.mxu0 %v968
  %1361 = vmatpush1.bf16.msra.mxu0 %v967
  %1362 = vmatprep.subr.bf16.mxu0 %v966
  %1363 = vmatpush1.bf16.msra.mxu0 %v965
  %1364 = vmatprep.subr.bf16.mxu0 %v964
  %1365 = vmatpush1.bf16.msra.mxu0 %v963
  %1366 = vmatprep.subr.bf16.mxu0 %v962
  %1367 = vmatpush1.bf16.msra.mxu0 %v961
  %1368 = vmatprep.subr.bf16.mxu0 %v960
  %1369 = vmatpush1.bf16.msra.mxu0 %v959
  %1370 = vmatprep.subr.bf16.mxu0 %v958
  %1371 = vmatpush1.bf16.msra.mxu0 %v957
  %1372 = vmatprep.subr.bf16.mxu0 %v956
  %1373 = vmatpush1.bf16.msra.mxu0 %v955
  %1374 = vmatprep.subr.bf16.mxu0 %v954
  %1375 = vmatpush1.bf16.msra.mxu0 %v953
  %1376 = vmatprep.subr.bf16.mxu0 0
  %1377 = vmatpush2.bf16.msra.mxu0 0
  %1378 = vmatprep.subr.bf16.mxu0 0
  %1379 = vmatpush2.bf16.msra.mxu0 0
  %1380 = vmatprep.subr.bf16.mxu0 0
  %1381 = vmatpush2.bf16.msra.mxu0 0
  %1382 = vmatprep.subr.bf16.mxu0 0
  %1383 = vmatpush2.bf16.msra.mxu0 0
  %1384 = vmatprep.subr.bf16.mxu0 0
  %1385 = vmatpush2.bf16.msra.mxu0 0
  %1386 = vmatprep.subr.bf16.mxu0 0
  %1387 = vmatpush2.bf16.msra.mxu0 0
  %1388 = vmatprep.subr.bf16.mxu0 0
  %1389 = vmatpush2.bf16.msra.mxu0 0
  %1390 = vmatprep.subr.bf16.mxu0 0
  %1391 = vmatpush2.bf16.msra.mxu0 0
  %1392 = vmatprep.mubr.bf16.mxu0 0
  %1393 = vmatmul.mubr.bf16.gmra.mxu0 %v253
  %v1394 = vpop.f32.mrf.mxu0
  %v1395 = vadd.f32 %v1352, %v1394
  %v1396 = vpop.f32.mrf.mxu0
  %v1397 = vadd.f32 %v1354, %v1396
  %v1398 = vpop.f32.mrf.mxu0
  %v1399 = vadd.f32 %v1356, %v1398
  %v1400 = vpop.f32.mrf.mxu0
  %v1401 = vadd.f32 %v1358, %v1400
  %1402 = vdwg.mxu0
  %v1403 = vld [vmem:[%s2] sm:$0x3]
  %v1405 = vlaneseq
  %v1406 = vshrl.u32 %v1405, 7
  %v1407 = vsub.s32 0, %v1406
  %v1408 = vrot.slane %v1403, %v1407
  %v1409 = vlaneseq
  %v1410 = vshrl.u32 %v1409, 7
  %v1411 = vsub.s32 1, %v1410
  %v1412 = vrot.slane %v1403, %v1411
  %v1415 = vmul.f32 %v1395, %v1408
  %v1416 = vmul.f32 %v1397, %v1412
  %v1417 = vmul.f32 %v1399, %v1408
  %v1418 = vmul.f32 %v1401, %v1412
  %v1419 = vld [vmem:[%s3] sm:$0x3]
  %v1421 = vlaneseq
  %v1422 = vshrl.u32 %v1421, 7
  %v1423 = vsub.s32 0, %v1422
  %v1424 = vrot.slane %v1419, %v1423
  %v1425 = vlaneseq
  %v1426 = vshrl.u32 %v1425, 7
  %v1427 = vsub.s32 1, %v1426
  %v1428 = vrot.slane %v1419, %v1427
  %v1431 = vadd.f32 %v1415, %v1424
  %v1432 = vadd.f32 %v1416, %v1428
  %v1433 = vadd.f32 %v1417, %v1424
  %v1434 = vadd.f32 %v1418, %v1428
  %v1435 = vld [vmem:[%s4] sm:$0xff]
  %v1436 = vld [vmem:[%s4 + $0x8] sm:$0xff]
  %v1437 = vunpack.c.l.bf16 %v1435
  %v1438 = vunpack.c.h.bf16 %v1435
  %v1439 = vunpack.c.l.bf16 %v1436
  %v1440 = vunpack.c.h.bf16 %v1436
  %v1441 = vadd.f32 %v1431, %v1437
  %v1442 = vadd.f32 %v1432, %v1438
  %v1443 = vadd.f32 %v1433, %v1439
  %v1444 = vadd.f32 %v1434, %v1440
  %v1445 = vmax.f32 %v1441, 0.0
  %v1446 = vmax.f32 %v1442, 0.0
  %v1447 = vmax.f32 %v1443, 0.0
  %v1448 = vmax.f32 %v1444, 0.0
  %v1449 = vpack.c.bf16 %v1447, %v1445
  %v1450 = vpack.c.bf16 %v1448, %v1446
  %v1453 = vunpack.c.l.b16 %v1449
  %v1454 = vunpack.c.l.b16 %v1450
  %v1455 = vunpack.c.h.b16 %v1449
  %v1456 = vunpack.c.h.b16 %v1450
  %v1457 = vpack.c.b16 %v1454, %v1453
  %v1458 = vpack.c.b16 %v1456, %v1455
  %1461 = vst [vmem:[%s5] sm:$0xff] %v1457
  %1462 = vst [vmem:[%s5 + $0x8] sm:$0xff] %v1458
  // Predicated region
  $region22: #{hrnet_forward.29} parent=0 // pred_check
    _
  $region23: #{hrnet_forward.29} parent=0 // pred_check_branch
    %1464 = sbr.rel (0) target = $region25
  $region24: #{hrnet_forward.29} parent=0 // pred_region
    _
  $region25: #{hrnet_forward.29} parent=0 // pred_fallthru
    _
  // Predicated region
  $region26: #{hrnet_forward.29} parent=0 // pred_check
    _
  $region27: #{hrnet_forward.29} parent=0 // pred_check_branch
    %1466 = sbr.rel (0) target = $region29
  $region28: #{hrnet_forward.29} parent=0 // pred_region
    _
  $region29: #{hrnet_forward.29} parent=0 // pred_fallthru
    _

// kernel: hrnet_forward.43
$region0: #{hrnet_forward.43}
  #allocation0 [shape = 'u32[]', space=smem, size = 0x4, offset = 0x4, fixed_abs, tag = 'smem constant byte address 0x4 - core index']
  #allocation1 [shape = 'u32[144,128]{1,0:T(1,128)}', space=vmem, size = 0x12000, scoped, tag = 'internal scratch']
  %s0 = inlined_call_operand.vmem [shape: bf16[16,256], index: 0, kind: input, shape index: {}]
  %s1 = inlined_call_operand.vmem [shape: bf16[256,128], index: 1, kind: input, shape index: {}]
  %s2 = inlined_call_operand.vmem [shape: f32[1,128], index: 2, kind: input, shape index: {}]
  %s3 = inlined_call_operand.vmem [shape: f32[1,128], index: 3, kind: input, shape index: {}]
  %s4 = inlined_call_operand.vmem [shape: bf16[16,128], index: 4, kind: output, shape index: {}]
  %s5 = sld [smem:[#allocation0]]
  $region26: #{hrnet_forward.43} parent=0
    _
  %s7 = ssub.s32 1, %s5
  %s8 = scalar_select 0, %s7, %s5
  // Predicated region
  $region2: #{hrnet_forward.43} parent=0 // pred_check
    _
  $region3: #{hrnet_forward.43} parent=0 // pred_check_branch
    %10 = sbr.rel (0) target = $region5
  $region4: #{hrnet_forward.43} parent=0 // pred_region
    _
  $region5: #{hrnet_forward.43} parent=0 // pred_fallthru
    _
  // Predicated region
  $region6: #{hrnet_forward.43} parent=0 // pred_check
    _
  $region7: #{hrnet_forward.43} parent=0 // pred_check_branch
    %12 = sbr.rel (0) target = $region9
  $region8: #{hrnet_forward.43} parent=0 // pred_region
    _
  $region9: #{hrnet_forward.43} parent=0 // pred_fallthru
    _
  // Predicated region
  $region10: #{hrnet_forward.43} parent=0 // pred_check
    _
  $region11: #{hrnet_forward.43} parent=0 // pred_check_branch
    %14 = sbr.rel (0) target = $region13
  $region12: #{hrnet_forward.43} parent=0 // pred_region
    _
  $region13: #{hrnet_forward.43} parent=0 // pred_fallthru
    _
  // Predicated region
  $region14: #{hrnet_forward.43} parent=0 // pred_check
    _
  $region15: #{hrnet_forward.43} parent=0 // pred_check_branch
    %16 = sbr.rel (0) target = $region17
  $region16: #{hrnet_forward.43} parent=0 // pred_region
    _
  $region17: #{hrnet_forward.43} parent=0 // pred_fallthru
    _
  %v18 = vld [vmem:[%s0] sm:$0xff]
  %v19 = vld [vmem:[%s0 + $0x8] sm:$0xff]
  %v20 = vld [vmem:[%s1] sm:$0xf]
  %v21 = vld [vmem:[%s1 + $0x4] sm:$0xf]
  %v22 = vld [vmem:[%s1 + $0x8] sm:$0xf]
  %v23 = vld [vmem:[%s1 + $0xc] sm:$0xf]
  %v24 = vld [vmem:[%s1 + $0x10] sm:$0xf]
  %v25 = vld [vmem:[%s1 + $0x14] sm:$0xf]
  %v26 = vld [vmem:[%s1 + $0x18] sm:$0xf]
  %v27 = vld [vmem:[%s1 + $0x1c] sm:$0xf]
  %v28 = vld [vmem:[%s1 + $0x20] sm:$0xf]
  %v29 = vld [vmem:[%s1 + $0x24] sm:$0xf]
  %v30 = vld [vmem:[%s1 + $0x28] sm:$0xf]
  %v31 = vld [vmem:[%s1 + $0x2c] sm:$0xf]
  %v32 = vld [vmem:[%s1 + $0x30] sm:$0xf]
  %v33 = vld [vmem:[%s1 + $0x34] sm:$0xf]
  %v34 = vld [vmem:[%s1 + $0x38] sm:$0xf]
  %v35 = vld [vmem:[%s1 + $0x3c] sm:$0xf]
  %v36 = vld [vmem:[%s1 + $0x40] sm:$0xf]
  %v37 = vld [vmem:[%s1 + $0x44] sm:$0xf]
  %v38 = vld [vmem:[%s1 + $0x48] sm:$0xf]
  %v39 = vld [vmem:[%s1 + $0x4c] sm:$0xf]
  %v40 = vld [vmem:[%s1 + $0x50] sm:$0xf]
  %v41 = vld [vmem:[%s1 + $0x54] sm:$0xf]
  %v42 = vld [vmem:[%s1 + $0x58] sm:$0xf]
  %v43 = vld [vmem:[%s1 + $0x5c] sm:$0xf]
  %v44 = vld [vmem:[%s1 + $0x60] sm:$0xf]
  %v45 = vld [vmem:[%s1 + $0x64] sm:$0xf]
  %v46 = vld [vmem:[%s1 + $0x68] sm:$0xf]
  %v47 = vld [vmem:[%s1 + $0x6c] sm:$0xf]
  %v48 = vld [vmem:[%s1 + $0x70] sm:$0xf]
  %v49 = vld [vmem:[%s1 + $0x74] sm:$0xf]
  %v50 = vld [vmem:[%s1 + $0x78] sm:$0xf]
  %v51 = vld [vmem:[%s1 + $0x7c] sm:$0xf]
  %v54 = vunpack.c.l.b16 %v18
  %v55 = vunpack.c.h.b16 %v18
  %v56 = vunpack.c.l.b16 %v19
  %v57 = vunpack.c.h.b16 %v19
  %v58 = vpack.c.b16 %v56, %v54
  %v59 = vpack.c.b16 %v57, %v55
  %v94 = vunpack.c.l.b16 %v20
  %v95 = vunpack.c.l.b16 %v21
  %v96 = vunpack.c.l.b16 %v22
  %v97 = vunpack.c.l.b16 %v23
  %v98 = vunpack.c.l.b16 %v24
  %v99 = vunpack.c.l.b16 %v25
  %v100 = vunpack.c.l.b16 %v26
  %v101 = vunpack.c.l.b16 %v27
  %v102 = vunpack.c.l.b16 %v28
  %v103 = vunpack.c.l.b16 %v29
  %v104 = vunpack.c.l.b16 %v30
  %v105 = vunpack.c.l.b16 %v31
  %v106 = vunpack.c.l.b16 %v32
  %v107 = vunpack.c.l.b16 %v33
  %v108 = vunpack.c.l.b16 %v34
  %v109 = vunpack.c.l.b16 %v35
  %v110 = vunpack.c.l.b16 %v36
  %v111 = vunpack.c.l.b16 %v37
  %v112 = vunpack.c.l.b16 %v38
  %v113 = vunpack.c.l.b16 %v39
  %v114 = vunpack.c.l.b16 %v40
  %v115 = vunpack.c.l.b16 %v41
  %v116 = vunpack.c.l.b16 %v42
  %v117 = vunpack.c.l.b16 %v43
  %v118 = vunpack.c.l.b16 %v44
  %v119 = vunpack.c.l.b16 %v45
  %v120 = vunpack.c.l.b16 %v46
  %v121 = vunpack.c.l.b16 %v47
  %v122 = vunpack.c.l.b16 %v48
  %v123 = vunpack.c.l.b16 %v49
  %v124 = vunpack.c.l.b16 %v50
  %v125 = vunpack.c.l.b16 %v51
  %v126 = vpack.c.b16 %v95, %v94
  %v127 = vpack.c.b16 %v97, %v96
  %v128 = vpack.c.b16 %v99, %v98
  %v129 = vpack.c.b16 %v101, %v100
  %v130 = vpack.c.b16 %v103, %v102
  %v131 = vpack.c.b16 %v105, %v104
  %v132 = vpack.c.b16 %v107, %v106
  %v133 = vpack.c.b16 %v109, %v108
  %v134 = vpack.c.b16 %v111, %v110
  %v135 = vpack.c.b16 %v113, %v112
  %v136 = vpack.c.b16 %v115, %v114
  %v137 = vpack.c.b16 %v117, %v116
  %v138 = vpack.c.b16 %v119, %v118
  %v139 = vpack.c.b16 %v121, %v120
  %v140 = vpack.c.b16 %v123, %v122
  %v141 = vpack.c.b16 %v125, %v124
  %158 = vmatprep.subr.bf16.mxu0 0
  %159 = vmatpush1.bf16.msra.mxu0 %v133
  %160 = vmatprep.subr.bf16.mxu0 0
  %161 = vmatpush1.bf16.msra.mxu0 %v132
  %162 = vmatprep.subr.bf16.mxu0 0
  %163 = vmatpush1.bf16.msra.mxu0 %v131
  %164 = vmatprep.subr.bf16.mxu0 0
  %165 = vmatpush1.bf16.msra.mxu0 %v130
  %166 = vmatprep.subr.bf16.mxu0 0
  %167 = vmatpush1.bf16.msra.mxu0 %v129
  %168 = vmatprep.subr.bf16.mxu0 0
  %169 = vmatpush1.bf16.msra.mxu0 %v128
  %170 = vmatprep.subr.bf16.mxu0 0
  %171 = vmatpush1.bf16.msra.mxu0 %v127
  %172 = vmatprep.subr.bf16.mxu0 0
  %173 = vmatpush1.bf16.msra.mxu0 %v126
  %174 = vmatprep.subr.bf16.mxu0 0
  %175 = vmatpush2.bf16.msra.mxu0 %v141
  %176 = vmatprep.subr.bf16.mxu0 0
  %177 = vmatpush2.bf16.msra.mxu0 %v140
  %178 = vmatprep.subr.bf16.mxu0 0
  %179 = vmatpush2.bf16.msra.mxu0 %v139
  %180 = vmatprep.subr.bf16.mxu0 0
  %181 = vmatpush2.bf16.msra.mxu0 %v138
  %182 = vmatprep.subr.bf16.mxu0 0
  %183 = vmatpush2.bf16.msra.mxu0 %v137
  %184 = vmatprep.subr.bf16.mxu0 0
  %185 = vmatpush2.bf16.msra.mxu0 %v136
  %186 = vmatprep.subr.bf16.mxu0 0
  %187 = vmatpush2.bf16.msra.mxu0 %v135
  %188 = vmatprep.subr.bf16.mxu0 0
  %189 = vmatpush2.bf16.msra.mxu0 %v134
  %190 = vmatprep.mubr.bf16.mxu0 %v59
  %191 = vmatmul.mubr.bf16.gmra.mxu0 %v58
  %v192 = vpop.f32.mrf.mxu0
  %v193 = vadd.f32 0.0, %v192
  %v194 = vpop.f32.mrf.mxu0
  %v195 = vpop.f32.mrf.mxu0
  %v196 = vadd.f32 0.0, %v195
  %v197 = vpop.f32.mrf.mxu0
  %198 = vdwg.mxu0
  %v199 = vld [vmem:[%s2] sm:$0x1]
  %v201 = vlaneseq
  %v202 = vshrl.u32 %v201, 7
  %v203 = vsub.s32 0, %v202
  %v204 = vrot.slane %v199, %v203
  %v206 = vmul.f32 %v193, %v204
  %v207 = vmul.f32 %v196, %v204
  %v208 = vld [vmem:[%s3] sm:$0x1]
  %v210 = vlaneseq
  %v211 = vshrl.u32 %v210, 7
  %v212 = vsub.s32 0, %v211
  %v213 = vrot.slane %v208, %v212
  %v215 = vadd.f32 %v206, %v213
  %v216 = vadd.f32 %v207, %v213
  %v217 = vpack.c.bf16 %v216, %v215
  %v219 = vunpack.c.l.b16 %v217
  %v220 = vunpack.c.h.b16 %v217
  %v221 = vpack.c.b16 %v219, %v219
  %v222 = vpack.c.b16 %v220, %v220
  %225 = vst [vmem:[%s4] sm:$0xf] %v221
  %226 = vst [vmem:[%s4 + $0x4] sm:$0xf] %v222
  // Predicated region
  $region18: #{hrnet_forward.43} parent=0 // pred_check
    _
  $region19: #{hrnet_forward.43} parent=0 // pred_check_branch
    %228 = sbr.rel (0) target = $region21
  $region20: #{hrnet_forward.43} parent=0 // pred_region
    _
  $region21: #{hrnet_forward.43} parent=0 // pred_fallthru
    _
  // Predicated region
  $region22: #{hrnet_forward.43} parent=0 // pred_check
    _
  $region23: #{hrnet_forward.43} parent=0 // pred_check_branch
    %230 = sbr.rel (0) target = $region25
  $region24: #{hrnet_forward.43} parent=0 // pred_region
    _
  $region25: #{hrnet_forward.43} parent=0 // pred_fallthru
    _

// kernel: hrnet_forward.28
$region0: #{hrnet_forward.28}
  #allocation0 [shape = 'u32[]', space=smem, size = 0x4, offset = 0x4, fixed_abs, tag = 'smem constant byte address 0x4 - core index']
  #allocation1 [shape = 'u32[144,128]{1,0:T(1,128)}', space=vmem, size = 0x12000, scoped, tag = 'internal scratch']
  %s0 = inlined_call_operand.vmem [shape: bf16[16,2688], index: 0, kind: input, shape index: {}]
  %s1 = inlined_call_operand.vmem [shape: bf16[2688,256], index: 1, kind: input, shape index: {}]
  %s2 = inlined_call_operand.vmem [shape: f32[1,256], index: 2, kind: input, shape index: {}]
  %s3 = inlined_call_operand.vmem [shape: f32[1,256], index: 3, kind: input, shape index: {}]
  %s4 = inlined_call_operand.vmem [shape: bf16[16,256], index: 4, kind: output, shape index: {}]
  %s5 = sld [smem:[#allocation0]]
  $region26: #{hrnet_forward.28} parent=0
    _
  %s7 = ssub.s32 1, %s5
  %s8 = scalar_select 0, %s7, %s5
  // Predicated region
  $region2: #{hrnet_forward.28} parent=0 // pred_check
    _
  $region3: #{hrnet_forward.28} parent=0 // pred_check_branch
    %10 = sbr.rel (0) target = $region5
  $region4: #{hrnet_forward.28} parent=0 // pred_region
    _
  $region5: #{hrnet_forward.28} parent=0 // pred_fallthru
    _
  // Predicated region
  $region6: #{hrnet_forward.28} parent=0 // pred_check
    _
  $region7: #{hrnet_forward.28} parent=0 // pred_check_branch
    %12 = sbr.rel (0) target = $region9
  $region8: #{hrnet_forward.28} parent=0 // pred_region
    _
  $region9: #{hrnet_forward.28} parent=0 // pred_fallthru
    _
  // Predicated region
  $region10: #{hrnet_forward.28} parent=0 // pred_check
    _
  $region11: #{hrnet_forward.28} parent=0 // pred_check_branch
    %14 = sbr.rel (0) target = $region13
  $region12: #{hrnet_forward.28} parent=0 // pred_region
    _
  $region13: #{hrnet_forward.28} parent=0 // pred_fallthru
    _
  // Predicated region
  $region14: #{hrnet_forward.28} parent=0 // pred_check
    _
  $region15: #{hrnet_forward.28} parent=0 // pred_check_branch
    %16 = sbr.rel (0) target = $region17
  $region16: #{hrnet_forward.28} parent=0 // pred_region
    _
  $region17: #{hrnet_forward.28} parent=0 // pred_fallthru
    _
  %v18 = vld [vmem:[%s0] sm:$0xff]
  %v19 = vld [vmem:[%s0 + $0x8] sm:$0xff]
  %v20 = vld [vmem:[%s0 + $0x10] sm:$0xff]
  %v21 = vld [vmem:[%s0 + $0x18] sm:$0xff]
  %v22 = vld [vmem:[%s0 + $0x20] sm:$0xff]
  %v23 = vld [vmem:[%s0 + $0x28] sm:$0xff]
  %v24 = vld [vmem:[%s0 + $0x30] sm:$0xff]
  %v25 = vld [vmem:[%s0 + $0x38] sm:$0xff]
  %v26 = vld [vmem:[%s0 + $0x40] sm:$0xff]
  %v27 = vld [vmem:[%s0 + $0x48] sm:$0xff]
  %v28 = vld [vmem:[%s0 + $0x50] sm:$0xf]
  %v29 = vld [vmem:[%s0 + $0x54] sm:$0xff]
  %v30 = vld [vmem:[%s0 + $0x5c] sm:$0xff]
  %v31 = vld [vmem:[%s0 + $0x64] sm:$0xff]
  %v32 = vld [vmem:[%s0 + $0x6c] sm:$0xff]
  %v33 = vld [vmem:[%s0 + $0x74] sm:$0xff]
  %v34 = vld [vmem:[%s0 + $0x7c] sm:$0xff]
  %v35 = vld [vmem:[%s0 + $0x84] sm:$0xff]
  %v36 = vld [vmem:[%s0 + $0x8c] sm:$0xff]
  %v37 = vld [vmem:[%s0 + $0x94] sm:$0xff]
  %v38 = vld [vmem:[%s0 + $0x9c] sm:$0xff]
  %v39 = vld [vmem:[%s0 + $0xa4] sm:$0xf]
  %v40 = vld [vmem:[%s1] sm:$0xff]
  %v41 = vld [vmem:[%s1 + $0x8] sm:$0xff]
  %v42 = vld [vmem:[%s1 + $0x10] sm:$0xff]
  %v43 = vld [vmem:[%s1 + $0x18] sm:$0xff]
  %v44 = vld [vmem:[%s1 + $0x20] sm:$0xff]
  %v45 = vld [vmem:[%s1 + $0x28] sm:$0xff]
  %v46 = vld [vmem:[%s1 + $0x30] sm:$0xff]
  %v47 = vld [vmem:[%s1 + $0x38] sm:$0xff]
  %v48 = vld [vmem:[%s1 + $0x40] sm:$0xff]
  %v49 = vld [vmem:[%s1 + $0x48] sm:$0xff]
  %v50 = vld [vmem:[%s1 + $0x50] sm:$0xff]
  %v51 = vld [vmem:[%s1 + $0x58] sm:$0xff]
  %v52 = vld [vmem:[%s1 + $0x60] sm:$0xff]
  %v53 = vld [vmem:[%s1 + $0x68] sm:$0xff]
  %v54 = vld [vmem:[%s1 + $0x70] sm:$0xff]
  %v55 = vld [vmem:[%s1 + $0x78] sm:$0xff]
  %v56 = vld [vmem:[%s1 + $0x80] sm:$0xff]
  %v57 = vld [vmem:[%s1 + $0x88] sm:$0xff]
  %v58 = vld [vmem:[%s1 + $0x90] sm:$0xff]
  %v59 = vld [vmem:[%s1 + $0x98] sm:$0xff]
  %v60 = vld [vmem:[%s1 + $0xa0] sm:$0xff]
  %v61 = vld [vmem:[%s1 + $0xa8] sm:$0xff]
  %v62 = vld [vmem:[%s1 + $0xb0] sm:$0xff]
  %v63 = vld [vmem:[%s1 + $0xb8] sm:$0xff]
  %v64 = vld [vmem:[%s1 + $0xc0] sm:$0xff]
  %v65 = vld [vmem:[%s1 + $0xc8] sm:$0xff]
  %v66 = vld [vmem:[%s1 + $0xd0] sm:$0xff]
  %v67 = vld [vmem:[%s1 + $0xd8] sm:$0xff]
  %v68 = vld [vmem:[%s1 + $0xe0] sm:$0xff]
  %v69 = vld [vmem:[%s1 + $0xe8] sm:$0xff]
  %v70 = vld [vmem:[%s1 + $0xf0] sm:$0xff]
  %v71 = vld [vmem:[%s1 + $0xf8] sm:$0xff]
  %v72 = vld [vmem:[%s1 + $0x100] sm:$0xff]
  %v73 = vld [vmem:[%s1 + $0x108] sm:$0xff]
  %v74 = vld [vmem:[%s1 + $0x110] sm:$0xff]
  %v75 = vld [vmem:[%s1 + $0x118] sm:$0xff]
  %v76 = vld [vmem:[%s1 + $0x120] sm:$0xff]
  %v77 = vld [vmem:[%s1 + $0x128] sm:$0xff]
  %v78 = vld [vmem:[%s1 + $0x130] sm:$0xff]
  %v79 = vld [vmem:[%s1 + $0x138] sm:$0xff]
  %v80 = vld [vmem:[%s1 + $0x140] sm:$0xff]
  %v81 = vld [vmem:[%s1 + $0x148] sm:$0xff]
  %v82 = vld [vmem:[%s1 + $0x150] sm:$0xff]
  %v83 = vld [vmem:[%s1 + $0x158] sm:$0xff]
  %v84 = vld [vmem:[%s1 + $0x160] sm:$0xff]
  %v85 = vld [vmem:[%s1 + $0x168] sm:$0xff]
  %v86 = vld [vmem:[%s1 + $0x170] sm:$0xff]
  %v87 = vld [vmem:[%s1 + $0x178] sm:$0xff]
  %v88 = vld [vmem:[%s1 + $0x180] sm:$0xff]
  %v89 = vld [vmem:[%s1 + $0x188] sm:$0xff]
  %v90 = vld [vmem:[%s1 + $0x190] sm:$0xff]
  %v91 = vld [vmem:[%s1 + $0x198] sm:$0xff]
  %v92 = vld [vmem:[%s1 + $0x1a0] sm:$0xff]
  %v93 = vld [vmem:[%s1 + $0x1a8] sm:$0xff]
  %v94 = vld [vmem:[%s1 + $0x1b0] sm:$0xff]
  %v95 = vld [vmem:[%s1 + $0x1b8] sm:$0xff]
  %v96 = vld [vmem:[%s1 + $0x1c0] sm:$0xff]
  %v97 = vld [vmem:[%s1 + $0x1c8] sm:$0xff]
  %v98 = vld [vmem:[%s1 + $0x1d0] sm:$0xff]
  %v99 = vld [vmem:[%s1 + $0x1d8] sm:$0xff]
  %v100 = vld [vmem:[%s1 + $0x1e0] sm:$0xff]
  %v101 = vld [vmem:[%s1 + $0x1e8] sm:$0xff]
  %v102 = vld [vmem:[%s1 + $0x1f0] sm:$0xff]
  %v103 = vld [vmem:[%s1 + $0x1f8] sm:$0xff]
  %v104 = vld [vmem:[%s1 + $0x200] sm:$0xff]
  %v105 = vld [vmem:[%s1 + $0x208] sm:$0xff]
  %v106 = vld [vmem:[%s1 + $0x210] sm:$0xff]
  %v107 = vld [vmem:[%s1 + $0x218] sm:$0xff]
  %v108 = vld [vmem:[%s1 + $0x220] sm:$0xff]
  %v109 = vld [vmem:[%s1 + $0x228] sm:$0xff]
  %v110 = vld [vmem:[%s1 + $0x230] sm:$0xff]
  %v111 = vld [vmem:[%s1 + $0x238] sm:$0xff]
  %v112 = vld [vmem:[%s1 + $0x240] sm:$0xff]
  %v113 = vld [vmem:[%s1 + $0x248] sm:$0xff]
  %v114 = vld [vmem:[%s1 + $0x250] sm:$0xff]
  %v115 = vld [vmem:[%s1 + $0x258] sm:$0xff]
  %v116 = vld [vmem:[%s1 + $0x260] sm:$0xff]
  %v117 = vld [vmem:[%s1 + $0x268] sm:$0xff]
  %v118 = vld [vmem:[%s1 + $0x270] sm:$0xff]
  %v119 = vld [vmem:[%s1 + $0x278] sm:$0xff]
  %v120 = vld [vmem:[%s1 + $0x280] sm:$0xff]
  %v121 = vld [vmem:[%s1 + $0x288] sm:$0xff]
  %v122 = vld [vmem:[%s1 + $0x290] sm:$0xff]
  %v123 = vld [vmem:[%s1 + $0x298] sm:$0xff]
  %v124 = vld [vmem:[%s1 + $0x2a0] sm:$0xff]
  %v125 = vld [vmem:[%s1 + $0x2a8] sm:$0xff]
  %v126 = vld [vmem:[%s1 + $0x2b0] sm:$0xff]
  %v127 = vld [vmem:[%s1 + $0x2b8] sm:$0xff]
  %v128 = vld [vmem:[%s1 + $0x2c0] sm:$0xff]
  %v129 = vld [vmem:[%s1 + $0x2c8] sm:$0xff]
  %v130 = vld [vmem:[%s1 + $0x2d0] sm:$0xff]
  %v131 = vld [vmem:[%s1 + $0x2d8] sm:$0xff]
  %v132 = vld [vmem:[%s1 + $0x2e0] sm:$0xff]
  %v133 = vld [vmem:[%s1 + $0x2e8] sm:$0xff]
  %v134 = vld [vmem:[%s1 + $0x2f0] sm:$0xff]
  %v135 = vld [vmem:[%s1 + $0x2f8] sm:$0xff]
  %v136 = vld [vmem:[%s1 + $0x300] sm:$0xff]
  %v137 = vld [vmem:[%s1 + $0x308] sm:$0xff]
  %v138 = vld [vmem:[%s1 + $0x310] sm:$0xff]
  %v139 = vld [vmem:[%s1 + $0x318] sm:$0xff]
  %v140 = vld [vmem:[%s1 + $0x320] sm:$0xff]
  %v141 = vld [vmem:[%s1 + $0x328] sm:$0xff]
  %v142 = vld [vmem:[%s1 + $0x330] sm:$0xff]
  %v143 = vld [vmem:[%s1 + $0x338] sm:$0xff]
  %v144 = vld [vmem:[%s1 + $0x340] sm:$0xff]
  %v145 = vld [vmem:[%s1 + $0x348] sm:$0xff]
  %v146 = vld [vmem:[%s1 + $0x350] sm:$0xff]
  %v147 = vld [vmem:[%s1 + $0x358] sm:$0xff]
  %v148 = vld [vmem:[%s1 + $0x360] sm:$0xff]
  %v149 = vld [vmem:[%s1 + $0x368] sm:$0xff]
  %v150 = vld [vmem:[%s1 + $0x370] sm:$0xff]
  %v151 = vld [vmem:[%s1 + $0x378] sm:$0xff]
  %v152 = vld [vmem:[%s1 + $0x380] sm:$0xff]
  %v153 = vld [vmem:[%s1 + $0x388] sm:$0xff]
  %v154 = vld [vmem:[%s1 + $0x390] sm:$0xff]
  %v155 = vld [vmem:[%s1 + $0x398] sm:$0xff]
  %v156 = vld [vmem:[%s1 + $0x3a0] sm:$0xff]
  %v157 = vld [vmem:[%s1 + $0x3a8] sm:$0xff]
  %v158 = vld [vmem:[%s1 + $0x3b0] sm:$0xff]
  %v159 = vld [vmem:[%s1 + $0x3b8] sm:$0xff]
  %v160 = vld [vmem:[%s1 + $0x3c0] sm:$0xff]
  %v161 = vld [vmem:[%s1 + $0x3c8] sm:$0xff]
  %v162 = vld [vmem:[%s1 + $0x3d0] sm:$0xff]
  %v163 = vld [vmem:[%s1 + $0x3d8] sm:$0xff]
  %v164 = vld [vmem:[%s1 + $0x3e0] sm:$0xff]
  %v165 = vld [vmem:[%s1 + $0x3e8] sm:$0xff]
  %v166 = vld [vmem:[%s1 + $0x3f0] sm:$0xff]
  %v167 = vld [vmem:[%s1 + $0x3f8] sm:$0xff]
  %v168 = vld [vmem:[%s1 + $0x400] sm:$0xff]
  %v169 = vld [vmem:[%s1 + $0x408] sm:$0xff]
  %v170 = vld [vmem:[%s1 + $0x410] sm:$0xff]
  %v171 = vld [vmem:[%s1 + $0x418] sm:$0xff]
  %v172 = vld [vmem:[%s1 + $0x420] sm:$0xff]
  %v173 = vld [vmem:[%s1 + $0x428] sm:$0xff]
  %v174 = vld [vmem:[%s1 + $0x430] sm:$0xff]
  %v175 = vld [vmem:[%s1 + $0x438] sm:$0xff]
  %v176 = vld [vmem:[%s1 + $0x440] sm:$0xff]
  %v177 = vld [vmem:[%s1 + $0x448] sm:$0xff]
  %v178 = vld [vmem:[%s1 + $0x450] sm:$0xff]
  %v179 = vld [vmem:[%s1 + $0x458] sm:$0xff]
  %v180 = vld [vmem:[%s1 + $0x460] sm:$0xff]
  %v181 = vld [vmem:[%s1 + $0x468] sm:$0xff]
  %v182 = vld [vmem:[%s1 + $0x470] sm:$0xff]
  %v183 = vld [vmem:[%s1 + $0x478] sm:$0xff]
  %v184 = vld [vmem:[%s1 + $0x480] sm:$0xff]
  %v185 = vld [vmem:[%s1 + $0x488] sm:$0xff]
  %v186 = vld [vmem:[%s1 + $0x490] sm:$0xff]
  %v187 = vld [vmem:[%s1 + $0x498] sm:$0xff]
  %v188 = vld [vmem:[%s1 + $0x4a0] sm:$0xff]
  %v189 = vld [vmem:[%s1 + $0x4a8] sm:$0xff]
  %v190 = vld [vmem:[%s1 + $0x4b0] sm:$0xff]
  %v191 = vld [vmem:[%s1 + $0x4b8] sm:$0xff]
  %v192 = vld [vmem:[%s1 + $0x4c0] sm:$0xff]
  %v193 = vld [vmem:[%s1 + $0x4c8] sm:$0xff]
  %v194 = vld [vmem:[%s1 + $0x4d0] sm:$0xff]
  %v195 = vld [vmem:[%s1 + $0x4d8] sm:$0xff]
  %v196 = vld [vmem:[%s1 + $0x4e0] sm:$0xff]
  %v197 = vld [vmem:[%s1 + $0x4e8] sm:$0xff]
  %v198 = vld [vmem:[%s1 + $0x4f0] sm:$0xff]
  %v199 = vld [vmem:[%s1 + $0x4f8] sm:$0xff]
  %v200 = vld [vmem:[%s1 + $0x500] sm:$0xff]
  %v201 = vld [vmem:[%s1 + $0x508] sm:$0xff]
  %v202 = vld [vmem:[%s1 + $0x510] sm:$0xff]
  %v203 = vld [vmem:[%s1 + $0x518] sm:$0xff]
  %v204 = vld [vmem:[%s1 + $0x520] sm:$0xff]
  %v205 = vld [vmem:[%s1 + $0x528] sm:$0xff]
  %v206 = vld [vmem:[%s1 + $0x530] sm:$0xff]
  %v207 = vld [vmem:[%s1 + $0x538] sm:$0xff]
  %v208 = vld [vmem:[%s1 + $0x540] sm:$0xff]
  %v209 = vld [vmem:[%s1 + $0x548] sm:$0xff]
  %v210 = vld [vmem:[%s1 + $0x550] sm:$0xff]
  %v211 = vld [vmem:[%s1 + $0x558] sm:$0xff]
  %v212 = vld [vmem:[%s1 + $0x560] sm:$0xff]
  %v213 = vld [vmem:[%s1 + $0x568] sm:$0xff]
  %v214 = vld [vmem:[%s1 + $0x570] sm:$0xff]
  %v215 = vld [vmem:[%s1 + $0x578] sm:$0xff]
  %v216 = vld [vmem:[%s1 + $0x580] sm:$0xff]
  %v217 = vld [vmem:[%s1 + $0x588] sm:$0xff]
  %v218 = vld [vmem:[%s1 + $0x590] sm:$0xff]
  %v219 = vld [vmem:[%s1 + $0x598] sm:$0xff]
  %v220 = vld [vmem:[%s1 + $0x5a0] sm:$0xff]
  %v221 = vld [vmem:[%s1 + $0x5a8] sm:$0xff]
  %v222 = vld [vmem:[%s1 + $0x5b0] sm:$0xff]
  %v223 = vld [vmem:[%s1 + $0x5b8] sm:$0xff]
  %v224 = vld [vmem:[%s1 + $0x5c0] sm:$0xff]
  %v225 = vld [vmem:[%s1 + $0x5c8] sm:$0xff]
  %v226 = vld [vmem:[%s1 + $0x5d0] sm:$0xff]
  %v227 = vld [vmem:[%s1 + $0x5d8] sm:$0xff]
  %v228 = vld [vmem:[%s1 + $0x5e0] sm:$0xff]
  %v229 = vld [vmem:[%s1 + $0x5e8] sm:$0xff]
  %v230 = vld [vmem:[%s1 + $0x5f0] sm:$0xff]
  %v231 = vld [vmem:[%s1 + $0x5f8] sm:$0xff]
  %v232 = vld [vmem:[%s1 + $0x600] sm:$0xff]
  %v233 = vld [vmem:[%s1 + $0x608] sm:$0xff]
  %v234 = vld [vmem:[%s1 + $0x610] sm:$0xff]
  %v235 = vld [vmem:[%s1 + $0x618] sm:$0xff]
  %v236 = vld [vmem:[%s1 + $0x620] sm:$0xff]
  %v237 = vld [vmem:[%s1 + $0x628] sm:$0xff]
  %v238 = vld [vmem:[%s1 + $0x630] sm:$0xff]
  %v239 = vld [vmem:[%s1 + $0x638] sm:$0xff]
  %v240 = vld [vmem:[%s1 + $0x640] sm:$0xff]
  %v241 = vld [vmem:[%s1 + $0x648] sm:$0xff]
  %v242 = vld [vmem:[%s1 + $0x650] sm:$0xff]
  %v243 = vld [vmem:[%s1 + $0x658] sm:$0xff]
  %v244 = vld [vmem:[%s1 + $0x660] sm:$0xff]
  %v245 = vld [vmem:[%s1 + $0x668] sm:$0xff]
  %v246 = vld [vmem:[%s1 + $0x670] sm:$0xff]
  %v247 = vld [vmem:[%s1 + $0x678] sm:$0xff]
  %v248 = vld [vmem:[%s1 + $0x680] sm:$0xff]
  %v249 = vld [vmem:[%s1 + $0x688] sm:$0xff]
  %v250 = vld [vmem:[%s1 + $0x690] sm:$0xff]
  %v251 = vld [vmem:[%s1 + $0x698] sm:$0xff]
  %v252 = vld [vmem:[%s1 + $0x6a0] sm:$0xff]
  %v253 = vld [vmem:[%s1 + $0x6a8] sm:$0xff]
  %v254 = vld [vmem:[%s1 + $0x6b0] sm:$0xff]
  %v255 = vld [vmem:[%s1 + $0x6b8] sm:$0xff]
  %v256 = vld [vmem:[%s1 + $0x6c0] sm:$0xff]
  %v257 = vld [vmem:[%s1 + $0x6c8] sm:$0xff]
  %v258 = vld [vmem:[%s1 + $0x6d0] sm:$0xff]
  %v259 = vld [vmem:[%s1 + $0x6d8] sm:$0xff]
  %v260 = vld [vmem:[%s1 + $0x6e0] sm:$0xff]
  %v261 = vld [vmem:[%s1 + $0x6e8] sm:$0xff]
  %v262 = vld [vmem:[%s1 + $0x6f0] sm:$0xff]
  %v263 = vld [vmem:[%s1 + $0x6f8] sm:$0xff]
  %v264 = vld [vmem:[%s1 + $0x700] sm:$0xff]
  %v265 = vld [vmem:[%s1 + $0x708] sm:$0xff]
  %v266 = vld [vmem:[%s1 + $0x710] sm:$0xff]
  %v267 = vld [vmem:[%s1 + $0x718] sm:$0xff]
  %v268 = vld [vmem:[%s1 + $0x720] sm:$0xff]
  %v269 = vld [vmem:[%s1 + $0x728] sm:$0xff]
  %v270 = vld [vmem:[%s1 + $0x730] sm:$0xff]
  %v271 = vld [vmem:[%s1 + $0x738] sm:$0xff]
  %v272 = vld [vmem:[%s1 + $0x740] sm:$0xff]
  %v273 = vld [vmem:[%s1 + $0x748] sm:$0xff]
  %v274 = vld [vmem:[%s1 + $0x750] sm:$0xff]
  %v275 = vld [vmem:[%s1 + $0x758] sm:$0xff]
  %v276 = vld [vmem:[%s1 + $0x760] sm:$0xff]
  %v277 = vld [vmem:[%s1 + $0x768] sm:$0xff]
  %v278 = vld [vmem:[%s1 + $0x770] sm:$0xff]
  %v279 = vld [vmem:[%s1 + $0x778] sm:$0xff]
  %v280 = vld [vmem:[%s1 + $0x780] sm:$0xff]
  %v281 = vld [vmem:[%s1 + $0x788] sm:$0xff]
  %v282 = vld [vmem:[%s1 + $0x790] sm:$0xff]
  %v283 = vld [vmem:[%s1 + $0x798] sm:$0xff]
  %v284 = vld [vmem:[%s1 + $0x7a0] sm:$0xff]
  %v285 = vld [vmem:[%s1 + $0x7a8] sm:$0xff]
  %v286 = vld [vmem:[%s1 + $0x7b0] sm:$0xff]
  %v287 = vld [vmem:[%s1 + $0x7b8] sm:$0xff]
  %v288 = vld [vmem:[%s1 + $0x7c0] sm:$0xff]
  %v289 = vld [vmem:[%s1 + $0x7c8] sm:$0xff]
  %v290 = vld [vmem:[%s1 + $0x7d0] sm:$0xff]
  %v291 = vld [vmem:[%s1 + $0x7d8] sm:$0xff]
  %v292 = vld [vmem:[%s1 + $0x7e0] sm:$0xff]
  %v293 = vld [vmem:[%s1 + $0x7e8] sm:$0xff]
  %v294 = vld [vmem:[%s1 + $0x7f0] sm:$0xff]
  %v295 = vld [vmem:[%s1 + $0x7f8] sm:$0xff]
  %v296 = vld [vmem:[%s1 + $0x800] sm:$0xff]
  %v297 = vld [vmem:[%s1 + $0x808] sm:$0xff]
  %v298 = vld [vmem:[%s1 + $0x810] sm:$0xff]
  %v299 = vld [vmem:[%s1 + $0x818] sm:$0xff]
  %v300 = vld [vmem:[%s1 + $0x820] sm:$0xff]
  %v301 = vld [vmem:[%s1 + $0x828] sm:$0xff]
  %v302 = vld [vmem:[%s1 + $0x830] sm:$0xff]
  %v303 = vld [vmem:[%s1 + $0x838] sm:$0xff]
  %v304 = vld [vmem:[%s1 + $0x840] sm:$0xff]
  %v305 = vld [vmem:[%s1 + $0x848] sm:$0xff]
  %v306 = vld [vmem:[%s1 + $0x850] sm:$0xff]
  %v307 = vld [vmem:[%s1 + $0x858] sm:$0xff]
  %v308 = vld [vmem:[%s1 + $0x860] sm:$0xff]
  %v309 = vld [vmem:[%s1 + $0x868] sm:$0xff]
  %v310 = vld [vmem:[%s1 + $0x870] sm:$0xff]
  %v311 = vld [vmem:[%s1 + $0x878] sm:$0xff]
  %v312 = vld [vmem:[%s1 + $0x880] sm:$0xff]
  %v313 = vld [vmem:[%s1 + $0x888] sm:$0xff]
  %v314 = vld [vmem:[%s1 + $0x890] sm:$0xff]
  %v315 = vld [vmem:[%s1 + $0x898] sm:$0xff]
  %v316 = vld [vmem:[%s1 + $0x8a0] sm:$0xff]
  %v317 = vld [vmem:[%s1 + $0x8a8] sm:$0xff]
  %v318 = vld [vmem:[%s1 + $0x8b0] sm:$0xff]
  %v319 = vld [vmem:[%s1 + $0x8b8] sm:$0xff]
  %v320 = vld [vmem:[%s1 + $0x8c0] sm:$0xff]
  %v321 = vld [vmem:[%s1 + $0x8c8] sm:$0xff]
  %v322 = vld [vmem:[%s1 + $0x8d0] sm:$0xff]
  %v323 = vld [vmem:[%s1 + $0x8d8] sm:$0xff]
  %v324 = vld [vmem:[%s1 + $0x8e0] sm:$0xff]
  %v325 = vld [vmem:[%s1 + $0x8e8] sm:$0xff]
  %v326 = vld [vmem:[%s1 + $0x8f0] sm:$0xff]
  %v327 = vld [vmem:[%s1 + $0x8f8] sm:$0xff]
  %v328 = vld [vmem:[%s1 + $0x900] sm:$0xff]
  %v329 = vld [vmem:[%s1 + $0x908] sm:$0xff]
  %v330 = vld [vmem:[%s1 + $0x910] sm:$0xff]
  %v331 = vld [vmem:[%s1 + $0x918] sm:$0xff]
  %v332 = vld [vmem:[%s1 + $0x920] sm:$0xff]
  %v333 = vld [vmem:[%s1 + $0x928] sm:$0xff]
  %v334 = vld [vmem:[%s1 + $0x930] sm:$0xff]
  %v335 = vld [vmem:[%s1 + $0x938] sm:$0xff]
  %v336 = vld [vmem:[%s1 + $0x940] sm:$0xff]
  %v337 = vld [vmem:[%s1 + $0x948] sm:$0xff]
  %v338 = vld [vmem:[%s1 + $0x950] sm:$0xff]
  %v339 = vld [vmem:[%s1 + $0x958] sm:$0xff]
  %v340 = vld [vmem:[%s1 + $0x960] sm:$0xff]
  %v341 = vld [vmem:[%s1 + $0x968] sm:$0xff]
  %v342 = vld [vmem:[%s1 + $0x970] sm:$0xff]
  %v343 = vld [vmem:[%s1 + $0x978] sm:$0xff]
  %v344 = vld [vmem:[%s1 + $0x980] sm:$0xff]
  %v345 = vld [vmem:[%s1 + $0x988] sm:$0xff]
  %v346 = vld [vmem:[%s1 + $0x990] sm:$0xff]
  %v347 = vld [vmem:[%s1 + $0x998] sm:$0xff]
  %v348 = vld [vmem:[%s1 + $0x9a0] sm:$0xff]
  %v349 = vld [vmem:[%s1 + $0x9a8] sm:$0xff]
  %v350 = vld [vmem:[%s1 + $0x9b0] sm:$0xff]
  %v351 = vld [vmem:[%s1 + $0x9b8] sm:$0xff]
  %v352 = vld [vmem:[%s1 + $0x9c0] sm:$0xff]
  %v353 = vld [vmem:[%s1 + $0x9c8] sm:$0xff]
  %v354 = vld [vmem:[%s1 + $0x9d0] sm:$0xff]
  %v355 = vld [vmem:[%s1 + $0x9d8] sm:$0xff]
  %v356 = vld [vmem:[%s1 + $0x9e0] sm:$0xff]
  %v357 = vld [vmem:[%s1 + $0x9e8] sm:$0xff]
  %v358 = vld [vmem:[%s1 + $0x9f0] sm:$0xff]
  %v359 = vld [vmem:[%s1 + $0x9f8] sm:$0xff]
  %v360 = vld [vmem:[%s1 + $0xa00] sm:$0xff]
  %v361 = vld [vmem:[%s1 + $0xa08] sm:$0xff]
  %v362 = vld [vmem:[%s1 + $0xa10] sm:$0xff]
  %v363 = vld [vmem:[%s1 + $0xa18] sm:$0xff]
  %v364 = vld [vmem:[%s1 + $0xa20] sm:$0xff]
  %v365 = vld [vmem:[%s1 + $0xa28] sm:$0xff]
  %v366 = vld [vmem:[%s1 + $0xa30] sm:$0xff]
  %v367 = vld [vmem:[%s1 + $0xa38] sm:$0xff]
  %v368 = vld [vmem:[%s1 + $0xa40] sm:$0xff]
  %v369 = vld [vmem:[%s1 + $0xa48] sm:$0xff]
  %v370 = vld [vmem:[%s1 + $0xa50] sm:$0xff]
  %v371 = vld [vmem:[%s1 + $0xa58] sm:$0xff]
  %v372 = vld [vmem:[%s1 + $0xa60] sm:$0xff]
  %v373 = vld [vmem:[%s1 + $0xa68] sm:$0xff]
  %v374 = vld [vmem:[%s1 + $0xa70] sm:$0xff]
  %v375 = vld [vmem:[%s1 + $0xa78] sm:$0xff]
  %v398 = vunpack.c.l.b16 %v18
  %v399 = vunpack.c.h.b16 %v18
  %v400 = vunpack.c.l.b16 %v19
  %v401 = vunpack.c.h.b16 %v19
  %v402 = vunpack.c.l.b16 %v20
  %v403 = vunpack.c.h.b16 %v20
  %v404 = vunpack.c.l.b16 %v21
  %v405 = vunpack.c.h.b16 %v21
  %v406 = vunpack.c.l.b16 %v22
  %v407 = vunpack.c.h.b16 %v22
  %v408 = vunpack.c.l.b16 %v23
  %v409 = vunpack.c.h.b16 %v23
  %v410 = vunpack.c.l.b16 %v24
  %v411 = vunpack.c.h.b16 %v24
  %v412 = vunpack.c.l.b16 %v25
  %v413 = vunpack.c.h.b16 %v25
  %v414 = vunpack.c.l.b16 %v26
  %v415 = vunpack.c.h.b16 %v26
  %v416 = vunpack.c.l.b16 %v27
  %v417 = vunpack.c.h.b16 %v27
  %v418 = vunpack.c.l.b16 %v28
  %v419 = vunpack.c.l.b16 %v29
  %v420 = vunpack.c.h.b16 %v29
  %v421 = vunpack.c.l.b16 %v30
  %v422 = vunpack.c.h.b16 %v30
  %v423 = vunpack.c.l.b16 %v31
  %v424 = vunpack.c.h.b16 %v31
  %v425 = vunpack.c.l.b16 %v32
  %v426 = vunpack.c.h.b16 %v32
  %v427 = vunpack.c.l.b16 %v33
  %v428 = vunpack.c.h.b16 %v33
  %v429 = vunpack.c.l.b16 %v34
  %v430 = vunpack.c.h.b16 %v34
  %v431 = vunpack.c.l.b16 %v35
  %v432 = vunpack.c.h.b16 %v35
  %v433 = vunpack.c.l.b16 %v36
  %v434 = vunpack.c.h.b16 %v36
  %v435 = vunpack.c.l.b16 %v37
  %v436 = vunpack.c.h.b16 %v37
  %v437 = vunpack.c.l.b16 %v38
  %v438 = vunpack.c.h.b16 %v38
  %v439 = vunpack.c.l.b16 %v39
  %v440 = vpack.c.b16 %v419, %v398
  %v441 = vpack.c.b16 %v420, %v399
  %v442 = vpack.c.b16 %v421, %v400
  %v443 = vpack.c.b16 %v422, %v401
  %v444 = vpack.c.b16 %v423, %v402
  %v445 = vpack.c.b16 %v424, %v403
  %v446 = vpack.c.b16 %v425, %v404
  %v447 = vpack.c.b16 %v426, %v405
  %v448 = vpack.c.b16 %v427, %v406
  %v449 = vpack.c.b16 %v428, %v407
  %v450 = vpack.c.b16 %v429, %v408
  %v451 = vpack.c.b16 %v430, %v409
  %v452 = vpack.c.b16 %v431, %v410
  %v453 = vpack.c.b16 %v432, %v411
  %v454 = vpack.c.b16 %v433, %v412
  %v455 = vpack.c.b16 %v434, %v413
  %v456 = vpack.c.b16 %v435, %v414
  %v457 = vpack.c.b16 %v436, %v415
  %v458 = vpack.c.b16 %v437, %v416
  %v459 = vpack.c.b16 %v438, %v417
  %v460 = vpack.c.b16 %v439, %v418
  %v818 = vunpack.c.l.b16 %v40
  %v819 = vunpack.c.h.b16 %v40
  %v820 = vunpack.c.l.b16 %v41
  %v821 = vunpack.c.h.b16 %v41
  %v822 = vunpack.c.l.b16 %v42
  %v823 = vunpack.c.h.b16 %v42
  %v824 = vunpack.c.l.b16 %v43
  %v825 = vunpack.c.h.b16 %v43
  %v826 = vunpack.c.l.b16 %v44
  %v827 = vunpack.c.h.b16 %v44
  %v828 = vunpack.c.l.b16 %v45
  %v829 = vunpack.c.h.b16 %v45
  %v830 = vunpack.c.l.b16 %v46
  %v831 = vunpack.c.h.b16 %v46
  %v832 = vunpack.c.l.b16 %v47
  %v833 = vunpack.c.h.b16 %v47
  %v834 = vunpack.c.l.b16 %v48
  %v835 = vunpack.c.h.b16 %v48
  %v836 = vunpack.c.l.b16 %v49
  %v837 = vunpack.c.h.b16 %v49
  %v838 = vunpack.c.l.b16 %v50
  %v839 = vunpack.c.h.b16 %v50
  %v840 = vunpack.c.l.b16 %v51
  %v841 = vunpack.c.h.b16 %v51
  %v842 = vunpack.c.l.b16 %v52
  %v843 = vunpack.c.h.b16 %v52
  %v844 = vunpack.c.l.b16 %v53
  %v845 = vunpack.c.h.b16 %v53
  %v846 = vunpack.c.l.b16 %v54
  %v847 = vunpack.c.h.b16 %v54
  %v848 = vunpack.c.l.b16 %v55
  %v849 = vunpack.c.h.b16 %v55
  %v850 = vunpack.c.l.b16 %v56
  %v851 = vunpack.c.h.b16 %v56
  %v852 = vunpack.c.l.b16 %v57
  %v853 = vunpack.c.h.b16 %v57
  %v854 = vunpack.c.l.b16 %v58
  %v855 = vunpack.c.h.b16 %v58
  %v856 = vunpack.c.l.b16 %v59
  %v857 = vunpack.c.h.b16 %v59
  %v858 = vunpack.c.l.b16 %v60
  %v859 = vunpack.c.h.b16 %v60
  %v860 = vunpack.c.l.b16 %v61
  %v861 = vunpack.c.h.b16 %v61
  %v862 = vunpack.c.l.b16 %v62
  %v863 = vunpack.c.h.b16 %v62
  %v864 = vunpack.c.l.b16 %v63
  %v865 = vunpack.c.h.b16 %v63
  %v866 = vunpack.c.l.b16 %v64
  %v867 = vunpack.c.h.b16 %v64
  %v868 = vunpack.c.l.b16 %v65
  %v869 = vunpack.c.h.b16 %v65
  %v870 = vunpack.c.l.b16 %v66
  %v871 = vunpack.c.h.b16 %v66
  %v872 = vunpack.c.l.b16 %v67
  %v873 = vunpack.c.h.b16 %v67
  %v874 = vunpack.c.l.b16 %v68
  %v875 = vunpack.c.h.b16 %v68
  %v876 = vunpack.c.l.b16 %v69
  %v877 = vunpack.c.h.b16 %v69
  %v878 = vunpack.c.l.b16 %v70
  %v879 = vunpack.c.h.b16 %v70
  %v880 = vunpack.c.l.b16 %v71
  %v881 = vunpack.c.h.b16 %v71
  %v882 = vunpack.c.l.b16 %v72
  %v883 = vunpack.c.h.b16 %v72
  %v884 = vunpack.c.l.b16 %v73
  %v885 = vunpack.c.h.b16 %v73
  %v886 = vunpack.c.l.b16 %v74
  %v887 = vunpack.c.h.b16 %v74
  %v888 = vunpack.c.l.b16 %v75
  %v889 = vunpack.c.h.b16 %v75
  %v890 = vunpack.c.l.b16 %v76
  %v891 = vunpack.c.h.b16 %v76
  %v892 = vunpack.c.l.b16 %v77
  %v893 = vunpack.c.h.b16 %v77
  %v894 = vunpack.c.l.b16 %v78
  %v895 = vunpack.c.h.b16 %v78
  %v896 = vunpack.c.l.b16 %v79
  %v897 = vunpack.c.h.b16 %v79
  %v898 = vunpack.c.l.b16 %v80
  %v899 = vunpack.c.h.b16 %v80
  %v900 = vunpack.c.l.b16 %v81
  %v901 = vunpack.c.h.b16 %v81
  %v902 = vunpack.c.l.b16 %v82
  %v903 = vunpack.c.h.b16 %v82
  %v904 = vunpack.c.l.b16 %v83
  %v905 = vunpack.c.h.b16 %v83
  %v906 = vunpack.c.l.b16 %v84
  %v907 = vunpack.c.h.b16 %v84
  %v908 = vunpack.c.l.b16 %v85
  %v909 = vunpack.c.h.b16 %v85
  %v910 = vunpack.c.l.b16 %v86
  %v911 = vunpack.c.h.b16 %v86
  %v912 = vunpack.c.l.b16 %v87
  %v913 = vunpack.c.h.b16 %v87
  %v914 = vunpack.c.l.b16 %v88
  %v915 = vunpack.c.h.b16 %v88
  %v916 = vunpack.c.l.b16 %v89
  %v917 = vunpack.c.h.b16 %v89
  %v918 = vunpack.c.l.b16 %v90
  %v919 = vunpack.c.h.b16 %v90
  %v920 = vunpack.c.l.b16 %v91
  %v921 = vunpack.c.h.b16 %v91
  %v922 = vunpack.c.l.b16 %v92
  %v923 = vunpack.c.h.b16 %v92
  %v924 = vunpack.c.l.b16 %v93
  %v925 = vunpack.c.h.b16 %v93
  %v926 = vunpack.c.l.b16 %v94
  %v927 = vunpack.c.h.b16 %v94
  %v928 = vunpack.c.l.b16 %v95
  %v929 = vunpack.c.h.b16 %v95
  %v930 = vunpack.c.l.b16 %v96
  %v931 = vunpack.c.h.b16 %v96
  %v932 = vunpack.c.l.b16 %v97
  %v933 = vunpack.c.h.b16 %v97
  %v934 = vunpack.c.l.b16 %v98
  %v935 = vunpack.c.h.b16 %v98
  %v936 = vunpack.c.l.b16 %v99
  %v937 = vunpack.c.h.b16 %v99
  %v938 = vunpack.c.l.b16 %v100
  %v939 = vunpack.c.h.b16 %v100
  %v940 = vunpack.c.l.b16 %v101
  %v941 = vunpack.c.h.b16 %v101
  %v942 = vunpack.c.l.b16 %v102
  %v943 = vunpack.c.h.b16 %v102
  %v944 = vunpack.c.l.b16 %v103
  %v945 = vunpack.c.h.b16 %v103
  %v946 = vunpack.c.l.b16 %v104
  %v947 = vunpack.c.h.b16 %v104
  %v948 = vunpack.c.l.b16 %v105
  %v949 = vunpack.c.h.b16 %v105
  %v950 = vunpack.c.l.b16 %v106
  %v951 = vunpack.c.h.b16 %v106
  %v952 = vunpack.c.l.b16 %v107
  %v953 = vunpack.c.h.b16 %v107
  %v954 = vunpack.c.l.b16 %v108
  %v955 = vunpack.c.h.b16 %v108
  %v956 = vunpack.c.l.b16 %v109
  %v957 = vunpack.c.h.b16 %v109
  %v958 = vunpack.c.l.b16 %v110
  %v959 = vunpack.c.h.b16 %v110
  %v960 = vunpack.c.l.b16 %v111
  %v961 = vunpack.c.h.b16 %v111
  %v962 = vunpack.c.l.b16 %v112
  %v963 = vunpack.c.h.b16 %v112
  %v964 = vunpack.c.l.b16 %v113
  %v965 = vunpack.c.h.b16 %v113
  %v966 = vunpack.c.l.b16 %v114
  %v967 = vunpack.c.h.b16 %v114
  %v968 = vunpack.c.l.b16 %v115
  %v969 = vunpack.c.h.b16 %v115
  %v970 = vunpack.c.l.b16 %v116
  %v971 = vunpack.c.h.b16 %v116
  %v972 = vunpack.c.l.b16 %v117
  %v973 = vunpack.c.h.b16 %v117
  %v974 = vunpack.c.l.b16 %v118
  %v975 = vunpack.c.h.b16 %v118
  %v976 = vunpack.c.l.b16 %v119
  %v977 = vunpack.c.h.b16 %v119
  %v978 = vunpack.c.l.b16 %v120
  %v979 = vunpack.c.h.b16 %v120
  %v980 = vunpack.c.l.b16 %v121
  %v981 = vunpack.c.h.b16 %v121
  %v982 = vunpack.c.l.b16 %v122
  %v983 = vunpack.c.h.b16 %v122
  %v984 = vunpack.c.l.b16 %v123
  %v985 = vunpack.c.h.b16 %v123
  %v986 = vunpack.c.l.b16 %v124
  %v987 = vunpack.c.h.b16 %v124
  %v988 = vunpack.c.l.b16 %v125
  %v989 = vunpack.c.h.b16 %v125
  %v990 = vunpack.c.l.b16 %v126
  %v991 = vunpack.c.h.b16 %v126
  %v992 = vunpack.c.l.b16 %v127
  %v993 = vunpack.c.h.b16 %v127
  %v994 = vunpack.c.l.b16 %v128
  %v995 = vunpack.c.h.b16 %v128
  %v996 = vunpack.c.l.b16 %v129
  %v997 = vunpack.c.h.b16 %v129
  %v998 = vunpack.c.l.b16 %v130
  %v999 = vunpack.c.h.b16 %v130
  %v1000 = vunpack.c.l.b16 %v131
  %v1001 = vunpack.c.h.b16 %v131
  %v1002 = vunpack.c.l.b16 %v132
  %v1003 = vunpack.c.h.b16 %v132
  %v1004 = vunpack.c.l.b16 %v133
  %v1005 = vunpack.c.h.b16 %v133
  %v1006 = vunpack.c.l.b16 %v134
  %v1007 = vunpack.c.h.b16 %v134
  %v1008 = vunpack.c.l.b16 %v135
  %v1009 = vunpack.c.h.b16 %v135
  %v1010 = vunpack.c.l.b16 %v136
  %v1011 = vunpack.c.h.b16 %v136
  %v1012 = vunpack.c.l.b16 %v137
  %v1013 = vunpack.c.h.b16 %v137
  %v1014 = vunpack.c.l.b16 %v138
  %v1015 = vunpack.c.h.b16 %v138
  %v1016 = vunpack.c.l.b16 %v139
  %v1017 = vunpack.c.h.b16 %v139
  %v1018 = vunpack.c.l.b16 %v140
  %v1019 = vunpack.c.h.b16 %v140
  %v1020 = vunpack.c.l.b16 %v141
  %v1021 = vunpack.c.h.b16 %v141
  %v1022 = vunpack.c.l.b16 %v142
  %v1023 = vunpack.c.h.b16 %v142
  %v1024 = vunpack.c.l.b16 %v143
  %v1025 = vunpack.c.h.b16 %v143
  %v1026 = vunpack.c.l.b16 %v144
  %v1027 = vunpack.c.h.b16 %v144
  %v1028 = vunpack.c.l.b16 %v145
  %v1029 = vunpack.c.h.b16 %v145
  %v1030 = vunpack.c.l.b16 %v146
  %v1031 = vunpack.c.h.b16 %v146
  %v1032 = vunpack.c.l.b16 %v147
  %v1033 = vunpack.c.h.b16 %v147
  %v1034 = vunpack.c.l.b16 %v148
  %v1035 = vunpack.c.h.b16 %v148
  %v1036 = vunpack.c.l.b16 %v149
  %v1037 = vunpack.c.h.b16 %v149
  %v1038 = vunpack.c.l.b16 %v150
  %v1039 = vunpack.c.h.b16 %v150
  %v1040 = vunpack.c.l.b16 %v151
  %v1041 = vunpack.c.h.b16 %v151
  %v1042 = vunpack.c.l.b16 %v152
  %v1043 = vunpack.c.h.b16 %v152
  %v1044 = vunpack.c.l.b16 %v153
  %v1045 = vunpack.c.h.b16 %v153
  %v1046 = vunpack.c.l.b16 %v154
  %v1047 = vunpack.c.h.b16 %v154
  %v1048 = vunpack.c.l.b16 %v155
  %v1049 = vunpack.c.h.b16 %v155
  %v1050 = vunpack.c.l.b16 %v156
  %v1051 = vunpack.c.h.b16 %v156
  %v1052 = vunpack.c.l.b16 %v157
  %v1053 = vunpack.c.h.b16 %v157
  %v1054 = vunpack.c.l.b16 %v158
  %v1055 = vunpack.c.h.b16 %v158
  %v1056 = vunpack.c.l.b16 %v159
  %v1057 = vunpack.c.h.b16 %v159
  %v1058 = vunpack.c.l.b16 %v160
  %v1059 = vunpack.c.h.b16 %v160
  %v1060 = vunpack.c.l.b16 %v161
  %v1061 = vunpack.c.h.b16 %v161
  %v1062 = vunpack.c.l.b16 %v162
  %v1063 = vunpack.c.h.b16 %v162
  %v1064 = vunpack.c.l.b16 %v163
  %v1065 = vunpack.c.h.b16 %v163
  %v1066 = vunpack.c.l.b16 %v164
  %v1067 = vunpack.c.h.b16 %v164
  %v1068 = vunpack.c.l.b16 %v165
  %v1069 = vunpack.c.h.b16 %v165
  %v1070 = vunpack.c.l.b16 %v166
  %v1071 = vunpack.c.h.b16 %v166
  %v1072 = vunpack.c.l.b16 %v167
  %v1073 = vunpack.c.h.b16 %v167
  %v1074 = vunpack.c.l.b16 %v168
  %v1075 = vunpack.c.h.b16 %v168
  %v1076 = vunpack.c.l.b16 %v169
  %v1077 = vunpack.c.h.b16 %v169
  %v1078 = vunpack.c.l.b16 %v170
  %v1079 = vunpack.c.h.b16 %v170
  %v1080 = vunpack.c.l.b16 %v171
  %v1081 = vunpack.c.h.b16 %v171
  %v1082 = vunpack.c.l.b16 %v172
  %v1083 = vunpack.c.h.b16 %v172
  %v1084 = vunpack.c.l.b16 %v173
  %v1085 = vunpack.c.h.b16 %v173
  %v1086 = vunpack.c.l.b16 %v174
  %v1087 = vunpack.c.h.b16 %v174
  %v1088 = vunpack.c.l.b16 %v175
  %v1089 = vunpack.c.h.b16 %v175
  %v1090 = vunpack.c.l.b16 %v176
  %v1091 = vunpack.c.h.b16 %v176
  %v1092 = vunpack.c.l.b16 %v177
  %v1093 = vunpack.c.h.b16 %v177
  %v1094 = vunpack.c.l.b16 %v178
  %v1095 = vunpack.c.h.b16 %v178
  %v1096 = vunpack.c.l.b16 %v179
  %v1097 = vunpack.c.h.b16 %v179
  %v1098 = vunpack.c.l.b16 %v180
  %v1099 = vunpack.c.h.b16 %v180
  %v1100 = vunpack.c.l.b16 %v181
  %v1101 = vunpack.c.h.b16 %v181
  %v1102 = vunpack.c.l.b16 %v182
  %v1103 = vunpack.c.h.b16 %v182
  %v1104 = vunpack.c.l.b16 %v183
  %v1105 = vunpack.c.h.b16 %v183
  %v1106 = vunpack.c.l.b16 %v184
  %v1107 = vunpack.c.h.b16 %v184
  %v1108 = vunpack.c.l.b16 %v185
  %v1109 = vunpack.c.h.b16 %v185
  %v1110 = vunpack.c.l.b16 %v186
  %v1111 = vunpack.c.h.b16 %v186
  %v1112 = vunpack.c.l.b16 %v187
  %v1113 = vunpack.c.h.b16 %v187
  %v1114 = vunpack.c.l.b16 %v188
  %v1115 = vunpack.c.h.b16 %v188
  %v1116 = vunpack.c.l.b16 %v189
  %v1117 = vunpack.c.h.b16 %v189
  %v1118 = vunpack.c.l.b16 %v190
  %v1119 = vunpack.c.h.b16 %v190
  %v1120 = vunpack.c.l.b16 %v191
  %v1121 = vunpack.c.h.b16 %v191
  %v1122 = vunpack.c.l.b16 %v192
  %v1123 = vunpack.c.h.b16 %v192
  %v1124 = vunpack.c.l.b16 %v193
  %v1125 = vunpack.c.h.b16 %v193
  %v1126 = vunpack.c.l.b16 %v194
  %v1127 = vunpack.c.h.b16 %v194
  %v1128 = vunpack.c.l.b16 %v195
  %v1129 = vunpack.c.h.b16 %v195
  %v1130 = vunpack.c.l.b16 %v196
  %v1131 = vunpack.c.h.b16 %v196
  %v1132 = vunpack.c.l.b16 %v197
  %v1133 = vunpack.c.h.b16 %v197
  %v1134 = vunpack.c.l.b16 %v198
  %v1135 = vunpack.c.h.b16 %v198
  %v1136 = vunpack.c.l.b16 %v199
  %v1137 = vunpack.c.h.b16 %v199
  %v1138 = vunpack.c.l.b16 %v200
  %v1139 = vunpack.c.h.b16 %v200
  %v1140 = vunpack.c.l.b16 %v201
  %v1141 = vunpack.c.h.b16 %v201
  %v1142 = vunpack.c.l.b16 %v202
  %v1143 = vunpack.c.h.b16 %v202
  %v1144 = vunpack.c.l.b16 %v203
  %v1145 = vunpack.c.h.b16 %v203
  %v1146 = vunpack.c.l.b16 %v204
  %v1147 = vunpack.c.h.b16 %v204
  %v1148 = vunpack.c.l.b16 %v205
  %v1149 = vunpack.c.h.b16 %v205
  %v1150 = vunpack.c.l.b16 %v206
  %v1151 = vunpack.c.h.b16 %v206
  %v1152 = vunpack.c.l.b16 %v207
  %v1153 = vunpack.c.h.b16 %v207
  %v1154 = vunpack.c.l.b16 %v208
  %v1155 = vunpack.c.h.b16 %v208
  %v1156 = vunpack.c.l.b16 %v209
  %v1157 = vunpack.c.h.b16 %v209
  %v1158 = vunpack.c.l.b16 %v210
  %v1159 = vunpack.c.h.b16 %v210
  %v1160 = vunpack.c.l.b16 %v211
  %v1161 = vunpack.c.h.b16 %v211
  %v1162 = vunpack.c.l.b16 %v212
  %v1163 = vunpack.c.h.b16 %v212
  %v1164 = vunpack.c.l.b16 %v213
  %v1165 = vunpack.c.h.b16 %v213
  %v1166 = vunpack.c.l.b16 %v214
  %v1167 = vunpack.c.h.b16 %v214
  %v1168 = vunpack.c.l.b16 %v215
  %v1169 = vunpack.c.h.b16 %v215
  %v1170 = vunpack.c.l.b16 %v216
  %v1171 = vunpack.c.h.b16 %v216
  %v1172 = vunpack.c.l.b16 %v217
  %v1173 = vunpack.c.h.b16 %v217
  %v1174 = vunpack.c.l.b16 %v218
  %v1175 = vunpack.c.h.b16 %v218
  %v1176 = vunpack.c.l.b16 %v219
  %v1177 = vunpack.c.h.b16 %v219
  %v1178 = vunpack.c.l.b16 %v220
  %v1179 = vunpack.c.h.b16 %v220
  %v1180 = vunpack.c.l.b16 %v221
  %v1181 = vunpack.c.h.b16 %v221
  %v1182 = vunpack.c.l.b16 %v222
  %v1183 = vunpack.c.h.b16 %v222
  %v1184 = vunpack.c.l.b16 %v223
  %v1185 = vunpack.c.h.b16 %v223
  %v1186 = vunpack.c.l.b16 %v224
  %v1187 = vunpack.c.h.b16 %v224
  %v1188 = vunpack.c.l.b16 %v225
  %v1189 = vunpack.c.h.b16 %v225
  %v1190 = vunpack.c.l.b16 %v226
  %v1191 = vunpack.c.h.b16 %v226
  %v1192 = vunpack.c.l.b16 %v227
  %v1193 = vunpack.c.h.b16 %v227
  %v1194 = vunpack.c.l.b16 %v228
  %v1195 = vunpack.c.h.b16 %v228
  %v1196 = vunpack.c.l.b16 %v229
  %v1197 = vunpack.c.h.b16 %v229
  %v1198 = vunpack.c.l.b16 %v230
  %v1199 = vunpack.c.h.b16 %v230
  %v1200 = vunpack.c.l.b16 %v231
  %v1201 = vunpack.c.h.b16 %v231
  %v1202 = vunpack.c.l.b16 %v232
  %v1203 = vunpack.c.h.b16 %v232
  %v1204 = vunpack.c.l.b16 %v233
  %v1205 = vunpack.c.h.b16 %v233
  %v1206 = vunpack.c.l.b16 %v234
  %v1207 = vunpack.c.h.b16 %v234
  %v1208 = vunpack.c.l.b16 %v235
  %v1209 = vunpack.c.h.b16 %v235
  %v1210 = vunpack.c.l.b16 %v236
  %v1211 = vunpack.c.h.b16 %v236
  %v1212 = vunpack.c.l.b16 %v237
  %v1213 = vunpack.c.h.b16 %v237
  %v1214 = vunpack.c.l.b16 %v238
  %v1215 = vunpack.c.h.b16 %v238
  %v1216 = vunpack.c.l.b16 %v239
  %v1217 = vunpack.c.h.b16 %v239
  %v1218 = vunpack.c.l.b16 %v240
  %v1219 = vunpack.c.h.b16 %v240
  %v1220 = vunpack.c.l.b16 %v241
  %v1221 = vunpack.c.h.b16 %v241
  %v1222 = vunpack.c.l.b16 %v242
  %v1223 = vunpack.c.h.b16 %v242
  %v1224 = vunpack.c.l.b16 %v243
  %v1225 = vunpack.c.h.b16 %v243
  %v1226 = vunpack.c.l.b16 %v244
  %v1227 = vunpack.c.h.b16 %v244
  %v1228 = vunpack.c.l.b16 %v245
  %v1229 = vunpack.c.h.b16 %v245
  %v1230 = vunpack.c.l.b16 %v246
  %v1231 = vunpack.c.h.b16 %v246
  %v1232 = vunpack.c.l.b16 %v247
  %v1233 = vunpack.c.h.b16 %v247
  %v1234 = vunpack.c.l.b16 %v248
  %v1235 = vunpack.c.h.b16 %v248
  %v1236 = vunpack.c.l.b16 %v249
  %v1237 = vunpack.c.h.b16 %v249
  %v1238 = vunpack.c.l.b16 %v250
  %v1239 = vunpack.c.h.b16 %v250
  %v1240 = vunpack.c.l.b16 %v251
  %v1241 = vunpack.c.h.b16 %v251
  %v1242 = vunpack.c.l.b16 %v252
  %v1243 = vunpack.c.h.b16 %v252
  %v1244 = vunpack.c.l.b16 %v253
  %v1245 = vunpack.c.h.b16 %v253
  %v1246 = vunpack.c.l.b16 %v254
  %v1247 = vunpack.c.h.b16 %v254
  %v1248 = vunpack.c.l.b16 %v255
  %v1249 = vunpack.c.h.b16 %v255
  %v1250 = vunpack.c.l.b16 %v256
  %v1251 = vunpack.c.h.b16 %v256
  %v1252 = vunpack.c.l.b16 %v257
  %v1253 = vunpack.c.h.b16 %v257
  %v1254 = vunpack.c.l.b16 %v258
  %v1255 = vunpack.c.h.b16 %v258
  %v1256 = vunpack.c.l.b16 %v259
  %v1257 = vunpack.c.h.b16 %v259
  %v1258 = vunpack.c.l.b16 %v260
  %v1259 = vunpack.c.h.b16 %v260
  %v1260 = vunpack.c.l.b16 %v261
  %v1261 = vunpack.c.h.b16 %v261
  %v1262 = vunpack.c.l.b16 %v262
  %v1263 = vunpack.c.h.b16 %v262
  %v1264 = vunpack.c.l.b16 %v263
  %v1265 = vunpack.c.h.b16 %v263
  %v1266 = vunpack.c.l.b16 %v264
  %v1267 = vunpack.c.h.b16 %v264
  %v1268 = vunpack.c.l.b16 %v265
  %v1269 = vunpack.c.h.b16 %v265
  %v1270 = vunpack.c.l.b16 %v266
  %v1271 = vunpack.c.h.b16 %v266
  %v1272 = vunpack.c.l.b16 %v267
  %v1273 = vunpack.c.h.b16 %v267
  %v1274 = vunpack.c.l.b16 %v268
  %v1275 = vunpack.c.h.b16 %v268
  %v1276 = vunpack.c.l.b16 %v269
  %v1277 = vunpack.c.h.b16 %v269
  %v1278 = vunpack.c.l.b16 %v270
  %v1279 = vunpack.c.h.b16 %v270
  %v1280 = vunpack.c.l.b16 %v271
  %v1281 = vunpack.c.h.b16 %v271
  %v1282 = vunpack.c.l.b16 %v272
  %v1283 = vunpack.c.h.b16 %v272
  %v1284 = vunpack.c.l.b16 %v273
  %v1285 = vunpack.c.h.b16 %v273
  %v1286 = vunpack.c.l.b16 %v274
  %v1287 = vunpack.c.h.b16 %v274
  %v1288 = vunpack.c.l.b16 %v275
  %v1289 = vunpack.c.h.b16 %v275
  %v1290 = vunpack.c.l.b16 %v276
  %v1291 = vunpack.c.h.b16 %v276
  %v1292 = vunpack.c.l.b16 %v277
  %v1293 = vunpack.c.h.b16 %v277
  %v1294 = vunpack.c.l.b16 %v278
  %v1295 = vunpack.c.h.b16 %v278
  %v1296 = vunpack.c.l.b16 %v279
  %v1297 = vunpack.c.h.b16 %v279
  %v1298 = vunpack.c.l.b16 %v280
  %v1299 = vunpack.c.h.b16 %v280
  %v1300 = vunpack.c.l.b16 %v281
  %v1301 = vunpack.c.h.b16 %v281
  %v1302 = vunpack.c.l.b16 %v282
  %v1303 = vunpack.c.h.b16 %v282
  %v1304 = vunpack.c.l.b16 %v283
  %v1305 = vunpack.c.h.b16 %v283
  %v1306 = vunpack.c.l.b16 %v284
  %v1307 = vunpack.c.h.b16 %v284
  %v1308 = vunpack.c.l.b16 %v285
  %v1309 = vunpack.c.h.b16 %v285
  %v1310 = vunpack.c.l.b16 %v286
  %v1311 = vunpack.c.h.b16 %v286
  %v1312 = vunpack.c.l.b16 %v287
  %v1313 = vunpack.c.h.b16 %v287
  %v1314 = vunpack.c.l.b16 %v288
  %v1315 = vunpack.c.h.b16 %v288
  %v1316 = vunpack.c.l.b16 %v289
  %v1317 = vunpack.c.h.b16 %v289
  %v1318 = vunpack.c.l.b16 %v290
  %v1319 = vunpack.c.h.b16 %v290
  %v1320 = vunpack.c.l.b16 %v291
  %v1321 = vunpack.c.h.b16 %v291
  %v1322 = vunpack.c.l.b16 %v292
  %v1323 = vunpack.c.h.b16 %v292
  %v1324 = vunpack.c.l.b16 %v293
  %v1325 = vunpack.c.h.b16 %v293
  %v1326 = vunpack.c.l.b16 %v294
  %v1327 = vunpack.c.h.b16 %v294
  %v1328 = vunpack.c.l.b16 %v295
  %v1329 = vunpack.c.h.b16 %v295
  %v1330 = vunpack.c.l.b16 %v296
  %v1331 = vunpack.c.h.b16 %v296
  %v1332 = vunpack.c.l.b16 %v297
  %v1333 = vunpack.c.h.b16 %v297
  %v1334 = vunpack.c.l.b16 %v298
  %v1335 = vunpack.c.h.b16 %v298
  %v1336 = vunpack.c.l.b16 %v299
  %v1337 = vunpack.c.h.b16 %v299
  %v1338 = vunpack.c.l.b16 %v300
  %v1339 = vunpack.c.h.b16 %v300
  %v1340 = vunpack.c.l.b16 %v301
  %v1341 = vunpack.c.h.b16 %v301
  %v1342 = vunpack.c.l.b16 %v302
  %v1343 = vunpack.c.h.b16 %v302
  %v1344 = vunpack.c.l.b16 %v303
  %v1345 = vunpack.c.h.b16 %v303
  %v1346 = vunpack.c.l.b16 %v304
  %v1347 = vunpack.c.h.b16 %v304
  %v1348 = vunpack.c.l.b16 %v305
  %v1349 = vunpack.c.h.b16 %v305
  %v1350 = vunpack.c.l.b16 %v306
  %v1351 = vunpack.c.h.b16 %v306
  %v1352 = vunpack.c.l.b16 %v307
  %v1353 = vunpack.c.h.b16 %v307
  %v1354 = vunpack.c.l.b16 %v308
  %v1355 = vunpack.c.h.b16 %v308
  %v1356 = vunpack.c.l.b16 %v309
  %v1357 = vunpack.c.h.b16 %v309
  %v1358 = vunpack.c.l.b16 %v310
  %v1359 = vunpack.c.h.b16 %v310
  %v1360 = vunpack.c.l.b16 %v311
  %v1361 = vunpack.c.h.b16 %v311
  %v1362 = vunpack.c.l.b16 %v312
  %v1363 = vunpack.c.h.b16 %v312
  %v1364 = vunpack.c.l.b16 %v313
  %v1365 = vunpack.c.h.b16 %v313
  %v1366 = vunpack.c.l.b16 %v314
  %v1367 = vunpack.c.h.b16 %v314
  %v1368 = vunpack.c.l.b16 %v315
  %v1369 = vunpack.c.h.b16 %v315
  %v1370 = vunpack.c.l.b16 %v316
  %v1371 = vunpack.c.h.b16 %v316
  %v1372 = vunpack.c.l.b16 %v317
  %v1373 = vunpack.c.h.b16 %v317
  %v1374 = vunpack.c.l.b16 %v318
  %v1375 = vunpack.c.h.b16 %v318
  %v1376 = vunpack.c.l.b16 %v319
  %v1377 = vunpack.c.h.b16 %v319
  %v1378 = vunpack.c.l.b16 %v320
  %v1379 = vunpack.c.h.b16 %v320
  %v1380 = vunpack.c.l.b16 %v321
  %v1381 = vunpack.c.h.b16 %v321
  %v1382 = vunpack.c.l.b16 %v322
  %v1383 = vunpack.c.h.b16 %v322
  %v1384 = vunpack.c.l.b16 %v323
  %v1385 = vunpack.c.h.b16 %v323
  %v1386 = vunpack.c.l.b16 %v324
  %v1387 = vunpack.c.h.b16 %v324
  %v1388 = vunpack.c.l.b16 %v325
  %v1389 = vunpack.c.h.b16 %v325
  %v1390 = vunpack.c.l.b16 %v326
  %v1391 = vunpack.c.h.b16 %v326
  %v1392 = vunpack.c.l.b16 %v327
  %v1393 = vunpack.c.h.b16 %v327
  %v1394 = vunpack.c.l.b16 %v328
  %v1395 = vunpack.c.h.b16 %v328
  %v1396 = vunpack.c.l.b16 %v329
  %v1397 = vunpack.c.h.b16 %v329
  %v1398 = vunpack.c.l.b16 %v330
  %v1399 = vunpack.c.h.b16 %v330
  %v1400 = vunpack.c.l.b16 %v331
  %v1401 = vunpack.c.h.b16 %v331
  %v1402 = vunpack.c.l.b16 %v332
  %v1403 = vunpack.c.h.b16 %v332
  %v1404 = vunpack.c.l.b16 %v333
  %v1405 = vunpack.c.h.b16 %v333
  %v1406 = vunpack.c.l.b16 %v334
  %v1407 = vunpack.c.h.b16 %v334
  %v1408 = vunpack.c.l.b16 %v335
  %v1409 = vunpack.c.h.b16 %v335
  %v1410 = vunpack.c.l.b16 %v336
  %v1411 = vunpack.c.h.b16 %v336
  %v1412 = vunpack.c.l.b16 %v337
  %v1413 = vunpack.c.h.b16 %v337
  %v1414 = vunpack.c.l.b16 %v338
  %v1415 = vunpack.c.h.b16 %v338
  %v1416 = vunpack.c.l.b16 %v339
  %v1417 = vunpack.c.h.b16 %v339
  %v1418 = vunpack.c.l.b16 %v340
  %v1419 = vunpack.c.h.b16 %v340
  %v1420 = vunpack.c.l.b16 %v341
  %v1421 = vunpack.c.h.b16 %v341
  %v1422 = vunpack.c.l.b16 %v342
  %v1423 = vunpack.c.h.b16 %v342
  %v1424 = vunpack.c.l.b16 %v343
  %v1425 = vunpack.c.h.b16 %v343
  %v1426 = vunpack.c.l.b16 %v344
  %v1427 = vunpack.c.h.b16 %v344
  %v1428 = vunpack.c.l.b16 %v345
  %v1429 = vunpack.c.h.b16 %v345
  %v1430 = vunpack.c.l.b16 %v346
  %v1431 = vunpack.c.h.b16 %v346
  %v1432 = vunpack.c.l.b16 %v347
  %v1433 = vunpack.c.h.b16 %v347
  %v1434 = vunpack.c.l.b16 %v348
  %v1435 = vunpack.c.h.b16 %v348
  %v1436 = vunpack.c.l.b16 %v349
  %v1437 = vunpack.c.h.b16 %v349
  %v1438 = vunpack.c.l.b16 %v350
  %v1439 = vunpack.c.h.b16 %v350
  %v1440 = vunpack.c.l.b16 %v351
  %v1441 = vunpack.c.h.b16 %v351
  %v1442 = vunpack.c.l.b16 %v352
  %v1443 = vunpack.c.h.b16 %v352
  %v1444 = vunpack.c.l.b16 %v353
  %v1445 = vunpack.c.h.b16 %v353
  %v1446 = vunpack.c.l.b16 %v354
  %v1447 = vunpack.c.h.b16 %v354
  %v1448 = vunpack.c.l.b16 %v355
  %v1449 = vunpack.c.h.b16 %v355
  %v1450 = vunpack.c.l.b16 %v356
  %v1451 = vunpack.c.h.b16 %v356
  %v1452 = vunpack.c.l.b16 %v357
  %v1453 = vunpack.c.h.b16 %v357
  %v1454 = vunpack.c.l.b16 %v358
  %v1455 = vunpack.c.h.b16 %v358
  %v1456 = vunpack.c.l.b16 %v359
  %v1457 = vunpack.c.h.b16 %v359
  %v1458 = vunpack.c.l.b16 %v360
  %v1459 = vunpack.c.h.b16 %v360
  %v1460 = vunpack.c.l.b16 %v361
  %v1461 = vunpack.c.h.b16 %v361
  %v1462 = vunpack.c.l.b16 %v362
  %v1463 = vunpack.c.h.b16 %v362
  %v1464 = vunpack.c.l.b16 %v363
  %v1465 = vunpack.c.h.b16 %v363
  %v1466 = vunpack.c.l.b16 %v364
  %v1467 = vunpack.c.h.b16 %v364
  %v1468 = vunpack.c.l.b16 %v365
  %v1469 = vunpack.c.h.b16 %v365
  %v1470 = vunpack.c.l.b16 %v366
  %v1471 = vunpack.c.h.b16 %v366
  %v1472 = vunpack.c.l.b16 %v367
  %v1473 = vunpack.c.h.b16 %v367
  %v1474 = vunpack.c.l.b16 %v368
  %v1475 = vunpack.c.h.b16 %v368
  %v1476 = vunpack.c.l.b16 %v369
  %v1477 = vunpack.c.h.b16 %v369
  %v1478 = vunpack.c.l.b16 %v370
  %v1479 = vunpack.c.h.b16 %v370
  %v1480 = vunpack.c.l.b16 %v371
  %v1481 = vunpack.c.h.b16 %v371
  %v1482 = vunpack.c.l.b16 %v372
  %v1483 = vunpack.c.h.b16 %v372
  %v1484 = vunpack.c.l.b16 %v373
  %v1485 = vunpack.c.h.b16 %v373
  %v1486 = vunpack.c.l.b16 %v374
  %v1487 = vunpack.c.h.b16 %v374
  %v1488 = vunpack.c.l.b16 %v375
  %v1489 = vunpack.c.h.b16 %v375
  %v1490 = vpack.c.b16 %v820, %v818
  %v1491 = vpack.c.b16 %v821, %v819
  %v1492 = vpack.c.b16 %v824, %v822
  %v1493 = vpack.c.b16 %v825, %v823
  %v1494 = vpack.c.b16 %v828, %v826
  %v1495 = vpack.c.b16 %v829, %v827
  %v1496 = vpack.c.b16 %v832, %v830
  %v1497 = vpack.c.b16 %v833, %v831
  %v1498 = vpack.c.b16 %v836, %v834
  %v1499 = vpack.c.b16 %v837, %v835
  %v1500 = vpack.c.b16 %v840, %v838
  %v1501 = vpack.c.b16 %v841, %v839
  %v1502 = vpack.c.b16 %v844, %v842
  %v1503 = vpack.c.b16 %v845, %v843
  %v1504 = vpack.c.b16 %v848, %v846
  %v1505 = vpack.c.b16 %v849, %v847
  %v1506 = vpack.c.b16 %v852, %v850
  %v1507 = vpack.c.b16 %v853, %v851
  %v1508 = vpack.c.b16 %v856, %v854
  %v1509 = vpack.c.b16 %v857, %v855
  %v1510 = vpack.c.b16 %v860, %v858
  %v1511 = vpack.c.b16 %v861, %v859
  %v1512 = vpack.c.b16 %v864, %v862
  %v1513 = vpack.c.b16 %v865, %v863
  %v1514 = vpack.c.b16 %v868, %v866
  %v1515 = vpack.c.b16 %v869, %v867
  %v1516 = vpack.c.b16 %v872, %v870
  %v1517 = vpack.c.b16 %v873, %v871
  %v1518 = vpack.c.b16 %v876, %v874
  %v1519 = vpack.c.b16 %v877, %v875
  %v1520 = vpack.c.b16 %v880, %v878
  %v1521 = vpack.c.b16 %v881, %v879
  %v1522 = vpack.c.b16 %v884, %v882
  %v1523 = vpack.c.b16 %v885, %v883
  %v1524 = vpack.c.b16 %v888, %v886
  %v1525 = vpack.c.b16 %v889, %v887
  %v1526 = vpack.c.b16 %v892, %v890
  %v1527 = vpack.c.b16 %v893, %v891
  %v1528 = vpack.c.b16 %v896, %v894
  %v1529 = vpack.c.b16 %v897, %v895
  %v1530 = vpack.c.b16 %v900, %v898
  %v1531 = vpack.c.b16 %v901, %v899
  %v1532 = vpack.c.b16 %v904, %v902
  %v1533 = vpack.c.b16 %v905, %v903
  %v1534 = vpack.c.b16 %v908, %v906
  %v1535 = vpack.c.b16 %v909, %v907
  %v1536 = vpack.c.b16 %v912, %v910
  %v1537 = vpack.c.b16 %v913, %v911
  %v1538 = vpack.c.b16 %v916, %v914
  %v1539 = vpack.c.b16 %v917, %v915
  %v1540 = vpack.c.b16 %v920, %v918
  %v1541 = vpack.c.b16 %v921, %v919
  %v1542 = vpack.c.b16 %v924, %v922
  %v1543 = vpack.c.b16 %v925, %v923
  %v1544 = vpack.c.b16 %v928, %v926
  %v1545 = vpack.c.b16 %v929, %v927
  %v1546 = vpack.c.b16 %v932, %v930
  %v1547 = vpack.c.b16 %v933, %v931
  %v1548 = vpack.c.b16 %v936, %v934
  %v1549 = vpack.c.b16 %v937, %v935
  %v1550 = vpack.c.b16 %v940, %v938
  %v1551 = vpack.c.b16 %v941, %v939
  %v1552 = vpack.c.b16 %v944, %v942
  %v1553 = vpack.c.b16 %v945, %v943
  %v1554 = vpack.c.b16 %v948, %v946
  %v1555 = vpack.c.b16 %v949, %v947
  %v1556 = vpack.c.b16 %v952, %v950
  %v1557 = vpack.c.b16 %v953, %v951
  %v1558 = vpack.c.b16 %v956, %v954
  %v1559 = vpack.c.b16 %v957, %v955
  %v1560 = vpack.c.b16 %v960, %v958
  %v1561 = vpack.c.b16 %v961, %v959
  %v1562 = vpack.c.b16 %v964, %v962
  %v1563 = vpack.c.b16 %v965, %v963
  %v1564 = vpack.c.b16 %v968, %v966
  %v1565 = vpack.c.b16 %v969, %v967
  %v1566 = vpack.c.b16 %v972, %v970
  %v1567 = vpack.c.b16 %v973, %v971
  %v1568 = vpack.c.b16 %v976, %v974
  %v1569 = vpack.c.b16 %v977, %v975
  %v1570 = vpack.c.b16 %v980, %v978
  %v1571 = vpack.c.b16 %v981, %v979
  %v1572 = vpack.c.b16 %v984, %v982
  %v1573 = vpack.c.b16 %v985, %v983
  %v1574 = vpack.c.b16 %v988, %v986
  %v1575 = vpack.c.b16 %v989, %v987
  %v1576 = vpack.c.b16 %v992, %v990
  %v1577 = vpack.c.b16 %v993, %v991
  %v1578 = vpack.c.b16 %v996, %v994
  %v1579 = vpack.c.b16 %v997, %v995
  %v1580 = vpack.c.b16 %v1000, %v998
  %v1581 = vpack.c.b16 %v1001, %v999
  %v1582 = vpack.c.b16 %v1004, %v1002
  %v1583 = vpack.c.b16 %v1005, %v1003
  %v1584 = vpack.c.b16 %v1008, %v1006
  %v1585 = vpack.c.b16 %v1009, %v1007
  %v1586 = vpack.c.b16 %v1012, %v1010
  %v1587 = vpack.c.b16 %v1013, %v1011
  %v1588 = vpack.c.b16 %v1016, %v1014
  %v1589 = vpack.c.b16 %v1017, %v1015
  %v1590 = vpack.c.b16 %v1020, %v1018
  %v1591 = vpack.c.b16 %v1021, %v1019
  %v1592 = vpack.c.b16 %v1024, %v1022
  %v1593 = vpack.c.b16 %v1025, %v1023
  %v1594 = vpack.c.b16 %v1028, %v1026
  %v1595 = vpack.c.b16 %v1029, %v1027
  %v1596 = vpack.c.b16 %v1032, %v1030
  %v1597 = vpack.c.b16 %v1033, %v1031
  %v1598 = vpack.c.b16 %v1036, %v1034
  %v1599 = vpack.c.b16 %v1037, %v1035
  %v1600 = vpack.c.b16 %v1040, %v1038
  %v1601 = vpack.c.b16 %v1041, %v1039
  %v1602 = vpack.c.b16 %v1044, %v1042
  %v1603 = vpack.c.b16 %v1045, %v1043
  %v1604 = vpack.c.b16 %v1048, %v1046
  %v1605 = vpack.c.b16 %v1049, %v1047
  %v1606 = vpack.c.b16 %v1052, %v1050
  %v1607 = vpack.c.b16 %v1053, %v1051
  %v1608 = vpack.c.b16 %v1056, %v1054
  %v1609 = vpack.c.b16 %v1057, %v1055
  %v1610 = vpack.c.b16 %v1060, %v1058
  %v1611 = vpack.c.b16 %v1061, %v1059
  %v1612 = vpack.c.b16 %v1064, %v1062
  %v1613 = vpack.c.b16 %v1065, %v1063
  %v1614 = vpack.c.b16 %v1068, %v1066
  %v1615 = vpack.c.b16 %v1069, %v1067
  %v1616 = vpack.c.b16 %v1072, %v1070
  %v1617 = vpack.c.b16 %v1073, %v1071
  %v1618 = vpack.c.b16 %v1076, %v1074
  %v1619 = vpack.c.b16 %v1077, %v1075
  %v1620 = vpack.c.b16 %v1080, %v1078
  %v1621 = vpack.c.b16 %v1081, %v1079
  %v1622 = vpack.c.b16 %v1084, %v1082
  %v1623 = vpack.c.b16 %v1085, %v1083
  %v1624 = vpack.c.b16 %v1088, %v1086
  %v1625 = vpack.c.b16 %v1089, %v1087
  %v1626 = vpack.c.b16 %v1092, %v1090
  %v1627 = vpack.c.b16 %v1093, %v1091
  %v1628 = vpack.c.b16 %v1096, %v1094
  %v1629 = vpack.c.b16 %v1097, %v1095
  %v1630 = vpack.c.b16 %v1100, %v1098
  %v1631 = vpack.c.b16 %v1101, %v1099
  %v1632 = vpack.c.b16 %v1104, %v1102
  %v1633 = vpack.c.b16 %v1105, %v1103
  %v1634 = vpack.c.b16 %v1108, %v1106
  %v1635 = vpack.c.b16 %v1109, %v1107
  %v1636 = vpack.c.b16 %v1112, %v1110
  %v1637 = vpack.c.b16 %v1113, %v1111
  %v1638 = vpack.c.b16 %v1116, %v1114
  %v1639 = vpack.c.b16 %v1117, %v1115
  %v1640 = vpack.c.b16 %v1120, %v1118
  %v1641 = vpack.c.b16 %v1121, %v1119
  %v1642 = vpack.c.b16 %v1124, %v1122
  %v1643 = vpack.c.b16 %v1125, %v1123
  %v1644 = vpack.c.b16 %v1128, %v1126
  %v1645 = vpack.c.b16 %v1129, %v1127
  %v1646 = vpack.c.b16 %v1132, %v1130
  %v1647 = vpack.c.b16 %v1133, %v1131
  %v1648 = vpack.c.b16 %v1136, %v1134
  %v1649 = vpack.c.b16 %v1137, %v1135
  %v1650 = vpack.c.b16 %v1140, %v1138
  %v1651 = vpack.c.b16 %v1141, %v1139
  %v1652 = vpack.c.b16 %v1144, %v1142
  %v1653 = vpack.c.b16 %v1145, %v1143
  %v1654 = vpack.c.b16 %v1148, %v1146
  %v1655 = vpack.c.b16 %v1149, %v1147
  %v1656 = vpack.c.b16 %v1152, %v1150
  %v1657 = vpack.c.b16 %v1153, %v1151
  %v1658 = vpack.c.b16 %v1156, %v1154
  %v1659 = vpack.c.b16 %v1157, %v1155
  %v1660 = vpack.c.b16 %v1160, %v1158
  %v1661 = vpack.c.b16 %v1161, %v1159
  %v1662 = vpack.c.b16 %v1164, %v1162
  %v1663 = vpack.c.b16 %v1165, %v1163
  %v1664 = vpack.c.b16 %v1168, %v1166
  %v1665 = vpack.c.b16 %v1169, %v1167
  %v1666 = vpack.c.b16 %v1172, %v1170
  %v1667 = vpack.c.b16 %v1173, %v1171
  %v1668 = vpack.c.b16 %v1176, %v1174
  %v1669 = vpack.c.b16 %v1177, %v1175
  %v1670 = vpack.c.b16 %v1180, %v1178
  %v1671 = vpack.c.b16 %v1181, %v1179
  %v1672 = vpack.c.b16 %v1184, %v1182
  %v1673 = vpack.c.b16 %v1185, %v1183
  %v1674 = vpack.c.b16 %v1188, %v1186
  %v1675 = vpack.c.b16 %v1189, %v1187
  %v1676 = vpack.c.b16 %v1192, %v1190
  %v1677 = vpack.c.b16 %v1193, %v1191
  %v1678 = vpack.c.b16 %v1196, %v1194
  %v1679 = vpack.c.b16 %v1197, %v1195
  %v1680 = vpack.c.b16 %v1200, %v1198
  %v1681 = vpack.c.b16 %v1201, %v1199
  %v1682 = vpack.c.b16 %v1204, %v1202
  %v1683 = vpack.c.b16 %v1205, %v1203
  %v1684 = vpack.c.b16 %v1208, %v1206
  %v1685 = vpack.c.b16 %v1209, %v1207
  %v1686 = vpack.c.b16 %v1212, %v1210
  %v1687 = vpack.c.b16 %v1213, %v1211
  %v1688 = vpack.c.b16 %v1216, %v1214
  %v1689 = vpack.c.b16 %v1217, %v1215
  %v1690 = vpack.c.b16 %v1220, %v1218
  %v1691 = vpack.c.b16 %v1221, %v1219
  %v1692 = vpack.c.b16 %v1224, %v1222
  %v1693 = vpack.c.b16 %v1225, %v1223
  %v1694 = vpack.c.b16 %v1228, %v1226
  %v1695 = vpack.c.b16 %v1229, %v1227
  %v1696 = vpack.c.b16 %v1232, %v1230
  %v1697 = vpack.c.b16 %v1233, %v1231
  %v1698 = vpack.c.b16 %v1236, %v1234
  %v1699 = vpack.c.b16 %v1237, %v1235
  %v1700 = vpack.c.b16 %v1240, %v1238
  %v1701 = vpack.c.b16 %v1241, %v1239
  %v1702 = vpack.c.b16 %v1244, %v1242
  %v1703 = vpack.c.b16 %v1245, %v1243
  %v1704 = vpack.c.b16 %v1248, %v1246
  %v1705 = vpack.c.b16 %v1249, %v1247
  %v1706 = vpack.c.b16 %v1252, %v1250
  %v1707 = vpack.c.b16 %v1253, %v1251
  %v1708 = vpack.c.b16 %v1256, %v1254
  %v1709 = vpack.c.b16 %v1257, %v1255
  %v1710 = vpack.c.b16 %v1260, %v1258
  %v1711 = vpack.c.b16 %v1261, %v1259
  %v1712 = vpack.c.b16 %v1264, %v1262
  %v1713 = vpack.c.b16 %v1265, %v1263
  %v1714 = vpack.c.b16 %v1268, %v1266
  %v1715 = vpack.c.b16 %v1269, %v1267
  %v1716 = vpack.c.b16 %v1272, %v1270
  %v1717 = vpack.c.b16 %v1273, %v1271
  %v1718 = vpack.c.b16 %v1276, %v1274
  %v1719 = vpack.c.b16 %v1277, %v1275
  %v1720 = vpack.c.b16 %v1280, %v1278
  %v1721 = vpack.c.b16 %v1281, %v1279
  %v1722 = vpack.c.b16 %v1284, %v1282
  %v1723 = vpack.c.b16 %v1285, %v1283
  %v1724 = vpack.c.b16 %v1288, %v1286
  %v1725 = vpack.c.b16 %v1289, %v1287
  %v1726 = vpack.c.b16 %v1292, %v1290
  %v1727 = vpack.c.b16 %v1293, %v1291
  %v1728 = vpack.c.b16 %v1296, %v1294
  %v1729 = vpack.c.b16 %v1297, %v1295
  %v1730 = vpack.c.b16 %v1300, %v1298
  %v1731 = vpack.c.b16 %v1301, %v1299
  %v1732 = vpack.c.b16 %v1304, %v1302
  %v1733 = vpack.c.b16 %v1305, %v1303
  %v1734 = vpack.c.b16 %v1308, %v1306
  %v1735 = vpack.c.b16 %v1309, %v1307
  %v1736 = vpack.c.b16 %v1312, %v1310
  %v1737 = vpack.c.b16 %v1313, %v1311
  %v1738 = vpack.c.b16 %v1316, %v1314
  %v1739 = vpack.c.b16 %v1317, %v1315
  %v1740 = vpack.c.b16 %v1320, %v1318
  %v1741 = vpack.c.b16 %v1321, %v1319
  %v1742 = vpack.c.b16 %v1324, %v1322
  %v1743 = vpack.c.b16 %v1325, %v1323
  %v1744 = vpack.c.b16 %v1328, %v1326
  %v1745 = vpack.c.b16 %v1329, %v1327
  %v1746 = vpack.c.b16 %v1332, %v1330
  %v1747 = vpack.c.b16 %v1333, %v1331
  %v1748 = vpack.c.b16 %v1336, %v1334
  %v1749 = vpack.c.b16 %v1337, %v1335
  %v1750 = vpack.c.b16 %v1340, %v1338
  %v1751 = vpack.c.b16 %v1341, %v1339
  %v1752 = vpack.c.b16 %v1344, %v1342
  %v1753 = vpack.c.b16 %v1345, %v1343
  %v1754 = vpack.c.b16 %v1348, %v1346
  %v1755 = vpack.c.b16 %v1349, %v1347
  %v1756 = vpack.c.b16 %v1352, %v1350
  %v1757 = vpack.c.b16 %v1353, %v1351
  %v1758 = vpack.c.b16 %v1356, %v1354
  %v1759 = vpack.c.b16 %v1357, %v1355
  %v1760 = vpack.c.b16 %v1360, %v1358
  %v1761 = vpack.c.b16 %v1361, %v1359
  %v1762 = vpack.c.b16 %v1364, %v1362
  %v1763 = vpack.c.b16 %v1365, %v1363
  %v1764 = vpack.c.b16 %v1368, %v1366
  %v1765 = vpack.c.b16 %v1369, %v1367
  %v1766 = vpack.c.b16 %v1372, %v1370
  %v1767 = vpack.c.b16 %v1373, %v1371
  %v1768 = vpack.c.b16 %v1376, %v1374
  %v1769 = vpack.c.b16 %v1377, %v1375
  %v1770 = vpack.c.b16 %v1380, %v1378
  %v1771 = vpack.c.b16 %v1381, %v1379
  %v1772 = vpack.c.b16 %v1384, %v1382
  %v1773 = vpack.c.b16 %v1385, %v1383
  %v1774 = vpack.c.b16 %v1388, %v1386
  %v1775 = vpack.c.b16 %v1389, %v1387
  %v1776 = vpack.c.b16 %v1392, %v1390
  %v1777 = vpack.c.b16 %v1393, %v1391
  %v1778 = vpack.c.b16 %v1396, %v1394
  %v1779 = vpack.c.b16 %v1397, %v1395
  %v1780 = vpack.c.b16 %v1400, %v1398
  %v1781 = vpack.c.b16 %v1401, %v1399
  %v1782 = vpack.c.b16 %v1404, %v1402
  %v1783 = vpack.c.b16 %v1405, %v1403
  %v1784 = vpack.c.b16 %v1408, %v1406
  %v1785 = vpack.c.b16 %v1409, %v1407
  %v1786 = vpack.c.b16 %v1412, %v1410
  %v1787 = vpack.c.b16 %v1413, %v1411
  %v1788 = vpack.c.b16 %v1416, %v1414
  %v1789 = vpack.c.b16 %v1417, %v1415
  %v1790 = vpack.c.b16 %v1420, %v1418
  %v1791 = vpack.c.b16 %v1421, %v1419
  %v1792 = vpack.c.b16 %v1424, %v1422
  %v1793 = vpack.c.b16 %v1425, %v1423
  %v1794 = vpack.c.b16 %v1428, %v1426
  %v1795 = vpack.c.b16 %v1429, %v1427
  %v1796 = vpack.c.b16 %v1432, %v1430
  %v1797 = vpack.c.b16 %v1433, %v1431
  %v1798 = vpack.c.b16 %v1436, %v1434
  %v1799 = vpack.c.b16 %v1437, %v1435
  %v1800 = vpack.c.b16 %v1440, %v1438
  %v1801 = vpack.c.b16 %v1441, %v1439
  %v1802 = vpack.c.b16 %v1444, %v1442
  %v1803 = vpack.c.b16 %v1445, %v1443
  %v1804 = vpack.c.b16 %v1448, %v1446
  %v1805 = vpack.c.b16 %v1449, %v1447
  %v1806 = vpack.c.b16 %v1452, %v1450
  %v1807 = vpack.c.b16 %v1453, %v1451
  %v1808 = vpack.c.b16 %v1456, %v1454
  %v1809 = vpack.c.b16 %v1457, %v1455
  %v1810 = vpack.c.b16 %v1460, %v1458
  %v1811 = vpack.c.b16 %v1461, %v1459
  %v1812 = vpack.c.b16 %v1464, %v1462
  %v1813 = vpack.c.b16 %v1465, %v1463
  %v1814 = vpack.c.b16 %v1468, %v1466
  %v1815 = vpack.c.b16 %v1469, %v1467
  %v1816 = vpack.c.b16 %v1472, %v1470
  %v1817 = vpack.c.b16 %v1473, %v1471
  %v1818 = vpack.c.b16 %v1476, %v1474
  %v1819 = vpack.c.b16 %v1477, %v1475
  %v1820 = vpack.c.b16 %v1480, %v1478
  %v1821 = vpack.c.b16 %v1481, %v1479
  %v1822 = vpack.c.b16 %v1484, %v1482
  %v1823 = vpack.c.b16 %v1485, %v1483
  %v1824 = vpack.c.b16 %v1488, %v1486
  %v1825 = vpack.c.b16 %v1489, %v1487
  %2162 = vmatprep.subr.bf16.mxu0 %v1505
  %2163 = vmatpush1.bf16.msra.mxu0 %v1504
  %2164 = vmatprep.subr.bf16.mxu0 %v1503
  %2165 = vmatpush1.bf16.msra.mxu0 %v1502
  %2166 = vmatprep.subr.bf16.mxu0 %v1501
  %2167 = vmatpush1.bf16.msra.mxu0 %v1500
  %2168 = vmatprep.subr.bf16.mxu0 %v1499
  %2169 = vmatpush1.bf16.msra.mxu0 %v1498
  %2170 = vmatprep.subr.bf16.mxu0 %v1497
  %2171 = vmatpush1.bf16.msra.mxu0 %v1496
  %2172 = vmatprep.subr.bf16.mxu0 %v1495
  %2173 = vmatpush1.bf16.msra.mxu0 %v1494
  %2174 = vmatprep.subr.bf16.mxu0 %v1493
  %2175 = vmatpush1.bf16.msra.mxu0 %v1492
  %2176 = vmatprep.subr.bf16.mxu0 %v1491
  %2177 = vmatpush1.bf16.msra.mxu0 %v1490
  %2178 = vmatprep.subr.bf16.mxu0 %v1521
  %2179 = vmatpush2.bf16.msra.mxu0 %v1520
  %2180 = vmatprep.subr.bf16.mxu0 %v1519
  %2181 = vmatpush2.bf16.msra.mxu0 %v1518
  %2182 = vmatprep.subr.bf16.mxu0 %v1517
  %2183 = vmatpush2.bf16.msra.mxu0 %v1516
  %2184 = vmatprep.subr.bf16.mxu0 %v1515
  %2185 = vmatpush2.bf16.msra.mxu0 %v1514
  %2186 = vmatprep.subr.bf16.mxu0 %v1513
  %2187 = vmatpush2.bf16.msra.mxu0 %v1512
  %2188 = vmatprep.subr.bf16.mxu0 %v1511
  %2189 = vmatpush2.bf16.msra.mxu0 %v1510
  %2190 = vmatprep.subr.bf16.mxu0 %v1509
  %2191 = vmatpush2.bf16.msra.mxu0 %v1508
  %2192 = vmatprep.subr.bf16.mxu0 %v1507
  %2193 = vmatpush2.bf16.msra.mxu0 %v1506
  %2194 = vmatprep.mubr.bf16.mxu0 %v441
  %2195 = vmatmul.mubr.bf16.gmra.mxu0 %v440
  %v2196 = vpop.f32.mrf.mxu0
  %v2197 = vadd.f32 0.0, %v2196
  %v2198 = vpop.f32.mrf.mxu0
  %v2199 = vadd.f32 0.0, %v2198
  %v2200 = vpop.f32.mrf.mxu0
  %v2201 = vadd.f32 0.0, %v2200
  %v2202 = vpop.f32.mrf.mxu0
  %v2203 = vadd.f32 0.0, %v2202
  %2204 = vdwg.mxu0
  %2205 = vmatprep.subr.bf16.mxu0 %v1537
  %2206 = vmatpush1.bf16.msra.mxu0 %v1536
  %2207 = vmatprep.subr.bf16.mxu0 %v1535
  %2208 = vmatpush1.bf16.msra.mxu0 %v1534
  %2209 = vmatprep.subr.bf16.mxu0 %v1533
  %2210 = vmatpush1.bf16.msra.mxu0 %v1532
  %2211 = vmatprep.subr.bf16.mxu0 %v1531
  %2212 = vmatpush1.bf16.msra.mxu0 %v1530
  %2213 = vmatprep.subr.bf16.mxu0 %v1529
  %2214 = vmatpush1.bf16.msra.mxu0 %v1528
  %2215 = vmatprep.subr.bf16.mxu0 %v1527
  %2216 = vmatpush1.bf16.msra.mxu0 %v1526
  %2217 = vmatprep.subr.bf16.mxu0 %v1525
  %2218 = vmatpush1.bf16.msra.mxu0 %v1524
  %2219 = vmatprep.subr.bf16.mxu0 %v1523
  %2220 = vmatpush1.bf16.msra.mxu0 %v1522
  %2221 = vmatprep.subr.bf16.mxu0 %v1553
  %2222 = vmatpush2.bf16.msra.mxu0 %v1552
  %2223 = vmatprep.subr.bf16.mxu0 %v1551
  %2224 = vmatpush2.bf16.msra.mxu0 %v1550
  %2225 = vmatprep.subr.bf16.mxu0 %v1549
  %2226 = vmatpush2.bf16.msra.mxu0 %v1548
  %2227 = vmatprep.subr.bf16.mxu0 %v1547
  %2228 = vmatpush2.bf16.msra.mxu0 %v1546
  %2229 = vmatprep.subr.bf16.mxu0 %v1545
  %2230 = vmatpush2.bf16.msra.mxu0 %v1544
  %2231 = vmatprep.subr.bf16.mxu0 %v1543
  %2232 = vmatpush2.bf16.msra.mxu0 %v1542
  %2233 = vmatprep.subr.bf16.mxu0 %v1541
  %2234 = vmatpush2.bf16.msra.mxu0 %v1540
  %2235 = vmatprep.subr.bf16.mxu0 %v1539
  %2236 = vmatpush2.bf16.msra.mxu0 %v1538
  %2237 = vmatprep.mubr.bf16.mxu0 %v443
  %2238 = vmatmul.mubr.bf16.gmra.mxu0 %v442
  %v2239 = vpop.f32.mrf.mxu0
  %v2240 = vadd.f32 %v2197, %v2239
  %v2241 = vpop.f32.mrf.mxu0
  %v2242 = vadd.f32 %v2199, %v2241
  %v2243 = vpop.f32.mrf.mxu0
  %v2244 = vadd.f32 %v2201, %v2243
  %v2245 = vpop.f32.mrf.mxu0
  %v2246 = vadd.f32 %v2203, %v2245
  %2247 = vdwg.mxu0
  %2248 = vmatprep.subr.bf16.mxu0 %v1569
  %2249 = vmatpush1.bf16.msra.mxu0 %v1568
  %2250 = vmatprep.subr.bf16.mxu0 %v1567
  %2251 = vmatpush1.bf16.msra.mxu0 %v1566
  %2252 = vmatprep.subr.bf16.mxu0 %v1565
  %2253 = vmatpush1.bf16.msra.mxu0 %v1564
  %2254 = vmatprep.subr.bf16.mxu0 %v1563
  %2255 = vmatpush1.bf16.msra.mxu0 %v1562
  %2256 = vmatprep.subr.bf16.mxu0 %v1561
  %2257 = vmatpush1.bf16.msra.mxu0 %v1560
  %2258 = vmatprep.subr.bf16.mxu0 %v1559
  %2259 = vmatpush1.bf16.msra.mxu0 %v1558
  %2260 = vmatprep.subr.bf16.mxu0 %v1557
  %2261 = vmatpush1.bf16.msra.mxu0 %v1556
  %2262 = vmatprep.subr.bf16.mxu0 %v1555
  %2263 = vmatpush1.bf16.msra.mxu0 %v1554
  %2264 = vmatprep.subr.bf16.mxu0 %v1585
  %2265 = vmatpush2.bf16.msra.mxu0 %v1584
  %2266 = vmatprep.subr.bf16.mxu0 %v1583
  %2267 = vmatpush2.bf16.msra.mxu0 %v1582
  %2268 = vmatprep.subr.bf16.mxu0 %v1581
  %2269 = vmatpush2.bf16.msra.mxu0 %v1580
  %2270 = vmatprep.subr.bf16.mxu0 %v1579
  %2271 = vmatpush2.bf16.msra.mxu0 %v1578
  %2272 = vmatprep.subr.bf16.mxu0 %v1577
  %2273 = vmatpush2.bf16.msra.mxu0 %v1576
  %2274 = vmatprep.subr.bf16.mxu0 %v1575
  %2275 = vmatpush2.bf16.msra.mxu0 %v1574
  %2276 = vmatprep.subr.bf16.mxu0 %v1573
  %2277 = vmatpush2.bf16.msra.mxu0 %v1572
  %2278 = vmatprep.subr.bf16.mxu0 %v1571
  %2279 = vmatpush2.bf16.msra.mxu0 %v1570
  %2280 = vmatprep.mubr.bf16.mxu0 %v445
  %2281 = vmatmul.mubr.bf16.gmra.mxu0 %v444
  %v2282 = vpop.f32.mrf.mxu0
  %v2283 = vadd.f32 %v2240, %v2282
  %v2284 = vpop.f32.mrf.mxu0
  %v2285 = vadd.f32 %v2242, %v2284
  %v2286 = vpop.f32.mrf.mxu0
  %v2287 = vadd.f32 %v2244, %v2286
  %v2288 = vpop.f32.mrf.mxu0
  %v2289 = vadd.f32 %v2246, %v2288
  %2290 = vdwg.mxu0
  %2291 = vmatprep.subr.bf16.mxu0 %v1601
  %2292 = vmatpush1.bf16.msra.mxu0 %v1600
  %2293 = vmatprep.subr.bf16.mxu0 %v1599
  %2294 = vmatpush1.bf16.msra.mxu0 %v1598
  %2295 = vmatprep.subr.bf16.mxu0 %v1597
  %2296 = vmatpush1.bf16.msra.mxu0 %v1596
  %2297 = vmatprep.subr.bf16.mxu0 %v1595
  %2298 = vmatpush1.bf16.msra.mxu0 %v1594
  %2299 = vmatprep.subr.bf16.mxu0 %v1593
  %2300 = vmatpush1.bf16.msra.mxu0 %v1592
  %2301 = vmatprep.subr.bf16.mxu0 %v1591
  %2302 = vmatpush1.bf16.msra.mxu0 %v1590
  %2303 = vmatprep.subr.bf16.mxu0 %v1589
  %2304 = vmatpush1.bf16.msra.mxu0 %v1588
  %2305 = vmatprep.subr.bf16.mxu0 %v1587
  %2306 = vmatpush1.bf16.msra.mxu0 %v1586
  %2307 = vmatprep.subr.bf16.mxu0 %v1617
  %2308 = vmatpush2.bf16.msra.mxu0 %v1616
  %2309 = vmatprep.subr.bf16.mxu0 %v1615
  %2310 = vmatpush2.bf16.msra.mxu0 %v1614
  %2311 = vmatprep.subr.bf16.mxu0 %v1613
  %2312 = vmatpush2.bf16.msra.mxu0 %v1612
  %2313 = vmatprep.subr.bf16.mxu0 %v1611
  %2314 = vmatpush2.bf16.msra.mxu0 %v1610
  %2315 = vmatprep.subr.bf16.mxu0 %v1609
  %2316 = vmatpush2.bf16.msra.mxu0 %v1608
  %2317 = vmatprep.subr.bf16.mxu0 %v1607
  %2318 = vmatpush2.bf16.msra.mxu0 %v1606
  %2319 = vmatprep.subr.bf16.mxu0 %v1605
  %2320 = vmatpush2.bf16.msra.mxu0 %v1604
  %2321 = vmatprep.subr.bf16.mxu0 %v1603
  %2322 = vmatpush2.bf16.msra.mxu0 %v1602
  %2323 = vmatprep.mubr.bf16.mxu0 %v447
  %2324 = vmatmul.mubr.bf16.gmra.mxu0 %v446
  %v2325 = vpop.f32.mrf.mxu0
  %v2326 = vadd.f32 %v2283, %v2325
  %v2327 = vpop.f32.mrf.mxu0
  %v2328 = vadd.f32 %v2285, %v2327
  %v2329 = vpop.f32.mrf.mxu0
  %v2330 = vadd.f32 %v2287, %v2329
  %v2331 = vpop.f32.mrf.mxu0
  %v2332 = vadd.f32 %v2289, %v2331
  %2333 = vdwg.mxu0
  %2334 = vmatprep.subr.bf16.mxu0 %v1633
  %2335 = vmatpush1.bf16.msra.mxu0 %v1632
  %2336 = vmatprep.subr.bf16.mxu0 %v1631
  %2337 = vmatpush1.bf16.msra.mxu0 %v1630
  %2338 = vmatprep.subr.bf16.mxu0 %v1629
  %2339 = vmatpush1.bf16.msra.mxu0 %v1628
  %2340 = vmatprep.subr.bf16.mxu0 %v1627
  %2341 = vmatpush1.bf16.msra.mxu0 %v1626
  %2342 = vmatprep.subr.bf16.mxu0 %v1625
  %2343 = vmatpush1.bf16.msra.mxu0 %v1624
  %2344 = vmatprep.subr.bf16.mxu0 %v1623
  %2345 = vmatpush1.bf16.msra.mxu0 %v1622
  %2346 = vmatprep.subr.bf16.mxu0 %v1621
  %2347 = vmatpush1.bf16.msra.mxu0 %v1620
  %2348 = vmatprep.subr.bf16.mxu0 %v1619
  %2349 = vmatpush1.bf16.msra.mxu0 %v1618
  %2350 = vmatprep.subr.bf16.mxu0 %v1649
  %2351 = vmatpush2.bf16.msra.mxu0 %v1648
  %2352 = vmatprep.subr.bf16.mxu0 %v1647
  %2353 = vmatpush2.bf16.msra.mxu0 %v1646
  %2354 = vmatprep.subr.bf16.mxu0 %v1645
  %2355 = vmatpush2.bf16.msra.mxu0 %v1644
  %2356 = vmatprep.subr.bf16.mxu0 %v1643
  %2357 = vmatpush2.bf16.msra.mxu0 %v1642
  %2358 = vmatprep.subr.bf16.mxu0 %v1641
  %2359 = vmatpush2.bf16.msra.mxu0 %v1640
  %2360 = vmatprep.subr.bf16.mxu0 %v1639
  %2361 = vmatpush2.bf16.msra.mxu0 %v1638
  %2362 = vmatprep.subr.bf16.mxu0 %v1637
  %2363 = vmatpush2.bf16.msra.mxu0 %v1636
  %2364 = vmatprep.subr.bf16.mxu0 %v1635
  %2365 = vmatpush2.bf16.msra.mxu0 %v1634
  %2366 = vmatprep.mubr.bf16.mxu0 %v449
  %2367 = vmatmul.mubr.bf16.gmra.mxu0 %v448
  %v2368 = vpop.f32.mrf.mxu0
  %v2369 = vadd.f32 %v2326, %v2368
  %v2370 = vpop.f32.mrf.mxu0
  %v2371 = vadd.f32 %v2328, %v2370
  %v2372 = vpop.f32.mrf.mxu0
  %v2373 = vadd.f32 %v2330, %v2372
  %v2374 = vpop.f32.mrf.mxu0
  %v2375 = vadd.f32 %v2332, %v2374
  %2376 = vdwg.mxu0
  %2377 = vmatprep.subr.bf16.mxu0 %v1665
  %2378 = vmatpush1.bf16.msra.mxu0 %v1664
  %2379 = vmatprep.subr.bf16.mxu0 %v1663
  %2380 = vmatpush1.bf16.msra.mxu0 %v1662
  %2381 = vmatprep.subr.bf16.mxu0 %v1661
  %2382 = vmatpush1.bf16.msra.mxu0 %v1660
  %2383 = vmatprep.subr.bf16.mxu0 %v1659
  %2384 = vmatpush1.bf16.msra.mxu0 %v1658
  %2385 = vmatprep.subr.bf16.mxu0 %v1657
  %2386 = vmatpush1.bf16.msra.mxu0 %v1656
  %2387 = vmatprep.subr.bf16.mxu0 %v1655
  %2388 = vmatpush1.bf16.msra.mxu0 %v1654
  %2389 = vmatprep.subr.bf16.mxu0 %v1653
  %2390 = vmatpush1.bf16.msra.mxu0 %v1652
  %2391 = vmatprep.subr.bf16.mxu0 %v1651
  %2392 = vmatpush1.bf16.msra.mxu0 %v1650
  %2393 = vmatprep.subr.bf16.mxu0 %v1681
  %2394 = vmatpush2.bf16.msra.mxu0 %v1680
  %2395 = vmatprep.subr.bf16.mxu0 %v1679
  %2396 = vmatpush2.bf16.msra.mxu0 %v1678
  %2397 = vmatprep.subr.bf16.mxu0 %v1677
  %2398 = vmatpush2.bf16.msra.mxu0 %v1676
  %2399 = vmatprep.subr.bf16.mxu0 %v1675
  %2400 = vmatpush2.bf16.msra.mxu0 %v1674
  %2401 = vmatprep.subr.bf16.mxu0 %v1673
  %2402 = vmatpush2.bf16.msra.mxu0 %v1672
  %2403 = vmatprep.subr.bf16.mxu0 %v1671
  %2404 = vmatpush2.bf16.msra.mxu0 %v1670
  %2405 = vmatprep.subr.bf16.mxu0 %v1669
  %2406 = vmatpush2.bf16.msra.mxu0 %v1668
  %2407 = vmatprep.subr.bf16.mxu0 %v1667
  %2408 = vmatpush2.bf16.msra.mxu0 %v1666
  %2409 = vmatprep.mubr.bf16.mxu0 %v451
  %2410 = vmatmul.mubr.bf16.gmra.mxu0 %v450
  %v2411 = vpop.f32.mrf.mxu0
  %v2412 = vadd.f32 %v2369, %v2411
  %v2413 = vpop.f32.mrf.mxu0
  %v2414 = vadd.f32 %v2371, %v2413
  %v2415 = vpop.f32.mrf.mxu0
  %v2416 = vadd.f32 %v2373, %v2415
  %v2417 = vpop.f32.mrf.mxu0
  %v2418 = vadd.f32 %v2375, %v2417
  %2419 = vdwg.mxu0
  %2420 = vmatprep.subr.bf16.mxu0 %v1697
  %2421 = vmatpush1.bf16.msra.mxu0 %v1696
  %2422 = vmatprep.subr.bf16.mxu0 %v1695
  %2423 = vmatpush1.bf16.msra.mxu0 %v1694
  %2424 = vmatprep.subr.bf16.mxu0 %v1693
  %2425 = vmatpush1.bf16.msra.mxu0 %v1692
  %2426 = vmatprep.subr.bf16.mxu0 %v1691
  %2427 = vmatpush1.bf16.msra.mxu0 %v1690
  %2428 = vmatprep.subr.bf16.mxu0 %v1689
  %2429 = vmatpush1.bf16.msra.mxu0 %v1688
  %2430 = vmatprep.subr.bf16.mxu0 %v1687
  %2431 = vmatpush1.bf16.msra.mxu0 %v1686
  %2432 = vmatprep.subr.bf16.mxu0 %v1685
  %2433 = vmatpush1.bf16.msra.mxu0 %v1684
  %2434 = vmatprep.subr.bf16.mxu0 %v1683
  %2435 = vmatpush1.bf16.msra.mxu0 %v1682
  %2436 = vmatprep.subr.bf16.mxu0 %v1713
  %2437 = vmatpush2.bf16.msra.mxu0 %v1712
  %2438 = vmatprep.subr.bf16.mxu0 %v1711
  %2439 = vmatpush2.bf16.msra.mxu0 %v1710
  %2440 = vmatprep.subr.bf16.mxu0 %v1709
  %2441 = vmatpush2.bf16.msra.mxu0 %v1708
  %2442 = vmatprep.subr.bf16.mxu0 %v1707
  %2443 = vmatpush2.bf16.msra.mxu0 %v1706
  %2444 = vmatprep.subr.bf16.mxu0 %v1705
  %2445 = vmatpush2.bf16.msra.mxu0 %v1704
  %2446 = vmatprep.subr.bf16.mxu0 %v1703
  %2447 = vmatpush2.bf16.msra.mxu0 %v1702
  %2448 = vmatprep.subr.bf16.mxu0 %v1701
  %2449 = vmatpush2.bf16.msra.mxu0 %v1700
  %2450 = vmatprep.subr.bf16.mxu0 %v1699
  %2451 = vmatpush2.bf16.msra.mxu0 %v1698
  %2452 = vmatprep.mubr.bf16.mxu0 %v453
  %2453 = vmatmul.mubr.bf16.gmra.mxu0 %v452
  %v2454 = vpop.f32.mrf.mxu0
  %v2455 = vadd.f32 %v2412, %v2454
  %v2456 = vpop.f32.mrf.mxu0
  %v2457 = vadd.f32 %v2414, %v2456
  %v2458 = vpop.f32.mrf.mxu0
  %v2459 = vadd.f32 %v2416, %v2458
  %v2460 = vpop.f32.mrf.mxu0
  %v2461 = vadd.f32 %v2418, %v2460
  %2462 = vdwg.mxu0
  %2463 = vmatprep.subr.bf16.mxu0 %v1729
  %2464 = vmatpush1.bf16.msra.mxu0 %v1728
  %2465 = vmatprep.subr.bf16.mxu0 %v1727
  %2466 = vmatpush1.bf16.msra.mxu0 %v1726
  %2467 = vmatprep.subr.bf16.mxu0 %v1725
  %2468 = vmatpush1.bf16.msra.mxu0 %v1724
  %2469 = vmatprep.subr.bf16.mxu0 %v1723
  %2470 = vmatpush1.bf16.msra.mxu0 %v1722
  %2471 = vmatprep.subr.bf16.mxu0 %v1721
  %2472 = vmatpush1.bf16.msra.mxu0 %v1720
  %2473 = vmatprep.subr.bf16.mxu0 %v1719
  %2474 = vmatpush1.bf16.msra.mxu0 %v1718
  %2475 = vmatprep.subr.bf16.mxu0 %v1717
  %2476 = vmatpush1.bf16.msra.mxu0 %v1716
  %2477 = vmatprep.subr.bf16.mxu0 %v1715
  %2478 = vmatpush1.bf16.msra.mxu0 %v1714
  %2479 = vmatprep.subr.bf16.mxu0 %v1745
  %2480 = vmatpush2.bf16.msra.mxu0 %v1744
  %2481 = vmatprep.subr.bf16.mxu0 %v1743
  %2482 = vmatpush2.bf16.msra.mxu0 %v1742
  %2483 = vmatprep.subr.bf16.mxu0 %v1741
  %2484 = vmatpush2.bf16.msra.mxu0 %v1740
  %2485 = vmatprep.subr.bf16.mxu0 %v1739
  %2486 = vmatpush2.bf16.msra.mxu0 %v1738
  %2487 = vmatprep.subr.bf16.mxu0 %v1737
  %2488 = vmatpush2.bf16.msra.mxu0 %v1736
  %2489 = vmatprep.subr.bf16.mxu0 %v1735
  %2490 = vmatpush2.bf16.msra.mxu0 %v1734
  %2491 = vmatprep.subr.bf16.mxu0 %v1733
  %2492 = vmatpush2.bf16.msra.mxu0 %v1732
  %2493 = vmatprep.subr.bf16.mxu0 %v1731
  %2494 = vmatpush2.bf16.msra.mxu0 %v1730
  %2495 = vmatprep.mubr.bf16.mxu0 %v455
  %2496 = vmatmul.mubr.bf16.gmra.mxu0 %v454
  %v2497 = vpop.f32.mrf.mxu0
  %v2498 = vadd.f32 %v2455, %v2497
  %v2499 = vpop.f32.mrf.mxu0
  %v2500 = vadd.f32 %v2457, %v2499
  %v2501 = vpop.f32.mrf.mxu0
  %v2502 = vadd.f32 %v2459, %v2501
  %v2503 = vpop.f32.mrf.mxu0
  %v2504 = vadd.f32 %v2461, %v2503
  %2505 = vdwg.mxu0
  %2506 = vmatprep.subr.bf16.mxu0 %v1761
  %2507 = vmatpush1.bf16.msra.mxu0 %v1760
  %2508 = vmatprep.subr.bf16.mxu0 %v1759
  %2509 = vmatpush1.bf16.msra.mxu0 %v1758
  %2510 = vmatprep.subr.bf16.mxu0 %v1757
  %2511 = vmatpush1.bf16.msra.mxu0 %v1756
  %2512 = vmatprep.subr.bf16.mxu0 %v1755
  %2513 = vmatpush1.bf16.msra.mxu0 %v1754
  %2514 = vmatprep.subr.bf16.mxu0 %v1753
  %2515 = vmatpush1.bf16.msra.mxu0 %v1752
  %2516 = vmatprep.subr.bf16.mxu0 %v1751
  %2517 = vmatpush1.bf16.msra.mxu0 %v1750
  %2518 = vmatprep.subr.bf16.mxu0 %v1749
  %2519 = vmatpush1.bf16.msra.mxu0 %v1748
  %2520 = vmatprep.subr.bf16.mxu0 %v1747
  %2521 = vmatpush1.bf16.msra.mxu0 %v1746
  %2522 = vmatprep.subr.bf16.mxu0 %v1777
  %2523 = vmatpush2.bf16.msra.mxu0 %v1776
  %2524 = vmatprep.subr.bf16.mxu0 %v1775
  %2525 = vmatpush2.bf16.msra.mxu0 %v1774
  %2526 = vmatprep.subr.bf16.mxu0 %v1773
  %2527 = vmatpush2.bf16.msra.mxu0 %v1772
  %2528 = vmatprep.subr.bf16.mxu0 %v1771
  %2529 = vmatpush2.bf16.msra.mxu0 %v1770
  %2530 = vmatprep.subr.bf16.mxu0 %v1769
  %2531 = vmatpush2.bf16.msra.mxu0 %v1768
  %2532 = vmatprep.subr.bf16.mxu0 %v1767
  %2533 = vmatpush2.bf16.msra.mxu0 %v1766
  %2534 = vmatprep.subr.bf16.mxu0 %v1765
  %2535 = vmatpush2.bf16.msra.mxu0 %v1764
  %2536 = vmatprep.subr.bf16.mxu0 %v1763
  %2537 = vmatpush2.bf16.msra.mxu0 %v1762
  %2538 = vmatprep.mubr.bf16.mxu0 %v457
  %2539 = vmatmul.mubr.bf16.gmra.mxu0 %v456
  %v2540 = vpop.f32.mrf.mxu0
  %v2541 = vadd.f32 %v2498, %v2540
  %v2542 = vpop.f32.mrf.mxu0
  %v2543 = vadd.f32 %v2500, %v2542
  %v2544 = vpop.f32.mrf.mxu0
  %v2545 = vadd.f32 %v2502, %v2544
  %v2546 = vpop.f32.mrf.mxu0
  %v2547 = vadd.f32 %v2504, %v2546
  %2548 = vdwg.mxu0
  %2549 = vmatprep.subr.bf16.mxu0 %v1793
  %2550 = vmatpush1.bf16.msra.mxu0 %v1792
  %2551 = vmatprep.subr.bf16.mxu0 %v1791
  %2552 = vmatpush1.bf16.msra.mxu0 %v1790
  %2553 = vmatprep.subr.bf16.mxu0 %v1789
  %2554 = vmatpush1.bf16.msra.mxu0 %v1788
  %2555 = vmatprep.subr.bf16.mxu0 %v1787
  %2556 = vmatpush1.bf16.msra.mxu0 %v1786
  %2557 = vmatprep.subr.bf16.mxu0 %v1785
  %2558 = vmatpush1.bf16.msra.mxu0 %v1784
  %2559 = vmatprep.subr.bf16.mxu0 %v1783
  %2560 = vmatpush1.bf16.msra.mxu0 %v1782
  %2561 = vmatprep.subr.bf16.mxu0 %v1781
  %2562 = vmatpush1.bf16.msra.mxu0 %v1780
  %2563 = vmatprep.subr.bf16.mxu0 %v1779
  %2564 = vmatpush1.bf16.msra.mxu0 %v1778
  %2565 = vmatprep.subr.bf16.mxu0 %v1809
  %2566 = vmatpush2.bf16.msra.mxu0 %v1808
  %2567 = vmatprep.subr.bf16.mxu0 %v1807
  %2568 = vmatpush2.bf16.msra.mxu0 %v1806
  %2569 = vmatprep.subr.bf16.mxu0 %v1805
  %2570 = vmatpush2.bf16.msra.mxu0 %v1804
  %2571 = vmatprep.subr.bf16.mxu0 %v1803
  %2572 = vmatpush2.bf16.msra.mxu0 %v1802
  %2573 = vmatprep.subr.bf16.mxu0 %v1801
  %2574 = vmatpush2.bf16.msra.mxu0 %v1800
  %2575 = vmatprep.subr.bf16.mxu0 %v1799
  %2576 = vmatpush2.bf16.msra.mxu0 %v1798
  %2577 = vmatprep.subr.bf16.mxu0 %v1797
  %2578 = vmatpush2.bf16.msra.mxu0 %v1796
  %2579 = vmatprep.subr.bf16.mxu0 %v1795
  %2580 = vmatpush2.bf16.msra.mxu0 %v1794
  %2581 = vmatprep.mubr.bf16.mxu0 %v459
  %2582 = vmatmul.mubr.bf16.gmra.mxu0 %v458
  %v2583 = vpop.f32.mrf.mxu0
  %v2584 = vadd.f32 %v2541, %v2583
  %v2585 = vpop.f32.mrf.mxu0
  %v2586 = vadd.f32 %v2543, %v2585
  %v2587 = vpop.f32.mrf.mxu0
  %v2588 = vadd.f32 %v2545, %v2587
  %v2589 = vpop.f32.mrf.mxu0
  %v2590 = vadd.f32 %v2547, %v2589
  %2591 = vdwg.mxu0
  %2592 = vmatprep.subr.bf16.mxu0 %v1825
  %2593 = vmatpush1.bf16.msra.mxu0 %v1824
  %2594 = vmatprep.subr.bf16.mxu0 %v1823
  %2595 = vmatpush1.bf16.msra.mxu0 %v1822
  %2596 = vmatprep.subr.bf16.mxu0 %v1821
  %2597 = vmatpush1.bf16.msra.mxu0 %v1820
  %2598 = vmatprep.subr.bf16.mxu0 %v1819
  %2599 = vmatpush1.bf16.msra.mxu0 %v1818
  %2600 = vmatprep.subr.bf16.mxu0 %v1817
  %2601 = vmatpush1.bf16.msra.mxu0 %v1816
  %2602 = vmatprep.subr.bf16.mxu0 %v1815
  %2603 = vmatpush1.bf16.msra.mxu0 %v1814
  %2604 = vmatprep.subr.bf16.mxu0 %v1813
  %2605 = vmatpush1.bf16.msra.mxu0 %v1812
  %2606 = vmatprep.subr.bf16.mxu0 %v1811
  %2607 = vmatpush1.bf16.msra.mxu0 %v1810
  %2608 = vmatprep.subr.bf16.mxu0 0
  %2609 = vmatpush2.bf16.msra.mxu0 0
  %2610 = vmatprep.subr.bf16.mxu0 0
  %2611 = vmatpush2.bf16.msra.mxu0 0
  %2612 = vmatprep.subr.bf16.mxu0 0
  %2613 = vmatpush2.bf16.msra.mxu0 0
  %2614 = vmatprep.subr.bf16.mxu0 0
  %2615 = vmatpush2.bf16.msra.mxu0 0
  %2616 = vmatprep.subr.bf16.mxu0 0
  %2617 = vmatpush2.bf16.msra.mxu0 0
  %2618 = vmatprep.subr.bf16.mxu0 0
  %2619 = vmatpush2.bf16.msra.mxu0 0
  %2620 = vmatprep.subr.bf16.mxu0 0
  %2621 = vmatpush2.bf16.msra.mxu0 0
  %2622 = vmatprep.subr.bf16.mxu0 0
  %2623 = vmatpush2.bf16.msra.mxu0 0
  %2624 = vmatprep.mubr.bf16.mxu0 0
  %2625 = vmatmul.mubr.bf16.gmra.mxu0 %v460
  %v2626 = vpop.f32.mrf.mxu0
  %v2627 = vadd.f32 %v2584, %v2626
  %v2628 = vpop.f32.mrf.mxu0
  %v2629 = vadd.f32 %v2586, %v2628
  %v2630 = vpop.f32.mrf.mxu0
  %v2631 = vadd.f32 %v2588, %v2630
  %v2632 = vpop.f32.mrf.mxu0
  %v2633 = vadd.f32 %v2590, %v2632
  %2634 = vdwg.mxu0
  %v2635 = vld [vmem:[%s2] sm:$0x3]
  %v2637 = vlaneseq
  %v2638 = vshrl.u32 %v2637, 7
  %v2639 = vsub.s32 0, %v2638
  %v2640 = vrot.slane %v2635, %v2639
  %v2641 = vlaneseq
  %v2642 = vshrl.u32 %v2641, 7
  %v2643 = vsub.s32 1, %v2642
  %v2644 = vrot.slane %v2635, %v2643
  %v2647 = vmul.f32 %v2627, %v2640
  %v2648 = vmul.f32 %v2629, %v2644
  %v2649 = vmul.f32 %v2631, %v2640
  %v2650 = vmul.f32 %v2633, %v2644
  %v2651 = vld [vmem:[%s3] sm:$0x3]
  %v2653 = vlaneseq
  %v2654 = vshrl.u32 %v2653, 7
  %v2655 = vsub.s32 0, %v2654
  %v2656 = vrot.slane %v2651, %v2655
  %v2657 = vlaneseq
  %v2658 = vshrl.u32 %v2657, 7
  %v2659 = vsub.s32 1, %v2658
  %v2660 = vrot.slane %v2651, %v2659
  %v2663 = vadd.f32 %v2647, %v2656
  %v2664 = vadd.f32 %v2648, %v2660
  %v2665 = vadd.f32 %v2649, %v2656
  %v2666 = vadd.f32 %v2650, %v2660
  %v2667 = vmax.f32 %v2663, 0.0
  %v2668 = vmax.f32 %v2664, 0.0
  %v2669 = vmax.f32 %v2665, 0.0
  %v2670 = vmax.f32 %v2666, 0.0
  %v2671 = vpack.c.bf16 %v2669, %v2667
  %v2672 = vpack.c.bf16 %v2670, %v2668
  %v2675 = vunpack.c.l.b16 %v2671
  %v2676 = vunpack.c.l.b16 %v2672
  %v2677 = vunpack.c.h.b16 %v2671
  %v2678 = vunpack.c.h.b16 %v2672
  %v2679 = vpack.c.b16 %v2676, %v2675
  %v2680 = vpack.c.b16 %v2678, %v2677
  %2683 = vst [vmem:[%s4] sm:$0xff] %v2679
  %2684 = vst [vmem:[%s4 + $0x8] sm:$0xff] %v2680
  // Predicated region
  $region18: #{hrnet_forward.28} parent=0 // pred_check
    _
  $region19: #{hrnet_forward.28} parent=0 // pred_check_branch
    %2686 = sbr.rel (0) target = $region21
  $region20: #{hrnet_forward.28} parent=0 // pred_region
    _
  $region21: #{hrnet_forward.28} parent=0 // pred_fallthru
    _
  // Predicated region
  $region22: #{hrnet_forward.28} parent=0 // pred_check
    _
  $region23: #{hrnet_forward.28} parent=0 // pred_check_branch
    %2688 = sbr.rel (0) target = $region25
  $region24: #{hrnet_forward.28} parent=0 // pred_region
    _
  $region25: #{hrnet_forward.28} parent=0 // pred_fallthru
    _

</llo_original>
